<compile_context>
chip_gen: v5e
topology: v5e:2x2
jax: 0.10.0
libtpu: 0.0.40
codegen_flags: <defaults>
</compile_context>

<pallas_src>
import functools

import numpy as np

import jax
import jax.numpy as jnp
from jax.experimental import pallas as pl
from jax.experimental.pallas import tpu as pltpu


def _rup(x, m):
    return (x + m - 1) // m * m


# Phase ordering shared by the weight packer and the scatter builder.
_PHASES = tuple((pr, pc) for pr in range(2) for pc in range(2))  # p = 2*pr + pc


# ----------------------------------------------------------------------------
# Fused kernel: deconv1 -> interleave -> deconv2 -> interleave -> conv3x3,
# everything in VMEM, one grid step per batch element.
# ----------------------------------------------------------------------------
def _fused_synthesis_kernel(x_ref, s0_ref,
                            w1_ref, b1_ref, s1_ref,
                            w2_ref, b2_ref, s2_ref,
                            w3_ref, b3_ref,
                            o_ref, *, N, KP, layer_dims):
    (Wp0, L0c), (Wp1, L1c), (Wp2, L2c) = layer_dims

    def im2col(act, Wp, Lc):
        # 3x3 taps on the flattened zero-padded grid (flat-shift trick); the
        # contraction dim is explicitly zero-padded to KP (128-aligned).
        # NOTE: Cin=8 (< bf16 sublane tile of 16) is acceptable at this size.
        taps = [act[:, a * Wp + c: a * Wp + c + Lc]
                for a in range(3) for c in range(3)]
        taps.append(jnp.zeros((KP - 9 * N, Lc), act.dtype))
        return jnp.concatenate(taps, axis=0)                      # (KP, Lc)

    def conv_relu(act, w_ref, b_ref, Wp, Lc):
        patches = im2col(act, Wp, Lc)                             # bf16
        h = jnp.dot(w_ref[...], patches,                          # single MXU matmul
                    preferred_element_type=jnp.float32)           # (Ctot, Lc) f32
        return jnp.maximum(h + b_ref[...], 0.0)                   # bias + ReLU (f32)

    def interleave(h, s_ref):
        # Crop + 2x2 phase interleave + re-pad as four accumulated 0/1 scatter
        # matmuls (exact selection of bf16 values).  Output columns outside the
        # next padded grid (and its zero tail) are exactly zero.
        hb = h.astype(jnp.bfloat16)
        acc = jnp.dot(hb[0:N], s_ref[0], preferred_element_type=jnp.float32)
        for p in range(1, 4):
            acc = acc + jnp.dot(hb[p * N:(p + 1) * N], s_ref[p],
                                preferred_element_type=jnp.float32)
        return acc.astype(jnp.bfloat16)                           # (N, Lstore_next)

    x = x_ref[0]                                                  # (N, H*W) bf16
    # Zero-pad + flatten the input onto the lane axis (scatter matmul, exact).
    a0 = jnp.dot(x, s0_ref[...],
                 preferred_element_type=jnp.float32).astype(jnp.bfloat16)
    h1 = conv_relu(a0, w1_ref, b1_ref, Wp0, L0c)                  # deconv1 phases
    a1 = interleave(h1, s1_ref)                                   # (N, Ls1) bf16, VMEM only
    h2 = conv_relu(a1, w2_ref, b2_ref, Wp1, L1c)                  # deconv2 phases
    a2 = interleave(h2, s2_ref)                                   # (N, Ls2) bf16, VMEM only
    h3 = conv_relu(a2, w3_ref, b3_ref, Wp2, L2c)                  # final conv3x3 (M, L2c) f32
    o_ref[0] = h3.astype(o_ref.dtype)                             # lane-dense 128-aligned store


# ----------------------------------------------------------------------------
# Trace-time constant builders (run once under jit tracing; plain numpy/jnp).
# ----------------------------------------------------------------------------
def _pack_deconv_params(w_t, b, kp):
    """ConvTranspose2d(k=5, s=2, p=2, output_padding=1) -> four 3x3 phase filters
    packed as one (4*Cout, kp) matmul operand (phase-major rows; tap-major /
    Cin-minor cols; contraction dim zero-padded to kp)."""
    Cin, Cout, KH, KW = w_t.shape                     # (Cin, Cout, 5, 5)
    rows = []
    for pr, pc in _PHASES:
        cols = []
        for a in range(3):
            kh = 4 + pr - 2 * a
            for c in range(3):
                kw = 4 + pc - 2 * c
                if 0 <= kh < KH and 0 <= kw < KW:
                    cols.append(jnp.transpose(w_t[:, :, kh, kw]))   # (Cout, Cin)
                else:
                    cols.append(jnp.zeros((Cout, Cin), w_t.dtype))  # zero tap
        rows.append(jnp.concatenate(cols, axis=1))                  # (Cout, 9*Cin)
    w_mat = jnp.concatenate(rows, axis=0)                           # (4*Cout, 9*Cin)
    w_mat = jnp.pad(w_mat, ((0, 0), (0, kp - w_mat.shape[1])))
    b_tot = jnp.tile(b, 4).reshape(4 * Cout, 1)                     # phase-major, matches rows
    return w_mat.astype(jnp.bfloat16), b_tot.astype(jnp.float32)


def _pack_conv_params(w, b, kp):
    """Conv2d(k=3, s=1, p=1) weights (Cout, Cin, 3, 3) -> (Cout, kp)."""
    Cout, Cin, KH, KW = w.shape
    cols = [w[:, :, a, c] for a in range(KH) for c in range(KW)]    # each (Cout, Cin)
    w_mat = jnp.concatenate(cols, axis=1)
    w_mat = jnp.pad(w_mat, ((0, 0), (0, kp - w_mat.shape[1])))
    return w_mat.astype(jnp.bfloat16), b.reshape(Cout, 1).astype(jnp.float32)


def _input_scatter(H, W, l_store):
    """Raw (H, W) image flat -> zero-padded (H+2, W+2) grid, flattened, zero tail."""
    Wp = W + 2
    S = np.zeros((H * W, l_store), np.float32)
    for y in range(H):
        for x in range(W):
            S[y * W + x, (y + 1) * Wp + (x + 1)] = 1.0
    return jnp.asarray(S, jnp.bfloat16)


def _phase_scatter(Hs, Ws, l_src, l_store):
    """Four (Hs, Ws) phase images (conv-output flat convention on a padded grid of
    width Ws+2) -> 2x2 interleaved (2Hs, 2Ws) image, zero-padded by 1, flattened
    into an l_store-wide slab with zero tail."""
    wp_src = Ws + 2
    wp_dst = 2 * Ws + 2
    S = np.zeros((4, l_src, l_store), np.float32)
    for ri in range(2 * Hs):
        for ci in range(2 * Ws):
            p = (ri % 2) * 2 + (ci % 2)               # matches _PHASES order
            k = (ri // 2) * wp_src + (ci // 2)        # source conv-output flat index
            dst = (ri + 1) * wp_dst + (ci + 1)        # padded destination flat index
            S[p, k, dst] = 1.0
    return jnp.asarray(S, jnp.bfloat16)


# ----------------------------------------------------------------------------
# Forward pass (single pallas_call + one output crop)
# ----------------------------------------------------------------------------
@jax.jit
def hyperprior_hyper_synthesis(x_nchw, params):
    B, N, H, W = x_nchw.shape
    M = params["w3"].shape[0]
    KP = _rup(9 * N, 128)                             # padded contraction dim

    # Per-layer padded-grid geometry (grid g feeds layer g+1's 3x3 taps).
    geo = []
    h, w = H, W
    for _ in range(3):
        hp, wp = h + 2, w + 2
        lc = _rup(hp * wp, 128)                       # conv-output width (lane-dense)
        ls = _rup(lc + 2 * wp + 2, 128)               # stored activation width (tap halo + tail)
        geo.append((hp, wp, lc, ls))
        h, w = 2 * h, 2 * w
    (_, Wp0, L0c, Ls0), (_, Wp1, L1c, Ls1), (_, Wp2, L2c, Ls2) = geo

    # Trace-time constants: packed weights + 0/1 scatter operators.
    w1, b1 = _pack_deconv_params(params["w1"], params["b1"], KP)
    w2, b2 = _pack_deconv_params(params["w2"], params["b2"], KP)
    w3, b3 = _pack_conv_params(params["w3"], params["b3"], KP)
    s0 = _input_scatter(H, W, Ls0)                    # (H*W, Ls0)
    s1 = _phase_scatter(H, W, L0c, Ls1)               # (4, L0c, Ls1)
    s2 = _phase_scatter(2 * H, 2 * W, L1c, Ls2)       # (4, L1c, Ls2)

    x_flat = x_nchw.reshape(B, N, H * W).astype(jnp.bfloat16)

    kernel = functools.partial(
        _fused_synthesis_kernel, N=N, KP=KP,
        layer_dims=((Wp0, L0c), (Wp1, L1c), (Wp2, L2c)))

    out_flat = pl.pallas_call(
        kernel,
        out_shape=jax.ShapeDtypeStruct((B, M, L2c), jnp.float32),
        grid_spec=pltpu.PrefetchScalarGridSpec(
            num_scalar_prefetch=0,
            grid=(B,),
            in_specs=[
                pl.BlockSpec((1, N, H * W), lambda b: (b, 0, 0)),   # x
                pl.BlockSpec(s0.shape, lambda b: (0, 0)),           # input scatter
                pl.BlockSpec(w1.shape, lambda b: (0, 0)),           # deconv1 weights
                pl.BlockSpec(b1.shape, lambda b: (0, 0)),
                pl.BlockSpec(s1.shape, lambda b: (0, 0, 0)),        # interleave 1
                pl.BlockSpec(w2.shape, lambda b: (0, 0)),           # deconv2 weights
                pl.BlockSpec(b2.shape, lambda b: (0, 0)),
                pl.BlockSpec(s2.shape, lambda b: (0, 0, 0)),        # interleave 2
                pl.BlockSpec(w3.shape, lambda b: (0, 0)),           # conv3x3 weights
                pl.BlockSpec(b3.shape, lambda b: (0, 0)),
            ],
            out_specs=pl.BlockSpec((1, M, L2c), lambda b: (b, 0, 0)),
        ),
        compiler_params=pltpu.CompilerParams(
            dimension_semantics=("parallel",),
            vmem_limit_bytes=32 * 1024 * 1024,
        ),
    )(x_flat, s0, w1, b1, s1, w2, b2, s2, w3, b3)

    # Final crop: padded-grid flat (M, L2c) -> (B, M, 4H, 4W).  This is the only
    # post-kernel data movement (on the final output, which has to hit HBM anyway).
    Ho, Wo = 4 * H, 4 * W
    out = out_flat[:, :, : Ho * Wp2].reshape(B, M, Ho, Wp2)[:, :, :, :Wo]
    return out


# ----------------------------------------------------------------------------
# Pure-JAX reference (lax convolutions, f32) for verification
# ----------------------------------------------------------------------------
def _ref_forward(x, params):
    def deconv(x, w_t, b):
        wc = jnp.transpose(w_t[:, :, ::-1, ::-1], (1, 0, 2, 3))  # (Cout, Cin, KH, KW)
        y = jax.lax.conv_general_dilated(
            x, wc, window_strides=(1, 1), padding=((2, 3), (2, 3)),
            lhs_dilation=(2, 2), dimension_numbers=("NCHW", "OIHW", "NCHW"))
        return jax.nn.relu(y + b[None, :, None, None])

    def conv3(x, w, b):
        y = jax.lax.conv_general_dilated(
            x, w, window_strides=(1, 1), padding=((1, 1), (1, 1)),
            dimension_numbers=("NCHW", "OIHW", "NCHW"))
        return jax.nn.relu(y + b[None, :, None, None])

    x = deconv(x, params["w1"], params["b1"])
    x = deconv(x, params["w2"], params["b2"])
    return conv3(x, params["w3"], params["b3"])


if __name__ == "__main__":
    N, M = 8, 16          # module hyperparameters
    B, H, W = 2, 8, 8     # small spatial input -> output (B, M, 32, 32)

    key = jax.random.PRNGKey(0)
    ks = jax.random.split(key, 7)
    params = {
        # ConvTranspose2d(N, N, 5, stride=2, padding=2, output_padding=1)
        "w1": jax.random.normal(ks[0], (N, N, 5, 5), jnp.float32) * 0.1,
        "b1": jax.random.normal(ks[1], (N,), jnp.float32) * 0.1,
        "w2": jax.random.normal(ks[2], (N, N, 5, 5), jnp.float32) * 0.1,
        "b2": jax.random.normal(ks[3], (N,), jnp.float32) * 0.1,
        # Conv2d(N, M, 3, stride=1, padding=1)
        "w3": jax.random.normal(ks[4], (M, N, 3, 3), jnp.float32) * 0.1,
        "b3": jax.random.normal(ks[5], (M,), jnp.float32) * 0.1,
    }
    x = jax.random.normal(ks[6], (B, N, H, W), jnp.float32)

    out = jax.block_until_ready(hyperprior_hyper_synthesis(x, params))
    assert out.shape == (B, M, 4 * H, 4 * W), out.shape

    ref = jax.block_until_ready(_ref_forward(x, params))
    # bf16 MXU operands / bf16 inter-layer activations (f32 accumulation) ->
    # loosened tolerance vs the f32 lax reference.
    max_err = float(jnp.max(jnp.abs(out - ref)))
    if not bool(jnp.allclose(out, ref, rtol=5e-2, atol=5e-2)):
        raise AssertionError(
            f"Pallas output does not match lax reference (max abs err = {max_err})")

    print("KERNEL_OK")
</pallas_src>

<mosaic_0001>
module attributes {stable_mosaic.version = 11 : i64} {
  func.func @_fused_synthesis_kernel(%arg0: i32, %arg1: memref<1x8x64xbf16, #tpu.memory_space<vmem>>, %arg2: memref<64x256xbf16, #tpu.memory_space<vmem>>, %arg3: memref<32x128xbf16, #tpu.memory_space<vmem>>, %arg4: memref<32x1xf32, #tpu.memory_space<vmem>>, %arg5: memref<4x128x512xbf16, #tpu.memory_space<vmem>>, %arg6: memref<32x128xbf16, #tpu.memory_space<vmem>>, %arg7: memref<32x1xf32, #tpu.memory_space<vmem>>, %arg8: memref<4x384x1408xbf16, #tpu.memory_space<vmem>>, %arg9: memref<16x128xbf16, #tpu.memory_space<vmem>>, %arg10: memref<16x1xf32, #tpu.memory_space<vmem>>, %arg11: memref<1x16x1280xf32, #tpu.memory_space<vmem>>) attributes {dimension_semantics = [#tpu.dimension_semantics<parallel>], iteration_bounds = array<i64: 2>, scalar_prefetch = 0 : i64, scratch_operands = 0 : i64, tpu.core_type = #tpu.core_type<tc>, window_params = [{transform_indices = @transform_0, window_bounds = array<i64: 1, 8, 64>}, {pipeline_mode = #tpu.pipeline_mode<synchronous>, transform_indices = @transform_1, window_bounds = array<i64: 64, 256>}, {pipeline_mode = #tpu.pipeline_mode<synchronous>, transform_indices = @transform_2, window_bounds = array<i64: 32, 128>}, {pipeline_mode = #tpu.pipeline_mode<synchronous>, transform_indices = @transform_3, window_bounds = array<i64: 32, 1>}, {pipeline_mode = #tpu.pipeline_mode<synchronous>, transform_indices = @transform_4, window_bounds = array<i64: 4, 128, 512>}, {pipeline_mode = #tpu.pipeline_mode<synchronous>, transform_indices = @transform_5, window_bounds = array<i64: 32, 128>}, {pipeline_mode = #tpu.pipeline_mode<synchronous>, transform_indices = @transform_6, window_bounds = array<i64: 32, 1>}, {pipeline_mode = #tpu.pipeline_mode<synchronous>, transform_indices = @transform_7, window_bounds = array<i64: 4, 384, 1408>}, {pipeline_mode = #tpu.pipeline_mode<synchronous>, transform_indices = @transform_8, window_bounds = array<i64: 16, 128>}, {pipeline_mode = #tpu.pipeline_mode<synchronous>, transform_indices = @transform_9, window_bounds = array<i64: 16, 1>}, {transform_indices = @transform_10, window_bounds = array<i64: 1, 16, 1280>}]} {
    %c0 = arith.constant 0 : index
    %c0_0 = arith.constant 0 : index
    %c0_1 = arith.constant 0 : index
    %0 = vector.load %arg1[%c0, %c0_0, %c0_1] : memref<1x8x64xbf16, #tpu.memory_space<vmem>>, vector<1x8x64xbf16>
    %1 = vector.shape_cast %0 : vector<1x8x64xbf16> to vector<8x64xbf16>
    %c0_2 = arith.constant 0 : index
    %c0_3 = arith.constant 0 : index
    %2 = vector.load %arg2[%c0_2, %c0_3] : memref<64x256xbf16, #tpu.memory_space<vmem>>, vector<64x256xbf16>
    %cst = arith.constant dense<0.000000e+00> : vector<8x256xf32>
    %3 = tpu.matmul %1, %2, %cst {dimension_numbers = #tpu.dot_dimension_numbers<[1], [0], [0], [1], [0, 0, 1, 1], [], []>} : vector<8x64xbf16>, vector<64x256xbf16>, vector<8x256xf32> -> vector<8x256xf32>
    %4 = arith.truncf %3 : vector<8x256xf32> to vector<8x256xbf16>
    %5 = vector.extract_strided_slice %4 {offsets = [0, 0], sizes = [8, 128], strides = [1, 1]} : vector<8x256xbf16> to vector<8x128xbf16>
    %6 = vector.extract_strided_slice %4 {offsets = [0, 1], sizes = [8, 128], strides = [1, 1]} : vector<8x256xbf16> to vector<8x128xbf16>
    %7 = vector.extract_strided_slice %4 {offsets = [0, 2], sizes = [8, 128], strides = [1, 1]} : vector<8x256xbf16> to vector<8x128xbf16>
    %8 = vector.extract_strided_slice %4 {offsets = [0, 10], sizes = [8, 128], strides = [1, 1]} : vector<8x256xbf16> to vector<8x128xbf16>
    %9 = vector.extract_strided_slice %4 {offsets = [0, 11], sizes = [8, 128], strides = [1, 1]} : vector<8x256xbf16> to vector<8x128xbf16>
    %10 = vector.extract_strided_slice %4 {offsets = [0, 12], sizes = [8, 128], strides = [1, 1]} : vector<8x256xbf16> to vector<8x128xbf16>
    %11 = vector.extract_strided_slice %4 {offsets = [0, 20], sizes = [8, 128], strides = [1, 1]} : vector<8x256xbf16> to vector<8x128xbf16>
    %12 = vector.extract_strided_slice %4 {offsets = [0, 21], sizes = [8, 128], strides = [1, 1]} : vector<8x256xbf16> to vector<8x128xbf16>
    %13 = vector.extract_strided_slice %4 {offsets = [0, 22], sizes = [8, 128], strides = [1, 1]} : vector<8x256xbf16> to vector<8x128xbf16>
    %cst_4 = arith.constant 0.000000e+00 : bf16
    %14 = vector.broadcast %cst_4 : bf16 to vector<56x128xbf16>
    %15 = tpu.concatenate %5, %6, %7, %8, %9, %10, %11, %12, %13, %14 in 0 : vector<8x128xbf16>, vector<8x128xbf16>, vector<8x128xbf16>, vector<8x128xbf16>, vector<8x128xbf16>, vector<8x128xbf16>, vector<8x128xbf16>, vector<8x128xbf16>, vector<8x128xbf16>, vector<56x128xbf16> -> vector<128x128xbf16>
    %c0_5 = arith.constant 0 : index
    %c0_6 = arith.constant 0 : index
    %16 = vector.load %arg3[%c0_5, %c0_6] : memref<32x128xbf16, #tpu.memory_space<vmem>>, vector<32x128xbf16>
    %cst_7 = arith.constant dense<0.000000e+00> : vector<32x128xf32>
    %17 = tpu.matmul %16, %15, %cst_7 {dimension_numbers = #tpu.dot_dimension_numbers<[1], [0], [0], [1], [0, 0, 1, 1], [], []>} : vector<32x128xbf16>, vector<128x128xbf16>, vector<32x128xf32> -> vector<32x128xf32>
    %c0_8 = arith.constant 0 : index
    %c0_9 = arith.constant 0 : index
    %18 = vector.load %arg4[%c0_8, %c0_9] : memref<32x1xf32, #tpu.memory_space<vmem>>, vector<32x1xf32>
    %19 = vector.broadcast %18 : vector<32x1xf32> to vector<32x128xf32>
    %20 = arith.addf %17, %19 : vector<32x128xf32>
    %cst_10 = arith.constant 0.000000e+00 : f32
    %21 = vector.broadcast %cst_10 : f32 to vector<32x128xf32>
    %22 = arith.maximumf %20, %21 : vector<32x128xf32>
    %23 = arith.truncf %22 : vector<32x128xf32> to vector<32x128xbf16>
    %24 = vector.extract_strided_slice %23 {offsets = [0, 0], sizes = [8, 128], strides = [1, 1]} : vector<32x128xbf16> to vector<8x128xbf16>
    %c0_11 = arith.constant 0 : index
    %c0_12 = arith.constant 0 : index
    %c0_13 = arith.constant 0 : index
    %25 = vector.load %arg5[%c0_11, %c0_12, %c0_13] : memref<4x128x512xbf16, #tpu.memory_space<vmem>>, vector<1x128x512xbf16>
    %26 = vector.shape_cast %25 : vector<1x128x512xbf16> to vector<128x512xbf16>
    %cst_14 = arith.constant dense<0.000000e+00> : vector<8x512xf32>
    %27 = tpu.matmul %24, %26, %cst_14 {dimension_numbers = #tpu.dot_dimension_numbers<[1], [0], [0], [1], [0, 0, 1, 1], [], []>} : vector<8x128xbf16>, vector<128x512xbf16>, vector<8x512xf32> -> vector<8x512xf32>
    %28 = vector.extract_strided_slice %23 {offsets = [8, 0], sizes = [8, 128], strides = [1, 1]} : vector<32x128xbf16> to vector<8x128xbf16>
    %c1 = arith.constant 1 : index
    %c0_15 = arith.constant 0 : index
    %c0_16 = arith.constant 0 : index
    %29 = vector.load %arg5[%c1, %c0_15, %c0_16] : memref<4x128x512xbf16, #tpu.memory_space<vmem>>, vector<1x128x512xbf16>
    %30 = vector.shape_cast %29 : vector<1x128x512xbf16> to vector<128x512xbf16>
    %cst_17 = arith.constant dense<0.000000e+00> : vector<8x512xf32>
    %31 = tpu.matmul %28, %30, %cst_17 {dimension_numbers = #tpu.dot_dimension_numbers<[1], [0], [0], [1], [0, 0, 1, 1], [], []>} : vector<8x128xbf16>, vector<128x512xbf16>, vector<8x512xf32> -> vector<8x512xf32>
    %32 = arith.addf %27, %31 : vector<8x512xf32>
    %33 = vector.extract_strided_slice %23 {offsets = [16, 0], sizes = [8, 128], strides = [1, 1]} : vector<32x128xbf16> to vector<8x128xbf16>
    %c2 = arith.constant 2 : index
    %c0_18 = arith.constant 0 : index
    %c0_19 = arith.constant 0 : index
    %34 = vector.load %arg5[%c2, %c0_18, %c0_19] : memref<4x128x512xbf16, #tpu.memory_space<vmem>>, vector<1x128x512xbf16>
    %35 = vector.shape_cast %34 : vector<1x128x512xbf16> to vector<128x512xbf16>
    %cst_20 = arith.constant dense<0.000000e+00> : vector<8x512xf32>
    %36 = tpu.matmul %33, %35, %cst_20 {dimension_numbers = #tpu.dot_dimension_numbers<[1], [0], [0], [1], [0, 0, 1, 1], [], []>} : vector<8x128xbf16>, vector<128x512xbf16>, vector<8x512xf32> -> vector<8x512xf32>
    %37 = arith.addf %32, %36 : vector<8x512xf32>
    %38 = vector.extract_strided_slice %23 {offsets = [24, 0], sizes = [8, 128], strides = [1, 1]} : vector<32x128xbf16> to vector<8x128xbf16>
    %c3 = arith.constant 3 : index
    %c0_21 = arith.constant 0 : index
    %c0_22 = arith.constant 0 : index
    %39 = vector.load %arg5[%c3, %c0_21, %c0_22] : memref<4x128x512xbf16, #tpu.memory_space<vmem>>, vector<1x128x512xbf16>
    %40 = vector.shape_cast %39 : vector<1x128x512xbf16> to vector<128x512xbf16>
    %cst_23 = arith.constant dense<0.000000e+00> : vector<8x512xf32>
    %41 = tpu.matmul %38, %40, %cst_23 {dimension_numbers = #tpu.dot_dimension_numbers<[1], [0], [0], [1], [0, 0, 1, 1], [], []>} : vector<8x128xbf16>, vector<128x512xbf16>, vector<8x512xf32> -> vector<8x512xf32>
    %42 = arith.addf %37, %41 : vector<8x512xf32>
    %43 = arith.truncf %42 : vector<8x512xf32> to vector<8x512xbf16>
    %44 = vector.extract_strided_slice %43 {offsets = [0, 0], sizes = [8, 384], strides = [1, 1]} : vector<8x512xbf16> to vector<8x384xbf16>
    %45 = vector.extract_strided_slice %43 {offsets = [0, 1], sizes = [8, 384], strides = [1, 1]} : vector<8x512xbf16> to vector<8x384xbf16>
    %46 = vector.extract_strided_slice %43 {offsets = [0, 2], sizes = [8, 384], strides = [1, 1]} : vector<8x512xbf16> to vector<8x384xbf16>
    %47 = vector.extract_strided_slice %43 {offsets = [0, 18], sizes = [8, 384], strides = [1, 1]} : vector<8x512xbf16> to vector<8x384xbf16>
    %48 = vector.extract_strided_slice %43 {offsets = [0, 19], sizes = [8, 384], strides = [1, 1]} : vector<8x512xbf16> to vector<8x384xbf16>
    %49 = vector.extract_strided_slice %43 {offsets = [0, 20], sizes = [8, 384], strides = [1, 1]} : vector<8x512xbf16> to vector<8x384xbf16>
    %50 = vector.extract_strided_slice %43 {offsets = [0, 36], sizes = [8, 384], strides = [1, 1]} : vector<8x512xbf16> to vector<8x384xbf16>
    %51 = vector.extract_strided_slice %43 {offsets = [0, 37], sizes = [8, 384], strides = [1, 1]} : vector<8x512xbf16> to vector<8x384xbf16>
    %52 = vector.extract_strided_slice %43 {offsets = [0, 38], sizes = [8, 384], strides = [1, 1]} : vector<8x512xbf16> to vector<8x384xbf16>
    %cst_24 = arith.constant 0.000000e+00 : bf16
    %53 = vector.broadcast %cst_24 : bf16 to vector<56x384xbf16>
    %54 = tpu.concatenate %44, %45, %46, %47, %48, %49, %50, %51, %52, %53 in 0 : vector<8x384xbf16>, vector<8x384xbf16>, vector<8x384xbf16>, vector<8x384xbf16>, vector<8x384xbf16>, vector<8x384xbf16>, vector<8x384xbf16>, vector<8x384xbf16>, vector<8x384xbf16>, vector<56x384xbf16> -> vector<128x384xbf16>
    %c0_25 = arith.constant 0 : index
    %c0_26 = arith.constant 0 : index
    %55 = vector.load %arg6[%c0_25, %c0_26] : memref<32x128xbf16, #tpu.memory_space<vmem>>, vector<32x128xbf16>
    %cst_27 = arith.constant dense<0.000000e+00> : vector<32x384xf32>
    %56 = tpu.matmul %55, %54, %cst_27 {dimension_numbers = #tpu.dot_dimension_numbers<[1], [0], [0], [1], [0, 0, 1, 1], [], []>} : vector<32x128xbf16>, vector<128x384xbf16>, vector<32x384xf32> -> vector<32x384xf32>
    %c0_28 = arith.constant 0 : index
    %c0_29 = arith.constant 0 : index
    %57 = vector.load %arg7[%c0_28, %c0_29] : memref<32x1xf32, #tpu.memory_space<vmem>>, vector<32x1xf32>
    %58 = vector.broadcast %57 : vector<32x1xf32> to vector<32x384xf32>
    %59 = arith.addf %56, %58 : vector<32x384xf32>
    %cst_30 = arith.constant 0.000000e+00 : f32
    %60 = vector.broadcast %cst_30 : f32 to vector<32x384xf32>
    %61 = arith.maximumf %59, %60 : vector<32x384xf32>
    %62 = arith.truncf %61 : vector<32x384xf32> to vector<32x384xbf16>
    %63 = vector.extract_strided_slice %62 {offsets = [0, 0], sizes = [8, 384], strides = [1, 1]} : vector<32x384xbf16> to vector<8x384xbf16>
    %c0_31 = arith.constant 0 : index
    %c0_32 = arith.constant 0 : index
    %c0_33 = arith.constant 0 : index
    %64 = vector.load %arg8[%c0_31, %c0_32, %c0_33] : memref<4x384x1408xbf16, #tpu.memory_space<vmem>>, vector<1x384x1408xbf16>
    %65 = vector.shape_cast %64 : vector<1x384x1408xbf16> to vector<384x1408xbf16>
    %cst_34 = arith.constant dense<0.000000e+00> : vector<8x1408xf32>
    %66 = tpu.matmul %63, %65, %cst_34 {dimension_numbers = #tpu.dot_dimension_numbers<[1], [0], [0], [1], [0, 0, 1, 1], [], []>} : vector<8x384xbf16>, vector<384x1408xbf16>, vector<8x1408xf32> -> vector<8x1408xf32>
    %67 = vector.extract_strided_slice %62 {offsets = [8, 0], sizes = [8, 384], strides = [1, 1]} : vector<32x384xbf16> to vector<8x384xbf16>
    %c1_35 = arith.constant 1 : index
    %c0_36 = arith.constant 0 : index
    %c0_37 = arith.constant 0 : index
    %68 = vector.load %arg8[%c1_35, %c0_36, %c0_37] : memref<4x384x1408xbf16, #tpu.memory_space<vmem>>, vector<1x384x1408xbf16>
    %69 = vector.shape_cast %68 : vector<1x384x1408xbf16> to vector<384x1408xbf16>
    %cst_38 = arith.constant dense<0.000000e+00> : vector<8x1408xf32>
    %70 = tpu.matmul %67, %69, %cst_38 {dimension_numbers = #tpu.dot_dimension_numbers<[1], [0], [0], [1], [0, 0, 1, 1], [], []>} : vector<8x384xbf16>, vector<384x1408xbf16>, vector<8x1408xf32> -> vector<8x1408xf32>
    %71 = arith.addf %66, %70 : vector<8x1408xf32>
    %72 = vector.extract_strided_slice %62 {offsets = [16, 0], sizes = [8, 384], strides = [1, 1]} : vector<32x384xbf16> to vector<8x384xbf16>
    %c2_39 = arith.constant 2 : index
    %c0_40 = arith.constant 0 : index
    %c0_41 = arith.constant 0 : index
    %73 = vector.load %arg8[%c2_39, %c0_40, %c0_41] : memref<4x384x1408xbf16, #tpu.memory_space<vmem>>, vector<1x384x1408xbf16>
    %74 = vector.shape_cast %73 : vector<1x384x1408xbf16> to vector<384x1408xbf16>
    %cst_42 = arith.constant dense<0.000000e+00> : vector<8x1408xf32>
    %75 = tpu.matmul %72, %74, %cst_42 {dimension_numbers = #tpu.dot_dimension_numbers<[1], [0], [0], [1], [0, 0, 1, 1], [], []>} : vector<8x384xbf16>, vector<384x1408xbf16>, vector<8x1408xf32> -> vector<8x1408xf32>
    %76 = arith.addf %71, %75 : vector<8x1408xf32>
    %77 = vector.extract_strided_slice %62 {offsets = [24, 0], sizes = [8, 384], strides = [1, 1]} : vector<32x384xbf16> to vector<8x384xbf16>
    %c3_43 = arith.constant 3 : index
    %c0_44 = arith.constant 0 : index
    %c0_45 = arith.constant 0 : index
    %78 = vector.load %arg8[%c3_43, %c0_44, %c0_45] : memref<4x384x1408xbf16, #tpu.memory_space<vmem>>, vector<1x384x1408xbf16>
    %79 = vector.shape_cast %78 : vector<1x384x1408xbf16> to vector<384x1408xbf16>
    %cst_46 = arith.constant dense<0.000000e+00> : vector<8x1408xf32>
    %80 = tpu.matmul %77, %79, %cst_46 {dimension_numbers = #tpu.dot_dimension_numbers<[1], [0], [0], [1], [0, 0, 1, 1], [], []>} : vector<8x384xbf16>, vector<384x1408xbf16>, vector<8x1408xf32> -> vector<8x1408xf32>
    %81 = arith.addf %76, %80 : vector<8x1408xf32>
    %82 = arith.truncf %81 : vector<8x1408xf32> to vector<8x1408xbf16>
    %83 = vector.extract_strided_slice %82 {offsets = [0, 0], sizes = [8, 1280], strides = [1, 1]} : vector<8x1408xbf16> to vector<8x1280xbf16>
    %84 = vector.extract_strided_slice %82 {offsets = [0, 1], sizes = [8, 1280], strides = [1, 1]} : vector<8x1408xbf16> to vector<8x1280xbf16>
    %85 = vector.extract_strided_slice %82 {offsets = [0, 2], sizes = [8, 1280], strides = [1, 1]} : vector<8x1408xbf16> to vector<8x1280xbf16>
    %86 = vector.extract_strided_slice %82 {offsets = [0, 34], sizes = [8, 1280], strides = [1, 1]} : vector<8x1408xbf16> to vector<8x1280xbf16>
    %87 = vector.extract_strided_slice %82 {offsets = [0, 35], sizes = [8, 1280], strides = [1, 1]} : vector<8x1408xbf16> to vector<8x1280xbf16>
    %88 = vector.extract_strided_slice %82 {offsets = [0, 36], sizes = [8, 1280], strides = [1, 1]} : vector<8x1408xbf16> to vector<8x1280xbf16>
    %89 = vector.extract_strided_slice %82 {offsets = [0, 68], sizes = [8, 1280], strides = [1, 1]} : vector<8x1408xbf16> to vector<8x1280xbf16>
    %90 = vector.extract_strided_slice %82 {offsets = [0, 69], sizes = [8, 1280], strides = [1, 1]} : vector<8x1408xbf16> to vector<8x1280xbf16>
    %91 = vector.extract_strided_slice %82 {offsets = [0, 70], sizes = [8, 1280], strides = [1, 1]} : vector<8x1408xbf16> to vector<8x1280xbf16>
    %cst_47 = arith.constant 0.000000e+00 : bf16
    %92 = vector.broadcast %cst_47 : bf16 to vector<56x1280xbf16>
    %93 = tpu.concatenate %83, %84, %85, %86, %87, %88, %89, %90, %91, %92 in 0 : vector<8x1280xbf16>, vector<8x1280xbf16>, vector<8x1280xbf16>, vector<8x1280xbf16>, vector<8x1280xbf16>, vector<8x1280xbf16>, vector<8x1280xbf16>, vector<8x1280xbf16>, vector<8x1280xbf16>, vector<56x1280xbf16> -> vector<128x1280xbf16>
    %c0_48 = arith.constant 0 : index
    %c0_49 = arith.constant 0 : index
    %94 = vector.load %arg9[%c0_48, %c0_49] : memref<16x128xbf16, #tpu.memory_space<vmem>>, vector<16x128xbf16>
    %cst_50 = arith.constant dense<0.000000e+00> : vector<16x1280xf32>
    %95 = tpu.matmul %94, %93, %cst_50 {dimension_numbers = #tpu.dot_dimension_numbers<[1], [0], [0], [1], [0, 0, 1, 1], [], []>} : vector<16x128xbf16>, vector<128x1280xbf16>, vector<16x1280xf32> -> vector<16x1280xf32>
    %c0_51 = arith.constant 0 : index
    %c0_52 = arith.constant 0 : index
    %96 = vector.load %arg10[%c0_51, %c0_52] : memref<16x1xf32, #tpu.memory_space<vmem>>, vector<16x1xf32>
    %97 = vector.broadcast %96 : vector<16x1xf32> to vector<16x1280xf32>
    %98 = arith.addf %95, %97 : vector<16x1280xf32>
    %cst_53 = arith.constant 0.000000e+00 : f32
    %99 = vector.broadcast %cst_53 : f32 to vector<16x1280xf32>
    %100 = arith.maximumf %98, %99 : vector<16x1280xf32>
    %c0_54 = arith.constant 0 : index
    %c0_55 = arith.constant 0 : index
    %c0_56 = arith.constant 0 : index
    %101 = vector.load %arg11[%c0_54, %c0_55, %c0_56] : memref<1x16x1280xf32, #tpu.memory_space<vmem>>, vector<1x16x1280xf32>
    %102 = vector.shape_cast %101 : vector<1x16x1280xf32> to vector<16x1280xf32>
    %103 = vector.shape_cast %100 : vector<16x1280xf32> to vector<1x16x1280xf32>
    tpu.vector_store %arg11[%c0_54, %c0_55, %c0_56], %103 {strides = array<i32>} : memref<1x16x1280xf32, #tpu.memory_space<vmem>>, vector<1x16x1280xf32>,
    return
  }
  func.func @transform_0(%arg0: i32) -> (i32, i32, i32) {
    %c0_i32 = arith.constant 0 : i32
    %c0_i32_0 = arith.constant 0 : i32
    %c0_i32_1 = arith.constant 0 : i32
    return %arg0, %c0_i32, %c0_i32_0 : i32, i32, i32
  }
  func.func @transform_1(%arg0: i32) -> (i32, i32) {
    %c0_i32 = arith.constant 0 : i32
    %c0_i32_0 = arith.constant 0 : i32
    %c0_i32_1 = arith.constant 0 : i32
    return %c0_i32, %c0_i32_0 : i32, i32
  }
  func.func @transform_2(%arg0: i32) -> (i32, i32) {
    %c0_i32 = arith.constant 0 : i32
    %c0_i32_0 = arith.constant 0 : i32
    %c0_i32_1 = arith.constant 0 : i32
    return %c0_i32, %c0_i32_0 : i32, i32
  }
  func.func @transform_3(%arg0: i32) -> (i32, i32) {
    %c0_i32 = arith.constant 0 : i32
    %c0_i32_0 = arith.constant 0 : i32
    %c0_i32_1 = arith.constant 0 : i32
    return %c0_i32, %c0_i32_0 : i32, i32
  }
  func.func @transform_4(%arg0: i32) -> (i32, i32, i32) {
    %c0_i32 = arith.constant 0 : i32
    %c0_i32_0 = arith.constant 0 : i32
    %c0_i32_1 = arith.constant 0 : i32
    %c0_i32_2 = arith.constant 0 : i32
    return %c0_i32, %c0_i32_0, %c0_i32_1 : i32, i32, i32
  }
  func.func @transform_5(%arg0: i32) -> (i32, i32) {
    %c0_i32 = arith.constant 0 : i32
    %c0_i32_0 = arith.constant 0 : i32
    %c0_i32_1 = arith.constant 0 : i32
    return %c0_i32, %c0_i32_0 : i32, i32
  }
  func.func @transform_6(%arg0: i32) -> (i32, i32) {
    %c0_i32 = arith.constant 0 : i32
    %c0_i32_0 = arith.constant 0 : i32
    %c0_i32_1 = arith.constant 0 : i32
    return %c0_i32, %c0_i32_0 : i32, i32
  }
  func.func @transform_7(%arg0: i32) -> (i32, i32, i32) {
    %c0_i32 = arith.constant 0 : i32
    %c0_i32_0 = arith.constant 0 : i32
    %c0_i32_1 = arith.constant 0 : i32
    %c0_i32_2 = arith.constant 0 : i32
    return %c0_i32, %c0_i32_0, %c0_i32_1 : i32, i32, i32
  }
  func.func @transform_8(%arg0: i32) -> (i32, i32) {
    %c0_i32 = arith.constant 0 : i32
    %c0_i32_0 = arith.constant 0 : i32
    %c0_i32_1 = arith.constant 0 : i32
    return %c0_i32, %c0_i32_0 : i32, i32
  }
  func.func @transform_9(%arg0: i32) -> (i32, i32) {
    %c0_i32 = arith.constant 0 : i32
    %c0_i32_0 = arith.constant 0 : i32
    %c0_i32_1 = arith.constant 0 : i32
    return %c0_i32, %c0_i32_0 : i32, i32
  }
  func.func @transform_10(%arg0: i32) -> (i32, i32, i32) {
    %c0_i32 = arith.constant 0 : i32
    %c0_i32_0 = arith.constant 0 : i32
    %c0_i32_1 = arith.constant 0 : i32
    return %arg0, %c0_i32, %c0_i32_0 : i32, i32, i32
  }
}

</mosaic_0001>

<llo_original>
// kernel: tile.1
$region0: #{tile.1}
  %s0 = inlined_call_operand.vmem [shape: f32[4,8], index: 0, kind: input, shape index: {}]
  %s1 = inlined_call_operand.vmem [shape: f32[32,1], index: 1, kind: output, shape index: {}]
  $region1: #{tile.1} parent=0
    #allocation0 [shape = 'u8[4096]{0}', space=vmem, size = 0x1000, scoped, tag = 'scoped mem for input reshape']
    %s3 = ssub.s32 16, 1
    %v4 = vld [vmem:[%s0] sm:%s3]
    %5 = vst [vmem:[#allocation0] sm:%s3] %v4
    %v6 = vld [vmem:[#allocation0] sm:$0xf]
    %vm7 = vcmask 7168
    %8 = vst.msk [vmem:[%s1] ss:$8 sm:$0xf] %vm7, %v6
    %v9 = vld [vmem:[#allocation0] sm:$0xf]
    %10 = vrot.lane.b32.xlu0 %v9, 127
    %v11 = vpop.permute.xlu0 %10
    %vm12 = vcmask 7168
    %s13 = scalar_lea.vmem %s1, 1
    %14 = vst.msk [vmem:[%s13] ss:$8 sm:$0xf] %vm12, %v11
    %v15 = vld [vmem:[#allocation0] sm:$0xf]
    %16 = vrot.lane.b32.xlu0 %v15, 126
    %v17 = vpop.permute.xlu0 %16
    %vm18 = vcmask 7168
    %s19 = scalar_lea.vmem %s1, 2
    %20 = vst.msk [vmem:[%s19] ss:$8 sm:$0xf] %vm18, %v17
    %v21 = vld [vmem:[#allocation0] sm:$0xf]
    %22 = vrot.lane.b32.xlu0 %v21, 125
    %v23 = vpop.permute.xlu0 %22
    %vm24 = vcmask 7168
    %s25 = scalar_lea.vmem %s1, 3
    %26 = vst.msk [vmem:[%s25] ss:$8 sm:$0xf] %vm24, %v23
    %v27 = vld [vmem:[#allocation0] sm:$0xf]
    %28 = vrot.lane.b32.xlu0 %v27, 124
    %v29 = vpop.permute.xlu0 %28
    %vm30 = vcmask 7168
    %s31 = scalar_lea.vmem %s1, 4
    %32 = vst.msk [vmem:[%s31] ss:$8 sm:$0xf] %vm30, %v29
    %v33 = vld [vmem:[#allocation0] sm:$0xf]
    %34 = vrot.lane.b32.xlu0 %v33, 123
    %v35 = vpop.permute.xlu0 %34
    %vm36 = vcmask 7168
    %s37 = scalar_lea.vmem %s1, 5
    %38 = vst.msk [vmem:[%s37] ss:$8 sm:$0xf] %vm36, %v35
    %v39 = vld [vmem:[#allocation0] sm:$0xf]
    %40 = vrot.lane.b32.xlu0 %v39, 122
    %v41 = vpop.permute.xlu0 %40
    %vm42 = vcmask 7168
    %s43 = scalar_lea.vmem %s1, 6
    %44 = vst.msk [vmem:[%s43] ss:$8 sm:$0xf] %vm42, %v41
    %v45 = vld [vmem:[#allocation0] sm:$0xf]
    %46 = vrot.lane.b32.xlu0 %v45, 121
    %v47 = vpop.permute.xlu0 %46
    %vm48 = vcmask 7168
    %s49 = scalar_lea.vmem %s1, 7
    %50 = vst.msk [vmem:[%s49] ss:$8 sm:$0xf] %vm48, %v47

// kernel: tile.13
$region0: #{tile.13}
  #allocation2 [shape = 's32[1]{0}', space=sflag, size = 0x4, scoped, tag = 'scoped memory for tile.13']
  %s0 = inlined_call_operand.hbm [shape: f32[8], index: 0, kind: input, shape index: {}]
  %s1 = inlined_call_operand.vmem [shape: f32[4,8], index: 1, kind: output, shape index: {}]
  $region1: #{tile.13} parent=0
    #allocation0 [shape = 'u8[512]{0}', space=vmem, size = 0x400, scoped, tag = 'operand span for operand 0']
    #allocation1 [shape = 's32[1]{0}', space=sflag, size = 0x4, scoped, tag = 'scoped memory for tile.13']
    %2 = vsyncpa [#allocation1], 0
    // Predicated region
    $region2: #{tile.13} parent=1 // pred_check
      _
    $region3: #{tile.13} parent=1 // pred_check_branch
      %4 = sbr.rel (0) target = $region5
    $region4: #{tile.13} parent=1 // pred_region
      %6 = vsyncadd [#allocation1], 0
      %s8 = sshll.u32 %s0, 4
      %s9 = int_to_ptr.hbm [resolvable:$true] %s8
      %s10 = sshll.u32 [#allocation0], 4
      %s11 = int_to_ptr.vmem [resolvable:$true] %s10
      %13 = dma.hbm_to_vmem [thread:$0]  %s9, 16, %s11, [#allocation1]
    $region5: #{tile.13} parent=1 // pred_fallthru
      _
    // Predicated region
    $region6: #{tile.13} parent=1 // pred_check
      _
    $region7: #{tile.13} parent=1 // pred_check_branch
      %15 = sbr.rel (0) target = $region9
    $region8: #{tile.13} parent=1 // pred_region
      %17 = dma.done [#allocation1], 16
    $region9: #{tile.13} parent=1 // pred_fallthru
      _
    %v18 = vld [vmem:[#allocation0] ss:$0 sm:$0xff]
    %19 = vst [vmem:[%s1] sm:$0xf] %v18
    %20 = vsyncpa [#allocation1], 1

// kernel: hyperprior_hyper_synthesis.1
$region0: #{hyperprior_hyper_synthesis.1}
  #allocation0 [shape = 'u32[]', space=smem, size = 0x4, offset = 0x4, fixed_abs, tag = 'smem constant byte address 0x4 - core index']
  #allocation1 [shape = 'u32[72,128]{1,0:T(1,128)}', space=vmem, size = 0x9000, scoped, tag = 'internal scratch']
  %s0 = inlined_call_operand.vmem [shape: bf16[2,8,64], index: 0, kind: input, shape index: {}]
  %s1 = inlined_call_operand.hbm [shape: bf16[64,256], index: 1, kind: input, shape index: {}]
  %s2 = inlined_call_operand.vmem [shape: bf16[32,128], index: 2, kind: input, shape index: {}]
  %s3 = inlined_call_operand.vmem [shape: f32[32,1], index: 3, kind: input, shape index: {}]
  %s4 = inlined_call_operand.hbm [shape: bf16[4,128,512], index: 4, kind: input, shape index: {}]
  %s5 = inlined_call_operand.vmem [shape: bf16[32,128], index: 5, kind: input, shape index: {}]
  %s6 = inlined_call_operand.vmem [shape: f32[32,1], index: 6, kind: input, shape index: {}]
  %s7 = inlined_call_operand.hbm [shape: bf16[4,384,1408], index: 7, kind: input, shape index: {}]
  %s8 = inlined_call_operand.vmem [shape: bf16[16,128], index: 8, kind: input, shape index: {}]
  %s9 = inlined_call_operand.vmem [shape: f32[16,1], index: 9, kind: input, shape index: {}]
  %s10 = inlined_call_operand.vmem [shape: f32[2,16,1280], index: 10, kind: output, shape index: {}]
  %s11 = sld [smem:[#allocation0]]
  $region85: #{hyperprior_hyper_synthesis.1} parent=0
    _
  %s13 = ssub.s32 1, %s11
  %s14 = scalar_select 0, %s13, %s11
  $region1: #{hyperprior_hyper_synthesis.1} parent=0
    #allocation2 [shape = 'u8[32768]{0}', space=vmem, size = 0x8000, scoped, tag = 'input window, operand 1, single buffered']
    #allocation3 [shape = 's32[2]{0}', space=sflag, size = 0x8, scoped, tag = 'scoped memory for hyperprior_hyper_synthesis.1']
    #allocation4 [shape = 'u8[524288]{0}', space=vmem, size = 0x80000, scoped, tag = 'input window, operand 4, single buffered']
    #allocation5 [shape = 's32[1]{0}', space=sflag, size = 0x4, scoped, tag = 'scoped memory for hyperprior_hyper_synthesis.1']
    #allocation6 [shape = 'u8[4325376]{0}', space=vmem, size = 0x420000, scoped, tag = 'input window, operand 7, single buffered']
    %15 = vsyncpa [#allocation3], 0
    %16 = vsyncpa [#allocation5], 0
    loop: start=0, step=1, limit=4
    $region2: #{hyperprior_hyper_synthesis.1} parent=1 // loop_pre_header
      _
    $region3: #{hyperprior_hyper_synthesis.1} parent=1 // loop_header
      %s18 = sphi 0, %s22
      %p19 = scmp.ge.s32.totalorder %s18, 4
      %s28 = sphi 0, %s30
      %s31 = sphi 0, %s28
      %s32 = sphi 0, %s31
      %s48 = sphi 0, %s32
      %s52 = sphi 0, %s52
      %s54 = sphi 0, %s52
      %s55 = sphi 0, %s54
      %s69 = sphi 0, %s55
      %s73 = sphi 0, %s73
      %s75 = sphi 0, %s73
      %s76 = sphi 0, %s75
      %s90 = sphi 0, %s76
      %s94 = sphi 0, %s94
      %s96 = sphi 0, %s94
      %s97 = sphi 0, %s96
      %s111 = sphi 0, %s97
      %s115 = sphi 0, %s115
      %s117 = sphi 0, %s115
      %s118 = sphi 0, %s117
      %s132 = sphi 0, %s118
      %s136 = sphi 0, %s136
      %s138 = sphi 0, %s136
      %s139 = sphi 0, %s138
      %s153 = sphi 0, %s139
      %s157 = sphi 0, %s157
      %s159 = sphi 0, %s157
      %s160 = sphi 0, %s159
      %s174 = sphi 0, %s160
      %s178 = sphi 0, %s178
      %s180 = sphi 0, %s178
      %s181 = sphi 0, %s180
      %s195 = sphi 0, %s181
      %s199 = sphi 0, %s199
      %s201 = sphi 0, %s199
      %s202 = sphi 0, %s201
      %s216 = sphi 0, %s202
      %s220 = sphi 0, %s220
      %s222 = sphi 0, %s220
      %s223 = sphi 0, %s222
      %s237 = sphi 0, %s223
      %s243 = sphi 0, %s245
      %s246 = sphi 0, %s243
      %s247 = sphi 0, %s246
      %s263 = sphi 0, %s247
    $region4: #{hyperprior_hyper_synthesis.1} parent=1 // loop_header_branch
      %21 = sbr.rel (%p19) target = $region8
    $region5: #{hyperprior_hyper_synthesis.1} parent=1 // loop_body
      %s23 = ssub.s32 %s18, 1
      %s24 = ssub.s32 %s18, 2
      %s25 = sadd.s32 %s18, 1
      %s26 = ssub.s32 %s18, %s25
      %p27 = scmp.eq.s32.totalorder %s26, 0
      %s29 = sadd.s32 %s28, 1
      %s30 = scalar_select %p27, %s28, %s29
      %p33 = pneg %p27
      %p34 = scmp.eq.s32.totalorder %s18, 1
      %p35 = por %p33, %p34
      %p36 = scmp.ne.s32.totalorder %s28, %s31
      %p37 = scmp.eq.s32.totalorder %s18, 0
      %p38 = por %p36, %p37
      %p39 = scmp.ne.s32.totalorder %s28, %s31
      %p40 = scmp.eq.s32.totalorder %s23, 1
      %p41 = por %p39, %p40
      %p42 = scmp.ne.s32.totalorder %s31, %s32
      %p43 = scmp.eq.s32.totalorder %s23, 0
      %p44 = por %p42, %p43
      %p45 = scmp.ne.s32.totalorder %s31, %s32
      %p46 = scmp.eq.s32.totalorder %s24, 1
      %p47 = por %p45, %p46
      %p49 = scmp.ne.s32.totalorder %s32, %s48
      %p50 = scmp.eq.s32.totalorder %s24, 0
      %p51 = por %p49, %p50
      %s53 = sadd.s32 %s52, 1
      %p56 = scmp.eq.s32.totalorder %s18, 1
      %p57 = scmp.ne.s32.totalorder %s52, %s54
      %p58 = scmp.eq.s32.totalorder %s18, 0
      %p59 = por %p57, %p58
      %p60 = scmp.ne.s32.totalorder %s52, %s54
      %p61 = scmp.eq.s32.totalorder %s23, 1
      %p62 = por %p60, %p61
      %p63 = scmp.ne.s32.totalorder %s54, %s55
      %p64 = scmp.eq.s32.totalorder %s23, 0
      %p65 = por %p63, %p64
      %p66 = scmp.ne.s32.totalorder %s54, %s55
      %p67 = scmp.eq.s32.totalorder %s24, 1
      %p68 = por %p66, %p67
      %p70 = scmp.ne.s32.totalorder %s55, %s69
      %p71 = scmp.eq.s32.totalorder %s24, 0
      %p72 = por %p70, %p71
      %s74 = sadd.s32 %s73, 1
      %p77 = scmp.eq.s32.totalorder %s18, 1
      %p78 = scmp.ne.s32.totalorder %s73, %s75
      %p79 = scmp.eq.s32.totalorder %s18, 0
      %p80 = por %p78, %p79
      %p81 = scmp.ne.s32.totalorder %s73, %s75
      %p82 = scmp.eq.s32.totalorder %s23, 1
      %p83 = por %p81, %p82
      %p84 = scmp.ne.s32.totalorder %s75, %s76
      %p85 = scmp.eq.s32.totalorder %s23, 0
      %p86 = por %p84, %p85
      %p87 = scmp.ne.s32.totalorder %s75, %s76
      %p88 = scmp.eq.s32.totalorder %s24, 1
      %p89 = por %p87, %p88
      %p91 = scmp.ne.s32.totalorder %s76, %s90
      %p92 = scmp.eq.s32.totalorder %s24, 0
      %p93 = por %p91, %p92
      %s95 = sadd.s32 %s94, 1
      %p98 = scmp.eq.s32.totalorder %s18, 1
      %p99 = scmp.ne.s32.totalorder %s94, %s96
      %p100 = scmp.eq.s32.totalorder %s18, 0
      %p101 = por %p99, %p100
      %p102 = scmp.ne.s32.totalorder %s94, %s96
      %p103 = scmp.eq.s32.totalorder %s23, 1
      %p104 = por %p102, %p103
      %p105 = scmp.ne.s32.totalorder %s96, %s97
      %p106 = scmp.eq.s32.totalorder %s23, 0
      %p107 = por %p105, %p106
      %p108 = scmp.ne.s32.totalorder %s96, %s97
      %p109 = scmp.eq.s32.totalorder %s24, 1
      %p110 = por %p108, %p109
      %p112 = scmp.ne.s32.totalorder %s97, %s111
      %p113 = scmp.eq.s32.totalorder %s24, 0
      %p114 = por %p112, %p113
      %s116 = sadd.s32 %s115, 1
      %p119 = scmp.eq.s32.totalorder %s18, 1
      %p120 = scmp.ne.s32.totalorder %s115, %s117
      %p121 = scmp.eq.s32.totalorder %s18, 0
      %p122 = por %p120, %p121
      %p123 = scmp.ne.s32.totalorder %s115, %s117
      %p124 = scmp.eq.s32.totalorder %s23, 1
      %p125 = por %p123, %p124
      %p126 = scmp.ne.s32.totalorder %s117, %s118
      %p127 = scmp.eq.s32.totalorder %s23, 0
      %p128 = por %p126, %p127
      %p129 = scmp.ne.s32.totalorder %s117, %s118
      %p130 = scmp.eq.s32.totalorder %s24, 1
      %p131 = por %p129, %p130
      %p133 = scmp.ne.s32.totalorder %s118, %s132
      %p134 = scmp.eq.s32.totalorder %s24, 0
      %p135 = por %p133, %p134
      %s137 = sadd.s32 %s136, 1
      %p140 = scmp.eq.s32.totalorder %s18, 1
      %p141 = scmp.ne.s32.totalorder %s136, %s138
      %p142 = scmp.eq.s32.totalorder %s18, 0
      %p143 = por %p141, %p142
      %p144 = scmp.ne.s32.totalorder %s136, %s138
      %p145 = scmp.eq.s32.totalorder %s23, 1
      %p146 = por %p144, %p145
      %p147 = scmp.ne.s32.totalorder %s138, %s139
      %p148 = scmp.eq.s32.totalorder %s23, 0
      %p149 = por %p147, %p148
      %p150 = scmp.ne.s32.totalorder %s138, %s139
      %p151 = scmp.eq.s32.totalorder %s24, 1
      %p152 = por %p150, %p151
      %p154 = scmp.ne.s32.totalorder %s139, %s153
      %p155 = scmp.eq.s32.totalorder %s24, 0
      %p156 = por %p154, %p155
      %s158 = sadd.s32 %s157, 1
      %p161 = scmp.eq.s32.totalorder %s18, 1
      %p162 = scmp.ne.s32.totalorder %s157, %s159
      %p163 = scmp.eq.s32.totalorder %s18, 0
      %p164 = por %p162, %p163
      %p165 = scmp.ne.s32.totalorder %s157, %s159
      %p166 = scmp.eq.s32.totalorder %s23, 1
      %p167 = por %p165, %p166
      %p168 = scmp.ne.s32.totalorder %s159, %s160
      %p169 = scmp.eq.s32.totalorder %s23, 0
      %p170 = por %p168, %p169
      %p171 = scmp.ne.s32.totalorder %s159, %s160
      %p172 = scmp.eq.s32.totalorder %s24, 1
      %p173 = por %p171, %p172
      %p175 = scmp.ne.s32.totalorder %s160, %s174
      %p176 = scmp.eq.s32.totalorder %s24, 0
      %p177 = por %p175, %p176
      %s179 = sadd.s32 %s178, 1
      %p182 = scmp.eq.s32.totalorder %s18, 1
      %p183 = scmp.ne.s32.totalorder %s178, %s180
      %p184 = scmp.eq.s32.totalorder %s18, 0
      %p185 = por %p183, %p184
      %p186 = scmp.ne.s32.totalorder %s178, %s180
      %p187 = scmp.eq.s32.totalorder %s23, 1
      %p188 = por %p186, %p187
      %p189 = scmp.ne.s32.totalorder %s180, %s181
      %p190 = scmp.eq.s32.totalorder %s23, 0
      %p191 = por %p189, %p190
      %p192 = scmp.ne.s32.totalorder %s180, %s181
      %p193 = scmp.eq.s32.totalorder %s24, 1
      %p194 = por %p192, %p193
      %p196 = scmp.ne.s32.totalorder %s181, %s195
      %p197 = scmp.eq.s32.totalorder %s24, 0
      %p198 = por %p196, %p197
      %s200 = sadd.s32 %s199, 1
      %p203 = scmp.eq.s32.totalorder %s18, 1
      %p204 = scmp.ne.s32.totalorder %s199, %s201
      %p205 = scmp.eq.s32.totalorder %s18, 0
      %p206 = por %p204, %p205
      %p207 = scmp.ne.s32.totalorder %s199, %s201
      %p208 = scmp.eq.s32.totalorder %s23, 1
      %p209 = por %p207, %p208
      %p210 = scmp.ne.s32.totalorder %s201, %s202
      %p211 = scmp.eq.s32.totalorder %s23, 0
      %p212 = por %p210, %p211
      %p213 = scmp.ne.s32.totalorder %s201, %s202
      %p214 = scmp.eq.s32.totalorder %s24, 1
      %p215 = por %p213, %p214
      %p217 = scmp.ne.s32.totalorder %s202, %s216
      %p218 = scmp.eq.s32.totalorder %s24, 0
      %p219 = por %p217, %p218
      %s221 = sadd.s32 %s220, 1
      %p224 = scmp.eq.s32.totalorder %s18, 1
      %p225 = scmp.ne.s32.totalorder %s220, %s222
      %p226 = scmp.eq.s32.totalorder %s18, 0
      %p227 = por %p225, %p226
      %p228 = scmp.ne.s32.totalorder %s220, %s222
      %p229 = scmp.eq.s32.totalorder %s23, 1
      %p230 = por %p228, %p229
      %p231 = scmp.ne.s32.totalorder %s222, %s223
      %p232 = scmp.eq.s32.totalorder %s23, 0
      %p233 = por %p231, %p232
      %p234 = scmp.ne.s32.totalorder %s222, %s223
      %p235 = scmp.eq.s32.totalorder %s24, 1
      %p236 = por %p234, %p235
      %p238 = scmp.ne.s32.totalorder %s223, %s237
      %p239 = scmp.eq.s32.totalorder %s24, 0
      %p240 = por %p238, %p239
      %s241 = ssub.s32 %s18, %s25
      %p242 = scmp.eq.s32.totalorder %s241, 0
      %s244 = sadd.s32 %s243, 1
      %s245 = scalar_select %p242, %s243, %s244
      %p248 = pneg %p242
      %p249 = scmp.eq.s32.totalorder %s18, 1
      %p250 = por %p248, %p249
      %p251 = scmp.ne.s32.totalorder %s243, %s246
      %p252 = scmp.eq.s32.totalorder %s18, 0
      %p253 = por %p251, %p252
      %p254 = scmp.ne.s32.totalorder %s243, %s246
      %p255 = scmp.eq.s32.totalorder %s23, 1
      %p256 = por %p254, %p255
      %p257 = scmp.ne.s32.totalorder %s246, %s247
      %p258 = scmp.eq.s32.totalorder %s23, 0
      %p259 = por %p257, %p258
      %p260 = scmp.ne.s32.totalorder %s246, %s247
      %p261 = scmp.eq.s32.totalorder %s24, 1
      %p262 = por %p260, %p261
      %p264 = scmp.ne.s32.totalorder %s247, %s263
      %p265 = scmp.eq.s32.totalorder %s24, 0
      %p266 = por %p264, %p265
      %p267 = scmp.le.s32.totalorder 1, %s18
      %p268 = scmp.lt.s32.totalorder %s18, 3
      %p269 = pnand %p267, %p268
      %p270 = pneg %p269
      // Predicated region
      $region9: #{hyperprior_hyper_synthesis.1} parent=5 // pred_check
        _
      $region10: #{hyperprior_hyper_synthesis.1} parent=5 // pred_check_branch
        %272 = sbr.rel (%p269) target = $region12
      $region11: #{hyperprior_hyper_synthesis.1} parent=5 // pred_region
        %s273 = ssub.s32 %s18, 1
        // Predicated region
        $region13: #{hyperprior_hyper_synthesis.1} parent=11 // pred_check
          %p274 = pneg %p65
        $region14: #{hyperprior_hyper_synthesis.1} parent=11 // pred_check_branch
          %276 = sbr.rel (%p274) target = $region16
        $region15: #{hyperprior_hyper_synthesis.1} parent=11 // pred_region
          %278 = vsyncadd [#allocation3], 0
          %s279 = sshll.u32 %s1, 4
          %s280 = int_to_ptr.hbm [resolvable:$true] %s279
          %s281 = sshll.u32 [#allocation2], 4
          %s282 = int_to_ptr.vmem [resolvable:$true] %s281
          %287 = dma.hbm_to_vmem [thread:$0]  %s280, 1024, %s282, [#allocation3], 128, 128, 8
        $region16: #{hyperprior_hyper_synthesis.1} parent=11 // pred_fallthru
          _
        // Predicated region
        $region17: #{hyperprior_hyper_synthesis.1} parent=11 // pred_check
          %p288 = pneg %p86
        $region18: #{hyperprior_hyper_synthesis.1} parent=11 // pred_check_branch
          %290 = sbr.rel (%p288) target = $region20
        $region19: #{hyperprior_hyper_synthesis.1} parent=11 // pred_region
          _
        $region20: #{hyperprior_hyper_synthesis.1} parent=11 // pred_fallthru
          _
        // Predicated region
        $region21: #{hyperprior_hyper_synthesis.1} parent=11 // pred_check
          %p291 = pneg %p107
        $region22: #{hyperprior_hyper_synthesis.1} parent=11 // pred_check_branch
          %293 = sbr.rel (%p291) target = $region24
        $region23: #{hyperprior_hyper_synthesis.1} parent=11 // pred_region
          _
        $region24: #{hyperprior_hyper_synthesis.1} parent=11 // pred_fallthru
          _
        // Predicated region
        $region25: #{hyperprior_hyper_synthesis.1} parent=11 // pred_check
          %p294 = pneg %p128
        $region26: #{hyperprior_hyper_synthesis.1} parent=11 // pred_check_branch
          %296 = sbr.rel (%p294) target = $region28
        $region27: #{hyperprior_hyper_synthesis.1} parent=11 // pred_region
          %298 = vsyncadd [#allocation5], 0
          %s299 = sshll.u32 %s4, 4
          %s300 = int_to_ptr.hbm [resolvable:$true] %s299
          %s301 = sshll.u32 [#allocation4], 4
          %s302 = int_to_ptr.vmem [resolvable:$true] %s301
          %307 = dma.hbm_to_vmem [thread:$0]  %s300, 16384, %s302, [#allocation5], 256, 256, 16
        $region28: #{hyperprior_hyper_synthesis.1} parent=11 // pred_fallthru
          _
        // Predicated region
        $region29: #{hyperprior_hyper_synthesis.1} parent=11 // pred_check
          %p308 = pneg %p149
        $region30: #{hyperprior_hyper_synthesis.1} parent=11 // pred_check_branch
          %310 = sbr.rel (%p308) target = $region32
        $region31: #{hyperprior_hyper_synthesis.1} parent=11 // pred_region
          _
        $region32: #{hyperprior_hyper_synthesis.1} parent=11 // pred_fallthru
          _
        // Predicated region
        $region33: #{hyperprior_hyper_synthesis.1} parent=11 // pred_check
          %p311 = pneg %p170
        $region34: #{hyperprior_hyper_synthesis.1} parent=11 // pred_check_branch
          %313 = sbr.rel (%p311) target = $region36
        $region35: #{hyperprior_hyper_synthesis.1} parent=11 // pred_region
          _
        $region36: #{hyperprior_hyper_synthesis.1} parent=11 // pred_fallthru
          _
        // Predicated region
        $region37: #{hyperprior_hyper_synthesis.1} parent=11 // pred_check
          %p314 = pneg %p191
        $region38: #{hyperprior_hyper_synthesis.1} parent=11 // pred_check_branch
          %316 = sbr.rel (%p314) target = $region40
        $region39: #{hyperprior_hyper_synthesis.1} parent=11 // pred_region
          %318 = vsyncadd [#allocation5], 0
          %s319 = sshll.u32 %s7, 4
          %s320 = int_to_ptr.hbm [resolvable:$true] %s319
          %s321 = sshll.u32 [#allocation6], 4
          %s322 = int_to_ptr.vmem [resolvable:$true] %s321
          %327 = dma.hbm_to_vmem [thread:$0]  %s320, 135168, %s322, [#allocation5], 704, 704, 44
        $region40: #{hyperprior_hyper_synthesis.1} parent=11 // pred_fallthru
          _
        // Predicated region
        $region41: #{hyperprior_hyper_synthesis.1} parent=11 // pred_check
          %p328 = pneg %p212
        $region42: #{hyperprior_hyper_synthesis.1} parent=11 // pred_check_branch
          %330 = sbr.rel (%p328) target = $region44
        $region43: #{hyperprior_hyper_synthesis.1} parent=11 // pred_region
          _
        $region44: #{hyperprior_hyper_synthesis.1} parent=11 // pred_fallthru
          _
        // Predicated region
        $region45: #{hyperprior_hyper_synthesis.1} parent=11 // pred_check
          %p331 = pneg %p233
        $region46: #{hyperprior_hyper_synthesis.1} parent=11 // pred_check_branch
          %333 = sbr.rel (%p331) target = $region48
        $region47: #{hyperprior_hyper_synthesis.1} parent=11 // pred_region
          _
        $region48: #{hyperprior_hyper_synthesis.1} parent=11 // pred_fallthru
          _
      $region12: #{hyperprior_hyper_synthesis.1} parent=5 // pred_fallthru
        _
      %p334 = scmp.lt.s32.totalorder %s18, 2
      // Predicated region
      $region49: #{hyperprior_hyper_synthesis.1} parent=5 // pred_check
        %p335 = pneg %p334
      $region50: #{hyperprior_hyper_synthesis.1} parent=5 // pred_check_branch
        %337 = sbr.rel (%p335) target = $region52
      $region51: #{hyperprior_hyper_synthesis.1} parent=5 // pred_region
        // Predicated region
        $region53: #{hyperprior_hyper_synthesis.1} parent=51 // pred_check
          %p338 = pneg %p38
        $region54: #{hyperprior_hyper_synthesis.1} parent=51 // pred_check_branch
          %340 = sbr.rel (%p338) target = $region56
        $region55: #{hyperprior_hyper_synthesis.1} parent=51 // pred_region
          %p341 = scmp.lt.s32.totalorder %s18, 1
          %s342 = scalar_select %p341, %s18, 1
          %s343 = smul.addr %s342, 4
          %s344 = scalar_lea.vmem %s0, %s343
        $region56: #{hyperprior_hyper_synthesis.1} parent=51 // pred_fallthru
          _
      $region52: #{hyperprior_hyper_synthesis.1} parent=5 // pred_fallthru
        _
      %p345 = scmp.le.s32.totalorder 1, %s18
      %p346 = scmp.lt.s32.totalorder %s18, 3
      %p347 = pnand %p345, %p346
      %p348 = pneg %p347
      // Predicated region
      $region57: #{hyperprior_hyper_synthesis.1} parent=5 // pred_check
        _
      $region58: #{hyperprior_hyper_synthesis.1} parent=5 // pred_check_branch
        %350 = sbr.rel (%p347) target = $region60
      $region59: #{hyperprior_hyper_synthesis.1} parent=5 // pred_region
        %s351 = ssub.s32 %s18, 1
        // Predicated region
        $region61: #{hyperprior_hyper_synthesis.1} parent=59 // pred_check
          %p352 = pneg %p65
        $region62: #{hyperprior_hyper_synthesis.1} parent=59 // pred_check_branch
          %354 = sbr.rel (%p352) target = $region64
        $region63: #{hyperprior_hyper_synthesis.1} parent=59 // pred_region
          %356 = dma.done [#allocation3], 1024
        $region64: #{hyperprior_hyper_synthesis.1} parent=59 // pred_fallthru
          _
        // Predicated region
        $region65: #{hyperprior_hyper_synthesis.1} parent=59 // pred_check
          %p357 = pneg %p128
        $region66: #{hyperprior_hyper_synthesis.1} parent=59 // pred_check_branch
          %359 = sbr.rel (%p357) target = $region68
        $region67: #{hyperprior_hyper_synthesis.1} parent=59 // pred_region
          %361 = dma.done [#allocation5], 16384
        $region68: #{hyperprior_hyper_synthesis.1} parent=59 // pred_fallthru
          _
        // Predicated region
        $region69: #{hyperprior_hyper_synthesis.1} parent=59 // pred_check
          %p362 = pneg %p191
        $region70: #{hyperprior_hyper_synthesis.1} parent=59 // pred_check_branch
          %364 = sbr.rel (%p362) target = $region72
        $region71: #{hyperprior_hyper_synthesis.1} parent=59 // pred_region
          %366 = dma.done [#allocation5], 135168
        $region72: #{hyperprior_hyper_synthesis.1} parent=59 // pred_fallthru
          _
        %p367 = scmp.lt.s32.totalorder %s23, 1
        %s368 = scalar_select %p367, %s23, 1
        %s369 = smul.addr %s368, 4
        %s370 = scalar_lea.vmem %s0, %s369
        %p371 = pneg %p44
        %p372 = pneg %p41
        %p373 = pneg %p65
        %p374 = pneg %p62
        %p375 = pneg %p86
        %p376 = pneg %p83
        %p377 = pneg %p107
        %p378 = pneg %p104
        %p379 = pneg %p128
        %p380 = pneg %p125
        %p381 = pneg %p149
        %p382 = pneg %p146
        %p383 = pneg %p170
        %p384 = pneg %p167
        %p385 = pneg %p191
        %p386 = pneg %p188
        %p387 = pneg %p212
        %p388 = pneg %p209
        %p389 = pneg %p233
        %p390 = pneg %p230
        %p391 = pneg %p259
        %p392 = pneg %p256
        %p393 = scmp.lt.s32.totalorder %s23, 1
        %s394 = scalar_select %p393, %s23, 1
        %s395 = smul.addr %s394, 20
        %s396 = smul.addr %s395, 8
        %s397 = scalar_lea.vmem %s10, %s396
        %p398 = scmp.lt.s32.totalorder %s23, 1
        %s399 = scalar_select %p398, %s23, 1
        %s400 = smul.addr %s399, 4
        %s401 = scalar_lea.vmem %s0, %s400
        %p402 = scmp.lt.s32.totalorder %s23, 1
        %s403 = scalar_select %p402, %s23, 1
        %s404 = smul.addr %s403, 20
        %s405 = smul.addr %s404, 8
        %s406 = scalar_lea.vmem %s10, %s405
        %v408 = vld [vmem:[%s401] sm:$0xf]
        %v409 = vld [vmem:[#allocation2] sm:$0xff]
        %v410 = vld [vmem:[#allocation2 + $0x8] sm:$0xff]
        %v411 = vld [vmem:[#allocation2 + $0x10] sm:$0xff]
        %v412 = vld [vmem:[#allocation2 + $0x18] sm:$0xff]
        %v413 = vld [vmem:[#allocation2 + $0x20] sm:$0xff]
        %v414 = vld [vmem:[#allocation2 + $0x28] sm:$0xff]
        %v415 = vld [vmem:[#allocation2 + $0x30] sm:$0xff]
        %v416 = vld [vmem:[#allocation2 + $0x38] sm:$0xff]
        %v425 = vunpack.c.l.b16 %v409
        %v426 = vunpack.c.h.b16 %v409
        %v427 = vunpack.c.l.b16 %v410
        %v428 = vunpack.c.h.b16 %v410
        %v429 = vunpack.c.l.b16 %v411
        %v430 = vunpack.c.h.b16 %v411
        %v431 = vunpack.c.l.b16 %v412
        %v432 = vunpack.c.h.b16 %v412
        %v433 = vunpack.c.l.b16 %v413
        %v434 = vunpack.c.h.b16 %v413
        %v435 = vunpack.c.l.b16 %v414
        %v436 = vunpack.c.h.b16 %v414
        %v437 = vunpack.c.l.b16 %v415
        %v438 = vunpack.c.h.b16 %v415
        %v439 = vunpack.c.l.b16 %v416
        %v440 = vunpack.c.h.b16 %v416
        %v441 = vpack.c.b16 %v427, %v425
        %v442 = vpack.c.b16 %v428, %v426
        %v443 = vpack.c.b16 %v431, %v429
        %v444 = vpack.c.b16 %v432, %v430
        %v445 = vpack.c.b16 %v435, %v433
        %v446 = vpack.c.b16 %v436, %v434
        %v447 = vpack.c.b16 %v439, %v437
        %v448 = vpack.c.b16 %v440, %v438
        %vm457 = vcmask 523264
        %v459 = vsel %vm457, %v408, 0
        %461 = vmatpush.bf16.msra.mxu0 0
        %462 = vmatpush.bf16.msra.mxu0 0
        %463 = vmatpush.bf16.msra.mxu0 0
        %464 = vmatpush.bf16.msra.mxu0 0
        %465 = vmatpush.bf16.msra.mxu0 %v447
        %466 = vmatpush.bf16.msra.mxu0 %v445
        %467 = vmatpush.bf16.msra.mxu0 %v443
        %468 = vmatpush.bf16.msra.mxu0 %v441
        %469 = vmatmul.bf16.gmra.mxu0 %v459
        %v470 = vpop.f32.mrf.mxu0
        %v471 = vadd.f32 0.0, %v470
        %v472 = vpop.f32.mrf.mxu0
        %473 = vdwg.mxu0
        %474 = vmatpush.bf16.msra.mxu0 0
        %475 = vmatpush.bf16.msra.mxu0 0
        %476 = vmatpush.bf16.msra.mxu0 0
        %477 = vmatpush.bf16.msra.mxu0 0
        %478 = vmatpush.bf16.msra.mxu0 %v448
        %479 = vmatpush.bf16.msra.mxu0 %v446
        %480 = vmatpush.bf16.msra.mxu0 %v444
        %481 = vmatpush.bf16.msra.mxu0 %v442
        %482 = vmatmul.bf16.gmra.mxu0 %v459
        %v483 = vpop.f32.mrf.mxu0
        %v484 = vadd.f32 0.0, %v483
        %v485 = vpop.f32.mrf.mxu0
        %486 = vdwg.mxu0
        %v487 = vpack.c.bf16 %v484, %v471
        %v489 = vunpack.c.l.b16 %v487
        %v490 = vunpack.c.h.b16 %v487
        %v491 = vpack.c.b16 %v489, %v489
        %v492 = vpack.c.b16 %v490, %v490
        %493 = vrot.lane.b32.xlu0 %v491, 127
        %v494 = vpop.permute.xlu0 %493
        %495 = vrot.lane.b32.xlu0 %v492, 127
        %v496 = vpop.permute.xlu0 %495
        %vm497 = vcmask 1039360
        %v498 = vsel %vm497, %v494, %v496
        %499 = vrot.lane.b32.xlu0 %v491, 126
        %v500 = vpop.permute.xlu0 %499
        %501 = vrot.lane.b32.xlu0 %v492, 126
        %v502 = vpop.permute.xlu0 %501
        %vm503 = vcmask 1031168
        %v504 = vsel %vm503, %v500, %v502
        %505 = vrot.lane.b32.xlu0 %v491, 118
        %v506 = vpop.permute.xlu0 %505
        %507 = vrot.lane.b32.xlu0 %v492, 118
        %v508 = vpop.permute.xlu0 %507
        %vm509 = vcmask 965632
        %v510 = vsel %vm509, %v506, %v508
        %511 = vrot.lane.b32.xlu0 %v491, 117
        %v512 = vpop.permute.xlu0 %511
        %513 = vrot.lane.b32.xlu0 %v492, 117
        %v514 = vpop.permute.xlu0 %513
        %vm515 = vcmask 957440
        %v516 = vsel %vm515, %v512, %v514
        %517 = vrot.lane.b32.xlu0 %v491, 116
        %v518 = vpop.permute.xlu0 %517
        %519 = vrot.lane.b32.xlu0 %v492, 116
        %v520 = vpop.permute.xlu0 %519
        %vm521 = vcmask 949248
        %v522 = vsel %vm521, %v518, %v520
        %523 = vrot.lane.b32.xlu0 %v491, 108
        %v524 = vpop.permute.xlu0 %523
        %525 = vrot.lane.b32.xlu0 %v492, 108
        %v526 = vpop.permute.xlu0 %525
        %vm527 = vcmask 883712
        %v528 = vsel %vm527, %v524, %v526
        %529 = vrot.lane.b32.xlu0 %v491, 107
        %v530 = vpop.permute.xlu0 %529
        %531 = vrot.lane.b32.xlu0 %v492, 107
        %v532 = vpop.permute.xlu0 %531
        %vm533 = vcmask 875520
        %v534 = vsel %vm533, %v530, %v532
        %535 = vrot.lane.b32.xlu0 %v491, 106
        %v536 = vpop.permute.xlu0 %535
        %537 = vrot.lane.b32.xlu0 %v492, 106
        %v538 = vpop.permute.xlu0 %537
        %vm539 = vcmask 867328
        %v540 = vsel %vm539, %v536, %v538
        %vm541 = vcmask 1043456
        %v544 = vsel %vm541, %v487, %v498
        %v548 = vsel %vm541, %v504, %v510
        %v552 = vsel %vm541, %v516, %v522
        %v556 = vsel %vm541, %v528, %v534
        %v560 = vsel %vm541, %v540, 0
        %v562 = vld [vmem:[%s2] sm:$0xf]
        %v563 = vld [vmem:[%s2 + $0x4] sm:$0xf]
        %v564 = vld [vmem:[%s2 + $0x8] sm:$0xf]
        %v565 = vld [vmem:[%s2 + $0xc] sm:$0xf]
        %v566 = vld [vmem:[%s3] sm:$0xff]
        %v567 = vld [vmem:[%s3 + $0x8] sm:$0xff]
        %v568 = vld [vmem:[%s3 + $0x10] sm:$0xff]
        %v569 = vld [vmem:[%s3 + $0x18] sm:$0xff]
        %571 = vset.pattern.permute.xlu0 0
        %572 = vperm.xlu0 %571, %v566
        %v573 = vpop.permute.xlu0 %572
        %576 = vset.pattern.permute.xlu0 0
        %577 = vperm.xlu0 %576, %v567
        %v578 = vpop.permute.xlu0 %577
        %581 = vset.pattern.permute.xlu0 0
        %582 = vperm.xlu0 %581, %v568
        %v583 = vpop.permute.xlu0 %582
        %586 = vset.pattern.permute.xlu0 0
        %587 = vperm.xlu0 %586, %v569
        %v588 = vpop.permute.xlu0 %587
        %v594 = vunpack.c.l.b16 %v562
        %v595 = vunpack.c.l.b16 %v563
        %v596 = vunpack.c.l.b16 %v564
        %v597 = vunpack.c.l.b16 %v565
        %v598 = vpack.c.b16 %v595, %v594
        %v599 = vpack.c.b16 %v597, %v596
        %602 = vmatpush.bf16.msra.mxu0 0
        %603 = vmatpush.bf16.msra.mxu0 0
        %604 = vmatpush.bf16.msra.mxu0 0
        %605 = vmatpush.bf16.msra.mxu0 %v560
        %606 = vmatpush.bf16.msra.mxu0 %v556
        %607 = vmatpush.bf16.msra.mxu0 %v552
        %608 = vmatpush.bf16.msra.mxu0 %v548
        %609 = vmatpush.bf16.msra.mxu0 %v544
        %610 = vmatmul.bf16.gmra.mxu0 %v598
        %v611 = vpop.f32.mrf.mxu0
        %v612 = vadd.f32 %v573, %v611
        %v613 = vpop.f32.mrf.mxu0
        %v614 = vadd.f32 %v578, %v613
        %615 = vmatmul.bf16.gmra.mxu0 %v599
        %v616 = vpop.f32.mrf.mxu0
        %v617 = vadd.f32 %v583, %v616
        %v618 = vpop.f32.mrf.mxu0
        %v619 = vadd.f32 %v588, %v618
        %620 = vdwg.mxu0
        %v621 = vmax.f32 %v612, 0.0
        %v622 = vmax.f32 %v614, 0.0
        %v623 = vmax.f32 %v617, 0.0
        %v624 = vmax.f32 %v619, 0.0
        %v625 = vpack.c.bf16 %v621, %v621
        %v626 = vpack.c.bf16 %v622, %v622
        %v627 = vpack.c.bf16 %v623, %v623
        %v628 = vpack.c.bf16 %v624, %v624
        %v629 = vld [vmem:[#allocation4] sm:$0xff]
        %v630 = vld [vmem:[#allocation4 + $0x8] sm:$0xff]
        %v631 = vld [vmem:[#allocation4 + $0x10] sm:$0xff]
        %v632 = vld [vmem:[#allocation4 + $0x18] sm:$0xff]
        %v633 = vld [vmem:[#allocation4 + $0x20] sm:$0xff]
        %v634 = vld [vmem:[#allocation4 + $0x28] sm:$0xff]
        %v635 = vld [vmem:[#allocation4 + $0x30] sm:$0xff]
        %v636 = vld [vmem:[#allocation4 + $0x38] sm:$0xff]
        %v637 = vld [vmem:[#allocation4 + $0x40] sm:$0xff]
        %v638 = vld [vmem:[#allocation4 + $0x48] sm:$0xff]
        %v639 = vld [vmem:[#allocation4 + $0x50] sm:$0xff]
        %v640 = vld [vmem:[#allocation4 + $0x58] sm:$0xff]
        %v641 = vld [vmem:[#allocation4 + $0x60] sm:$0xff]
        %v642 = vld [vmem:[#allocation4 + $0x68] sm:$0xff]
        %v643 = vld [vmem:[#allocation4 + $0x70] sm:$0xff]
        %v644 = vld [vmem:[#allocation4 + $0x78] sm:$0xff]
        %v645 = vld [vmem:[#allocation4 + $0x80] sm:$0xff]
        %v646 = vld [vmem:[#allocation4 + $0x88] sm:$0xff]
        %v647 = vld [vmem:[#allocation4 + $0x90] sm:$0xff]
        %v648 = vld [vmem:[#allocation4 + $0x98] sm:$0xff]
        %v649 = vld [vmem:[#allocation4 + $0xa0] sm:$0xff]
        %v650 = vld [vmem:[#allocation4 + $0xa8] sm:$0xff]
        %v651 = vld [vmem:[#allocation4 + $0xb0] sm:$0xff]
        %v652 = vld [vmem:[#allocation4 + $0xb8] sm:$0xff]
        %v653 = vld [vmem:[#allocation4 + $0xc0] sm:$0xff]
        %v654 = vld [vmem:[#allocation4 + $0xc8] sm:$0xff]
        %v655 = vld [vmem:[#allocation4 + $0xd0] sm:$0xff]
        %v656 = vld [vmem:[#allocation4 + $0xd8] sm:$0xff]
        %v657 = vld [vmem:[#allocation4 + $0xe0] sm:$0xff]
        %v658 = vld [vmem:[#allocation4 + $0xe8] sm:$0xff]
        %v659 = vld [vmem:[#allocation4 + $0xf0] sm:$0xff]
        %v660 = vld [vmem:[#allocation4 + $0xf8] sm:$0xff]
        %s661 = scalar_lea.vmem [#allocation4], 256
        %v662 = vld [vmem:[%s661] sm:$0xff]
        %v663 = vld [vmem:[%s661 + $0x8] sm:$0xff]
        %v664 = vld [vmem:[%s661 + $0x10] sm:$0xff]
        %v665 = vld [vmem:[%s661 + $0x18] sm:$0xff]
        %v666 = vld [vmem:[%s661 + $0x20] sm:$0xff]
        %v667 = vld [vmem:[%s661 + $0x28] sm:$0xff]
        %v668 = vld [vmem:[%s661 + $0x30] sm:$0xff]
        %v669 = vld [vmem:[%s661 + $0x38] sm:$0xff]
        %v670 = vld [vmem:[%s661 + $0x40] sm:$0xff]
        %v671 = vld [vmem:[%s661 + $0x48] sm:$0xff]
        %v672 = vld [vmem:[%s661 + $0x50] sm:$0xff]
        %v673 = vld [vmem:[%s661 + $0x58] sm:$0xff]
        %v674 = vld [vmem:[%s661 + $0x60] sm:$0xff]
        %v675 = vld [vmem:[%s661 + $0x68] sm:$0xff]
        %v676 = vld [vmem:[%s661 + $0x70] sm:$0xff]
        %v677 = vld [vmem:[%s661 + $0x78] sm:$0xff]
        %v678 = vld [vmem:[%s661 + $0x80] sm:$0xff]
        %v679 = vld [vmem:[%s661 + $0x88] sm:$0xff]
        %v680 = vld [vmem:[%s661 + $0x90] sm:$0xff]
        %v681 = vld [vmem:[%s661 + $0x98] sm:$0xff]
        %v682 = vld [vmem:[%s661 + $0xa0] sm:$0xff]
        %v683 = vld [vmem:[%s661 + $0xa8] sm:$0xff]
        %v684 = vld [vmem:[%s661 + $0xb0] sm:$0xff]
        %v685 = vld [vmem:[%s661 + $0xb8] sm:$0xff]
        %v686 = vld [vmem:[%s661 + $0xc0] sm:$0xff]
        %v687 = vld [vmem:[%s661 + $0xc8] sm:$0xff]
        %v688 = vld [vmem:[%s661 + $0xd0] sm:$0xff]
        %v689 = vld [vmem:[%s661 + $0xd8] sm:$0xff]
        %v690 = vld [vmem:[%s661 + $0xe0] sm:$0xff]
        %v691 = vld [vmem:[%s661 + $0xe8] sm:$0xff]
        %v692 = vld [vmem:[%s661 + $0xf0] sm:$0xff]
        %v693 = vld [vmem:[%s661 + $0xf8] sm:$0xff]
        %v726 = vunpack.c.l.b16 %v662
        %v727 = vunpack.c.h.b16 %v662
        %v728 = vunpack.c.l.b16 %v663
        %v729 = vunpack.c.h.b16 %v663
        %v730 = vunpack.c.l.b16 %v664
        %v731 = vunpack.c.h.b16 %v664
        %v732 = vunpack.c.l.b16 %v665
        %v733 = vunpack.c.h.b16 %v665
        %v734 = vunpack.c.l.b16 %v666
        %v735 = vunpack.c.h.b16 %v666
        %v736 = vunpack.c.l.b16 %v667
        %v737 = vunpack.c.h.b16 %v667
        %v738 = vunpack.c.l.b16 %v668
        %v739 = vunpack.c.h.b16 %v668
        %v740 = vunpack.c.l.b16 %v669
        %v741 = vunpack.c.h.b16 %v669
        %v742 = vunpack.c.l.b16 %v670
        %v743 = vunpack.c.h.b16 %v670
        %v744 = vunpack.c.l.b16 %v671
        %v745 = vunpack.c.h.b16 %v671
        %v746 = vunpack.c.l.b16 %v672
        %v747 = vunpack.c.h.b16 %v672
        %v748 = vunpack.c.l.b16 %v673
        %v749 = vunpack.c.h.b16 %v673
        %v750 = vunpack.c.l.b16 %v674
        %v751 = vunpack.c.h.b16 %v674
        %v752 = vunpack.c.l.b16 %v675
        %v753 = vunpack.c.h.b16 %v675
        %v754 = vunpack.c.l.b16 %v676
        %v755 = vunpack.c.h.b16 %v676
        %v756 = vunpack.c.l.b16 %v677
        %v757 = vunpack.c.h.b16 %v677
        %v758 = vunpack.c.l.b16 %v678
        %v759 = vunpack.c.h.b16 %v678
        %v760 = vunpack.c.l.b16 %v679
        %v761 = vunpack.c.h.b16 %v679
        %v762 = vunpack.c.l.b16 %v680
        %v763 = vunpack.c.h.b16 %v680
        %v764 = vunpack.c.l.b16 %v681
        %v765 = vunpack.c.h.b16 %v681
        %v766 = vunpack.c.l.b16 %v682
        %v767 = vunpack.c.h.b16 %v682
        %v768 = vunpack.c.l.b16 %v683
        %v769 = vunpack.c.h.b16 %v683
        %v770 = vunpack.c.l.b16 %v684
        %v771 = vunpack.c.h.b16 %v684
        %v772 = vunpack.c.l.b16 %v685
        %v773 = vunpack.c.h.b16 %v685
        %v774 = vunpack.c.l.b16 %v686
        %v775 = vunpack.c.h.b16 %v686
        %v776 = vunpack.c.l.b16 %v687
        %v777 = vunpack.c.h.b16 %v687
        %v778 = vunpack.c.l.b16 %v688
        %v779 = vunpack.c.h.b16 %v688
        %v780 = vunpack.c.l.b16 %v689
        %v781 = vunpack.c.h.b16 %v689
        %v782 = vunpack.c.l.b16 %v690
        %v783 = vunpack.c.h.b16 %v690
        %v784 = vunpack.c.l.b16 %v691
        %v785 = vunpack.c.h.b16 %v691
        %v786 = vunpack.c.l.b16 %v692
        %v787 = vunpack.c.h.b16 %v692
        %v788 = vunpack.c.l.b16 %v693
        %v789 = vunpack.c.h.b16 %v693
        %v790 = vpack.c.b16 %v730, %v726
        %v791 = vpack.c.b16 %v731, %v727
        %v792 = vpack.c.b16 %v732, %v728
        %v793 = vpack.c.b16 %v733, %v729
        %v794 = vpack.c.b16 %v738, %v734
        %v795 = vpack.c.b16 %v739, %v735
        %v796 = vpack.c.b16 %v740, %v736
        %v797 = vpack.c.b16 %v741, %v737
        %v798 = vpack.c.b16 %v746, %v742
        %v799 = vpack.c.b16 %v747, %v743
        %v800 = vpack.c.b16 %v748, %v744
        %v801 = vpack.c.b16 %v749, %v745
        %v802 = vpack.c.b16 %v754, %v750
        %v803 = vpack.c.b16 %v755, %v751
        %v804 = vpack.c.b16 %v756, %v752
        %v805 = vpack.c.b16 %v757, %v753
        %v806 = vpack.c.b16 %v762, %v758
        %v807 = vpack.c.b16 %v763, %v759
        %v808 = vpack.c.b16 %v764, %v760
        %v809 = vpack.c.b16 %v765, %v761
        %v810 = vpack.c.b16 %v770, %v766
        %v811 = vpack.c.b16 %v771, %v767
        %v812 = vpack.c.b16 %v772, %v768
        %v813 = vpack.c.b16 %v773, %v769
        %v814 = vpack.c.b16 %v778, %v774
        %v815 = vpack.c.b16 %v779, %v775
        %v816 = vpack.c.b16 %v780, %v776
        %v817 = vpack.c.b16 %v781, %v777
        %v818 = vpack.c.b16 %v786, %v782
        %v819 = vpack.c.b16 %v787, %v783
        %v820 = vpack.c.b16 %v788, %v784
        %v821 = vpack.c.b16 %v789, %v785
        %854 = vmatpush.bf16.msra.mxu0 %v818
        %855 = vmatpush.bf16.msra.mxu0 %v814
        %856 = vmatpush.bf16.msra.mxu0 %v810
        %857 = vmatpush.bf16.msra.mxu0 %v806
        %858 = vmatpush.bf16.msra.mxu0 %v802
        %859 = vmatpush.bf16.msra.mxu0 %v798
        %860 = vmatpush.bf16.msra.mxu0 %v794
        %861 = vmatpush.bf16.msra.mxu0 %v790
        %862 = vmatmul.bf16.gmra.mxu0 %v626
        %v863 = vpop.f32.mrf.mxu0
        %v864 = vadd.f32 0.0, %v863
        %v865 = vpop.f32.mrf.mxu0
        %866 = vdwg.mxu0
        %867 = vmatpush.bf16.msra.mxu0 %v819
        %868 = vmatpush.bf16.msra.mxu0 %v815
        %869 = vmatpush.bf16.msra.mxu0 %v811
        %870 = vmatpush.bf16.msra.mxu0 %v807
        %871 = vmatpush.bf16.msra.mxu0 %v803
        %872 = vmatpush.bf16.msra.mxu0 %v799
        %873 = vmatpush.bf16.msra.mxu0 %v795
        %874 = vmatpush.bf16.msra.mxu0 %v791
        %875 = vmatmul.bf16.gmra.mxu0 %v626
        %v876 = vpop.f32.mrf.mxu0
        %v877 = vadd.f32 0.0, %v876
        %v878 = vpop.f32.mrf.mxu0
        %879 = vdwg.mxu0
        %880 = vmatpush.bf16.msra.mxu0 %v820
        %881 = vmatpush.bf16.msra.mxu0 %v816
        %882 = vmatpush.bf16.msra.mxu0 %v812
        %883 = vmatpush.bf16.msra.mxu0 %v808
        %884 = vmatpush.bf16.msra.mxu0 %v804
        %885 = vmatpush.bf16.msra.mxu0 %v800
        %886 = vmatpush.bf16.msra.mxu0 %v796
        %887 = vmatpush.bf16.msra.mxu0 %v792
        %888 = vmatmul.bf16.gmra.mxu0 %v626
        %v889 = vpop.f32.mrf.mxu0
        %v890 = vadd.f32 0.0, %v889
        %v891 = vpop.f32.mrf.mxu0
        %892 = vdwg.mxu0
        %893 = vmatpush.bf16.msra.mxu0 %v821
        %894 = vmatpush.bf16.msra.mxu0 %v817
        %895 = vmatpush.bf16.msra.mxu0 %v813
        %896 = vmatpush.bf16.msra.mxu0 %v809
        %897 = vmatpush.bf16.msra.mxu0 %v805
        %898 = vmatpush.bf16.msra.mxu0 %v801
        %899 = vmatpush.bf16.msra.mxu0 %v797
        %900 = vmatpush.bf16.msra.mxu0 %v793
        %901 = vmatmul.bf16.gmra.mxu0 %v626
        %v902 = vpop.f32.mrf.mxu0
        %v903 = vadd.f32 0.0, %v902
        %v904 = vpop.f32.mrf.mxu0
        %905 = vdwg.mxu0
        %v938 = vunpack.c.l.b16 %v629
        %v939 = vunpack.c.h.b16 %v629
        %v940 = vunpack.c.l.b16 %v630
        %v941 = vunpack.c.h.b16 %v630
        %v942 = vunpack.c.l.b16 %v631
        %v943 = vunpack.c.h.b16 %v631
        %v944 = vunpack.c.l.b16 %v632
        %v945 = vunpack.c.h.b16 %v632
        %v946 = vunpack.c.l.b16 %v633
        %v947 = vunpack.c.h.b16 %v633
        %v948 = vunpack.c.l.b16 %v634
        %v949 = vunpack.c.h.b16 %v634
        %v950 = vunpack.c.l.b16 %v635
        %v951 = vunpack.c.h.b16 %v635
        %v952 = vunpack.c.l.b16 %v636
        %v953 = vunpack.c.h.b16 %v636
        %v954 = vunpack.c.l.b16 %v637
        %v955 = vunpack.c.h.b16 %v637
        %v956 = vunpack.c.l.b16 %v638
        %v957 = vunpack.c.h.b16 %v638
        %v958 = vunpack.c.l.b16 %v639
        %v959 = vunpack.c.h.b16 %v639
        %v960 = vunpack.c.l.b16 %v640
        %v961 = vunpack.c.h.b16 %v640
        %v962 = vunpack.c.l.b16 %v641
        %v963 = vunpack.c.h.b16 %v641
        %v964 = vunpack.c.l.b16 %v642
        %v965 = vunpack.c.h.b16 %v642
        %v966 = vunpack.c.l.b16 %v643
        %v967 = vunpack.c.h.b16 %v643
        %v968 = vunpack.c.l.b16 %v644
        %v969 = vunpack.c.h.b16 %v644
        %v970 = vunpack.c.l.b16 %v645
        %v971 = vunpack.c.h.b16 %v645
        %v972 = vunpack.c.l.b16 %v646
        %v973 = vunpack.c.h.b16 %v646
        %v974 = vunpack.c.l.b16 %v647
        %v975 = vunpack.c.h.b16 %v647
        %v976 = vunpack.c.l.b16 %v648
        %v977 = vunpack.c.h.b16 %v648
        %v978 = vunpack.c.l.b16 %v649
        %v979 = vunpack.c.h.b16 %v649
        %v980 = vunpack.c.l.b16 %v650
        %v981 = vunpack.c.h.b16 %v650
        %v982 = vunpack.c.l.b16 %v651
        %v983 = vunpack.c.h.b16 %v651
        %v984 = vunpack.c.l.b16 %v652
        %v985 = vunpack.c.h.b16 %v652
        %v986 = vunpack.c.l.b16 %v653
        %v987 = vunpack.c.h.b16 %v653
        %v988 = vunpack.c.l.b16 %v654
        %v989 = vunpack.c.h.b16 %v654
        %v990 = vunpack.c.l.b16 %v655
        %v991 = vunpack.c.h.b16 %v655
        %v992 = vunpack.c.l.b16 %v656
        %v993 = vunpack.c.h.b16 %v656
        %v994 = vunpack.c.l.b16 %v657
        %v995 = vunpack.c.h.b16 %v657
        %v996 = vunpack.c.l.b16 %v658
        %v997 = vunpack.c.h.b16 %v658
        %v998 = vunpack.c.l.b16 %v659
        %v999 = vunpack.c.h.b16 %v659
        %v1000 = vunpack.c.l.b16 %v660
        %v1001 = vunpack.c.h.b16 %v660
        %v1002 = vpack.c.b16 %v942, %v938
        %v1003 = vpack.c.b16 %v943, %v939
        %v1004 = vpack.c.b16 %v944, %v940
        %v1005 = vpack.c.b16 %v945, %v941
        %v1006 = vpack.c.b16 %v950, %v946
        %v1007 = vpack.c.b16 %v951, %v947
        %v1008 = vpack.c.b16 %v952, %v948
        %v1009 = vpack.c.b16 %v953, %v949
        %v1010 = vpack.c.b16 %v958, %v954
        %v1011 = vpack.c.b16 %v959, %v955
        %v1012 = vpack.c.b16 %v960, %v956
        %v1013 = vpack.c.b16 %v961, %v957
        %v1014 = vpack.c.b16 %v966, %v962
        %v1015 = vpack.c.b16 %v967, %v963
        %v1016 = vpack.c.b16 %v968, %v964
        %v1017 = vpack.c.b16 %v969, %v965
        %v1018 = vpack.c.b16 %v974, %v970
        %v1019 = vpack.c.b16 %v975, %v971
        %v1020 = vpack.c.b16 %v976, %v972
        %v1021 = vpack.c.b16 %v977, %v973
        %v1022 = vpack.c.b16 %v982, %v978
        %v1023 = vpack.c.b16 %v983, %v979
        %v1024 = vpack.c.b16 %v984, %v980
        %v1025 = vpack.c.b16 %v985, %v981
        %v1026 = vpack.c.b16 %v990, %v986
        %v1027 = vpack.c.b16 %v991, %v987
        %v1028 = vpack.c.b16 %v992, %v988
        %v1029 = vpack.c.b16 %v993, %v989
        %v1030 = vpack.c.b16 %v998, %v994
        %v1031 = vpack.c.b16 %v999, %v995
        %v1032 = vpack.c.b16 %v1000, %v996
        %v1033 = vpack.c.b16 %v1001, %v997
        %1066 = vmatpush.bf16.msra.mxu0 %v1030
        %1067 = vmatpush.bf16.msra.mxu0 %v1026
        %1068 = vmatpush.bf16.msra.mxu0 %v1022
        %1069 = vmatpush.bf16.msra.mxu0 %v1018
        %1070 = vmatpush.bf16.msra.mxu0 %v1014
        %1071 = vmatpush.bf16.msra.mxu0 %v1010
        %1072 = vmatpush.bf16.msra.mxu0 %v1006
        %1073 = vmatpush.bf16.msra.mxu0 %v1002
        %1074 = vmatmul.bf16.gmra.mxu0 %v625
        %v1075 = vpop.f32.mrf.mxu0
        %v1076 = vadd.f32 %v864, %v1075
        %v1077 = vpop.f32.mrf.mxu0
        %1078 = vdwg.mxu0
        %1079 = vmatpush.bf16.msra.mxu0 %v1031
        %1080 = vmatpush.bf16.msra.mxu0 %v1027
        %1081 = vmatpush.bf16.msra.mxu0 %v1023
        %1082 = vmatpush.bf16.msra.mxu0 %v1019
        %1083 = vmatpush.bf16.msra.mxu0 %v1015
        %1084 = vmatpush.bf16.msra.mxu0 %v1011
        %1085 = vmatpush.bf16.msra.mxu0 %v1007
        %1086 = vmatpush.bf16.msra.mxu0 %v1003
        %1087 = vmatmul.bf16.gmra.mxu0 %v625
        %v1088 = vpop.f32.mrf.mxu0
        %v1089 = vadd.f32 %v877, %v1088
        %v1090 = vpop.f32.mrf.mxu0
        %1091 = vdwg.mxu0
        %1092 = vmatpush.bf16.msra.mxu0 %v1032
        %1093 = vmatpush.bf16.msra.mxu0 %v1028
        %1094 = vmatpush.bf16.msra.mxu0 %v1024
        %1095 = vmatpush.bf16.msra.mxu0 %v1020
        %1096 = vmatpush.bf16.msra.mxu0 %v1016
        %1097 = vmatpush.bf16.msra.mxu0 %v1012
        %1098 = vmatpush.bf16.msra.mxu0 %v1008
        %1099 = vmatpush.bf16.msra.mxu0 %v1004
        %1100 = vmatmul.bf16.gmra.mxu0 %v625
        %v1101 = vpop.f32.mrf.mxu0
        %v1102 = vadd.f32 %v890, %v1101
        %v1103 = vpop.f32.mrf.mxu0
        %1104 = vdwg.mxu0
        %1105 = vmatpush.bf16.msra.mxu0 %v1033
        %1106 = vmatpush.bf16.msra.mxu0 %v1029
        %1107 = vmatpush.bf16.msra.mxu0 %v1025
        %1108 = vmatpush.bf16.msra.mxu0 %v1021
        %1109 = vmatpush.bf16.msra.mxu0 %v1017
        %1110 = vmatpush.bf16.msra.mxu0 %v1013
        %1111 = vmatpush.bf16.msra.mxu0 %v1009
        %1112 = vmatpush.bf16.msra.mxu0 %v1005
        %1113 = vmatmul.bf16.gmra.mxu0 %v625
        %v1114 = vpop.f32.mrf.mxu0
        %v1115 = vadd.f32 %v903, %v1114
        %v1116 = vpop.f32.mrf.mxu0
        %1117 = vdwg.mxu0
        %s1118 = scalar_lea.vmem [#allocation4], 512
        %v1119 = vld [vmem:[%s1118] sm:$0xff]
        %v1120 = vld [vmem:[%s1118 + $0x8] sm:$0xff]
        %v1121 = vld [vmem:[%s1118 + $0x10] sm:$0xff]
        %v1122 = vld [vmem:[%s1118 + $0x18] sm:$0xff]
        %v1123 = vld [vmem:[%s1118 + $0x20] sm:$0xff]
        %v1124 = vld [vmem:[%s1118 + $0x28] sm:$0xff]
        %v1125 = vld [vmem:[%s1118 + $0x30] sm:$0xff]
        %v1126 = vld [vmem:[%s1118 + $0x38] sm:$0xff]
        %v1127 = vld [vmem:[%s1118 + $0x40] sm:$0xff]
        %v1128 = vld [vmem:[%s1118 + $0x48] sm:$0xff]
        %v1129 = vld [vmem:[%s1118 + $0x50] sm:$0xff]
        %v1130 = vld [vmem:[%s1118 + $0x58] sm:$0xff]
        %v1131 = vld [vmem:[%s1118 + $0x60] sm:$0xff]
        %v1132 = vld [vmem:[%s1118 + $0x68] sm:$0xff]
        %v1133 = vld [vmem:[%s1118 + $0x70] sm:$0xff]
        %v1134 = vld [vmem:[%s1118 + $0x78] sm:$0xff]
        %v1135 = vld [vmem:[%s1118 + $0x80] sm:$0xff]
        %v1136 = vld [vmem:[%s1118 + $0x88] sm:$0xff]
        %v1137 = vld [vmem:[%s1118 + $0x90] sm:$0xff]
        %v1138 = vld [vmem:[%s1118 + $0x98] sm:$0xff]
        %v1139 = vld [vmem:[%s1118 + $0xa0] sm:$0xff]
        %v1140 = vld [vmem:[%s1118 + $0xa8] sm:$0xff]
        %v1141 = vld [vmem:[%s1118 + $0xb0] sm:$0xff]
        %v1142 = vld [vmem:[%s1118 + $0xb8] sm:$0xff]
        %v1143 = vld [vmem:[%s1118 + $0xc0] sm:$0xff]
        %v1144 = vld [vmem:[%s1118 + $0xc8] sm:$0xff]
        %v1145 = vld [vmem:[%s1118 + $0xd0] sm:$0xff]
        %v1146 = vld [vmem:[%s1118 + $0xd8] sm:$0xff]
        %v1147 = vld [vmem:[%s1118 + $0xe0] sm:$0xff]
        %v1148 = vld [vmem:[%s1118 + $0xe8] sm:$0xff]
        %v1149 = vld [vmem:[%s1118 + $0xf0] sm:$0xff]
        %v1150 = vld [vmem:[%s1118 + $0xf8] sm:$0xff]
        %v1183 = vunpack.c.l.b16 %v1119
        %v1184 = vunpack.c.h.b16 %v1119
        %v1185 = vunpack.c.l.b16 %v1120
        %v1186 = vunpack.c.h.b16 %v1120
        %v1187 = vunpack.c.l.b16 %v1121
        %v1188 = vunpack.c.h.b16 %v1121
        %v1189 = vunpack.c.l.b16 %v1122
        %v1190 = vunpack.c.h.b16 %v1122
        %v1191 = vunpack.c.l.b16 %v1123
        %v1192 = vunpack.c.h.b16 %v1123
        %v1193 = vunpack.c.l.b16 %v1124
        %v1194 = vunpack.c.h.b16 %v1124
        %v1195 = vunpack.c.l.b16 %v1125
        %v1196 = vunpack.c.h.b16 %v1125
        %v1197 = vunpack.c.l.b16 %v1126
        %v1198 = vunpack.c.h.b16 %v1126
        %v1199 = vunpack.c.l.b16 %v1127
        %v1200 = vunpack.c.h.b16 %v1127
        %v1201 = vunpack.c.l.b16 %v1128
        %v1202 = vunpack.c.h.b16 %v1128
        %v1203 = vunpack.c.l.b16 %v1129
        %v1204 = vunpack.c.h.b16 %v1129
        %v1205 = vunpack.c.l.b16 %v1130
        %v1206 = vunpack.c.h.b16 %v1130
        %v1207 = vunpack.c.l.b16 %v1131
        %v1208 = vunpack.c.h.b16 %v1131
        %v1209 = vunpack.c.l.b16 %v1132
        %v1210 = vunpack.c.h.b16 %v1132
        %v1211 = vunpack.c.l.b16 %v1133
        %v1212 = vunpack.c.h.b16 %v1133
        %v1213 = vunpack.c.l.b16 %v1134
        %v1214 = vunpack.c.h.b16 %v1134
        %v1215 = vunpack.c.l.b16 %v1135
        %v1216 = vunpack.c.h.b16 %v1135
        %v1217 = vunpack.c.l.b16 %v1136
        %v1218 = vunpack.c.h.b16 %v1136
        %v1219 = vunpack.c.l.b16 %v1137
        %v1220 = vunpack.c.h.b16 %v1137
        %v1221 = vunpack.c.l.b16 %v1138
        %v1222 = vunpack.c.h.b16 %v1138
        %v1223 = vunpack.c.l.b16 %v1139
        %v1224 = vunpack.c.h.b16 %v1139
        %v1225 = vunpack.c.l.b16 %v1140
        %v1226 = vunpack.c.h.b16 %v1140
        %v1227 = vunpack.c.l.b16 %v1141
        %v1228 = vunpack.c.h.b16 %v1141
        %v1229 = vunpack.c.l.b16 %v1142
        %v1230 = vunpack.c.h.b16 %v1142
        %v1231 = vunpack.c.l.b16 %v1143
        %v1232 = vunpack.c.h.b16 %v1143
        %v1233 = vunpack.c.l.b16 %v1144
        %v1234 = vunpack.c.h.b16 %v1144
        %v1235 = vunpack.c.l.b16 %v1145
        %v1236 = vunpack.c.h.b16 %v1145
        %v1237 = vunpack.c.l.b16 %v1146
        %v1238 = vunpack.c.h.b16 %v1146
        %v1239 = vunpack.c.l.b16 %v1147
        %v1240 = vunpack.c.h.b16 %v1147
        %v1241 = vunpack.c.l.b16 %v1148
        %v1242 = vunpack.c.h.b16 %v1148
        %v1243 = vunpack.c.l.b16 %v1149
        %v1244 = vunpack.c.h.b16 %v1149
        %v1245 = vunpack.c.l.b16 %v1150
        %v1246 = vunpack.c.h.b16 %v1150
        %v1247 = vpack.c.b16 %v1187, %v1183
        %v1248 = vpack.c.b16 %v1188, %v1184
        %v1249 = vpack.c.b16 %v1189, %v1185
        %v1250 = vpack.c.b16 %v1190, %v1186
        %v1251 = vpack.c.b16 %v1195, %v1191
        %v1252 = vpack.c.b16 %v1196, %v1192
        %v1253 = vpack.c.b16 %v1197, %v1193
        %v1254 = vpack.c.b16 %v1198, %v1194
        %v1255 = vpack.c.b16 %v1203, %v1199
        %v1256 = vpack.c.b16 %v1204, %v1200
        %v1257 = vpack.c.b16 %v1205, %v1201
        %v1258 = vpack.c.b16 %v1206, %v1202
        %v1259 = vpack.c.b16 %v1211, %v1207
        %v1260 = vpack.c.b16 %v1212, %v1208
        %v1261 = vpack.c.b16 %v1213, %v1209
        %v1262 = vpack.c.b16 %v1214, %v1210
        %v1263 = vpack.c.b16 %v1219, %v1215
        %v1264 = vpack.c.b16 %v1220, %v1216
        %v1265 = vpack.c.b16 %v1221, %v1217
        %v1266 = vpack.c.b16 %v1222, %v1218
        %v1267 = vpack.c.b16 %v1227, %v1223
        %v1268 = vpack.c.b16 %v1228, %v1224
        %v1269 = vpack.c.b16 %v1229, %v1225
        %v1270 = vpack.c.b16 %v1230, %v1226
        %v1271 = vpack.c.b16 %v1235, %v1231
        %v1272 = vpack.c.b16 %v1236, %v1232
        %v1273 = vpack.c.b16 %v1237, %v1233
        %v1274 = vpack.c.b16 %v1238, %v1234
        %v1275 = vpack.c.b16 %v1243, %v1239
        %v1276 = vpack.c.b16 %v1244, %v1240
        %v1277 = vpack.c.b16 %v1245, %v1241
        %v1278 = vpack.c.b16 %v1246, %v1242
        %1311 = vmatpush.bf16.msra.mxu0 %v1275
        %1312 = vmatpush.bf16.msra.mxu0 %v1271
        %1313 = vmatpush.bf16.msra.mxu0 %v1267
        %1314 = vmatpush.bf16.msra.mxu0 %v1263
        %1315 = vmatpush.bf16.msra.mxu0 %v1259
        %1316 = vmatpush.bf16.msra.mxu0 %v1255
        %1317 = vmatpush.bf16.msra.mxu0 %v1251
        %1318 = vmatpush.bf16.msra.mxu0 %v1247
        %1319 = vmatmul.bf16.gmra.mxu0 %v627
        %v1320 = vpop.f32.mrf.mxu0
        %v1321 = vadd.f32 0.0, %v1320
        %v1322 = vpop.f32.mrf.mxu0
        %1323 = vdwg.mxu0
        %1324 = vmatpush.bf16.msra.mxu0 %v1276
        %1325 = vmatpush.bf16.msra.mxu0 %v1272
        %1326 = vmatpush.bf16.msra.mxu0 %v1268
        %1327 = vmatpush.bf16.msra.mxu0 %v1264
        %1328 = vmatpush.bf16.msra.mxu0 %v1260
        %1329 = vmatpush.bf16.msra.mxu0 %v1256
        %1330 = vmatpush.bf16.msra.mxu0 %v1252
        %1331 = vmatpush.bf16.msra.mxu0 %v1248
        %1332 = vmatmul.bf16.gmra.mxu0 %v627
        %v1333 = vpop.f32.mrf.mxu0
        %v1334 = vadd.f32 0.0, %v1333
        %v1335 = vpop.f32.mrf.mxu0
        %1336 = vdwg.mxu0
        %1337 = vmatpush.bf16.msra.mxu0 %v1277
        %1338 = vmatpush.bf16.msra.mxu0 %v1273
        %1339 = vmatpush.bf16.msra.mxu0 %v1269
        %1340 = vmatpush.bf16.msra.mxu0 %v1265
        %1341 = vmatpush.bf16.msra.mxu0 %v1261
        %1342 = vmatpush.bf16.msra.mxu0 %v1257
        %1343 = vmatpush.bf16.msra.mxu0 %v1253
        %1344 = vmatpush.bf16.msra.mxu0 %v1249
        %1345 = vmatmul.bf16.gmra.mxu0 %v627
        %v1346 = vpop.f32.mrf.mxu0
        %v1347 = vadd.f32 0.0, %v1346
        %v1348 = vpop.f32.mrf.mxu0
        %1349 = vdwg.mxu0
        %1350 = vmatpush.bf16.msra.mxu0 %v1278
        %1351 = vmatpush.bf16.msra.mxu0 %v1274
        %1352 = vmatpush.bf16.msra.mxu0 %v1270
        %1353 = vmatpush.bf16.msra.mxu0 %v1266
        %1354 = vmatpush.bf16.msra.mxu0 %v1262
        %1355 = vmatpush.bf16.msra.mxu0 %v1258
        %1356 = vmatpush.bf16.msra.mxu0 %v1254
        %1357 = vmatpush.bf16.msra.mxu0 %v1250
        %1358 = vmatmul.bf16.gmra.mxu0 %v627
        %v1359 = vpop.f32.mrf.mxu0
        %v1360 = vadd.f32 0.0, %v1359
        %v1361 = vpop.f32.mrf.mxu0
        %1362 = vdwg.mxu0
        %v1363 = vadd.f32 %v1076, %v1321
        %v1364 = vadd.f32 %v1089, %v1334
        %v1365 = vadd.f32 %v1102, %v1347
        %v1366 = vadd.f32 %v1115, %v1360
        %s1367 = scalar_lea.vmem [#allocation4], 768
        %v1368 = vld [vmem:[%s1367] sm:$0xff]
        %v1369 = vld [vmem:[%s1367 + $0x8] sm:$0xff]
        %v1370 = vld [vmem:[%s1367 + $0x10] sm:$0xff]
        %v1371 = vld [vmem:[%s1367 + $0x18] sm:$0xff]
        %v1372 = vld [vmem:[%s1367 + $0x20] sm:$0xff]
        %v1373 = vld [vmem:[%s1367 + $0x28] sm:$0xff]
        %v1374 = vld [vmem:[%s1367 + $0x30] sm:$0xff]
        %v1375 = vld [vmem:[%s1367 + $0x38] sm:$0xff]
        %v1376 = vld [vmem:[%s1367 + $0x40] sm:$0xff]
        %v1377 = vld [vmem:[%s1367 + $0x48] sm:$0xff]
        %v1378 = vld [vmem:[%s1367 + $0x50] sm:$0xff]
        %v1379 = vld [vmem:[%s1367 + $0x58] sm:$0xff]
        %v1380 = vld [vmem:[%s1367 + $0x60] sm:$0xff]
        %v1381 = vld [vmem:[%s1367 + $0x68] sm:$0xff]
        %v1382 = vld [vmem:[%s1367 + $0x70] sm:$0xff]
        %v1383 = vld [vmem:[%s1367 + $0x78] sm:$0xff]
        %v1384 = vld [vmem:[%s1367 + $0x80] sm:$0xff]
        %v1385 = vld [vmem:[%s1367 + $0x88] sm:$0xff]
        %v1386 = vld [vmem:[%s1367 + $0x90] sm:$0xff]
        %v1387 = vld [vmem:[%s1367 + $0x98] sm:$0xff]
        %v1388 = vld [vmem:[%s1367 + $0xa0] sm:$0xff]
        %v1389 = vld [vmem:[%s1367 + $0xa8] sm:$0xff]
        %v1390 = vld [vmem:[%s1367 + $0xb0] sm:$0xff]
        %v1391 = vld [vmem:[%s1367 + $0xb8] sm:$0xff]
        %v1392 = vld [vmem:[%s1367 + $0xc0] sm:$0xff]
        %v1393 = vld [vmem:[%s1367 + $0xc8] sm:$0xff]
        %v1394 = vld [vmem:[%s1367 + $0xd0] sm:$0xff]
        %v1395 = vld [vmem:[%s1367 + $0xd8] sm:$0xff]
        %v1396 = vld [vmem:[%s1367 + $0xe0] sm:$0xff]
        %v1397 = vld [vmem:[%s1367 + $0xe8] sm:$0xff]
        %v1398 = vld [vmem:[%s1367 + $0xf0] sm:$0xff]
        %v1399 = vld [vmem:[%s1367 + $0xf8] sm:$0xff]
        %v1432 = vunpack.c.l.b16 %v1368
        %v1433 = vunpack.c.h.b16 %v1368
        %v1434 = vunpack.c.l.b16 %v1369
        %v1435 = vunpack.c.h.b16 %v1369
        %v1436 = vunpack.c.l.b16 %v1370
        %v1437 = vunpack.c.h.b16 %v1370
        %v1438 = vunpack.c.l.b16 %v1371
        %v1439 = vunpack.c.h.b16 %v1371
        %v1440 = vunpack.c.l.b16 %v1372
        %v1441 = vunpack.c.h.b16 %v1372
        %v1442 = vunpack.c.l.b16 %v1373
        %v1443 = vunpack.c.h.b16 %v1373
        %v1444 = vunpack.c.l.b16 %v1374
        %v1445 = vunpack.c.h.b16 %v1374
        %v1446 = vunpack.c.l.b16 %v1375
        %v1447 = vunpack.c.h.b16 %v1375
        %v1448 = vunpack.c.l.b16 %v1376
        %v1449 = vunpack.c.h.b16 %v1376
        %v1450 = vunpack.c.l.b16 %v1377
        %v1451 = vunpack.c.h.b16 %v1377
        %v1452 = vunpack.c.l.b16 %v1378
        %v1453 = vunpack.c.h.b16 %v1378
        %v1454 = vunpack.c.l.b16 %v1379
        %v1455 = vunpack.c.h.b16 %v1379
        %v1456 = vunpack.c.l.b16 %v1380
        %v1457 = vunpack.c.h.b16 %v1380
        %v1458 = vunpack.c.l.b16 %v1381
        %v1459 = vunpack.c.h.b16 %v1381
        %v1460 = vunpack.c.l.b16 %v1382
        %v1461 = vunpack.c.h.b16 %v1382
        %v1462 = vunpack.c.l.b16 %v1383
        %v1463 = vunpack.c.h.b16 %v1383
        %v1464 = vunpack.c.l.b16 %v1384
        %v1465 = vunpack.c.h.b16 %v1384
        %v1466 = vunpack.c.l.b16 %v1385
        %v1467 = vunpack.c.h.b16 %v1385
        %v1468 = vunpack.c.l.b16 %v1386
        %v1469 = vunpack.c.h.b16 %v1386
        %v1470 = vunpack.c.l.b16 %v1387
        %v1471 = vunpack.c.h.b16 %v1387
        %v1472 = vunpack.c.l.b16 %v1388
        %v1473 = vunpack.c.h.b16 %v1388
        %v1474 = vunpack.c.l.b16 %v1389
        %v1475 = vunpack.c.h.b16 %v1389
        %v1476 = vunpack.c.l.b16 %v1390
        %v1477 = vunpack.c.h.b16 %v1390
        %v1478 = vunpack.c.l.b16 %v1391
        %v1479 = vunpack.c.h.b16 %v1391
        %v1480 = vunpack.c.l.b16 %v1392
        %v1481 = vunpack.c.h.b16 %v1392
        %v1482 = vunpack.c.l.b16 %v1393
        %v1483 = vunpack.c.h.b16 %v1393
        %v1484 = vunpack.c.l.b16 %v1394
        %v1485 = vunpack.c.h.b16 %v1394
        %v1486 = vunpack.c.l.b16 %v1395
        %v1487 = vunpack.c.h.b16 %v1395
        %v1488 = vunpack.c.l.b16 %v1396
        %v1489 = vunpack.c.h.b16 %v1396
        %v1490 = vunpack.c.l.b16 %v1397
        %v1491 = vunpack.c.h.b16 %v1397
        %v1492 = vunpack.c.l.b16 %v1398
        %v1493 = vunpack.c.h.b16 %v1398
        %v1494 = vunpack.c.l.b16 %v1399
        %v1495 = vunpack.c.h.b16 %v1399
        %v1496 = vpack.c.b16 %v1436, %v1432
        %v1497 = vpack.c.b16 %v1437, %v1433
        %v1498 = vpack.c.b16 %v1438, %v1434
        %v1499 = vpack.c.b16 %v1439, %v1435
        %v1500 = vpack.c.b16 %v1444, %v1440
        %v1501 = vpack.c.b16 %v1445, %v1441
        %v1502 = vpack.c.b16 %v1446, %v1442
        %v1503 = vpack.c.b16 %v1447, %v1443
        %v1504 = vpack.c.b16 %v1452, %v1448
        %v1505 = vpack.c.b16 %v1453, %v1449
        %v1506 = vpack.c.b16 %v1454, %v1450
        %v1507 = vpack.c.b16 %v1455, %v1451
        %v1508 = vpack.c.b16 %v1460, %v1456
        %v1509 = vpack.c.b16 %v1461, %v1457
        %v1510 = vpack.c.b16 %v1462, %v1458
        %v1511 = vpack.c.b16 %v1463, %v1459
        %v1512 = vpack.c.b16 %v1468, %v1464
        %v1513 = vpack.c.b16 %v1469, %v1465
        %v1514 = vpack.c.b16 %v1470, %v1466
        %v1515 = vpack.c.b16 %v1471, %v1467
        %v1516 = vpack.c.b16 %v1476, %v1472
        %v1517 = vpack.c.b16 %v1477, %v1473
        %v1518 = vpack.c.b16 %v1478, %v1474
        %v1519 = vpack.c.b16 %v1479, %v1475
        %v1520 = vpack.c.b16 %v1484, %v1480
        %v1521 = vpack.c.b16 %v1485, %v1481
        %v1522 = vpack.c.b16 %v1486, %v1482
        %v1523 = vpack.c.b16 %v1487, %v1483
        %v1524 = vpack.c.b16 %v1492, %v1488
        %v1525 = vpack.c.b16 %v1493, %v1489
        %v1526 = vpack.c.b16 %v1494, %v1490
        %v1527 = vpack.c.b16 %v1495, %v1491
        %1560 = vmatpush.bf16.msra.mxu0 %v1524
        %1561 = vmatpush.bf16.msra.mxu0 %v1520
        %1562 = vmatpush.bf16.msra.mxu0 %v1516
        %1563 = vmatpush.bf16.msra.mxu0 %v1512
        %1564 = vmatpush.bf16.msra.mxu0 %v1508
        %1565 = vmatpush.bf16.msra.mxu0 %v1504
        %1566 = vmatpush.bf16.msra.mxu0 %v1500
        %1567 = vmatpush.bf16.msra.mxu0 %v1496
        %1568 = vmatmul.bf16.gmra.mxu0 %v628
        %v1569 = vpop.f32.mrf.mxu0
        %v1570 = vadd.f32 0.0, %v1569
        %v1571 = vpop.f32.mrf.mxu0
        %1572 = vdwg.mxu0
        %1573 = vmatpush.bf16.msra.mxu0 %v1525
        %1574 = vmatpush.bf16.msra.mxu0 %v1521
        %1575 = vmatpush.bf16.msra.mxu0 %v1517
        %1576 = vmatpush.bf16.msra.mxu0 %v1513
        %1577 = vmatpush.bf16.msra.mxu0 %v1509
        %1578 = vmatpush.bf16.msra.mxu0 %v1505
        %1579 = vmatpush.bf16.msra.mxu0 %v1501
        %1580 = vmatpush.bf16.msra.mxu0 %v1497
        %1581 = vmatmul.bf16.gmra.mxu0 %v628
        %v1582 = vpop.f32.mrf.mxu0
        %v1583 = vadd.f32 0.0, %v1582
        %v1584 = vpop.f32.mrf.mxu0
        %1585 = vdwg.mxu0
        %1586 = vmatpush.bf16.msra.mxu0 %v1526
        %1587 = vmatpush.bf16.msra.mxu0 %v1522
        %1588 = vmatpush.bf16.msra.mxu0 %v1518
        %1589 = vmatpush.bf16.msra.mxu0 %v1514
        %1590 = vmatpush.bf16.msra.mxu0 %v1510
        %1591 = vmatpush.bf16.msra.mxu0 %v1506
        %1592 = vmatpush.bf16.msra.mxu0 %v1502
        %1593 = vmatpush.bf16.msra.mxu0 %v1498
        %1594 = vmatmul.bf16.gmra.mxu0 %v628
        %v1595 = vpop.f32.mrf.mxu0
        %v1596 = vadd.f32 0.0, %v1595
        %v1597 = vpop.f32.mrf.mxu0
        %1598 = vdwg.mxu0
        %1599 = vmatpush.bf16.msra.mxu0 %v1527
        %1600 = vmatpush.bf16.msra.mxu0 %v1523
        %1601 = vmatpush.bf16.msra.mxu0 %v1519
        %1602 = vmatpush.bf16.msra.mxu0 %v1515
        %1603 = vmatpush.bf16.msra.mxu0 %v1511
        %1604 = vmatpush.bf16.msra.mxu0 %v1507
        %1605 = vmatpush.bf16.msra.mxu0 %v1503
        %1606 = vmatpush.bf16.msra.mxu0 %v1499
        %1607 = vmatmul.bf16.gmra.mxu0 %v628
        %v1608 = vpop.f32.mrf.mxu0
        %v1609 = vadd.f32 0.0, %v1608
        %v1610 = vpop.f32.mrf.mxu0
        %1611 = vdwg.mxu0
        %v1612 = vadd.f32 %v1363, %v1570
        %v1613 = vadd.f32 %v1364, %v1583
        %v1614 = vadd.f32 %v1365, %v1596
        %v1615 = vadd.f32 %v1366, %v1609
        %v1616 = vpack.c.bf16 %v1613, %v1612
        %v1617 = vpack.c.bf16 %v1615, %v1614
        %v1620 = vunpack.c.l.b16 %v1616
        %v1621 = vunpack.c.h.b16 %v1616
        %v1622 = vunpack.c.l.b16 %v1617
        %v1623 = vpack.c.b16 %v1620, %v1620
        %v1624 = vpack.c.b16 %v1621, %v1621
        %v1625 = vpack.c.b16 %v1622, %v1622
        %v1626 = vunpack.c.h.b16 %v1617
        %v1627 = vpack.c.b16 %v1626, %v1626
        %1628 = vrot.lane.b32.xlu0 %v1623, 127
        %v1629 = vpop.permute.xlu0 %1628
        %1630 = vrot.lane.b32.xlu0 %v1624, 127
        %v1631 = vpop.permute.xlu0 %1630
        %1632 = vrot.lane.b32.xlu0 %v1625, 127
        %v1633 = vpop.permute.xlu0 %1632
        %1634 = vrot.lane.b32.xlu0 %v1627, 127
        %v1635 = vpop.permute.xlu0 %1634
        %v1636 = vsel %vm497, %v1629, %v1631
        %v1637 = vsel %vm497, %v1631, %v1633
        %v1638 = vsel %vm497, %v1633, %v1635
        %1639 = vrot.lane.b32.xlu0 %v1623, 126
        %v1640 = vpop.permute.xlu0 %1639
        %1641 = vrot.lane.b32.xlu0 %v1624, 126
        %v1642 = vpop.permute.xlu0 %1641
        %1643 = vrot.lane.b32.xlu0 %v1625, 126
        %v1644 = vpop.permute.xlu0 %1643
        %1645 = vrot.lane.b32.xlu0 %v1627, 126
        %v1646 = vpop.permute.xlu0 %1645
        %v1647 = vsel %vm503, %v1640, %v1642
        %v1648 = vsel %vm503, %v1642, %v1644
        %v1649 = vsel %vm503, %v1644, %v1646
        %1650 = vrot.lane.b32.xlu0 %v1623, 110
        %v1651 = vpop.permute.xlu0 %1650
        %1652 = vrot.lane.b32.xlu0 %v1624, 110
        %v1653 = vpop.permute.xlu0 %1652
        %1654 = vrot.lane.b32.xlu0 %v1625, 110
        %v1655 = vpop.permute.xlu0 %1654
        %1656 = vrot.lane.b32.xlu0 %v1627, 110
        %v1657 = vpop.permute.xlu0 %1656
        %vm1658 = vcmask 900096
        %v1659 = vsel %vm1658, %v1651, %v1653
        %v1660 = vsel %vm1658, %v1653, %v1655
        %v1661 = vsel %vm1658, %v1655, %v1657
        %1662 = vrot.lane.b32.xlu0 %v1623, 109
        %v1663 = vpop.permute.xlu0 %1662
        %1664 = vrot.lane.b32.xlu0 %v1624, 109
        %v1665 = vpop.permute.xlu0 %1664
        %1666 = vrot.lane.b32.xlu0 %v1625, 109
        %v1667 = vpop.permute.xlu0 %1666
        %1668 = vrot.lane.b32.xlu0 %v1627, 109
        %v1669 = vpop.permute.xlu0 %1668
        %vm1670 = vcmask 891904
        %v1671 = vsel %vm1670, %v1663, %v1665
        %v1672 = vsel %vm1670, %v1665, %v1667
        %v1673 = vsel %vm1670, %v1667, %v1669
        %1674 = vrot.lane.b32.xlu0 %v1623, 108
        %v1675 = vpop.permute.xlu0 %1674
        %1676 = vrot.lane.b32.xlu0 %v1624, 108
        %v1677 = vpop.permute.xlu0 %1676
        %1678 = vrot.lane.b32.xlu0 %v1625, 108
        %v1679 = vpop.permute.xlu0 %1678
        %1680 = vrot.lane.b32.xlu0 %v1627, 108
        %v1681 = vpop.permute.xlu0 %1680
        %v1682 = vsel %vm527, %v1675, %v1677
        %v1683 = vsel %vm527, %v1677, %v1679
        %v1684 = vsel %vm527, %v1679, %v1681
        %1685 = vrot.lane.b32.xlu0 %v1623, 92
        %v1686 = vpop.permute.xlu0 %1685
        %1687 = vrot.lane.b32.xlu0 %v1624, 92
        %v1688 = vpop.permute.xlu0 %1687
        %1689 = vrot.lane.b32.xlu0 %v1625, 92
        %v1690 = vpop.permute.xlu0 %1689
        %1691 = vrot.lane.b32.xlu0 %v1627, 92
        %v1692 = vpop.permute.xlu0 %1691
        %vm1693 = vcmask 752640
        %v1694 = vsel %vm1693, %v1686, %v1688
        %v1695 = vsel %vm1693, %v1688, %v1690
        %v1696 = vsel %vm1693, %v1690, %v1692
        %1697 = vrot.lane.b32.xlu0 %v1623, 91
        %v1698 = vpop.permute.xlu0 %1697
        %1699 = vrot.lane.b32.xlu0 %v1624, 91
        %v1700 = vpop.permute.xlu0 %1699
        %1701 = vrot.lane.b32.xlu0 %v1625, 91
        %v1702 = vpop.permute.xlu0 %1701
        %1703 = vrot.lane.b32.xlu0 %v1627, 91
        %v1704 = vpop.permute.xlu0 %1703
        %vm1705 = vcmask 744448
        %v1706 = vsel %vm1705, %v1698, %v1700
        %v1707 = vsel %vm1705, %v1700, %v1702
        %v1708 = vsel %vm1705, %v1702, %v1704
        %1709 = vrot.lane.b32.xlu0 %v1623, 90
        %v1710 = vpop.permute.xlu0 %1709
        %1711 = vrot.lane.b32.xlu0 %v1624, 90
        %v1712 = vpop.permute.xlu0 %1711
        %1713 = vrot.lane.b32.xlu0 %v1625, 90
        %v1714 = vpop.permute.xlu0 %1713
        %1715 = vrot.lane.b32.xlu0 %v1627, 90
        %v1716 = vpop.permute.xlu0 %1715
        %vm1717 = vcmask 736256
        %v1718 = vsel %vm1717, %v1710, %v1712
        %v1719 = vsel %vm1717, %v1712, %v1714
        %v1720 = vsel %vm1717, %v1714, %v1716
        %v1723 = vsel %vm541, %v1623, %v1636
        %v1727 = vsel %vm541, %v1624, %v1637
        %v1731 = vsel %vm541, %v1625, %v1638
        %v1735 = vsel %vm541, %v1647, %v1659
        %v1739 = vsel %vm541, %v1648, %v1660
        %v1743 = vsel %vm541, %v1649, %v1661
        %v1747 = vsel %vm541, %v1671, %v1682
        %v1751 = vsel %vm541, %v1672, %v1683
        %v1755 = vsel %vm541, %v1673, %v1684
        %v1759 = vsel %vm541, %v1694, %v1706
        %v1763 = vsel %vm541, %v1695, %v1707
        %v1767 = vsel %vm541, %v1696, %v1708
        %v1770 = vsel %vm541, %v1718, 0
        %v1773 = vsel %vm541, %v1719, 0
        %v1776 = vsel %vm541, %v1720, 0
        %v1778 = vld [vmem:[%s5] sm:$0xf]
        %v1779 = vld [vmem:[%s5 + $0x4] sm:$0xf]
        %v1780 = vld [vmem:[%s5 + $0x8] sm:$0xf]
        %v1781 = vld [vmem:[%s5 + $0xc] sm:$0xf]
        %v1782 = vld [vmem:[%s6] sm:$0xff]
        %v1783 = vld [vmem:[%s6 + $0x8] sm:$0xff]
        %v1784 = vld [vmem:[%s6 + $0x10] sm:$0xff]
        %v1785 = vld [vmem:[%s6 + $0x18] sm:$0xff]
        %1787 = vset.pattern.permute.xlu0 0
        %1788 = vperm.xlu0 %1787, %v1782
        %v1789 = vpop.permute.xlu0 %1788
        %1792 = vset.pattern.permute.xlu0 0
        %1793 = vperm.xlu0 %1792, %v1783
        %v1794 = vpop.permute.xlu0 %1793
        %1797 = vset.pattern.permute.xlu0 0
        %1798 = vperm.xlu0 %1797, %v1784
        %v1799 = vpop.permute.xlu0 %1798
        %1802 = vset.pattern.permute.xlu0 0
        %1803 = vperm.xlu0 %1802, %v1785
        %v1804 = vpop.permute.xlu0 %1803
        %v1810 = vunpack.c.l.b16 %v1778
        %v1811 = vunpack.c.l.b16 %v1779
        %v1812 = vunpack.c.l.b16 %v1780
        %v1813 = vunpack.c.l.b16 %v1781
        %v1814 = vpack.c.b16 %v1811, %v1810
        %v1815 = vpack.c.b16 %v1813, %v1812
        %1818 = vmatpush.bf16.msra.mxu0 0
        %1819 = vmatpush.bf16.msra.mxu0 0
        %1820 = vmatpush.bf16.msra.mxu0 0
        %1821 = vmatpush.bf16.msra.mxu0 %v1770
        %1822 = vmatpush.bf16.msra.mxu0 %v1759
        %1823 = vmatpush.bf16.msra.mxu0 %v1747
        %1824 = vmatpush.bf16.msra.mxu0 %v1735
        %1825 = vmatpush.bf16.msra.mxu0 %v1723
        %1826 = vmatmul.bf16.gmra.mxu0 %v1814
        %v1827 = vpop.f32.mrf.mxu0
        %v1828 = vadd.f32 %v1789, %v1827
        %v1829 = vpop.f32.mrf.mxu0
        %v1830 = vadd.f32 %v1794, %v1829
        %1831 = vmatmul.bf16.gmra.mxu0 %v1815
        %v1832 = vpop.f32.mrf.mxu0
        %v1833 = vadd.f32 %v1799, %v1832
        %v1834 = vpop.f32.mrf.mxu0
        %v1835 = vadd.f32 %v1804, %v1834
        %1836 = vdwg.mxu0
        %1837 = vmatpush.bf16.msra.mxu0 0
        %1838 = vmatpush.bf16.msra.mxu0 0
        %1839 = vmatpush.bf16.msra.mxu0 0
        %1840 = vmatpush.bf16.msra.mxu0 %v1773
        %1841 = vmatpush.bf16.msra.mxu0 %v1763
        %1842 = vmatpush.bf16.msra.mxu0 %v1751
        %1843 = vmatpush.bf16.msra.mxu0 %v1739
        %1844 = vmatpush.bf16.msra.mxu0 %v1727
        %1845 = vmatmul.bf16.gmra.mxu0 %v1814
        %v1846 = vpop.f32.mrf.mxu0
        %v1847 = vadd.f32 %v1789, %v1846
        %v1848 = vpop.f32.mrf.mxu0
        %v1849 = vadd.f32 %v1794, %v1848
        %1850 = vmatmul.bf16.gmra.mxu0 %v1815
        %v1851 = vpop.f32.mrf.mxu0
        %v1852 = vadd.f32 %v1799, %v1851
        %v1853 = vpop.f32.mrf.mxu0
        %v1854 = vadd.f32 %v1804, %v1853
        %1855 = vdwg.mxu0
        %1856 = vmatpush.bf16.msra.mxu0 0
        %1857 = vmatpush.bf16.msra.mxu0 0
        %1858 = vmatpush.bf16.msra.mxu0 0
        %1859 = vmatpush.bf16.msra.mxu0 %v1776
        %1860 = vmatpush.bf16.msra.mxu0 %v1767
        %1861 = vmatpush.bf16.msra.mxu0 %v1755
        %1862 = vmatpush.bf16.msra.mxu0 %v1743
        %1863 = vmatpush.bf16.msra.mxu0 %v1731
        %1864 = vmatmul.bf16.gmra.mxu0 %v1814
        %v1865 = vpop.f32.mrf.mxu0
        %v1866 = vadd.f32 %v1789, %v1865
        %v1867 = vpop.f32.mrf.mxu0
        %v1868 = vadd.f32 %v1794, %v1867
        %1869 = vmatmul.bf16.gmra.mxu0 %v1815
        %v1870 = vpop.f32.mrf.mxu0
        %v1871 = vadd.f32 %v1799, %v1870
        %v1872 = vpop.f32.mrf.mxu0
        %v1873 = vadd.f32 %v1804, %v1872
        %1874 = vdwg.mxu0
        %v1875 = vmax.f32 %v1828, 0.0
        %v1876 = vmax.f32 %v1847, 0.0
        %v1877 = vmax.f32 %v1866, 0.0
        %v1878 = vmax.f32 %v1830, 0.0
        %v1879 = vmax.f32 %v1849, 0.0
        %v1880 = vmax.f32 %v1868, 0.0
        %v1881 = vmax.f32 %v1833, 0.0
        %v1882 = vmax.f32 %v1852, 0.0
        %v1883 = vmax.f32 %v1871, 0.0
        %v1884 = vmax.f32 %v1835, 0.0
        %v1885 = vmax.f32 %v1854, 0.0
        %v1886 = vmax.f32 %v1873, 0.0
        %v1887 = vpack.c.bf16 %v1876, %v1875
        %v1888 = vpack.c.bf16 %v1877, %v1877
        %v1889 = vpack.c.bf16 %v1879, %v1878
        %v1890 = vpack.c.bf16 %v1880, %v1880
        %v1891 = vpack.c.bf16 %v1882, %v1881
        %v1892 = vpack.c.bf16 %v1883, %v1883
        %v1893 = vpack.c.bf16 %v1885, %v1884
        %v1894 = vpack.c.bf16 %v1886, %v1886
        %v1895 = vld [vmem:[#allocation6] sm:$0xff]
        %v1896 = vld [vmem:[#allocation6 + $0x8] sm:$0xff]
        %v1897 = vld [vmem:[#allocation6 + $0x10] sm:$0xff]
        %v1898 = vld [vmem:[#allocation6 + $0x18] sm:$0xff]
        %v1899 = vld [vmem:[#allocation6 + $0x20] sm:$0xff]
        %v1900 = vld [vmem:[#allocation6 + $0x28] sm:$0xf]
        %v1901 = vld [vmem:[#allocation6 + $0x2c] sm:$0xff]
        %v1902 = vld [vmem:[#allocation6 + $0x34] sm:$0xff]
        %v1903 = vld [vmem:[#allocation6 + $0x3c] sm:$0xff]
        %v1904 = vld [vmem:[#allocation6 + $0x44] sm:$0xff]
        %v1905 = vld [vmem:[#allocation6 + $0x4c] sm:$0xff]
        %v1906 = vld [vmem:[#allocation6 + $0x54] sm:$0xf]
        %v1907 = vld [vmem:[#allocation6 + $0x58] sm:$0xff]
        %v1908 = vld [vmem:[#allocation6 + $0x60] sm:$0xff]
        %v1909 = vld [vmem:[#allocation6 + $0x68] sm:$0xff]
        %v1910 = vld [vmem:[#allocation6 + $0x70] sm:$0xff]
        %v1911 = vld [vmem:[#allocation6 + $0x78] sm:$0xff]
        %v1912 = vld [vmem:[#allocation6 + $0x80] sm:$0xf]
        %v1913 = vld [vmem:[#allocation6 + $0x84] sm:$0xff]
        %v1914 = vld [vmem:[#allocation6 + $0x8c] sm:$0xff]
        %v1915 = vld [vmem:[#allocation6 + $0x94] sm:$0xff]
        %v1916 = vld [vmem:[#allocation6 + $0x9c] sm:$0xff]
        %v1917 = vld [vmem:[#allocation6 + $0xa4] sm:$0xff]
        %v1918 = vld [vmem:[#allocation6 + $0xac] sm:$0xf]
        %v1919 = vld [vmem:[#allocation6 + $0xb0] sm:$0xff]
        %v1920 = vld [vmem:[#allocation6 + $0xb8] sm:$0xff]
        %v1921 = vld [vmem:[#allocation6 + $0xc0] sm:$0xff]
        %v1922 = vld [vmem:[#allocation6 + $0xc8] sm:$0xff]
        %v1923 = vld [vmem:[#allocation6 + $0xd0] sm:$0xff]
        %v1924 = vld [vmem:[#allocation6 + $0xd8] sm:$0xf]
        %v1925 = vld [vmem:[#allocation6 + $0xdc] sm:$0xff]
        %v1926 = vld [vmem:[#allocation6 + $0xe4] sm:$0xff]
        %v1927 = vld [vmem:[#allocation6 + $0xec] sm:$0xff]
        %v1928 = vld [vmem:[#allocation6 + $0xf4] sm:$0xff]
        %v1929 = vld [vmem:[#allocation6 + $0xfc] sm:$0xff]
        %v1930 = vld [vmem:[#allocation6 + $0x104] sm:$0xf]
        %v1931 = vld [vmem:[#allocation6 + $0x108] sm:$0xff]
        %v1932 = vld [vmem:[#allocation6 + $0x110] sm:$0xff]
        %v1933 = vld [vmem:[#allocation6 + $0x118] sm:$0xff]
        %v1934 = vld [vmem:[#allocation6 + $0x120] sm:$0xff]
        %v1935 = vld [vmem:[#allocation6 + $0x128] sm:$0xff]
        %v1936 = vld [vmem:[#allocation6 + $0x130] sm:$0xf]
        %v1937 = vld [vmem:[#allocation6 + $0x134] sm:$0xff]
        %v1938 = vld [vmem:[#allocation6 + $0x13c] sm:$0xff]
        %v1939 = vld [vmem:[#allocation6 + $0x144] sm:$0xff]
        %v1940 = vld [vmem:[#allocation6 + $0x14c] sm:$0xff]
        %v1941 = vld [vmem:[#allocation6 + $0x154] sm:$0xff]
        %v1942 = vld [vmem:[#allocation6 + $0x15c] sm:$0xf]
        %v1943 = vld [vmem:[#allocation6 + $0x160] sm:$0xff]
        %v1944 = vld [vmem:[#allocation6 + $0x168] sm:$0xff]
        %v1945 = vld [vmem:[#allocation6 + $0x170] sm:$0xff]
        %v1946 = vld [vmem:[#allocation6 + $0x178] sm:$0xff]
        %v1947 = vld [vmem:[#allocation6 + $0x180] sm:$0xff]
        %v1948 = vld [vmem:[#allocation6 + $0x188] sm:$0xf]
        %v1949 = vld [vmem:[#allocation6 + $0x18c] sm:$0xff]
        %v1950 = vld [vmem:[#allocation6 + $0x194] sm:$0xff]
        %v1951 = vld [vmem:[#allocation6 + $0x19c] sm:$0xff]
        %v1952 = vld [vmem:[#allocation6 + $0x1a4] sm:$0xff]
        %v1953 = vld [vmem:[#allocation6 + $0x1ac] sm:$0xff]
        %v1954 = vld [vmem:[#allocation6 + $0x1b4] sm:$0xf]
        %v1955 = vld [vmem:[#allocation6 + $0x1b8] sm:$0xff]
        %v1956 = vld [vmem:[#allocation6 + $0x1c0] sm:$0xff]
        %v1957 = vld [vmem:[#allocation6 + $0x1c8] sm:$0xff]
        %v1958 = vld [vmem:[#allocation6 + $0x1d0] sm:$0xff]
        %v1959 = vld [vmem:[#allocation6 + $0x1d8] sm:$0xff]
        %v1960 = vld [vmem:[#allocation6 + $0x1e0] sm:$0xf]
        %v1961 = vld [vmem:[#allocation6 + $0x1e4] sm:$0xff]
        %v1962 = vld [vmem:[#allocation6 + $0x1ec] sm:$0xff]
        %v1963 = vld [vmem:[#allocation6 + $0x1f4] sm:$0xff]
        %v1964 = vld [vmem:[#allocation6 + $0x1fc] sm:$0xff]
        %v1965 = vld [vmem:[#allocation6 + $0x204] sm:$0xff]
        %v1966 = vld [vmem:[#allocation6 + $0x20c] sm:$0xf]
        %v1967 = vld [vmem:[#allocation6 + $0x210] sm:$0xff]
        %v1968 = vld [vmem:[#allocation6 + $0x218] sm:$0xff]
        %v1969 = vld [vmem:[#allocation6 + $0x220] sm:$0xff]
        %v1970 = vld [vmem:[#allocation6 + $0x228] sm:$0xff]
        %v1971 = vld [vmem:[#allocation6 + $0x230] sm:$0xff]
        %v1972 = vld [vmem:[#allocation6 + $0x238] sm:$0xf]
        %v1973 = vld [vmem:[#allocation6 + $0x23c] sm:$0xff]
        %v1974 = vld [vmem:[#allocation6 + $0x244] sm:$0xff]
        %v1975 = vld [vmem:[#allocation6 + $0x24c] sm:$0xff]
        %v1976 = vld [vmem:[#allocation6 + $0x254] sm:$0xff]
        %v1977 = vld [vmem:[#allocation6 + $0x25c] sm:$0xff]
        %v1978 = vld [vmem:[#allocation6 + $0x264] sm:$0xf]
        %v1979 = vld [vmem:[#allocation6 + $0x268] sm:$0xff]
        %v1980 = vld [vmem:[#allocation6 + $0x270] sm:$0xff]
        %v1981 = vld [vmem:[#allocation6 + $0x278] sm:$0xff]
        %v1982 = vld [vmem:[#allocation6 + $0x280] sm:$0xff]
        %v1983 = vld [vmem:[#allocation6 + $0x288] sm:$0xff]
        %v1984 = vld [vmem:[#allocation6 + $0x290] sm:$0xf]
        %v1985 = vld [vmem:[#allocation6 + $0x294] sm:$0xff]
        %v1986 = vld [vmem:[#allocation6 + $0x29c] sm:$0xff]
        %v1987 = vld [vmem:[#allocation6 + $0x2a4] sm:$0xff]
        %v1988 = vld [vmem:[#allocation6 + $0x2ac] sm:$0xff]
        %v1989 = vld [vmem:[#allocation6 + $0x2b4] sm:$0xff]
        %v1990 = vld [vmem:[#allocation6 + $0x2bc] sm:$0xf]
        %v1991 = vld [vmem:[#allocation6 + $0x2c0] sm:$0xff]
        %v1992 = vld [vmem:[#allocation6 + $0x2c8] sm:$0xff]
        %v1993 = vld [vmem:[#allocation6 + $0x2d0] sm:$0xff]
        %v1994 = vld [vmem:[#allocation6 + $0x2d8] sm:$0xff]
        %v1995 = vld [vmem:[#allocation6 + $0x2e0] sm:$0xff]
        %v1996 = vld [vmem:[#allocation6 + $0x2e8] sm:$0xf]
        %v1997 = vld [vmem:[#allocation6 + $0x2ec] sm:$0xff]
        %v1998 = vld [vmem:[#allocation6 + $0x2f4] sm:$0xff]
        %v1999 = vld [vmem:[#allocation6 + $0x2fc] sm:$0xff]
        %v2000 = vld [vmem:[#allocation6 + $0x304] sm:$0xff]
        %v2001 = vld [vmem:[#allocation6 + $0x30c] sm:$0xff]
        %v2002 = vld [vmem:[#allocation6 + $0x314] sm:$0xf]
        %v2003 = vld [vmem:[#allocation6 + $0x318] sm:$0xff]
        %v2004 = vld [vmem:[#allocation6 + $0x320] sm:$0xff]
        %v2005 = vld [vmem:[#allocation6 + $0x328] sm:$0xff]
        %v2006 = vld [vmem:[#allocation6 + $0x330] sm:$0xff]
        %v2007 = vld [vmem:[#allocation6 + $0x338] sm:$0xff]
        %v2008 = vld [vmem:[#allocation6 + $0x340] sm:$0xf]
        %v2009 = vld [vmem:[#allocation6 + $0x344] sm:$0xff]
        %v2010 = vld [vmem:[#allocation6 + $0x34c] sm:$0xff]
        %v2011 = vld [vmem:[#allocation6 + $0x354] sm:$0xff]
        %v2012 = vld [vmem:[#allocation6 + $0x35c] sm:$0xff]
        %v2013 = vld [vmem:[#allocation6 + $0x364] sm:$0xff]
        %v2014 = vld [vmem:[#allocation6 + $0x36c] sm:$0xf]
        %v2015 = vld [vmem:[#allocation6 + $0x370] sm:$0xff]
        %v2016 = vld [vmem:[#allocation6 + $0x378] sm:$0xff]
        %v2017 = vld [vmem:[#allocation6 + $0x380] sm:$0xff]
        %v2018 = vld [vmem:[#allocation6 + $0x388] sm:$0xff]
        %v2019 = vld [vmem:[#allocation6 + $0x390] sm:$0xff]
        %v2020 = vld [vmem:[#allocation6 + $0x398] sm:$0xf]
        %v2021 = vld [vmem:[#allocation6 + $0x39c] sm:$0xff]
        %v2022 = vld [vmem:[#allocation6 + $0x3a4] sm:$0xff]
        %v2023 = vld [vmem:[#allocation6 + $0x3ac] sm:$0xff]
        %v2024 = vld [vmem:[#allocation6 + $0x3b4] sm:$0xff]
        %v2025 = vld [vmem:[#allocation6 + $0x3bc] sm:$0xff]
        %v2026 = vld [vmem:[#allocation6 + $0x3c4] sm:$0xf]
        %v2027 = vld [vmem:[#allocation6 + $0x3c8] sm:$0xff]
        %v2028 = vld [vmem:[#allocation6 + $0x3d0] sm:$0xff]
        %v2029 = vld [vmem:[#allocation6 + $0x3d8] sm:$0xff]
        %v2030 = vld [vmem:[#allocation6 + $0x3e0] sm:$0xff]
        %v2031 = vld [vmem:[#allocation6 + $0x3e8] sm:$0xff]
        %v2032 = vld [vmem:[#allocation6 + $0x3f0] sm:$0xf]
        %v2033 = vld [vmem:[#allocation6 + $0x3f4] sm:$0xff]
        %v2034 = vld [vmem:[#allocation6 + $0x3fc] sm:$0xff]
        %v2035 = vld [vmem:[#allocation6 + $0x404] sm:$0xff]
        %v2036 = vld [vmem:[#allocation6 + $0x40c] sm:$0xff]
        %v2037 = vld [vmem:[#allocation6 + $0x414] sm:$0xff]
        %v2038 = vld [vmem:[#allocation6 + $0x41c] sm:$0xf]
        %v2039 = vld [vmem:[#allocation6 + $0x420] sm:$0xff]
        %v2040 = vld [vmem:[#allocation6 + $0x428] sm:$0xff]
        %v2041 = vld [vmem:[#allocation6 + $0x430] sm:$0xff]
        %v2042 = vld [vmem:[#allocation6 + $0x438] sm:$0xff]
        %v2043 = vld [vmem:[#allocation6 + $0x440] sm:$0xff]
        %v2044 = vld [vmem:[#allocation6 + $0x448] sm:$0xf]
        %v2045 = vld [vmem:[#allocation6 + $0x44c] sm:$0xff]
        %v2046 = vld [vmem:[#allocation6 + $0x454] sm:$0xff]
        %v2047 = vld [vmem:[#allocation6 + $0x45c] sm:$0xff]
        %v2048 = vld [vmem:[#allocation6 + $0x464] sm:$0xff]
        %v2049 = vld [vmem:[#allocation6 + $0x46c] sm:$0xff]
        %v2050 = vld [vmem:[#allocation6 + $0x474] sm:$0xf]
        %v2051 = vld [vmem:[#allocation6 + $0x478] sm:$0xff]
        %v2052 = vld [vmem:[#allocation6 + $0x480] sm:$0xff]
        %v2053 = vld [vmem:[#allocation6 + $0x488] sm:$0xff]
        %v2054 = vld [vmem:[#allocation6 + $0x490] sm:$0xff]
        %v2055 = vld [vmem:[#allocation6 + $0x498] sm:$0xff]
        %v2056 = vld [vmem:[#allocation6 + $0x4a0] sm:$0xf]
        %v2057 = vld [vmem:[#allocation6 + $0x4a4] sm:$0xff]
        %v2058 = vld [vmem:[#allocation6 + $0x4ac] sm:$0xff]
        %v2059 = vld [vmem:[#allocation6 + $0x4b4] sm:$0xff]
        %v2060 = vld [vmem:[#allocation6 + $0x4bc] sm:$0xff]
        %v2061 = vld [vmem:[#allocation6 + $0x4c4] sm:$0xff]
        %v2062 = vld [vmem:[#allocation6 + $0x4cc] sm:$0xf]
        %v2063 = vld [vmem:[#allocation6 + $0x4d0] sm:$0xff]
        %v2064 = vld [vmem:[#allocation6 + $0x4d8] sm:$0xff]
        %v2065 = vld [vmem:[#allocation6 + $0x4e0] sm:$0xff]
        %v2066 = vld [vmem:[#allocation6 + $0x4e8] sm:$0xff]
        %v2067 = vld [vmem:[#allocation6 + $0x4f0] sm:$0xff]
        %v2068 = vld [vmem:[#allocation6 + $0x4f8] sm:$0xf]
        %v2069 = vld [vmem:[#allocation6 + $0x4fc] sm:$0xff]
        %v2070 = vld [vmem:[#allocation6 + $0x504] sm:$0xff]
        %v2071 = vld [vmem:[#allocation6 + $0x50c] sm:$0xff]
        %v2072 = vld [vmem:[#allocation6 + $0x514] sm:$0xff]
        %v2073 = vld [vmem:[#allocation6 + $0x51c] sm:$0xff]
        %v2074 = vld [vmem:[#allocation6 + $0x524] sm:$0xf]
        %v2075 = vld [vmem:[#allocation6 + $0x528] sm:$0xff]
        %v2076 = vld [vmem:[#allocation6 + $0x530] sm:$0xff]
        %v2077 = vld [vmem:[#allocation6 + $0x538] sm:$0xff]
        %v2078 = vld [vmem:[#allocation6 + $0x540] sm:$0xff]
        %v2079 = vld [vmem:[#allocation6 + $0x548] sm:$0xff]
        %v2080 = vld [vmem:[#allocation6 + $0x550] sm:$0xf]
        %v2081 = vld [vmem:[#allocation6 + $0x554] sm:$0xff]
        %v2082 = vld [vmem:[#allocation6 + $0x55c] sm:$0xff]
        %v2083 = vld [vmem:[#allocation6 + $0x564] sm:$0xff]
        %v2084 = vld [vmem:[#allocation6 + $0x56c] sm:$0xff]
        %v2085 = vld [vmem:[#allocation6 + $0x574] sm:$0xff]
        %v2086 = vld [vmem:[#allocation6 + $0x57c] sm:$0xf]
        %v2087 = vld [vmem:[#allocation6 + $0x580] sm:$0xff]
        %v2088 = vld [vmem:[#allocation6 + $0x588] sm:$0xff]
        %v2089 = vld [vmem:[#allocation6 + $0x590] sm:$0xff]
        %v2090 = vld [vmem:[#allocation6 + $0x598] sm:$0xff]
        %v2091 = vld [vmem:[#allocation6 + $0x5a0] sm:$0xff]
        %v2092 = vld [vmem:[#allocation6 + $0x5a8] sm:$0xf]
        %v2093 = vld [vmem:[#allocation6 + $0x5ac] sm:$0xff]
        %v2094 = vld [vmem:[#allocation6 + $0x5b4] sm:$0xff]
        %v2095 = vld [vmem:[#allocation6 + $0x5bc] sm:$0xff]
        %v2096 = vld [vmem:[#allocation6 + $0x5c4] sm:$0xff]
        %v2097 = vld [vmem:[#allocation6 + $0x5cc] sm:$0xff]
        %v2098 = vld [vmem:[#allocation6 + $0x5d4] sm:$0xf]
        %v2099 = vld [vmem:[#allocation6 + $0x5d8] sm:$0xff]
        %v2100 = vld [vmem:[#allocation6 + $0x5e0] sm:$0xff]
        %v2101 = vld [vmem:[#allocation6 + $0x5e8] sm:$0xff]
        %v2102 = vld [vmem:[#allocation6 + $0x5f0] sm:$0xff]
        %v2103 = vld [vmem:[#allocation6 + $0x5f8] sm:$0xff]
        %v2104 = vld [vmem:[#allocation6 + $0x600] sm:$0xf]
        %v2105 = vld [vmem:[#allocation6 + $0x604] sm:$0xff]
        %v2106 = vld [vmem:[#allocation6 + $0x60c] sm:$0xff]
        %v2107 = vld [vmem:[#allocation6 + $0x614] sm:$0xff]
        %v2108 = vld [vmem:[#allocation6 + $0x61c] sm:$0xff]
        %v2109 = vld [vmem:[#allocation6 + $0x624] sm:$0xff]
        %v2110 = vld [vmem:[#allocation6 + $0x62c] sm:$0xf]
        %v2111 = vld [vmem:[#allocation6 + $0x630] sm:$0xff]
        %v2112 = vld [vmem:[#allocation6 + $0x638] sm:$0xff]
        %v2113 = vld [vmem:[#allocation6 + $0x640] sm:$0xff]
        %v2114 = vld [vmem:[#allocation6 + $0x648] sm:$0xff]
        %v2115 = vld [vmem:[#allocation6 + $0x650] sm:$0xff]
        %v2116 = vld [vmem:[#allocation6 + $0x658] sm:$0xf]
        %v2117 = vld [vmem:[#allocation6 + $0x65c] sm:$0xff]
        %v2118 = vld [vmem:[#allocation6 + $0x664] sm:$0xff]
        %v2119 = vld [vmem:[#allocation6 + $0x66c] sm:$0xff]
        %v2120 = vld [vmem:[#allocation6 + $0x674] sm:$0xff]
        %v2121 = vld [vmem:[#allocation6 + $0x67c] sm:$0xff]
        %v2122 = vld [vmem:[#allocation6 + $0x684] sm:$0xf]
        %v2123 = vld [vmem:[#allocation6 + $0x688] sm:$0xff]
        %v2124 = vld [vmem:[#allocation6 + $0x690] sm:$0xff]
        %v2125 = vld [vmem:[#allocation6 + $0x698] sm:$0xff]
        %v2126 = vld [vmem:[#allocation6 + $0x6a0] sm:$0xff]
        %v2127 = vld [vmem:[#allocation6 + $0x6a8] sm:$0xff]
        %v2128 = vld [vmem:[#allocation6 + $0x6b0] sm:$0xf]
        %v2129 = vld [vmem:[#allocation6 + $0x6b4] sm:$0xff]
        %v2130 = vld [vmem:[#allocation6 + $0x6bc] sm:$0xff]
        %v2131 = vld [vmem:[#allocation6 + $0x6c4] sm:$0xff]
        %v2132 = vld [vmem:[#allocation6 + $0x6cc] sm:$0xff]
        %v2133 = vld [vmem:[#allocation6 + $0x6d4] sm:$0xff]
        %v2134 = vld [vmem:[#allocation6 + $0x6dc] sm:$0xf]
        %v2135 = vld [vmem:[#allocation6 + $0x6e0] sm:$0xff]
        %v2136 = vld [vmem:[#allocation6 + $0x6e8] sm:$0xff]
        %v2137 = vld [vmem:[#allocation6 + $0x6f0] sm:$0xff]
        %v2138 = vld [vmem:[#allocation6 + $0x6f8] sm:$0xff]
        %v2139 = vld [vmem:[#allocation6 + $0x700] sm:$0xff]
        %v2140 = vld [vmem:[#allocation6 + $0x708] sm:$0xf]
        %v2141 = vld [vmem:[#allocation6 + $0x70c] sm:$0xff]
        %v2142 = vld [vmem:[#allocation6 + $0x714] sm:$0xff]
        %v2143 = vld [vmem:[#allocation6 + $0x71c] sm:$0xff]
        %v2144 = vld [vmem:[#allocation6 + $0x724] sm:$0xff]
        %v2145 = vld [vmem:[#allocation6 + $0x72c] sm:$0xff]
        %v2146 = vld [vmem:[#allocation6 + $0x734] sm:$0xf]
        %v2147 = vld [vmem:[#allocation6 + $0x738] sm:$0xff]
        %v2148 = vld [vmem:[#allocation6 + $0x740] sm:$0xff]
        %v2149 = vld [vmem:[#allocation6 + $0x748] sm:$0xff]
        %v2150 = vld [vmem:[#allocation6 + $0x750] sm:$0xff]
        %v2151 = vld [vmem:[#allocation6 + $0x758] sm:$0xff]
        %v2152 = vld [vmem:[#allocation6 + $0x760] sm:$0xf]
        %v2153 = vld [vmem:[#allocation6 + $0x764] sm:$0xff]
        %v2154 = vld [vmem:[#allocation6 + $0x76c] sm:$0xff]
        %v2155 = vld [vmem:[#allocation6 + $0x774] sm:$0xff]
        %v2156 = vld [vmem:[#allocation6 + $0x77c] sm:$0xff]
        %v2157 = vld [vmem:[#allocation6 + $0x784] sm:$0xff]
        %v2158 = vld [vmem:[#allocation6 + $0x78c] sm:$0xf]
        %v2159 = vld [vmem:[#allocation6 + $0x790] sm:$0xff]
        %v2160 = vld [vmem:[#allocation6 + $0x798] sm:$0xff]
        %v2161 = vld [vmem:[#allocation6 + $0x7a0] sm:$0xff]
        %v2162 = vld [vmem:[#allocation6 + $0x7a8] sm:$0xff]
        %v2163 = vld [vmem:[#allocation6 + $0x7b0] sm:$0xff]
        %v2164 = vld [vmem:[#allocation6 + $0x7b8] sm:$0xf]
        %v2165 = vld [vmem:[#allocation6 + $0x7bc] sm:$0xff]
        %v2166 = vld [vmem:[#allocation6 + $0x7c4] sm:$0xff]
        %v2167 = vld [vmem:[#allocation6 + $0x7cc] sm:$0xff]
        %v2168 = vld [vmem:[#allocation6 + $0x7d4] sm:$0xff]
        %v2169 = vld [vmem:[#allocation6 + $0x7dc] sm:$0xff]
        %v2170 = vld [vmem:[#allocation6 + $0x7e4] sm:$0xf]
        %v2171 = vld [vmem:[#allocation6 + $0x7e8] sm:$0xff]
        %v2172 = vld [vmem:[#allocation6 + $0x7f0] sm:$0xff]
        %v2173 = vld [vmem:[#allocation6 + $0x7f8] sm:$0xff]
        %v2174 = vld [vmem:[#allocation6 + $0x800] sm:$0xff]
        %v2175 = vld [vmem:[#allocation6 + $0x808] sm:$0xff]
        %v2176 = vld [vmem:[#allocation6 + $0x810] sm:$0xf]
        %v2177 = vld [vmem:[#allocation6 + $0x814] sm:$0xff]
        %v2178 = vld [vmem:[#allocation6 + $0x81c] sm:$0xff]
        %v2179 = vld [vmem:[#allocation6 + $0x824] sm:$0xff]
        %v2180 = vld [vmem:[#allocation6 + $0x82c] sm:$0xff]
        %v2181 = vld [vmem:[#allocation6 + $0x834] sm:$0xff]
        %v2182 = vld [vmem:[#allocation6 + $0x83c] sm:$0xf]
        %s2183 = scalar_lea.vmem [#allocation6], 2112
        %v2184 = vld [vmem:[%s2183] sm:$0xff]
        %v2185 = vld [vmem:[%s2183 + $0x8] sm:$0xff]
        %v2186 = vld [vmem:[%s2183 + $0x10] sm:$0xff]
        %v2187 = vld [vmem:[%s2183 + $0x18] sm:$0xff]
        %v2188 = vld [vmem:[%s2183 + $0x20] sm:$0xff]
        %v2189 = vld [vmem:[%s2183 + $0x28] sm:$0xf]
        %v2190 = vld [vmem:[%s2183 + $0x2c] sm:$0xff]
        %v2191 = vld [vmem:[%s2183 + $0x34] sm:$0xff]
        %v2192 = vld [vmem:[%s2183 + $0x3c] sm:$0xff]
        %v2193 = vld [vmem:[%s2183 + $0x44] sm:$0xff]
        %v2194 = vld [vmem:[%s2183 + $0x4c] sm:$0xff]
        %v2195 = vld [vmem:[%s2183 + $0x54] sm:$0xf]
        %v2196 = vld [vmem:[%s2183 + $0x58] sm:$0xff]
        %v2197 = vld [vmem:[%s2183 + $0x60] sm:$0xff]
        %v2198 = vld [vmem:[%s2183 + $0x68] sm:$0xff]
        %v2199 = vld [vmem:[%s2183 + $0x70] sm:$0xff]
        %v2200 = vld [vmem:[%s2183 + $0x78] sm:$0xff]
        %v2201 = vld [vmem:[%s2183 + $0x80] sm:$0xf]
        %v2202 = vld [vmem:[%s2183 + $0x84] sm:$0xff]
        %v2203 = vld [vmem:[%s2183 + $0x8c] sm:$0xff]
        %v2204 = vld [vmem:[%s2183 + $0x94] sm:$0xff]
        %v2205 = vld [vmem:[%s2183 + $0x9c] sm:$0xff]
        %v2206 = vld [vmem:[%s2183 + $0xa4] sm:$0xff]
        %v2207 = vld [vmem:[%s2183 + $0xac] sm:$0xf]
        %v2208 = vld [vmem:[%s2183 + $0xb0] sm:$0xff]
        %v2209 = vld [vmem:[%s2183 + $0xb8] sm:$0xff]
        %v2210 = vld [vmem:[%s2183 + $0xc0] sm:$0xff]
        %v2211 = vld [vmem:[%s2183 + $0xc8] sm:$0xff]
        %v2212 = vld [vmem:[%s2183 + $0xd0] sm:$0xff]
        %v2213 = vld [vmem:[%s2183 + $0xd8] sm:$0xf]
        %v2214 = vld [vmem:[%s2183 + $0xdc] sm:$0xff]
        %v2215 = vld [vmem:[%s2183 + $0xe4] sm:$0xff]
        %v2216 = vld [vmem:[%s2183 + $0xec] sm:$0xff]
        %v2217 = vld [vmem:[%s2183 + $0xf4] sm:$0xff]
        %v2218 = vld [vmem:[%s2183 + $0xfc] sm:$0xff]
        %v2219 = vld [vmem:[%s2183 + $0x104] sm:$0xf]
        %v2220 = vld [vmem:[%s2183 + $0x108] sm:$0xff]
        %v2221 = vld [vmem:[%s2183 + $0x110] sm:$0xff]
        %v2222 = vld [vmem:[%s2183 + $0x118] sm:$0xff]
        %v2223 = vld [vmem:[%s2183 + $0x120] sm:$0xff]
        %v2224 = vld [vmem:[%s2183 + $0x128] sm:$0xff]
        %v2225 = vld [vmem:[%s2183 + $0x130] sm:$0xf]
        %v2226 = vld [vmem:[%s2183 + $0x134] sm:$0xff]
        %v2227 = vld [vmem:[%s2183 + $0x13c] sm:$0xff]
        %v2228 = vld [vmem:[%s2183 + $0x144] sm:$0xff]
        %v2229 = vld [vmem:[%s2183 + $0x14c] sm:$0xff]
        %v2230 = vld [vmem:[%s2183 + $0x154] sm:$0xff]
        %v2231 = vld [vmem:[%s2183 + $0x15c] sm:$0xf]
        %v2232 = vld [vmem:[%s2183 + $0x160] sm:$0xff]
        %v2233 = vld [vmem:[%s2183 + $0x168] sm:$0xff]
        %v2234 = vld [vmem:[%s2183 + $0x170] sm:$0xff]
        %v2235 = vld [vmem:[%s2183 + $0x178] sm:$0xff]
        %v2236 = vld [vmem:[%s2183 + $0x180] sm:$0xff]
        %v2237 = vld [vmem:[%s2183 + $0x188] sm:$0xf]
        %v2238 = vld [vmem:[%s2183 + $0x18c] sm:$0xff]
        %v2239 = vld [vmem:[%s2183 + $0x194] sm:$0xff]
        %v2240 = vld [vmem:[%s2183 + $0x19c] sm:$0xff]
        %v2241 = vld [vmem:[%s2183 + $0x1a4] sm:$0xff]
        %v2242 = vld [vmem:[%s2183 + $0x1ac] sm:$0xff]
        %v2243 = vld [vmem:[%s2183 + $0x1b4] sm:$0xf]
        %v2244 = vld [vmem:[%s2183 + $0x1b8] sm:$0xff]
        %v2245 = vld [vmem:[%s2183 + $0x1c0] sm:$0xff]
        %v2246 = vld [vmem:[%s2183 + $0x1c8] sm:$0xff]
        %v2247 = vld [vmem:[%s2183 + $0x1d0] sm:$0xff]
        %v2248 = vld [vmem:[%s2183 + $0x1d8] sm:$0xff]
        %v2249 = vld [vmem:[%s2183 + $0x1e0] sm:$0xf]
        %v2250 = vld [vmem:[%s2183 + $0x1e4] sm:$0xff]
        %v2251 = vld [vmem:[%s2183 + $0x1ec] sm:$0xff]
        %v2252 = vld [vmem:[%s2183 + $0x1f4] sm:$0xff]
        %v2253 = vld [vmem:[%s2183 + $0x1fc] sm:$0xff]
        %v2254 = vld [vmem:[%s2183 + $0x204] sm:$0xff]
        %v2255 = vld [vmem:[%s2183 + $0x20c] sm:$0xf]
        %v2256 = vld [vmem:[%s2183 + $0x210] sm:$0xff]
        %v2257 = vld [vmem:[%s2183 + $0x218] sm:$0xff]
        %v2258 = vld [vmem:[%s2183 + $0x220] sm:$0xff]
        %v2259 = vld [vmem:[%s2183 + $0x228] sm:$0xff]
        %v2260 = vld [vmem:[%s2183 + $0x230] sm:$0xff]
        %v2261 = vld [vmem:[%s2183 + $0x238] sm:$0xf]
        %v2262 = vld [vmem:[%s2183 + $0x23c] sm:$0xff]
        %v2263 = vld [vmem:[%s2183 + $0x244] sm:$0xff]
        %v2264 = vld [vmem:[%s2183 + $0x24c] sm:$0xff]
        %v2265 = vld [vmem:[%s2183 + $0x254] sm:$0xff]
        %v2266 = vld [vmem:[%s2183 + $0x25c] sm:$0xff]
        %v2267 = vld [vmem:[%s2183 + $0x264] sm:$0xf]
        %v2268 = vld [vmem:[%s2183 + $0x268] sm:$0xff]
        %v2269 = vld [vmem:[%s2183 + $0x270] sm:$0xff]
        %v2270 = vld [vmem:[%s2183 + $0x278] sm:$0xff]
        %v2271 = vld [vmem:[%s2183 + $0x280] sm:$0xff]
        %v2272 = vld [vmem:[%s2183 + $0x288] sm:$0xff]
        %v2273 = vld [vmem:[%s2183 + $0x290] sm:$0xf]
        %v2274 = vld [vmem:[%s2183 + $0x294] sm:$0xff]
        %v2275 = vld [vmem:[%s2183 + $0x29c] sm:$0xff]
        %v2276 = vld [vmem:[%s2183 + $0x2a4] sm:$0xff]
        %v2277 = vld [vmem:[%s2183 + $0x2ac] sm:$0xff]
        %v2278 = vld [vmem:[%s2183 + $0x2b4] sm:$0xff]
        %v2279 = vld [vmem:[%s2183 + $0x2bc] sm:$0xf]
        %v2280 = vld [vmem:[%s2183 + $0x2c0] sm:$0xff]
        %v2281 = vld [vmem:[%s2183 + $0x2c8] sm:$0xff]
        %v2282 = vld [vmem:[%s2183 + $0x2d0] sm:$0xff]
        %v2283 = vld [vmem:[%s2183 + $0x2d8] sm:$0xff]
        %v2284 = vld [vmem:[%s2183 + $0x2e0] sm:$0xff]
        %v2285 = vld [vmem:[%s2183 + $0x2e8] sm:$0xf]
        %v2286 = vld [vmem:[%s2183 + $0x2ec] sm:$0xff]
        %v2287 = vld [vmem:[%s2183 + $0x2f4] sm:$0xff]
        %v2288 = vld [vmem:[%s2183 + $0x2fc] sm:$0xff]
        %v2289 = vld [vmem:[%s2183 + $0x304] sm:$0xff]
        %v2290 = vld [vmem:[%s2183 + $0x30c] sm:$0xff]
        %v2291 = vld [vmem:[%s2183 + $0x314] sm:$0xf]
        %v2292 = vld [vmem:[%s2183 + $0x318] sm:$0xff]
        %v2293 = vld [vmem:[%s2183 + $0x320] sm:$0xff]
        %v2294 = vld [vmem:[%s2183 + $0x328] sm:$0xff]
        %v2295 = vld [vmem:[%s2183 + $0x330] sm:$0xff]
        %v2296 = vld [vmem:[%s2183 + $0x338] sm:$0xff]
        %v2297 = vld [vmem:[%s2183 + $0x340] sm:$0xf]
        %v2298 = vld [vmem:[%s2183 + $0x344] sm:$0xff]
        %v2299 = vld [vmem:[%s2183 + $0x34c] sm:$0xff]
        %v2300 = vld [vmem:[%s2183 + $0x354] sm:$0xff]
        %v2301 = vld [vmem:[%s2183 + $0x35c] sm:$0xff]
        %v2302 = vld [vmem:[%s2183 + $0x364] sm:$0xff]
        %v2303 = vld [vmem:[%s2183 + $0x36c] sm:$0xf]
        %v2304 = vld [vmem:[%s2183 + $0x370] sm:$0xff]
        %v2305 = vld [vmem:[%s2183 + $0x378] sm:$0xff]
        %v2306 = vld [vmem:[%s2183 + $0x380] sm:$0xff]
        %v2307 = vld [vmem:[%s2183 + $0x388] sm:$0xff]
        %v2308 = vld [vmem:[%s2183 + $0x390] sm:$0xff]
        %v2309 = vld [vmem:[%s2183 + $0x398] sm:$0xf]
        %v2310 = vld [vmem:[%s2183 + $0x39c] sm:$0xff]
        %v2311 = vld [vmem:[%s2183 + $0x3a4] sm:$0xff]
        %v2312 = vld [vmem:[%s2183 + $0x3ac] sm:$0xff]
        %v2313 = vld [vmem:[%s2183 + $0x3b4] sm:$0xff]
        %v2314 = vld [vmem:[%s2183 + $0x3bc] sm:$0xff]
        %v2315 = vld [vmem:[%s2183 + $0x3c4] sm:$0xf]
        %v2316 = vld [vmem:[%s2183 + $0x3c8] sm:$0xff]
        %v2317 = vld [vmem:[%s2183 + $0x3d0] sm:$0xff]
        %v2318 = vld [vmem:[%s2183 + $0x3d8] sm:$0xff]
        %v2319 = vld [vmem:[%s2183 + $0x3e0] sm:$0xff]
        %v2320 = vld [vmem:[%s2183 + $0x3e8] sm:$0xff]
        %v2321 = vld [vmem:[%s2183 + $0x3f0] sm:$0xf]
        %v2322 = vld [vmem:[%s2183 + $0x3f4] sm:$0xff]
        %v2323 = vld [vmem:[%s2183 + $0x3fc] sm:$0xff]
        %v2324 = vld [vmem:[%s2183 + $0x404] sm:$0xff]
        %v2325 = vld [vmem:[%s2183 + $0x40c] sm:$0xff]
        %v2326 = vld [vmem:[%s2183 + $0x414] sm:$0xff]
        %v2327 = vld [vmem:[%s2183 + $0x41c] sm:$0xf]
        %v2328 = vld [vmem:[%s2183 + $0x420] sm:$0xff]
        %v2329 = vld [vmem:[%s2183 + $0x428] sm:$0xff]
        %v2330 = vld [vmem:[%s2183 + $0x430] sm:$0xff]
        %v2331 = vld [vmem:[%s2183 + $0x438] sm:$0xff]
        %v2332 = vld [vmem:[%s2183 + $0x440] sm:$0xff]
        %v2333 = vld [vmem:[%s2183 + $0x448] sm:$0xf]
        %v2334 = vld [vmem:[%s2183 + $0x44c] sm:$0xff]
        %v2335 = vld [vmem:[%s2183 + $0x454] sm:$0xff]
        %v2336 = vld [vmem:[%s2183 + $0x45c] sm:$0xff]
        %v2337 = vld [vmem:[%s2183 + $0x464] sm:$0xff]
        %v2338 = vld [vmem:[%s2183 + $0x46c] sm:$0xff]
        %v2339 = vld [vmem:[%s2183 + $0x474] sm:$0xf]
        %v2340 = vld [vmem:[%s2183 + $0x478] sm:$0xff]
        %v2341 = vld [vmem:[%s2183 + $0x480] sm:$0xff]
        %v2342 = vld [vmem:[%s2183 + $0x488] sm:$0xff]
        %v2343 = vld [vmem:[%s2183 + $0x490] sm:$0xff]
        %v2344 = vld [vmem:[%s2183 + $0x498] sm:$0xff]
        %v2345 = vld [vmem:[%s2183 + $0x4a0] sm:$0xf]
        %v2346 = vld [vmem:[%s2183 + $0x4a4] sm:$0xff]
        %v2347 = vld [vmem:[%s2183 + $0x4ac] sm:$0xff]
        %v2348 = vld [vmem:[%s2183 + $0x4b4] sm:$0xff]
        %v2349 = vld [vmem:[%s2183 + $0x4bc] sm:$0xff]
        %v2350 = vld [vmem:[%s2183 + $0x4c4] sm:$0xff]
        %v2351 = vld [vmem:[%s2183 + $0x4cc] sm:$0xf]
        %v2352 = vld [vmem:[%s2183 + $0x4d0] sm:$0xff]
        %v2353 = vld [vmem:[%s2183 + $0x4d8] sm:$0xff]
        %v2354 = vld [vmem:[%s2183 + $0x4e0] sm:$0xff]
        %v2355 = vld [vmem:[%s2183 + $0x4e8] sm:$0xff]
        %v2356 = vld [vmem:[%s2183 + $0x4f0] sm:$0xff]
        %v2357 = vld [vmem:[%s2183 + $0x4f8] sm:$0xf]
        %v2358 = vld [vmem:[%s2183 + $0x4fc] sm:$0xff]
        %v2359 = vld [vmem:[%s2183 + $0x504] sm:$0xff]
        %v2360 = vld [vmem:[%s2183 + $0x50c] sm:$0xff]
        %v2361 = vld [vmem:[%s2183 + $0x514] sm:$0xff]
        %v2362 = vld [vmem:[%s2183 + $0x51c] sm:$0xff]
        %v2363 = vld [vmem:[%s2183 + $0x524] sm:$0xf]
        %v2364 = vld [vmem:[%s2183 + $0x528] sm:$0xff]
        %v2365 = vld [vmem:[%s2183 + $0x530] sm:$0xff]
        %v2366 = vld [vmem:[%s2183 + $0x538] sm:$0xff]
        %v2367 = vld [vmem:[%s2183 + $0x540] sm:$0xff]
        %v2368 = vld [vmem:[%s2183 + $0x548] sm:$0xff]
        %v2369 = vld [vmem:[%s2183 + $0x550] sm:$0xf]
        %v2370 = vld [vmem:[%s2183 + $0x554] sm:$0xff]
        %v2371 = vld [vmem:[%s2183 + $0x55c] sm:$0xff]
        %v2372 = vld [vmem:[%s2183 + $0x564] sm:$0xff]
        %v2373 = vld [vmem:[%s2183 + $0x56c] sm:$0xff]
        %v2374 = vld [vmem:[%s2183 + $0x574] sm:$0xff]
        %v2375 = vld [vmem:[%s2183 + $0x57c] sm:$0xf]
        %v2376 = vld [vmem:[%s2183 + $0x580] sm:$0xff]
        %v2377 = vld [vmem:[%s2183 + $0x588] sm:$0xff]
        %v2378 = vld [vmem:[%s2183 + $0x590] sm:$0xff]
        %v2379 = vld [vmem:[%s2183 + $0x598] sm:$0xff]
        %v2380 = vld [vmem:[%s2183 + $0x5a0] sm:$0xff]
        %v2381 = vld [vmem:[%s2183 + $0x5a8] sm:$0xf]
        %v2382 = vld [vmem:[%s2183 + $0x5ac] sm:$0xff]
        %v2383 = vld [vmem:[%s2183 + $0x5b4] sm:$0xff]
        %v2384 = vld [vmem:[%s2183 + $0x5bc] sm:$0xff]
        %v2385 = vld [vmem:[%s2183 + $0x5c4] sm:$0xff]
        %v2386 = vld [vmem:[%s2183 + $0x5cc] sm:$0xff]
        %v2387 = vld [vmem:[%s2183 + $0x5d4] sm:$0xf]
        %v2388 = vld [vmem:[%s2183 + $0x5d8] sm:$0xff]
        %v2389 = vld [vmem:[%s2183 + $0x5e0] sm:$0xff]
        %v2390 = vld [vmem:[%s2183 + $0x5e8] sm:$0xff]
        %v2391 = vld [vmem:[%s2183 + $0x5f0] sm:$0xff]
        %v2392 = vld [vmem:[%s2183 + $0x5f8] sm:$0xff]
        %v2393 = vld [vmem:[%s2183 + $0x600] sm:$0xf]
        %v2394 = vld [vmem:[%s2183 + $0x604] sm:$0xff]
        %v2395 = vld [vmem:[%s2183 + $0x60c] sm:$0xff]
        %v2396 = vld [vmem:[%s2183 + $0x614] sm:$0xff]
        %v2397 = vld [vmem:[%s2183 + $0x61c] sm:$0xff]
        %v2398 = vld [vmem:[%s2183 + $0x624] sm:$0xff]
        %v2399 = vld [vmem:[%s2183 + $0x62c] sm:$0xf]
        %v2400 = vld [vmem:[%s2183 + $0x630] sm:$0xff]
        %v2401 = vld [vmem:[%s2183 + $0x638] sm:$0xff]
        %v2402 = vld [vmem:[%s2183 + $0x640] sm:$0xff]
        %v2403 = vld [vmem:[%s2183 + $0x648] sm:$0xff]
        %v2404 = vld [vmem:[%s2183 + $0x650] sm:$0xff]
        %v2405 = vld [vmem:[%s2183 + $0x658] sm:$0xf]
        %v2406 = vld [vmem:[%s2183 + $0x65c] sm:$0xff]
        %v2407 = vld [vmem:[%s2183 + $0x664] sm:$0xff]
        %v2408 = vld [vmem:[%s2183 + $0x66c] sm:$0xff]
        %v2409 = vld [vmem:[%s2183 + $0x674] sm:$0xff]
        %v2410 = vld [vmem:[%s2183 + $0x67c] sm:$0xff]
        %v2411 = vld [vmem:[%s2183 + $0x684] sm:$0xf]
        %v2412 = vld [vmem:[%s2183 + $0x688] sm:$0xff]
        %v2413 = vld [vmem:[%s2183 + $0x690] sm:$0xff]
        %v2414 = vld [vmem:[%s2183 + $0x698] sm:$0xff]
        %v2415 = vld [vmem:[%s2183 + $0x6a0] sm:$0xff]
        %v2416 = vld [vmem:[%s2183 + $0x6a8] sm:$0xff]
        %v2417 = vld [vmem:[%s2183 + $0x6b0] sm:$0xf]
        %v2418 = vld [vmem:[%s2183 + $0x6b4] sm:$0xff]
        %v2419 = vld [vmem:[%s2183 + $0x6bc] sm:$0xff]
        %v2420 = vld [vmem:[%s2183 + $0x6c4] sm:$0xff]
        %v2421 = vld [vmem:[%s2183 + $0x6cc] sm:$0xff]
        %v2422 = vld [vmem:[%s2183 + $0x6d4] sm:$0xff]
        %v2423 = vld [vmem:[%s2183 + $0x6dc] sm:$0xf]
        %v2424 = vld [vmem:[%s2183 + $0x6e0] sm:$0xff]
        %v2425 = vld [vmem:[%s2183 + $0x6e8] sm:$0xff]
        %v2426 = vld [vmem:[%s2183 + $0x6f0] sm:$0xff]
        %v2427 = vld [vmem:[%s2183 + $0x6f8] sm:$0xff]
        %v2428 = vld [vmem:[%s2183 + $0x700] sm:$0xff]
        %v2429 = vld [vmem:[%s2183 + $0x708] sm:$0xf]
        %v2430 = vld [vmem:[%s2183 + $0x70c] sm:$0xff]
        %v2431 = vld [vmem:[%s2183 + $0x714] sm:$0xff]
        %v2432 = vld [vmem:[%s2183 + $0x71c] sm:$0xff]
        %v2433 = vld [vmem:[%s2183 + $0x724] sm:$0xff]
        %v2434 = vld [vmem:[%s2183 + $0x72c] sm:$0xff]
        %v2435 = vld [vmem:[%s2183 + $0x734] sm:$0xf]
        %v2436 = vld [vmem:[%s2183 + $0x738] sm:$0xff]
        %v2437 = vld [vmem:[%s2183 + $0x740] sm:$0xff]
        %v2438 = vld [vmem:[%s2183 + $0x748] sm:$0xff]
        %v2439 = vld [vmem:[%s2183 + $0x750] sm:$0xff]
        %v2440 = vld [vmem:[%s2183 + $0x758] sm:$0xff]
        %v2441 = vld [vmem:[%s2183 + $0x760] sm:$0xf]
        %v2442 = vld [vmem:[%s2183 + $0x764] sm:$0xff]
        %v2443 = vld [vmem:[%s2183 + $0x76c] sm:$0xff]
        %v2444 = vld [vmem:[%s2183 + $0x774] sm:$0xff]
        %v2445 = vld [vmem:[%s2183 + $0x77c] sm:$0xff]
        %v2446 = vld [vmem:[%s2183 + $0x784] sm:$0xff]
        %v2447 = vld [vmem:[%s2183 + $0x78c] sm:$0xf]
        %v2448 = vld [vmem:[%s2183 + $0x790] sm:$0xff]
        %v2449 = vld [vmem:[%s2183 + $0x798] sm:$0xff]
        %v2450 = vld [vmem:[%s2183 + $0x7a0] sm:$0xff]
        %v2451 = vld [vmem:[%s2183 + $0x7a8] sm:$0xff]
        %v2452 = vld [vmem:[%s2183 + $0x7b0] sm:$0xff]
        %v2453 = vld [vmem:[%s2183 + $0x7b8] sm:$0xf]
        %v2454 = vld [vmem:[%s2183 + $0x7bc] sm:$0xff]
        %v2455 = vld [vmem:[%s2183 + $0x7c4] sm:$0xff]
        %v2456 = vld [vmem:[%s2183 + $0x7cc] sm:$0xff]
        %v2457 = vld [vmem:[%s2183 + $0x7d4] sm:$0xff]
        %v2458 = vld [vmem:[%s2183 + $0x7dc] sm:$0xff]
        %v2459 = vld [vmem:[%s2183 + $0x7e4] sm:$0xf]
        %v2460 = vld [vmem:[%s2183 + $0x7e8] sm:$0xff]
        %v2461 = vld [vmem:[%s2183 + $0x7f0] sm:$0xff]
        %v2462 = vld [vmem:[%s2183 + $0x7f8] sm:$0xff]
        %v2463 = vld [vmem:[%s2183 + $0x800] sm:$0xff]
        %v2464 = vld [vmem:[%s2183 + $0x808] sm:$0xff]
        %v2465 = vld [vmem:[%s2183 + $0x810] sm:$0xf]
        %v2466 = vld [vmem:[%s2183 + $0x814] sm:$0xff]
        %v2467 = vld [vmem:[%s2183 + $0x81c] sm:$0xff]
        %v2468 = vld [vmem:[%s2183 + $0x824] sm:$0xff]
        %v2469 = vld [vmem:[%s2183 + $0x82c] sm:$0xff]
        %v2470 = vld [vmem:[%s2183 + $0x834] sm:$0xff]
        %v2471 = vld [vmem:[%s2183 + $0x83c] sm:$0xf]
        %v2474 = vunpack.c.l.b16 %v1889
        %v2475 = vunpack.c.h.b16 %v1889
        %v2476 = vunpack.c.l.b16 %v1890
        %v2477 = vpack.c.b16 %v2474, %v2474
        %v2478 = vpack.c.b16 %v2475, %v2475
        %v2479 = vpack.c.b16 %v2476, %v2476
        %v2771 = vunpack.c.l.b16 %v2184
        %v2772 = vunpack.c.h.b16 %v2184
        %v2773 = vunpack.c.l.b16 %v2185
        %v2774 = vunpack.c.h.b16 %v2185
        %v2775 = vunpack.c.l.b16 %v2186
        %v2776 = vunpack.c.h.b16 %v2186
        %v2777 = vunpack.c.l.b16 %v2187
        %v2778 = vunpack.c.h.b16 %v2187
        %v2779 = vunpack.c.l.b16 %v2188
        %v2780 = vunpack.c.h.b16 %v2188
        %v2781 = vunpack.c.l.b16 %v2189
        %v2782 = vunpack.c.l.b16 %v2190
        %v2783 = vunpack.c.h.b16 %v2190
        %v2784 = vunpack.c.l.b16 %v2191
        %v2785 = vunpack.c.h.b16 %v2191
        %v2786 = vunpack.c.l.b16 %v2192
        %v2787 = vunpack.c.h.b16 %v2192
        %v2788 = vunpack.c.l.b16 %v2193
        %v2789 = vunpack.c.h.b16 %v2193
        %v2790 = vunpack.c.l.b16 %v2194
        %v2791 = vunpack.c.h.b16 %v2194
        %v2792 = vunpack.c.l.b16 %v2195
        %v2793 = vunpack.c.l.b16 %v2196
        %v2794 = vunpack.c.h.b16 %v2196
        %v2795 = vunpack.c.l.b16 %v2197
        %v2796 = vunpack.c.h.b16 %v2197
        %v2797 = vunpack.c.l.b16 %v2198
        %v2798 = vunpack.c.h.b16 %v2198
        %v2799 = vunpack.c.l.b16 %v2199
        %v2800 = vunpack.c.h.b16 %v2199
        %v2801 = vunpack.c.l.b16 %v2200
        %v2802 = vunpack.c.h.b16 %v2200
        %v2803 = vunpack.c.l.b16 %v2201
        %v2804 = vunpack.c.l.b16 %v2202
        %v2805 = vunpack.c.h.b16 %v2202
        %v2806 = vunpack.c.l.b16 %v2203
        %v2807 = vunpack.c.h.b16 %v2203
        %v2808 = vunpack.c.l.b16 %v2204
        %v2809 = vunpack.c.h.b16 %v2204
        %v2810 = vunpack.c.l.b16 %v2205
        %v2811 = vunpack.c.h.b16 %v2205
        %v2812 = vunpack.c.l.b16 %v2206
        %v2813 = vunpack.c.h.b16 %v2206
        %v2814 = vunpack.c.l.b16 %v2207
        %v2815 = vunpack.c.l.b16 %v2208
        %v2816 = vunpack.c.h.b16 %v2208
        %v2817 = vunpack.c.l.b16 %v2209
        %v2818 = vunpack.c.h.b16 %v2209
        %v2819 = vunpack.c.l.b16 %v2210
        %v2820 = vunpack.c.h.b16 %v2210
        %v2821 = vunpack.c.l.b16 %v2211
        %v2822 = vunpack.c.h.b16 %v2211
        %v2823 = vunpack.c.l.b16 %v2212
        %v2824 = vunpack.c.h.b16 %v2212
        %v2825 = vunpack.c.l.b16 %v2213
        %v2826 = vunpack.c.l.b16 %v2214
        %v2827 = vunpack.c.h.b16 %v2214
        %v2828 = vunpack.c.l.b16 %v2215
        %v2829 = vunpack.c.h.b16 %v2215
        %v2830 = vunpack.c.l.b16 %v2216
        %v2831 = vunpack.c.h.b16 %v2216
        %v2832 = vunpack.c.l.b16 %v2217
        %v2833 = vunpack.c.h.b16 %v2217
        %v2834 = vunpack.c.l.b16 %v2218
        %v2835 = vunpack.c.h.b16 %v2218
        %v2836 = vunpack.c.l.b16 %v2219
        %v2837 = vunpack.c.l.b16 %v2220
        %v2838 = vunpack.c.h.b16 %v2220
        %v2839 = vunpack.c.l.b16 %v2221
        %v2840 = vunpack.c.h.b16 %v2221
        %v2841 = vunpack.c.l.b16 %v2222
        %v2842 = vunpack.c.h.b16 %v2222
        %v2843 = vunpack.c.l.b16 %v2223
        %v2844 = vunpack.c.h.b16 %v2223
        %v2845 = vunpack.c.l.b16 %v2224
        %v2846 = vunpack.c.h.b16 %v2224
        %v2847 = vunpack.c.l.b16 %v2225
        %v2848 = vunpack.c.l.b16 %v2226
        %v2849 = vunpack.c.h.b16 %v2226
        %v2850 = vunpack.c.l.b16 %v2227
        %v2851 = vunpack.c.h.b16 %v2227
        %v2852 = vunpack.c.l.b16 %v2228
        %v2853 = vunpack.c.h.b16 %v2228
        %v2854 = vunpack.c.l.b16 %v2229
        %v2855 = vunpack.c.h.b16 %v2229
        %v2856 = vunpack.c.l.b16 %v2230
        %v2857 = vunpack.c.h.b16 %v2230
        %v2858 = vunpack.c.l.b16 %v2231
        %v2859 = vunpack.c.l.b16 %v2232
        %v2860 = vunpack.c.h.b16 %v2232
        %v2861 = vunpack.c.l.b16 %v2233
        %v2862 = vunpack.c.h.b16 %v2233
        %v2863 = vunpack.c.l.b16 %v2234
        %v2864 = vunpack.c.h.b16 %v2234
        %v2865 = vunpack.c.l.b16 %v2235
        %v2866 = vunpack.c.h.b16 %v2235
        %v2867 = vunpack.c.l.b16 %v2236
        %v2868 = vunpack.c.h.b16 %v2236
        %v2869 = vunpack.c.l.b16 %v2237
        %v2870 = vunpack.c.l.b16 %v2238
        %v2871 = vunpack.c.h.b16 %v2238
        %v2872 = vunpack.c.l.b16 %v2239
        %v2873 = vunpack.c.h.b16 %v2239
        %v2874 = vunpack.c.l.b16 %v2240
        %v2875 = vunpack.c.h.b16 %v2240
        %v2876 = vunpack.c.l.b16 %v2241
        %v2877 = vunpack.c.h.b16 %v2241
        %v2878 = vunpack.c.l.b16 %v2242
        %v2879 = vunpack.c.h.b16 %v2242
        %v2880 = vunpack.c.l.b16 %v2243
        %v2881 = vunpack.c.l.b16 %v2244
        %v2882 = vunpack.c.h.b16 %v2244
        %v2883 = vunpack.c.l.b16 %v2245
        %v2884 = vunpack.c.h.b16 %v2245
        %v2885 = vunpack.c.l.b16 %v2246
        %v2886 = vunpack.c.h.b16 %v2246
        %v2887 = vunpack.c.l.b16 %v2247
        %v2888 = vunpack.c.h.b16 %v2247
        %v2889 = vunpack.c.l.b16 %v2248
        %v2890 = vunpack.c.h.b16 %v2248
        %v2891 = vunpack.c.l.b16 %v2249
        %v2892 = vunpack.c.l.b16 %v2250
        %v2893 = vunpack.c.h.b16 %v2250
        %v2894 = vunpack.c.l.b16 %v2251
        %v2895 = vunpack.c.h.b16 %v2251
        %v2896 = vunpack.c.l.b16 %v2252
        %v2897 = vunpack.c.h.b16 %v2252
        %v2898 = vunpack.c.l.b16 %v2253
        %v2899 = vunpack.c.h.b16 %v2253
        %v2900 = vunpack.c.l.b16 %v2254
        %v2901 = vunpack.c.h.b16 %v2254
        %v2902 = vunpack.c.l.b16 %v2255
        %v2903 = vunpack.c.l.b16 %v2256
        %v2904 = vunpack.c.h.b16 %v2256
        %v2905 = vunpack.c.l.b16 %v2257
        %v2906 = vunpack.c.h.b16 %v2257
        %v2907 = vunpack.c.l.b16 %v2258
        %v2908 = vunpack.c.h.b16 %v2258
        %v2909 = vunpack.c.l.b16 %v2259
        %v2910 = vunpack.c.h.b16 %v2259
        %v2911 = vunpack.c.l.b16 %v2260
        %v2912 = vunpack.c.h.b16 %v2260
        %v2913 = vunpack.c.l.b16 %v2261
        %v2914 = vunpack.c.l.b16 %v2262
        %v2915 = vunpack.c.h.b16 %v2262
        %v2916 = vunpack.c.l.b16 %v2263
        %v2917 = vunpack.c.h.b16 %v2263
        %v2918 = vunpack.c.l.b16 %v2264
        %v2919 = vunpack.c.h.b16 %v2264
        %v2920 = vunpack.c.l.b16 %v2265
        %v2921 = vunpack.c.h.b16 %v2265
        %v2922 = vunpack.c.l.b16 %v2266
        %v2923 = vunpack.c.h.b16 %v2266
        %v2924 = vunpack.c.l.b16 %v2267
        %v2925 = vunpack.c.l.b16 %v2268
        %v2926 = vunpack.c.h.b16 %v2268
        %v2927 = vunpack.c.l.b16 %v2269
        %v2928 = vunpack.c.h.b16 %v2269
        %v2929 = vunpack.c.l.b16 %v2270
        %v2930 = vunpack.c.h.b16 %v2270
        %v2931 = vunpack.c.l.b16 %v2271
        %v2932 = vunpack.c.h.b16 %v2271
        %v2933 = vunpack.c.l.b16 %v2272
        %v2934 = vunpack.c.h.b16 %v2272
        %v2935 = vunpack.c.l.b16 %v2273
        %v2936 = vunpack.c.l.b16 %v2274
        %v2937 = vunpack.c.h.b16 %v2274
        %v2938 = vunpack.c.l.b16 %v2275
        %v2939 = vunpack.c.h.b16 %v2275
        %v2940 = vunpack.c.l.b16 %v2276
        %v2941 = vunpack.c.h.b16 %v2276
        %v2942 = vunpack.c.l.b16 %v2277
        %v2943 = vunpack.c.h.b16 %v2277
        %v2944 = vunpack.c.l.b16 %v2278
        %v2945 = vunpack.c.h.b16 %v2278
        %v2946 = vunpack.c.l.b16 %v2279
        %v2947 = vunpack.c.l.b16 %v2280
        %v2948 = vunpack.c.h.b16 %v2280
        %v2949 = vunpack.c.l.b16 %v2281
        %v2950 = vunpack.c.h.b16 %v2281
        %v2951 = vunpack.c.l.b16 %v2282
        %v2952 = vunpack.c.h.b16 %v2282
        %v2953 = vunpack.c.l.b16 %v2283
        %v2954 = vunpack.c.h.b16 %v2283
        %v2955 = vunpack.c.l.b16 %v2284
        %v2956 = vunpack.c.h.b16 %v2284
        %v2957 = vunpack.c.l.b16 %v2285
        %v2958 = vunpack.c.l.b16 %v2286
        %v2959 = vunpack.c.h.b16 %v2286
        %v2960 = vunpack.c.l.b16 %v2287
        %v2961 = vunpack.c.h.b16 %v2287
        %v2962 = vunpack.c.l.b16 %v2288
        %v2963 = vunpack.c.h.b16 %v2288
        %v2964 = vunpack.c.l.b16 %v2289
        %v2965 = vunpack.c.h.b16 %v2289
        %v2966 = vunpack.c.l.b16 %v2290
        %v2967 = vunpack.c.h.b16 %v2290
        %v2968 = vunpack.c.l.b16 %v2291
        %v2969 = vunpack.c.l.b16 %v2292
        %v2970 = vunpack.c.h.b16 %v2292
        %v2971 = vunpack.c.l.b16 %v2293
        %v2972 = vunpack.c.h.b16 %v2293
        %v2973 = vunpack.c.l.b16 %v2294
        %v2974 = vunpack.c.h.b16 %v2294
        %v2975 = vunpack.c.l.b16 %v2295
        %v2976 = vunpack.c.h.b16 %v2295
        %v2977 = vunpack.c.l.b16 %v2296
        %v2978 = vunpack.c.h.b16 %v2296
        %v2979 = vunpack.c.l.b16 %v2297
        %v2980 = vunpack.c.l.b16 %v2298
        %v2981 = vunpack.c.h.b16 %v2298
        %v2982 = vunpack.c.l.b16 %v2299
        %v2983 = vunpack.c.h.b16 %v2299
        %v2984 = vunpack.c.l.b16 %v2300
        %v2985 = vunpack.c.h.b16 %v2300
        %v2986 = vunpack.c.l.b16 %v2301
        %v2987 = vunpack.c.h.b16 %v2301
        %v2988 = vunpack.c.l.b16 %v2302
        %v2989 = vunpack.c.h.b16 %v2302
        %v2990 = vunpack.c.l.b16 %v2303
        %v2991 = vunpack.c.l.b16 %v2304
        %v2992 = vunpack.c.h.b16 %v2304
        %v2993 = vunpack.c.l.b16 %v2305
        %v2994 = vunpack.c.h.b16 %v2305
        %v2995 = vunpack.c.l.b16 %v2306
        %v2996 = vunpack.c.h.b16 %v2306
        %v2997 = vunpack.c.l.b16 %v2307
        %v2998 = vunpack.c.h.b16 %v2307
        %v2999 = vunpack.c.l.b16 %v2308
        %v3000 = vunpack.c.h.b16 %v2308
        %v3001 = vunpack.c.l.b16 %v2309
        %v3002 = vunpack.c.l.b16 %v2310
        %v3003 = vunpack.c.h.b16 %v2310
        %v3004 = vunpack.c.l.b16 %v2311
        %v3005 = vunpack.c.h.b16 %v2311
        %v3006 = vunpack.c.l.b16 %v2312
        %v3007 = vunpack.c.h.b16 %v2312
        %v3008 = vunpack.c.l.b16 %v2313
        %v3009 = vunpack.c.h.b16 %v2313
        %v3010 = vunpack.c.l.b16 %v2314
        %v3011 = vunpack.c.h.b16 %v2314
        %v3012 = vunpack.c.l.b16 %v2315
        %v3013 = vunpack.c.l.b16 %v2316
        %v3014 = vunpack.c.h.b16 %v2316
        %v3015 = vunpack.c.l.b16 %v2317
        %v3016 = vunpack.c.h.b16 %v2317
        %v3017 = vunpack.c.l.b16 %v2318
        %v3018 = vunpack.c.h.b16 %v2318
        %v3019 = vunpack.c.l.b16 %v2319
        %v3020 = vunpack.c.h.b16 %v2319
        %v3021 = vunpack.c.l.b16 %v2320
        %v3022 = vunpack.c.h.b16 %v2320
        %v3023 = vunpack.c.l.b16 %v2321
        %v3024 = vunpack.c.l.b16 %v2322
        %v3025 = vunpack.c.h.b16 %v2322
        %v3026 = vunpack.c.l.b16 %v2323
        %v3027 = vunpack.c.h.b16 %v2323
        %v3028 = vunpack.c.l.b16 %v2324
        %v3029 = vunpack.c.h.b16 %v2324
        %v3030 = vunpack.c.l.b16 %v2325
        %v3031 = vunpack.c.h.b16 %v2325
        %v3032 = vunpack.c.l.b16 %v2326
        %v3033 = vunpack.c.h.b16 %v2326
        %v3034 = vunpack.c.l.b16 %v2327
        %v3035 = vunpack.c.l.b16 %v2328
        %v3036 = vunpack.c.h.b16 %v2328
        %v3037 = vunpack.c.l.b16 %v2329
        %v3038 = vunpack.c.h.b16 %v2329
        %v3039 = vunpack.c.l.b16 %v2330
        %v3040 = vunpack.c.h.b16 %v2330
        %v3041 = vunpack.c.l.b16 %v2331
        %v3042 = vunpack.c.h.b16 %v2331
        %v3043 = vunpack.c.l.b16 %v2332
        %v3044 = vunpack.c.h.b16 %v2332
        %v3045 = vunpack.c.l.b16 %v2333
        %v3046 = vunpack.c.l.b16 %v2334
        %v3047 = vunpack.c.h.b16 %v2334
        %v3048 = vunpack.c.l.b16 %v2335
        %v3049 = vunpack.c.h.b16 %v2335
        %v3050 = vunpack.c.l.b16 %v2336
        %v3051 = vunpack.c.h.b16 %v2336
        %v3052 = vunpack.c.l.b16 %v2337
        %v3053 = vunpack.c.h.b16 %v2337
        %v3054 = vunpack.c.l.b16 %v2338
        %v3055 = vunpack.c.h.b16 %v2338
        %v3056 = vunpack.c.l.b16 %v2339
        %v3057 = vunpack.c.l.b16 %v2340
        %v3058 = vunpack.c.h.b16 %v2340
        %v3059 = vunpack.c.l.b16 %v2341
        %v3060 = vunpack.c.h.b16 %v2341
        %v3061 = vunpack.c.l.b16 %v2342
        %v3062 = vunpack.c.h.b16 %v2342
        %v3063 = vunpack.c.l.b16 %v2343
        %v3064 = vunpack.c.h.b16 %v2343
        %v3065 = vunpack.c.l.b16 %v2344
        %v3066 = vunpack.c.h.b16 %v2344
        %v3067 = vunpack.c.l.b16 %v2345
        %v3068 = vunpack.c.l.b16 %v2346
        %v3069 = vunpack.c.h.b16 %v2346
        %v3070 = vunpack.c.l.b16 %v2347
        %v3071 = vunpack.c.h.b16 %v2347
        %v3072 = vunpack.c.l.b16 %v2348
        %v3073 = vunpack.c.h.b16 %v2348
        %v3074 = vunpack.c.l.b16 %v2349
        %v3075 = vunpack.c.h.b16 %v2349
        %v3076 = vunpack.c.l.b16 %v2350
        %v3077 = vunpack.c.h.b16 %v2350
        %v3078 = vunpack.c.l.b16 %v2351
        %v3079 = vunpack.c.l.b16 %v2352
        %v3080 = vunpack.c.h.b16 %v2352
        %v3081 = vunpack.c.l.b16 %v2353
        %v3082 = vunpack.c.h.b16 %v2353
        %v3083 = vunpack.c.l.b16 %v2354
        %v3084 = vunpack.c.h.b16 %v2354
        %v3085 = vunpack.c.l.b16 %v2355
        %v3086 = vunpack.c.h.b16 %v2355
        %v3087 = vunpack.c.l.b16 %v2356
        %v3088 = vunpack.c.h.b16 %v2356
        %v3089 = vunpack.c.l.b16 %v2357
        %v3090 = vunpack.c.l.b16 %v2358
        %v3091 = vunpack.c.h.b16 %v2358
        %v3092 = vunpack.c.l.b16 %v2359
        %v3093 = vunpack.c.h.b16 %v2359
        %v3094 = vunpack.c.l.b16 %v2360
        %v3095 = vunpack.c.h.b16 %v2360
        %v3096 = vunpack.c.l.b16 %v2361
        %v3097 = vunpack.c.h.b16 %v2361
        %v3098 = vunpack.c.l.b16 %v2362
        %v3099 = vunpack.c.h.b16 %v2362
        %v3100 = vunpack.c.l.b16 %v2363
        %v3101 = vunpack.c.l.b16 %v2364
        %v3102 = vunpack.c.h.b16 %v2364
        %v3103 = vunpack.c.l.b16 %v2365
        %v3104 = vunpack.c.h.b16 %v2365
        %v3105 = vunpack.c.l.b16 %v2366
        %v3106 = vunpack.c.h.b16 %v2366
        %v3107 = vunpack.c.l.b16 %v2367
        %v3108 = vunpack.c.h.b16 %v2367
        %v3109 = vunpack.c.l.b16 %v2368
        %v3110 = vunpack.c.h.b16 %v2368
        %v3111 = vunpack.c.l.b16 %v2369
        %v3112 = vunpack.c.l.b16 %v2370
        %v3113 = vunpack.c.h.b16 %v2370
        %v3114 = vunpack.c.l.b16 %v2371
        %v3115 = vunpack.c.h.b16 %v2371
        %v3116 = vunpack.c.l.b16 %v2372
        %v3117 = vunpack.c.h.b16 %v2372
        %v3118 = vunpack.c.l.b16 %v2373
        %v3119 = vunpack.c.h.b16 %v2373
        %v3120 = vunpack.c.l.b16 %v2374
        %v3121 = vunpack.c.h.b16 %v2374
        %v3122 = vunpack.c.l.b16 %v2375
        %v3123 = vunpack.c.l.b16 %v2376
        %v3124 = vunpack.c.h.b16 %v2376
        %v3125 = vunpack.c.l.b16 %v2377
        %v3126 = vunpack.c.h.b16 %v2377
        %v3127 = vunpack.c.l.b16 %v2378
        %v3128 = vunpack.c.h.b16 %v2378
        %v3129 = vunpack.c.l.b16 %v2379
        %v3130 = vunpack.c.h.b16 %v2379
        %v3131 = vunpack.c.l.b16 %v2380
        %v3132 = vunpack.c.h.b16 %v2380
        %v3133 = vunpack.c.l.b16 %v2381
        %v3134 = vunpack.c.l.b16 %v2382
        %v3135 = vunpack.c.h.b16 %v2382
        %v3136 = vunpack.c.l.b16 %v2383
        %v3137 = vunpack.c.h.b16 %v2383
        %v3138 = vunpack.c.l.b16 %v2384
        %v3139 = vunpack.c.h.b16 %v2384
        %v3140 = vunpack.c.l.b16 %v2385
        %v3141 = vunpack.c.h.b16 %v2385
        %v3142 = vunpack.c.l.b16 %v2386
        %v3143 = vunpack.c.h.b16 %v2386
        %v3144 = vunpack.c.l.b16 %v2387
        %v3145 = vunpack.c.l.b16 %v2388
        %v3146 = vunpack.c.h.b16 %v2388
        %v3147 = vunpack.c.l.b16 %v2389
        %v3148 = vunpack.c.h.b16 %v2389
        %v3149 = vunpack.c.l.b16 %v2390
        %v3150 = vunpack.c.h.b16 %v2390
        %v3151 = vunpack.c.l.b16 %v2391
        %v3152 = vunpack.c.h.b16 %v2391
        %v3153 = vunpack.c.l.b16 %v2392
        %v3154 = vunpack.c.h.b16 %v2392
        %v3155 = vunpack.c.l.b16 %v2393
        %v3156 = vunpack.c.l.b16 %v2394
        %v3157 = vunpack.c.h.b16 %v2394
        %v3158 = vunpack.c.l.b16 %v2395
        %v3159 = vunpack.c.h.b16 %v2395
        %v3160 = vunpack.c.l.b16 %v2396
        %v3161 = vunpack.c.h.b16 %v2396
        %v3162 = vunpack.c.l.b16 %v2397
        %v3163 = vunpack.c.h.b16 %v2397
        %v3164 = vunpack.c.l.b16 %v2398
        %v3165 = vunpack.c.h.b16 %v2398
        %v3166 = vunpack.c.l.b16 %v2399
        %v3167 = vunpack.c.l.b16 %v2400
        %v3168 = vunpack.c.h.b16 %v2400
        %v3169 = vunpack.c.l.b16 %v2401
        %v3170 = vunpack.c.h.b16 %v2401
        %v3171 = vunpack.c.l.b16 %v2402
        %v3172 = vunpack.c.h.b16 %v2402
        %v3173 = vunpack.c.l.b16 %v2403
        %v3174 = vunpack.c.h.b16 %v2403
        %v3175 = vunpack.c.l.b16 %v2404
        %v3176 = vunpack.c.h.b16 %v2404
        %v3177 = vunpack.c.l.b16 %v2405
        %v3178 = vunpack.c.l.b16 %v2406
        %v3179 = vunpack.c.h.b16 %v2406
        %v3180 = vunpack.c.l.b16 %v2407
        %v3181 = vunpack.c.h.b16 %v2407
        %v3182 = vunpack.c.l.b16 %v2408
        %v3183 = vunpack.c.h.b16 %v2408
        %v3184 = vunpack.c.l.b16 %v2409
        %v3185 = vunpack.c.h.b16 %v2409
        %v3186 = vunpack.c.l.b16 %v2410
        %v3187 = vunpack.c.h.b16 %v2410
        %v3188 = vunpack.c.l.b16 %v2411
        %v3189 = vunpack.c.l.b16 %v2412
        %v3190 = vunpack.c.h.b16 %v2412
        %v3191 = vunpack.c.l.b16 %v2413
        %v3192 = vunpack.c.h.b16 %v2413
        %v3193 = vunpack.c.l.b16 %v2414
        %v3194 = vunpack.c.h.b16 %v2414
        %v3195 = vunpack.c.l.b16 %v2415
        %v3196 = vunpack.c.h.b16 %v2415
        %v3197 = vunpack.c.l.b16 %v2416
        %v3198 = vunpack.c.h.b16 %v2416
        %v3199 = vunpack.c.l.b16 %v2417
        %v3200 = vunpack.c.l.b16 %v2418
        %v3201 = vunpack.c.h.b16 %v2418
        %v3202 = vunpack.c.l.b16 %v2419
        %v3203 = vunpack.c.h.b16 %v2419
        %v3204 = vunpack.c.l.b16 %v2420
        %v3205 = vunpack.c.h.b16 %v2420
        %v3206 = vunpack.c.l.b16 %v2421
        %v3207 = vunpack.c.h.b16 %v2421
        %v3208 = vunpack.c.l.b16 %v2422
        %v3209 = vunpack.c.h.b16 %v2422
        %v3210 = vunpack.c.l.b16 %v2423
        %v3211 = vunpack.c.l.b16 %v2424
        %v3212 = vunpack.c.h.b16 %v2424
        %v3213 = vunpack.c.l.b16 %v2425
        %v3214 = vunpack.c.h.b16 %v2425
        %v3215 = vunpack.c.l.b16 %v2426
        %v3216 = vunpack.c.h.b16 %v2426
        %v3217 = vunpack.c.l.b16 %v2427
        %v3218 = vunpack.c.h.b16 %v2427
        %v3219 = vunpack.c.l.b16 %v2428
        %v3220 = vunpack.c.h.b16 %v2428
        %v3221 = vunpack.c.l.b16 %v2429
        %v3222 = vunpack.c.l.b16 %v2430
        %v3223 = vunpack.c.h.b16 %v2430
        %v3224 = vunpack.c.l.b16 %v2431
        %v3225 = vunpack.c.h.b16 %v2431
        %v3226 = vunpack.c.l.b16 %v2432
        %v3227 = vunpack.c.h.b16 %v2432
        %v3228 = vunpack.c.l.b16 %v2433
        %v3229 = vunpack.c.h.b16 %v2433
        %v3230 = vunpack.c.l.b16 %v2434
        %v3231 = vunpack.c.h.b16 %v2434
        %v3232 = vunpack.c.l.b16 %v2435
        %v3233 = vunpack.c.l.b16 %v2436
        %v3234 = vunpack.c.h.b16 %v2436
        %v3235 = vunpack.c.l.b16 %v2437
        %v3236 = vunpack.c.h.b16 %v2437
        %v3237 = vunpack.c.l.b16 %v2438
        %v3238 = vunpack.c.h.b16 %v2438
        %v3239 = vunpack.c.l.b16 %v2439
        %v3240 = vunpack.c.h.b16 %v2439
        %v3241 = vunpack.c.l.b16 %v2440
        %v3242 = vunpack.c.h.b16 %v2440
        %v3243 = vunpack.c.l.b16 %v2441
        %v3244 = vunpack.c.l.b16 %v2442
        %v3245 = vunpack.c.h.b16 %v2442
        %v3246 = vunpack.c.l.b16 %v2443
        %v3247 = vunpack.c.h.b16 %v2443
        %v3248 = vunpack.c.l.b16 %v2444
        %v3249 = vunpack.c.h.b16 %v2444
        %v3250 = vunpack.c.l.b16 %v2445
        %v3251 = vunpack.c.h.b16 %v2445
        %v3252 = vunpack.c.l.b16 %v2446
        %v3253 = vunpack.c.h.b16 %v2446
        %v3254 = vunpack.c.l.b16 %v2447
        %v3255 = vunpack.c.l.b16 %v2448
        %v3256 = vunpack.c.h.b16 %v2448
        %v3257 = vunpack.c.l.b16 %v2449
        %v3258 = vunpack.c.h.b16 %v2449
        %v3259 = vunpack.c.l.b16 %v2450
        %v3260 = vunpack.c.h.b16 %v2450
        %v3261 = vunpack.c.l.b16 %v2451
        %v3262 = vunpack.c.h.b16 %v2451
        %v3263 = vunpack.c.l.b16 %v2452
        %v3264 = vunpack.c.h.b16 %v2452
        %v3265 = vunpack.c.l.b16 %v2453
        %v3266 = vunpack.c.l.b16 %v2454
        %v3267 = vunpack.c.h.b16 %v2454
        %v3268 = vunpack.c.l.b16 %v2455
        %v3269 = vunpack.c.h.b16 %v2455
        %v3270 = vunpack.c.l.b16 %v2456
        %v3271 = vunpack.c.h.b16 %v2456
        %v3272 = vunpack.c.l.b16 %v2457
        %v3273 = vunpack.c.h.b16 %v2457
        %v3274 = vunpack.c.l.b16 %v2458
        %v3275 = vunpack.c.h.b16 %v2458
        %v3276 = vunpack.c.l.b16 %v2459
        %v3277 = vunpack.c.l.b16 %v2460
        %v3278 = vunpack.c.h.b16 %v2460
        %v3279 = vunpack.c.l.b16 %v2461
        %v3280 = vunpack.c.h.b16 %v2461
        %v3281 = vunpack.c.l.b16 %v2462
        %v3282 = vunpack.c.h.b16 %v2462
        %v3283 = vunpack.c.l.b16 %v2463
        %v3284 = vunpack.c.h.b16 %v2463
        %v3285 = vunpack.c.l.b16 %v2464
        %v3286 = vunpack.c.h.b16 %v2464
        %v3287 = vunpack.c.l.b16 %v2465
        %v3288 = vunpack.c.l.b16 %v2466
        %v3289 = vunpack.c.h.b16 %v2466
        %v3290 = vunpack.c.l.b16 %v2467
        %v3291 = vunpack.c.h.b16 %v2467
        %v3292 = vunpack.c.l.b16 %v2468
        %v3293 = vunpack.c.h.b16 %v2468
        %v3294 = vunpack.c.l.b16 %v2469
        %v3295 = vunpack.c.h.b16 %v2469
        %v3296 = vunpack.c.l.b16 %v2470
        %v3297 = vunpack.c.h.b16 %v2470
        %v3298 = vunpack.c.l.b16 %v2471
        %v3299 = vpack.c.b16 %v2782, %v2771
        %v3300 = vpack.c.b16 %v2783, %v2772
        %v3301 = vpack.c.b16 %v2784, %v2773
        %v3302 = vpack.c.b16 %v2785, %v2774
        %v3303 = vpack.c.b16 %v2786, %v2775
        %v3304 = vpack.c.b16 %v2787, %v2776
        %v3305 = vpack.c.b16 %v2788, %v2777
        %v3306 = vpack.c.b16 %v2789, %v2778
        %v3307 = vpack.c.b16 %v2790, %v2779
        %v3308 = vpack.c.b16 %v2791, %v2780
        %v3309 = vpack.c.b16 %v2792, %v2781
        %v3310 = vpack.c.b16 %v2804, %v2793
        %v3311 = vpack.c.b16 %v2805, %v2794
        %v3312 = vpack.c.b16 %v2806, %v2795
        %v3313 = vpack.c.b16 %v2807, %v2796
        %v3314 = vpack.c.b16 %v2808, %v2797
        %v3315 = vpack.c.b16 %v2809, %v2798
        %v3316 = vpack.c.b16 %v2810, %v2799
        %v3317 = vpack.c.b16 %v2811, %v2800
        %v3318 = vpack.c.b16 %v2812, %v2801
        %v3319 = vpack.c.b16 %v2813, %v2802
        %v3320 = vpack.c.b16 %v2814, %v2803
        %v3321 = vpack.c.b16 %v2826, %v2815
        %v3322 = vpack.c.b16 %v2827, %v2816
        %v3323 = vpack.c.b16 %v2828, %v2817
        %v3324 = vpack.c.b16 %v2829, %v2818
        %v3325 = vpack.c.b16 %v2830, %v2819
        %v3326 = vpack.c.b16 %v2831, %v2820
        %v3327 = vpack.c.b16 %v2832, %v2821
        %v3328 = vpack.c.b16 %v2833, %v2822
        %v3329 = vpack.c.b16 %v2834, %v2823
        %v3330 = vpack.c.b16 %v2835, %v2824
        %v3331 = vpack.c.b16 %v2836, %v2825
        %v3332 = vpack.c.b16 %v2848, %v2837
        %v3333 = vpack.c.b16 %v2849, %v2838
        %v3334 = vpack.c.b16 %v2850, %v2839
        %v3335 = vpack.c.b16 %v2851, %v2840
        %v3336 = vpack.c.b16 %v2852, %v2841
        %v3337 = vpack.c.b16 %v2853, %v2842
        %v3338 = vpack.c.b16 %v2854, %v2843
        %v3339 = vpack.c.b16 %v2855, %v2844
        %v3340 = vpack.c.b16 %v2856, %v2845
        %v3341 = vpack.c.b16 %v2857, %v2846
        %v3342 = vpack.c.b16 %v2858, %v2847
        %v3343 = vpack.c.b16 %v2870, %v2859
        %v3344 = vpack.c.b16 %v2871, %v2860
        %v3345 = vpack.c.b16 %v2872, %v2861
        %v3346 = vpack.c.b16 %v2873, %v2862
        %v3347 = vpack.c.b16 %v2874, %v2863
        %v3348 = vpack.c.b16 %v2875, %v2864
        %v3349 = vpack.c.b16 %v2876, %v2865
        %v3350 = vpack.c.b16 %v2877, %v2866
        %v3351 = vpack.c.b16 %v2878, %v2867
        %v3352 = vpack.c.b16 %v2879, %v2868
        %v3353 = vpack.c.b16 %v2880, %v2869
        %v3354 = vpack.c.b16 %v2892, %v2881
        %v3355 = vpack.c.b16 %v2893, %v2882
        %v3356 = vpack.c.b16 %v2894, %v2883
        %v3357 = vpack.c.b16 %v2895, %v2884
        %v3358 = vpack.c.b16 %v2896, %v2885
        %v3359 = vpack.c.b16 %v2897, %v2886
        %v3360 = vpack.c.b16 %v2898, %v2887
        %v3361 = vpack.c.b16 %v2899, %v2888
        %v3362 = vpack.c.b16 %v2900, %v2889
        %v3363 = vpack.c.b16 %v2901, %v2890
        %v3364 = vpack.c.b16 %v2902, %v2891
        %v3365 = vpack.c.b16 %v2914, %v2903
        %v3366 = vpack.c.b16 %v2915, %v2904
        %v3367 = vpack.c.b16 %v2916, %v2905
        %v3368 = vpack.c.b16 %v2917, %v2906
        %v3369 = vpack.c.b16 %v2918, %v2907
        %v3370 = vpack.c.b16 %v2919, %v2908
        %v3371 = vpack.c.b16 %v2920, %v2909
        %v3372 = vpack.c.b16 %v2921, %v2910
        %v3373 = vpack.c.b16 %v2922, %v2911
        %v3374 = vpack.c.b16 %v2923, %v2912
        %v3375 = vpack.c.b16 %v2924, %v2913
        %v3376 = vpack.c.b16 %v2936, %v2925
        %v3377 = vpack.c.b16 %v2937, %v2926
        %v3378 = vpack.c.b16 %v2938, %v2927
        %v3379 = vpack.c.b16 %v2939, %v2928
        %v3380 = vpack.c.b16 %v2940, %v2929
        %v3381 = vpack.c.b16 %v2941, %v2930
        %v3382 = vpack.c.b16 %v2942, %v2931
        %v3383 = vpack.c.b16 %v2943, %v2932
        %v3384 = vpack.c.b16 %v2944, %v2933
        %v3385 = vpack.c.b16 %v2945, %v2934
        %v3386 = vpack.c.b16 %v2946, %v2935
        %v3387 = vpack.c.b16 %v2958, %v2947
        %v3388 = vpack.c.b16 %v2959, %v2948
        %v3389 = vpack.c.b16 %v2960, %v2949
        %v3390 = vpack.c.b16 %v2961, %v2950
        %v3391 = vpack.c.b16 %v2962, %v2951
        %v3392 = vpack.c.b16 %v2963, %v2952
        %v3393 = vpack.c.b16 %v2964, %v2953
        %v3394 = vpack.c.b16 %v2965, %v2954
        %v3395 = vpack.c.b16 %v2966, %v2955
        %v3396 = vpack.c.b16 %v2967, %v2956
        %v3397 = vpack.c.b16 %v2968, %v2957
        %v3398 = vpack.c.b16 %v2980, %v2969
        %v3399 = vpack.c.b16 %v2981, %v2970
        %v3400 = vpack.c.b16 %v2982, %v2971
        %v3401 = vpack.c.b16 %v2983, %v2972
        %v3402 = vpack.c.b16 %v2984, %v2973
        %v3403 = vpack.c.b16 %v2985, %v2974
        %v3404 = vpack.c.b16 %v2986, %v2975
        %v3405 = vpack.c.b16 %v2987, %v2976
        %v3406 = vpack.c.b16 %v2988, %v2977
        %v3407 = vpack.c.b16 %v2989, %v2978
        %v3408 = vpack.c.b16 %v2990, %v2979
        %v3409 = vpack.c.b16 %v3002, %v2991
        %v3410 = vpack.c.b16 %v3003, %v2992
        %v3411 = vpack.c.b16 %v3004, %v2993
        %v3412 = vpack.c.b16 %v3005, %v2994
        %v3413 = vpack.c.b16 %v3006, %v2995
        %v3414 = vpack.c.b16 %v3007, %v2996
        %v3415 = vpack.c.b16 %v3008, %v2997
        %v3416 = vpack.c.b16 %v3009, %v2998
        %v3417 = vpack.c.b16 %v3010, %v2999
        %v3418 = vpack.c.b16 %v3011, %v3000
        %v3419 = vpack.c.b16 %v3012, %v3001
        %v3420 = vpack.c.b16 %v3024, %v3013
        %v3421 = vpack.c.b16 %v3025, %v3014
        %v3422 = vpack.c.b16 %v3026, %v3015
        %v3423 = vpack.c.b16 %v3027, %v3016
        %v3424 = vpack.c.b16 %v3028, %v3017
        %v3425 = vpack.c.b16 %v3029, %v3018
        %v3426 = vpack.c.b16 %v3030, %v3019
        %v3427 = vpack.c.b16 %v3031, %v3020
        %v3428 = vpack.c.b16 %v3032, %v3021
        %v3429 = vpack.c.b16 %v3033, %v3022
        %v3430 = vpack.c.b16 %v3034, %v3023
        %v3431 = vpack.c.b16 %v3046, %v3035
        %v3432 = vpack.c.b16 %v3047, %v3036
        %v3433 = vpack.c.b16 %v3048, %v3037
        %v3434 = vpack.c.b16 %v3049, %v3038
        %v3435 = vpack.c.b16 %v3050, %v3039
        %v3436 = vpack.c.b16 %v3051, %v3040
        %v3437 = vpack.c.b16 %v3052, %v3041
        %v3438 = vpack.c.b16 %v3053, %v3042
        %v3439 = vpack.c.b16 %v3054, %v3043
        %v3440 = vpack.c.b16 %v3055, %v3044
        %v3441 = vpack.c.b16 %v3056, %v3045
        %v3442 = vpack.c.b16 %v3068, %v3057
        %v3443 = vpack.c.b16 %v3069, %v3058
        %v3444 = vpack.c.b16 %v3070, %v3059
        %v3445 = vpack.c.b16 %v3071, %v3060
        %v3446 = vpack.c.b16 %v3072, %v3061
        %v3447 = vpack.c.b16 %v3073, %v3062
        %v3448 = vpack.c.b16 %v3074, %v3063
        %v3449 = vpack.c.b16 %v3075, %v3064
        %v3450 = vpack.c.b16 %v3076, %v3065
        %v3451 = vpack.c.b16 %v3077, %v3066
        %v3452 = vpack.c.b16 %v3078, %v3067
        %v3453 = vpack.c.b16 %v3090, %v3079
        %v3454 = vpack.c.b16 %v3091, %v3080
        %v3455 = vpack.c.b16 %v3092, %v3081
        %v3456 = vpack.c.b16 %v3093, %v3082
        %v3457 = vpack.c.b16 %v3094, %v3083
        %v3458 = vpack.c.b16 %v3095, %v3084
        %v3459 = vpack.c.b16 %v3096, %v3085
        %v3460 = vpack.c.b16 %v3097, %v3086
        %v3461 = vpack.c.b16 %v3098, %v3087
        %v3462 = vpack.c.b16 %v3099, %v3088
        %v3463 = vpack.c.b16 %v3100, %v3089
        %v3464 = vpack.c.b16 %v3112, %v3101
        %v3465 = vpack.c.b16 %v3113, %v3102
        %v3466 = vpack.c.b16 %v3114, %v3103
        %v3467 = vpack.c.b16 %v3115, %v3104
        %v3468 = vpack.c.b16 %v3116, %v3105
        %v3469 = vpack.c.b16 %v3117, %v3106
        %v3470 = vpack.c.b16 %v3118, %v3107
        %v3471 = vpack.c.b16 %v3119, %v3108
        %v3472 = vpack.c.b16 %v3120, %v3109
        %v3473 = vpack.c.b16 %v3121, %v3110
        %v3474 = vpack.c.b16 %v3122, %v3111
        %v3475 = vpack.c.b16 %v3134, %v3123
        %v3476 = vpack.c.b16 %v3135, %v3124
        %v3477 = vpack.c.b16 %v3136, %v3125
        %v3478 = vpack.c.b16 %v3137, %v3126
        %v3479 = vpack.c.b16 %v3138, %v3127
        %v3480 = vpack.c.b16 %v3139, %v3128
        %v3481 = vpack.c.b16 %v3140, %v3129
        %v3482 = vpack.c.b16 %v3141, %v3130
        %v3483 = vpack.c.b16 %v3142, %v3131
        %v3484 = vpack.c.b16 %v3143, %v3132
        %v3485 = vpack.c.b16 %v3144, %v3133
        %v3486 = vpack.c.b16 %v3156, %v3145
        %v3487 = vpack.c.b16 %v3157, %v3146
        %v3488 = vpack.c.b16 %v3158, %v3147
        %v3489 = vpack.c.b16 %v3159, %v3148
        %v3490 = vpack.c.b16 %v3160, %v3149
        %v3491 = vpack.c.b16 %v3161, %v3150
        %v3492 = vpack.c.b16 %v3162, %v3151
        %v3493 = vpack.c.b16 %v3163, %v3152
        %v3494 = vpack.c.b16 %v3164, %v3153
        %v3495 = vpack.c.b16 %v3165, %v3154
        %v3496 = vpack.c.b16 %v3166, %v3155
        %v3497 = vpack.c.b16 %v3178, %v3167
        %v3498 = vpack.c.b16 %v3179, %v3168
        %v3499 = vpack.c.b16 %v3180, %v3169
        %v3500 = vpack.c.b16 %v3181, %v3170
        %v3501 = vpack.c.b16 %v3182, %v3171
        %v3502 = vpack.c.b16 %v3183, %v3172
        %v3503 = vpack.c.b16 %v3184, %v3173
        %v3504 = vpack.c.b16 %v3185, %v3174
        %v3505 = vpack.c.b16 %v3186, %v3175
        %v3506 = vpack.c.b16 %v3187, %v3176
        %v3507 = vpack.c.b16 %v3188, %v3177
        %v3508 = vpack.c.b16 %v3200, %v3189
        %v3509 = vpack.c.b16 %v3201, %v3190
        %v3510 = vpack.c.b16 %v3202, %v3191
        %v3511 = vpack.c.b16 %v3203, %v3192
        %v3512 = vpack.c.b16 %v3204, %v3193
        %v3513 = vpack.c.b16 %v3205, %v3194
        %v3514 = vpack.c.b16 %v3206, %v3195
        %v3515 = vpack.c.b16 %v3207, %v3196
        %v3516 = vpack.c.b16 %v3208, %v3197
        %v3517 = vpack.c.b16 %v3209, %v3198
        %v3518 = vpack.c.b16 %v3210, %v3199
        %v3519 = vpack.c.b16 %v3222, %v3211
        %v3520 = vpack.c.b16 %v3223, %v3212
        %v3521 = vpack.c.b16 %v3224, %v3213
        %v3522 = vpack.c.b16 %v3225, %v3214
        %v3523 = vpack.c.b16 %v3226, %v3215
        %v3524 = vpack.c.b16 %v3227, %v3216
        %v3525 = vpack.c.b16 %v3228, %v3217
        %v3526 = vpack.c.b16 %v3229, %v3218
        %v3527 = vpack.c.b16 %v3230, %v3219
        %v3528 = vpack.c.b16 %v3231, %v3220
        %v3529 = vpack.c.b16 %v3232, %v3221
        %v3530 = vpack.c.b16 %v3244, %v3233
        %v3531 = vpack.c.b16 %v3245, %v3234
        %v3532 = vpack.c.b16 %v3246, %v3235
        %v3533 = vpack.c.b16 %v3247, %v3236
        %v3534 = vpack.c.b16 %v3248, %v3237
        %v3535 = vpack.c.b16 %v3249, %v3238
        %v3536 = vpack.c.b16 %v3250, %v3239
        %v3537 = vpack.c.b16 %v3251, %v3240
        %v3538 = vpack.c.b16 %v3252, %v3241
        %v3539 = vpack.c.b16 %v3253, %v3242
        %v3540 = vpack.c.b16 %v3254, %v3243
        %v3541 = vpack.c.b16 %v3266, %v3255
        %v3542 = vpack.c.b16 %v3267, %v3256
        %v3543 = vpack.c.b16 %v3268, %v3257
        %v3544 = vpack.c.b16 %v3269, %v3258
        %v3545 = vpack.c.b16 %v3270, %v3259
        %v3546 = vpack.c.b16 %v3271, %v3260
        %v3547 = vpack.c.b16 %v3272, %v3261
        %v3548 = vpack.c.b16 %v3273, %v3262
        %v3549 = vpack.c.b16 %v3274, %v3263
        %v3550 = vpack.c.b16 %v3275, %v3264
        %v3551 = vpack.c.b16 %v3276, %v3265
        %v3552 = vpack.c.b16 %v3288, %v3277
        %v3553 = vpack.c.b16 %v3289, %v3278
        %v3554 = vpack.c.b16 %v3290, %v3279
        %v3555 = vpack.c.b16 %v3291, %v3280
        %v3556 = vpack.c.b16 %v3292, %v3281
        %v3557 = vpack.c.b16 %v3293, %v3282
        %v3558 = vpack.c.b16 %v3294, %v3283
        %v3559 = vpack.c.b16 %v3295, %v3284
        %v3560 = vpack.c.b16 %v3296, %v3285
        %v3561 = vpack.c.b16 %v3297, %v3286
        %v3562 = vpack.c.b16 %v3298, %v3287
        %3827 = vmatpush.bf16.msra.mxu0 %v3376
        %3828 = vmatpush.bf16.msra.mxu0 %v3365
        %3829 = vmatpush.bf16.msra.mxu0 %v3354
        %3830 = vmatpush.bf16.msra.mxu0 %v3343
        %3831 = vmatpush.bf16.msra.mxu0 %v3332
        %3832 = vmatpush.bf16.msra.mxu0 %v3321
        %3833 = vmatpush.bf16.msra.mxu0 %v3310
        %3834 = vmatpush.bf16.msra.mxu0 %v3299
        %3835 = vmatmul.bf16.gmra.mxu0 %v2477
        %v3836 = vpop.f32.mrf.mxu0
        %v3837 = vadd.f32 0.0, %v3836
        %v3838 = vpop.f32.mrf.mxu0
        %3839 = vdwg.mxu0
        %3840 = vmatpush.bf16.msra.mxu0 %v3464
        %3841 = vmatpush.bf16.msra.mxu0 %v3453
        %3842 = vmatpush.bf16.msra.mxu0 %v3442
        %3843 = vmatpush.bf16.msra.mxu0 %v3431
        %3844 = vmatpush.bf16.msra.mxu0 %v3420
        %3845 = vmatpush.bf16.msra.mxu0 %v3409
        %3846 = vmatpush.bf16.msra.mxu0 %v3398
        %3847 = vmatpush.bf16.msra.mxu0 %v3387
        %3848 = vmatmul.bf16.gmra.mxu0 %v2478
        %v3849 = vpop.f32.mrf.mxu0
        %v3850 = vadd.f32 %v3837, %v3849
        %v3851 = vpop.f32.mrf.mxu0
        %3852 = vdwg.mxu0
        %3853 = vmatpush.bf16.msra.mxu0 %v3552
        %3854 = vmatpush.bf16.msra.mxu0 %v3541
        %3855 = vmatpush.bf16.msra.mxu0 %v3530
        %3856 = vmatpush.bf16.msra.mxu0 %v3519
        %3857 = vmatpush.bf16.msra.mxu0 %v3508
        %3858 = vmatpush.bf16.msra.mxu0 %v3497
        %3859 = vmatpush.bf16.msra.mxu0 %v3486
        %3860 = vmatpush.bf16.msra.mxu0 %v3475
        %3861 = vmatmul.bf16.gmra.mxu0 %v2479
        %v3862 = vpop.f32.mrf.mxu0
        %v3863 = vadd.f32 %v3850, %v3862
        %v3864 = vpop.f32.mrf.mxu0
        %3865 = vdwg.mxu0
        %3866 = vmatpush.bf16.msra.mxu0 %v3377
        %3867 = vmatpush.bf16.msra.mxu0 %v3366
        %3868 = vmatpush.bf16.msra.mxu0 %v3355
        %3869 = vmatpush.bf16.msra.mxu0 %v3344
        %3870 = vmatpush.bf16.msra.mxu0 %v3333
        %3871 = vmatpush.bf16.msra.mxu0 %v3322
        %3872 = vmatpush.bf16.msra.mxu0 %v3311
        %3873 = vmatpush.bf16.msra.mxu0 %v3300
        %3874 = vmatmul.bf16.gmra.mxu0 %v2477
        %v3875 = vpop.f32.mrf.mxu0
        %v3876 = vadd.f32 0.0, %v3875
        %v3877 = vpop.f32.mrf.mxu0
        %3878 = vdwg.mxu0
        %3879 = vmatpush.bf16.msra.mxu0 %v3465
        %3880 = vmatpush.bf16.msra.mxu0 %v3454
        %3881 = vmatpush.bf16.msra.mxu0 %v3443
        %3882 = vmatpush.bf16.msra.mxu0 %v3432
        %3883 = vmatpush.bf16.msra.mxu0 %v3421
        %3884 = vmatpush.bf16.msra.mxu0 %v3410
        %3885 = vmatpush.bf16.msra.mxu0 %v3399
        %3886 = vmatpush.bf16.msra.mxu0 %v3388
        %3887 = vmatmul.bf16.gmra.mxu0 %v2478
        %v3888 = vpop.f32.mrf.mxu0
        %v3889 = vadd.f32 %v3876, %v3888
        %v3890 = vpop.f32.mrf.mxu0
        %3891 = vdwg.mxu0
        %3892 = vmatpush.bf16.msra.mxu0 %v3553
        %3893 = vmatpush.bf16.msra.mxu0 %v3542
        %3894 = vmatpush.bf16.msra.mxu0 %v3531
        %3895 = vmatpush.bf16.msra.mxu0 %v3520
        %3896 = vmatpush.bf16.msra.mxu0 %v3509
        %3897 = vmatpush.bf16.msra.mxu0 %v3498
        %3898 = vmatpush.bf16.msra.mxu0 %v3487
        %3899 = vmatpush.bf16.msra.mxu0 %v3476
        %3900 = vmatmul.bf16.gmra.mxu0 %v2479
        %v3901 = vpop.f32.mrf.mxu0
        %v3902 = vadd.f32 %v3889, %v3901
        %v3903 = vpop.f32.mrf.mxu0
        %3904 = vdwg.mxu0
        %3905 = vmatpush.bf16.msra.mxu0 %v3378
        %3906 = vmatpush.bf16.msra.mxu0 %v3367
        %3907 = vmatpush.bf16.msra.mxu0 %v3356
        %3908 = vmatpush.bf16.msra.mxu0 %v3345
        %3909 = vmatpush.bf16.msra.mxu0 %v3334
        %3910 = vmatpush.bf16.msra.mxu0 %v3323
        %3911 = vmatpush.bf16.msra.mxu0 %v3312
        %3912 = vmatpush.bf16.msra.mxu0 %v3301
        %3913 = vmatmul.bf16.gmra.mxu0 %v2477
        %v3914 = vpop.f32.mrf.mxu0
        %v3915 = vadd.f32 0.0, %v3914
        %v3916 = vpop.f32.mrf.mxu0
        %3917 = vdwg.mxu0
        %3918 = vmatpush.bf16.msra.mxu0 %v3466
        %3919 = vmatpush.bf16.msra.mxu0 %v3455
        %3920 = vmatpush.bf16.msra.mxu0 %v3444
        %3921 = vmatpush.bf16.msra.mxu0 %v3433
        %3922 = vmatpush.bf16.msra.mxu0 %v3422
        %3923 = vmatpush.bf16.msra.mxu0 %v3411
        %3924 = vmatpush.bf16.msra.mxu0 %v3400
        %3925 = vmatpush.bf16.msra.mxu0 %v3389
        %3926 = vmatmul.bf16.gmra.mxu0 %v2478
        %v3927 = vpop.f32.mrf.mxu0
        %v3928 = vadd.f32 %v3915, %v3927
        %v3929 = vpop.f32.mrf.mxu0
        %3930 = vdwg.mxu0
        %3931 = vmatpush.bf16.msra.mxu0 %v3554
        %3932 = vmatpush.bf16.msra.mxu0 %v3543
        %3933 = vmatpush.bf16.msra.mxu0 %v3532
        %3934 = vmatpush.bf16.msra.mxu0 %v3521
        %3935 = vmatpush.bf16.msra.mxu0 %v3510
        %3936 = vmatpush.bf16.msra.mxu0 %v3499
        %3937 = vmatpush.bf16.msra.mxu0 %v3488
        %3938 = vmatpush.bf16.msra.mxu0 %v3477
        %3939 = vmatmul.bf16.gmra.mxu0 %v2479
        %v3940 = vpop.f32.mrf.mxu0
        %v3941 = vadd.f32 %v3928, %v3940
        %v3942 = vpop.f32.mrf.mxu0
        %3943 = vdwg.mxu0
        %3944 = vmatpush.bf16.msra.mxu0 %v3379
        %3945 = vmatpush.bf16.msra.mxu0 %v3368
        %3946 = vmatpush.bf16.msra.mxu0 %v3357
        %3947 = vmatpush.bf16.msra.mxu0 %v3346
        %3948 = vmatpush.bf16.msra.mxu0 %v3335
        %3949 = vmatpush.bf16.msra.mxu0 %v3324
        %3950 = vmatpush.bf16.msra.mxu0 %v3313
        %3951 = vmatpush.bf16.msra.mxu0 %v3302
        %3952 = vmatmul.bf16.gmra.mxu0 %v2477
        %v3953 = vpop.f32.mrf.mxu0
        %v3954 = vadd.f32 0.0, %v3953
        %v3955 = vpop.f32.mrf.mxu0
        %3956 = vdwg.mxu0
        %3957 = vmatpush.bf16.msra.mxu0 %v3467
        %3958 = vmatpush.bf16.msra.mxu0 %v3456
        %3959 = vmatpush.bf16.msra.mxu0 %v3445
        %3960 = vmatpush.bf16.msra.mxu0 %v3434
        %3961 = vmatpush.bf16.msra.mxu0 %v3423
        %3962 = vmatpush.bf16.msra.mxu0 %v3412
        %3963 = vmatpush.bf16.msra.mxu0 %v3401
        %3964 = vmatpush.bf16.msra.mxu0 %v3390
        %3965 = vmatmul.bf16.gmra.mxu0 %v2478
        %v3966 = vpop.f32.mrf.mxu0
        %v3967 = vadd.f32 %v3954, %v3966
        %v3968 = vpop.f32.mrf.mxu0
        %3969 = vdwg.mxu0
        %3970 = vmatpush.bf16.msra.mxu0 %v3555
        %3971 = vmatpush.bf16.msra.mxu0 %v3544
        %3972 = vmatpush.bf16.msra.mxu0 %v3533
        %3973 = vmatpush.bf16.msra.mxu0 %v3522
        %3974 = vmatpush.bf16.msra.mxu0 %v3511
        %3975 = vmatpush.bf16.msra.mxu0 %v3500
        %3976 = vmatpush.bf16.msra.mxu0 %v3489
        %3977 = vmatpush.bf16.msra.mxu0 %v3478
        %3978 = vmatmul.bf16.gmra.mxu0 %v2479
        %v3979 = vpop.f32.mrf.mxu0
        %v3980 = vadd.f32 %v3967, %v3979
        %v3981 = vpop.f32.mrf.mxu0
        %3982 = vdwg.mxu0
        %3983 = vmatpush.bf16.msra.mxu0 %v3380
        %3984 = vmatpush.bf16.msra.mxu0 %v3369
        %3985 = vmatpush.bf16.msra.mxu0 %v3358
        %3986 = vmatpush.bf16.msra.mxu0 %v3347
        %3987 = vmatpush.bf16.msra.mxu0 %v3336
        %3988 = vmatpush.bf16.msra.mxu0 %v3325
        %3989 = vmatpush.bf16.msra.mxu0 %v3314
        %3990 = vmatpush.bf16.msra.mxu0 %v3303
        %3991 = vmatmul.bf16.gmra.mxu0 %v2477
        %v3992 = vpop.f32.mrf.mxu0
        %v3993 = vadd.f32 0.0, %v3992
        %v3994 = vpop.f32.mrf.mxu0
        %3995 = vdwg.mxu0
        %3996 = vmatpush.bf16.msra.mxu0 %v3468
        %3997 = vmatpush.bf16.msra.mxu0 %v3457
        %3998 = vmatpush.bf16.msra.mxu0 %v3446
        %3999 = vmatpush.bf16.msra.mxu0 %v3435
        %4000 = vmatpush.bf16.msra.mxu0 %v3424
        %4001 = vmatpush.bf16.msra.mxu0 %v3413
        %4002 = vmatpush.bf16.msra.mxu0 %v3402
        %4003 = vmatpush.bf16.msra.mxu0 %v3391
        %4004 = vmatmul.bf16.gmra.mxu0 %v2478
        %v4005 = vpop.f32.mrf.mxu0
        %v4006 = vadd.f32 %v3993, %v4005
        %v4007 = vpop.f32.mrf.mxu0
        %4008 = vdwg.mxu0
        %4009 = vmatpush.bf16.msra.mxu0 %v3556
        %4010 = vmatpush.bf16.msra.mxu0 %v3545
        %4011 = vmatpush.bf16.msra.mxu0 %v3534
        %4012 = vmatpush.bf16.msra.mxu0 %v3523
        %4013 = vmatpush.bf16.msra.mxu0 %v3512
        %4014 = vmatpush.bf16.msra.mxu0 %v3501
        %4015 = vmatpush.bf16.msra.mxu0 %v3490
        %4016 = vmatpush.bf16.msra.mxu0 %v3479
        %4017 = vmatmul.bf16.gmra.mxu0 %v2479
        %v4018 = vpop.f32.mrf.mxu0
        %v4019 = vadd.f32 %v4006, %v4018
        %v4020 = vpop.f32.mrf.mxu0
        %4021 = vdwg.mxu0
        %4022 = vmatpush.bf16.msra.mxu0 %v3381
        %4023 = vmatpush.bf16.msra.mxu0 %v3370
        %4024 = vmatpush.bf16.msra.mxu0 %v3359
        %4025 = vmatpush.bf16.msra.mxu0 %v3348
        %4026 = vmatpush.bf16.msra.mxu0 %v3337
        %4027 = vmatpush.bf16.msra.mxu0 %v3326
        %4028 = vmatpush.bf16.msra.mxu0 %v3315
        %4029 = vmatpush.bf16.msra.mxu0 %v3304
        %4030 = vmatmul.bf16.gmra.mxu0 %v2477
        %v4031 = vpop.f32.mrf.mxu0
        %v4032 = vadd.f32 0.0, %v4031
        %v4033 = vpop.f32.mrf.mxu0
        %4034 = vdwg.mxu0
        %4035 = vmatpush.bf16.msra.mxu0 %v3469
        %4036 = vmatpush.bf16.msra.mxu0 %v3458
        %4037 = vmatpush.bf16.msra.mxu0 %v3447
        %4038 = vmatpush.bf16.msra.mxu0 %v3436
        %4039 = vmatpush.bf16.msra.mxu0 %v3425
        %4040 = vmatpush.bf16.msra.mxu0 %v3414
        %4041 = vmatpush.bf16.msra.mxu0 %v3403
        %4042 = vmatpush.bf16.msra.mxu0 %v3392
        %4043 = vmatmul.bf16.gmra.mxu0 %v2478
        %v4044 = vpop.f32.mrf.mxu0
        %v4045 = vadd.f32 %v4032, %v4044
        %v4046 = vpop.f32.mrf.mxu0
        %4047 = vdwg.mxu0
        %4048 = vmatpush.bf16.msra.mxu0 %v3557
        %4049 = vmatpush.bf16.msra.mxu0 %v3546
        %4050 = vmatpush.bf16.msra.mxu0 %v3535
        %4051 = vmatpush.bf16.msra.mxu0 %v3524
        %4052 = vmatpush.bf16.msra.mxu0 %v3513
        %4053 = vmatpush.bf16.msra.mxu0 %v3502
        %4054 = vmatpush.bf16.msra.mxu0 %v3491
        %4055 = vmatpush.bf16.msra.mxu0 %v3480
        %4056 = vmatmul.bf16.gmra.mxu0 %v2479
        %v4057 = vpop.f32.mrf.mxu0
        %v4058 = vadd.f32 %v4045, %v4057
        %v4059 = vpop.f32.mrf.mxu0
        %4060 = vdwg.mxu0
        %4061 = vmatpush.bf16.msra.mxu0 %v3382
        %4062 = vmatpush.bf16.msra.mxu0 %v3371
        %4063 = vmatpush.bf16.msra.mxu0 %v3360
        %4064 = vmatpush.bf16.msra.mxu0 %v3349
        %4065 = vmatpush.bf16.msra.mxu0 %v3338
        %4066 = vmatpush.bf16.msra.mxu0 %v3327
        %4067 = vmatpush.bf16.msra.mxu0 %v3316
        %4068 = vmatpush.bf16.msra.mxu0 %v3305
        %4069 = vmatmul.bf16.gmra.mxu0 %v2477
        %v4070 = vpop.f32.mrf.mxu0
        %v4071 = vadd.f32 0.0, %v4070
        %v4072 = vpop.f32.mrf.mxu0
        %4073 = vdwg.mxu0
        %4074 = vmatpush.bf16.msra.mxu0 %v3470
        %4075 = vmatpush.bf16.msra.mxu0 %v3459
        %4076 = vmatpush.bf16.msra.mxu0 %v3448
        %4077 = vmatpush.bf16.msra.mxu0 %v3437
        %4078 = vmatpush.bf16.msra.mxu0 %v3426
        %4079 = vmatpush.bf16.msra.mxu0 %v3415
        %4080 = vmatpush.bf16.msra.mxu0 %v3404
        %4081 = vmatpush.bf16.msra.mxu0 %v3393
        %4082 = vmatmul.bf16.gmra.mxu0 %v2478
        %v4083 = vpop.f32.mrf.mxu0
        %v4084 = vadd.f32 %v4071, %v4083
        %v4085 = vpop.f32.mrf.mxu0
        %4086 = vdwg.mxu0
        %4087 = vmatpush.bf16.msra.mxu0 %v3558
        %4088 = vmatpush.bf16.msra.mxu0 %v3547
        %4089 = vmatpush.bf16.msra.mxu0 %v3536
        %4090 = vmatpush.bf16.msra.mxu0 %v3525
        %4091 = vmatpush.bf16.msra.mxu0 %v3514
        %4092 = vmatpush.bf16.msra.mxu0 %v3503
        %4093 = vmatpush.bf16.msra.mxu0 %v3492
        %4094 = vmatpush.bf16.msra.mxu0 %v3481
        %4095 = vmatmul.bf16.gmra.mxu0 %v2479
        %v4096 = vpop.f32.mrf.mxu0
        %v4097 = vadd.f32 %v4084, %v4096
        %v4098 = vpop.f32.mrf.mxu0
        %4099 = vdwg.mxu0
        %4100 = vmatpush.bf16.msra.mxu0 %v3383
        %4101 = vmatpush.bf16.msra.mxu0 %v3372
        %4102 = vmatpush.bf16.msra.mxu0 %v3361
        %4103 = vmatpush.bf16.msra.mxu0 %v3350
        %4104 = vmatpush.bf16.msra.mxu0 %v3339
        %4105 = vmatpush.bf16.msra.mxu0 %v3328
        %4106 = vmatpush.bf16.msra.mxu0 %v3317
        %4107 = vmatpush.bf16.msra.mxu0 %v3306
        %4108 = vmatmul.bf16.gmra.mxu0 %v2477
        %v4109 = vpop.f32.mrf.mxu0
        %v4110 = vadd.f32 0.0, %v4109
        %v4111 = vpop.f32.mrf.mxu0
        %4112 = vdwg.mxu0
        %4113 = vmatpush.bf16.msra.mxu0 %v3471
        %4114 = vmatpush.bf16.msra.mxu0 %v3460
        %4115 = vmatpush.bf16.msra.mxu0 %v3449
        %4116 = vmatpush.bf16.msra.mxu0 %v3438
        %4117 = vmatpush.bf16.msra.mxu0 %v3427
        %4118 = vmatpush.bf16.msra.mxu0 %v3416
        %4119 = vmatpush.bf16.msra.mxu0 %v3405
        %4120 = vmatpush.bf16.msra.mxu0 %v3394
        %4121 = vmatmul.bf16.gmra.mxu0 %v2478
        %v4122 = vpop.f32.mrf.mxu0
        %v4123 = vadd.f32 %v4110, %v4122
        %v4124 = vpop.f32.mrf.mxu0
        %4125 = vdwg.mxu0
        %4126 = vmatpush.bf16.msra.mxu0 %v3559
        %4127 = vmatpush.bf16.msra.mxu0 %v3548
        %4128 = vmatpush.bf16.msra.mxu0 %v3537
        %4129 = vmatpush.bf16.msra.mxu0 %v3526
        %4130 = vmatpush.bf16.msra.mxu0 %v3515
        %4131 = vmatpush.bf16.msra.mxu0 %v3504
        %4132 = vmatpush.bf16.msra.mxu0 %v3493
        %4133 = vmatpush.bf16.msra.mxu0 %v3482
        %4134 = vmatmul.bf16.gmra.mxu0 %v2479
        %v4135 = vpop.f32.mrf.mxu0
        %v4136 = vadd.f32 %v4123, %v4135
        %v4137 = vpop.f32.mrf.mxu0
        %4138 = vdwg.mxu0
        %4139 = vmatpush.bf16.msra.mxu0 %v3384
        %4140 = vmatpush.bf16.msra.mxu0 %v3373
        %4141 = vmatpush.bf16.msra.mxu0 %v3362
        %4142 = vmatpush.bf16.msra.mxu0 %v3351
        %4143 = vmatpush.bf16.msra.mxu0 %v3340
        %4144 = vmatpush.bf16.msra.mxu0 %v3329
        %4145 = vmatpush.bf16.msra.mxu0 %v3318
        %4146 = vmatpush.bf16.msra.mxu0 %v3307
        %4147 = vmatmul.bf16.gmra.mxu0 %v2477
        %v4148 = vpop.f32.mrf.mxu0
        %v4149 = vadd.f32 0.0, %v4148
        %v4150 = vpop.f32.mrf.mxu0
        %4151 = vdwg.mxu0
        %4152 = vmatpush.bf16.msra.mxu0 %v3472
        %4153 = vmatpush.bf16.msra.mxu0 %v3461
        %4154 = vmatpush.bf16.msra.mxu0 %v3450
        %4155 = vmatpush.bf16.msra.mxu0 %v3439
        %4156 = vmatpush.bf16.msra.mxu0 %v3428
        %4157 = vmatpush.bf16.msra.mxu0 %v3417
        %4158 = vmatpush.bf16.msra.mxu0 %v3406
        %4159 = vmatpush.bf16.msra.mxu0 %v3395
        %4160 = vmatmul.bf16.gmra.mxu0 %v2478
        %v4161 = vpop.f32.mrf.mxu0
        %v4162 = vadd.f32 %v4149, %v4161
        %v4163 = vpop.f32.mrf.mxu0
        %4164 = vdwg.mxu0
        %4165 = vmatpush.bf16.msra.mxu0 %v3560
        %4166 = vmatpush.bf16.msra.mxu0 %v3549
        %4167 = vmatpush.bf16.msra.mxu0 %v3538
        %4168 = vmatpush.bf16.msra.mxu0 %v3527
        %4169 = vmatpush.bf16.msra.mxu0 %v3516
        %4170 = vmatpush.bf16.msra.mxu0 %v3505
        %4171 = vmatpush.bf16.msra.mxu0 %v3494
        %4172 = vmatpush.bf16.msra.mxu0 %v3483
        %4173 = vmatmul.bf16.gmra.mxu0 %v2479
        %v4174 = vpop.f32.mrf.mxu0
        %v4175 = vadd.f32 %v4162, %v4174
        %v4176 = vpop.f32.mrf.mxu0
        %4177 = vdwg.mxu0
        %4178 = vmatpush.bf16.msra.mxu0 %v3385
        %4179 = vmatpush.bf16.msra.mxu0 %v3374
        %4180 = vmatpush.bf16.msra.mxu0 %v3363
        %4181 = vmatpush.bf16.msra.mxu0 %v3352
        %4182 = vmatpush.bf16.msra.mxu0 %v3341
        %4183 = vmatpush.bf16.msra.mxu0 %v3330
        %4184 = vmatpush.bf16.msra.mxu0 %v3319
        %4185 = vmatpush.bf16.msra.mxu0 %v3308
        %4186 = vmatmul.bf16.gmra.mxu0 %v2477
        %v4187 = vpop.f32.mrf.mxu0
        %v4188 = vadd.f32 0.0, %v4187
        %v4189 = vpop.f32.mrf.mxu0
        %4190 = vdwg.mxu0
        %4191 = vmatpush.bf16.msra.mxu0 %v3473
        %4192 = vmatpush.bf16.msra.mxu0 %v3462
        %4193 = vmatpush.bf16.msra.mxu0 %v3451
        %4194 = vmatpush.bf16.msra.mxu0 %v3440
        %4195 = vmatpush.bf16.msra.mxu0 %v3429
        %4196 = vmatpush.bf16.msra.mxu0 %v3418
        %4197 = vmatpush.bf16.msra.mxu0 %v3407
        %4198 = vmatpush.bf16.msra.mxu0 %v3396
        %4199 = vmatmul.bf16.gmra.mxu0 %v2478
        %v4200 = vpop.f32.mrf.mxu0
        %v4201 = vadd.f32 %v4188, %v4200
        %v4202 = vpop.f32.mrf.mxu0
        %4203 = vdwg.mxu0
        %4204 = vmatpush.bf16.msra.mxu0 %v3561
        %4205 = vmatpush.bf16.msra.mxu0 %v3550
        %4206 = vmatpush.bf16.msra.mxu0 %v3539
        %4207 = vmatpush.bf16.msra.mxu0 %v3528
        %4208 = vmatpush.bf16.msra.mxu0 %v3517
        %4209 = vmatpush.bf16.msra.mxu0 %v3506
        %4210 = vmatpush.bf16.msra.mxu0 %v3495
        %4211 = vmatpush.bf16.msra.mxu0 %v3484
        %4212 = vmatmul.bf16.gmra.mxu0 %v2479
        %v4213 = vpop.f32.mrf.mxu0
        %v4214 = vadd.f32 %v4201, %v4213
        %v4215 = vpop.f32.mrf.mxu0
        %4216 = vdwg.mxu0
        %4217 = vmatpush.bf16.msra.mxu0 %v3386
        %4218 = vmatpush.bf16.msra.mxu0 %v3375
        %4219 = vmatpush.bf16.msra.mxu0 %v3364
        %4220 = vmatpush.bf16.msra.mxu0 %v3353
        %4221 = vmatpush.bf16.msra.mxu0 %v3342
        %4222 = vmatpush.bf16.msra.mxu0 %v3331
        %4223 = vmatpush.bf16.msra.mxu0 %v3320
        %4224 = vmatpush.bf16.msra.mxu0 %v3309
        %4225 = vmatmul.bf16.gmra.mxu0 %v2477
        %v4226 = vpop.f32.mrf.mxu0
        %v4227 = vadd.f32 0.0, %v4226
        %v4228 = vpop.f32.mrf.mxu0
        %4229 = vdwg.mxu0
        %4230 = vmatpush.bf16.msra.mxu0 %v3474
        %4231 = vmatpush.bf16.msra.mxu0 %v3463
        %4232 = vmatpush.bf16.msra.mxu0 %v3452
        %4233 = vmatpush.bf16.msra.mxu0 %v3441
        %4234 = vmatpush.bf16.msra.mxu0 %v3430
        %4235 = vmatpush.bf16.msra.mxu0 %v3419
        %4236 = vmatpush.bf16.msra.mxu0 %v3408
        %4237 = vmatpush.bf16.msra.mxu0 %v3397
        %4238 = vmatmul.bf16.gmra.mxu0 %v2478
        %v4239 = vpop.f32.mrf.mxu0
        %v4240 = vadd.f32 %v4227, %v4239
        %v4241 = vpop.f32.mrf.mxu0
        %4242 = vdwg.mxu0
        %4243 = vmatpush.bf16.msra.mxu0 %v3562
        %4244 = vmatpush.bf16.msra.mxu0 %v3551
        %4245 = vmatpush.bf16.msra.mxu0 %v3540
        %4246 = vmatpush.bf16.msra.mxu0 %v3529
        %4247 = vmatpush.bf16.msra.mxu0 %v3518
        %4248 = vmatpush.bf16.msra.mxu0 %v3507
        %4249 = vmatpush.bf16.msra.mxu0 %v3496
        %4250 = vmatpush.bf16.msra.mxu0 %v3485
        %4251 = vmatmul.bf16.gmra.mxu0 %v2479
        %v4252 = vpop.f32.mrf.mxu0
        %v4253 = vadd.f32 %v4240, %v4252
        %v4254 = vpop.f32.mrf.mxu0
        %4255 = vdwg.mxu0
        %v4258 = vunpack.c.l.b16 %v1887
        %v4259 = vunpack.c.h.b16 %v1887
        %v4260 = vunpack.c.l.b16 %v1888
        %v4261 = vpack.c.b16 %v4258, %v4258
        %v4262 = vpack.c.b16 %v4259, %v4259
        %v4263 = vpack.c.b16 %v4260, %v4260
        %v4555 = vunpack.c.l.b16 %v1895
        %v4556 = vunpack.c.h.b16 %v1895
        %v4557 = vunpack.c.l.b16 %v1896
        %v4558 = vunpack.c.h.b16 %v1896
        %v4559 = vunpack.c.l.b16 %v1897
        %v4560 = vunpack.c.h.b16 %v1897
        %v4561 = vunpack.c.l.b16 %v1898
        %v4562 = vunpack.c.h.b16 %v1898
        %v4563 = vunpack.c.l.b16 %v1899
        %v4564 = vunpack.c.h.b16 %v1899
        %v4565 = vunpack.c.l.b16 %v1900
        %v4566 = vunpack.c.l.b16 %v1901
        %v4567 = vunpack.c.h.b16 %v1901
        %v4568 = vunpack.c.l.b16 %v1902
        %v4569 = vunpack.c.h.b16 %v1902
        %v4570 = vunpack.c.l.b16 %v1903
        %v4571 = vunpack.c.h.b16 %v1903
        %v4572 = vunpack.c.l.b16 %v1904
        %v4573 = vunpack.c.h.b16 %v1904
        %v4574 = vunpack.c.l.b16 %v1905
        %v4575 = vunpack.c.h.b16 %v1905
        %v4576 = vunpack.c.l.b16 %v1906
        %v4577 = vunpack.c.l.b16 %v1907
        %v4578 = vunpack.c.h.b16 %v1907
        %v4579 = vunpack.c.l.b16 %v1908
        %v4580 = vunpack.c.h.b16 %v1908
        %v4581 = vunpack.c.l.b16 %v1909
        %v4582 = vunpack.c.h.b16 %v1909
        %v4583 = vunpack.c.l.b16 %v1910
        %v4584 = vunpack.c.h.b16 %v1910
        %v4585 = vunpack.c.l.b16 %v1911
        %v4586 = vunpack.c.h.b16 %v1911
        %v4587 = vunpack.c.l.b16 %v1912
        %v4588 = vunpack.c.l.b16 %v1913
        %v4589 = vunpack.c.h.b16 %v1913
        %v4590 = vunpack.c.l.b16 %v1914
        %v4591 = vunpack.c.h.b16 %v1914
        %v4592 = vunpack.c.l.b16 %v1915
        %v4593 = vunpack.c.h.b16 %v1915
        %v4594 = vunpack.c.l.b16 %v1916
        %v4595 = vunpack.c.h.b16 %v1916
        %v4596 = vunpack.c.l.b16 %v1917
        %v4597 = vunpack.c.h.b16 %v1917
        %v4598 = vunpack.c.l.b16 %v1918
        %v4599 = vunpack.c.l.b16 %v1919
        %v4600 = vunpack.c.h.b16 %v1919
        %v4601 = vunpack.c.l.b16 %v1920
        %v4602 = vunpack.c.h.b16 %v1920
        %v4603 = vunpack.c.l.b16 %v1921
        %v4604 = vunpack.c.h.b16 %v1921
        %v4605 = vunpack.c.l.b16 %v1922
        %v4606 = vunpack.c.h.b16 %v1922
        %v4607 = vunpack.c.l.b16 %v1923
        %v4608 = vunpack.c.h.b16 %v1923
        %v4609 = vunpack.c.l.b16 %v1924
        %v4610 = vunpack.c.l.b16 %v1925
        %v4611 = vunpack.c.h.b16 %v1925
        %v4612 = vunpack.c.l.b16 %v1926
        %v4613 = vunpack.c.h.b16 %v1926
        %v4614 = vunpack.c.l.b16 %v1927
        %v4615 = vunpack.c.h.b16 %v1927
        %v4616 = vunpack.c.l.b16 %v1928
        %v4617 = vunpack.c.h.b16 %v1928
        %v4618 = vunpack.c.l.b16 %v1929
        %v4619 = vunpack.c.h.b16 %v1929
        %v4620 = vunpack.c.l.b16 %v1930
        %v4621 = vunpack.c.l.b16 %v1931
        %v4622 = vunpack.c.h.b16 %v1931
        %v4623 = vunpack.c.l.b16 %v1932
        %v4624 = vunpack.c.h.b16 %v1932
        %v4625 = vunpack.c.l.b16 %v1933
        %v4626 = vunpack.c.h.b16 %v1933
        %v4627 = vunpack.c.l.b16 %v1934
        %v4628 = vunpack.c.h.b16 %v1934
        %v4629 = vunpack.c.l.b16 %v1935
        %v4630 = vunpack.c.h.b16 %v1935
        %v4631 = vunpack.c.l.b16 %v1936
        %v4632 = vunpack.c.l.b16 %v1937
        %v4633 = vunpack.c.h.b16 %v1937
        %v4634 = vunpack.c.l.b16 %v1938
        %v4635 = vunpack.c.h.b16 %v1938
        %v4636 = vunpack.c.l.b16 %v1939
        %v4637 = vunpack.c.h.b16 %v1939
        %v4638 = vunpack.c.l.b16 %v1940
        %v4639 = vunpack.c.h.b16 %v1940
        %v4640 = vunpack.c.l.b16 %v1941
        %v4641 = vunpack.c.h.b16 %v1941
        %v4642 = vunpack.c.l.b16 %v1942
        %v4643 = vunpack.c.l.b16 %v1943
        %v4644 = vunpack.c.h.b16 %v1943
        %v4645 = vunpack.c.l.b16 %v1944
        %v4646 = vunpack.c.h.b16 %v1944
        %v4647 = vunpack.c.l.b16 %v1945
        %v4648 = vunpack.c.h.b16 %v1945
        %v4649 = vunpack.c.l.b16 %v1946
        %v4650 = vunpack.c.h.b16 %v1946
        %v4651 = vunpack.c.l.b16 %v1947
        %v4652 = vunpack.c.h.b16 %v1947
        %v4653 = vunpack.c.l.b16 %v1948
        %v4654 = vunpack.c.l.b16 %v1949
        %v4655 = vunpack.c.h.b16 %v1949
        %v4656 = vunpack.c.l.b16 %v1950
        %v4657 = vunpack.c.h.b16 %v1950
        %v4658 = vunpack.c.l.b16 %v1951
        %v4659 = vunpack.c.h.b16 %v1951
        %v4660 = vunpack.c.l.b16 %v1952
        %v4661 = vunpack.c.h.b16 %v1952
        %v4662 = vunpack.c.l.b16 %v1953
        %v4663 = vunpack.c.h.b16 %v1953
        %v4664 = vunpack.c.l.b16 %v1954
        %v4665 = vunpack.c.l.b16 %v1955
        %v4666 = vunpack.c.h.b16 %v1955
        %v4667 = vunpack.c.l.b16 %v1956
        %v4668 = vunpack.c.h.b16 %v1956
        %v4669 = vunpack.c.l.b16 %v1957
        %v4670 = vunpack.c.h.b16 %v1957
        %v4671 = vunpack.c.l.b16 %v1958
        %v4672 = vunpack.c.h.b16 %v1958
        %v4673 = vunpack.c.l.b16 %v1959
        %v4674 = vunpack.c.h.b16 %v1959
        %v4675 = vunpack.c.l.b16 %v1960
        %v4676 = vunpack.c.l.b16 %v1961
        %v4677 = vunpack.c.h.b16 %v1961
        %v4678 = vunpack.c.l.b16 %v1962
        %v4679 = vunpack.c.h.b16 %v1962
        %v4680 = vunpack.c.l.b16 %v1963
        %v4681 = vunpack.c.h.b16 %v1963
        %v4682 = vunpack.c.l.b16 %v1964
        %v4683 = vunpack.c.h.b16 %v1964
        %v4684 = vunpack.c.l.b16 %v1965
        %v4685 = vunpack.c.h.b16 %v1965
        %v4686 = vunpack.c.l.b16 %v1966
        %v4687 = vunpack.c.l.b16 %v1967
        %v4688 = vunpack.c.h.b16 %v1967
        %v4689 = vunpack.c.l.b16 %v1968
        %v4690 = vunpack.c.h.b16 %v1968
        %v4691 = vunpack.c.l.b16 %v1969
        %v4692 = vunpack.c.h.b16 %v1969
        %v4693 = vunpack.c.l.b16 %v1970
        %v4694 = vunpack.c.h.b16 %v1970
        %v4695 = vunpack.c.l.b16 %v1971
        %v4696 = vunpack.c.h.b16 %v1971
        %v4697 = vunpack.c.l.b16 %v1972
        %v4698 = vunpack.c.l.b16 %v1973
        %v4699 = vunpack.c.h.b16 %v1973
        %v4700 = vunpack.c.l.b16 %v1974
        %v4701 = vunpack.c.h.b16 %v1974
        %v4702 = vunpack.c.l.b16 %v1975
        %v4703 = vunpack.c.h.b16 %v1975
        %v4704 = vunpack.c.l.b16 %v1976
        %v4705 = vunpack.c.h.b16 %v1976
        %v4706 = vunpack.c.l.b16 %v1977
        %v4707 = vunpack.c.h.b16 %v1977
        %v4708 = vunpack.c.l.b16 %v1978
        %v4709 = vunpack.c.l.b16 %v1979
        %v4710 = vunpack.c.h.b16 %v1979
        %v4711 = vunpack.c.l.b16 %v1980
        %v4712 = vunpack.c.h.b16 %v1980
        %v4713 = vunpack.c.l.b16 %v1981
        %v4714 = vunpack.c.h.b16 %v1981
        %v4715 = vunpack.c.l.b16 %v1982
        %v4716 = vunpack.c.h.b16 %v1982
        %v4717 = vunpack.c.l.b16 %v1983
        %v4718 = vunpack.c.h.b16 %v1983
        %v4719 = vunpack.c.l.b16 %v1984
        %v4720 = vunpack.c.l.b16 %v1985
        %v4721 = vunpack.c.h.b16 %v1985
        %v4722 = vunpack.c.l.b16 %v1986
        %v4723 = vunpack.c.h.b16 %v1986
        %v4724 = vunpack.c.l.b16 %v1987
        %v4725 = vunpack.c.h.b16 %v1987
        %v4726 = vunpack.c.l.b16 %v1988
        %v4727 = vunpack.c.h.b16 %v1988
        %v4728 = vunpack.c.l.b16 %v1989
        %v4729 = vunpack.c.h.b16 %v1989
        %v4730 = vunpack.c.l.b16 %v1990
        %v4731 = vunpack.c.l.b16 %v1991
        %v4732 = vunpack.c.h.b16 %v1991
        %v4733 = vunpack.c.l.b16 %v1992
        %v4734 = vunpack.c.h.b16 %v1992
        %v4735 = vunpack.c.l.b16 %v1993
        %v4736 = vunpack.c.h.b16 %v1993
        %v4737 = vunpack.c.l.b16 %v1994
        %v4738 = vunpack.c.h.b16 %v1994
        %v4739 = vunpack.c.l.b16 %v1995
        %v4740 = vunpack.c.h.b16 %v1995
        %v4741 = vunpack.c.l.b16 %v1996
        %v4742 = vunpack.c.l.b16 %v1997
        %v4743 = vunpack.c.h.b16 %v1997
        %v4744 = vunpack.c.l.b16 %v1998
        %v4745 = vunpack.c.h.b16 %v1998
        %v4746 = vunpack.c.l.b16 %v1999
        %v4747 = vunpack.c.h.b16 %v1999
        %v4748 = vunpack.c.l.b16 %v2000
        %v4749 = vunpack.c.h.b16 %v2000
        %v4750 = vunpack.c.l.b16 %v2001
        %v4751 = vunpack.c.h.b16 %v2001
        %v4752 = vunpack.c.l.b16 %v2002
        %v4753 = vunpack.c.l.b16 %v2003
        %v4754 = vunpack.c.h.b16 %v2003
        %v4755 = vunpack.c.l.b16 %v2004
        %v4756 = vunpack.c.h.b16 %v2004
        %v4757 = vunpack.c.l.b16 %v2005
        %v4758 = vunpack.c.h.b16 %v2005
        %v4759 = vunpack.c.l.b16 %v2006
        %v4760 = vunpack.c.h.b16 %v2006
        %v4761 = vunpack.c.l.b16 %v2007
        %v4762 = vunpack.c.h.b16 %v2007
        %v4763 = vunpack.c.l.b16 %v2008
        %v4764 = vunpack.c.l.b16 %v2009
        %v4765 = vunpack.c.h.b16 %v2009
        %v4766 = vunpack.c.l.b16 %v2010
        %v4767 = vunpack.c.h.b16 %v2010
        %v4768 = vunpack.c.l.b16 %v2011
        %v4769 = vunpack.c.h.b16 %v2011
        %v4770 = vunpack.c.l.b16 %v2012
        %v4771 = vunpack.c.h.b16 %v2012
        %v4772 = vunpack.c.l.b16 %v2013
        %v4773 = vunpack.c.h.b16 %v2013
        %v4774 = vunpack.c.l.b16 %v2014
        %v4775 = vunpack.c.l.b16 %v2015
        %v4776 = vunpack.c.h.b16 %v2015
        %v4777 = vunpack.c.l.b16 %v2016
        %v4778 = vunpack.c.h.b16 %v2016
        %v4779 = vunpack.c.l.b16 %v2017
        %v4780 = vunpack.c.h.b16 %v2017
        %v4781 = vunpack.c.l.b16 %v2018
        %v4782 = vunpack.c.h.b16 %v2018
        %v4783 = vunpack.c.l.b16 %v2019
        %v4784 = vunpack.c.h.b16 %v2019
        %v4785 = vunpack.c.l.b16 %v2020
        %v4786 = vunpack.c.l.b16 %v2021
        %v4787 = vunpack.c.h.b16 %v2021
        %v4788 = vunpack.c.l.b16 %v2022
        %v4789 = vunpack.c.h.b16 %v2022
        %v4790 = vunpack.c.l.b16 %v2023
        %v4791 = vunpack.c.h.b16 %v2023
        %v4792 = vunpack.c.l.b16 %v2024
        %v4793 = vunpack.c.h.b16 %v2024
        %v4794 = vunpack.c.l.b16 %v2025
        %v4795 = vunpack.c.h.b16 %v2025
        %v4796 = vunpack.c.l.b16 %v2026
        %v4797 = vunpack.c.l.b16 %v2027
        %v4798 = vunpack.c.h.b16 %v2027
        %v4799 = vunpack.c.l.b16 %v2028
        %v4800 = vunpack.c.h.b16 %v2028
        %v4801 = vunpack.c.l.b16 %v2029
        %v4802 = vunpack.c.h.b16 %v2029
        %v4803 = vunpack.c.l.b16 %v2030
        %v4804 = vunpack.c.h.b16 %v2030
        %v4805 = vunpack.c.l.b16 %v2031
        %v4806 = vunpack.c.h.b16 %v2031
        %v4807 = vunpack.c.l.b16 %v2032
        %v4808 = vunpack.c.l.b16 %v2033
        %v4809 = vunpack.c.h.b16 %v2033
        %v4810 = vunpack.c.l.b16 %v2034
        %v4811 = vunpack.c.h.b16 %v2034
        %v4812 = vunpack.c.l.b16 %v2035
        %v4813 = vunpack.c.h.b16 %v2035
        %v4814 = vunpack.c.l.b16 %v2036
        %v4815 = vunpack.c.h.b16 %v2036
        %v4816 = vunpack.c.l.b16 %v2037
        %v4817 = vunpack.c.h.b16 %v2037
        %v4818 = vunpack.c.l.b16 %v2038
        %v4819 = vunpack.c.l.b16 %v2039
        %v4820 = vunpack.c.h.b16 %v2039
        %v4821 = vunpack.c.l.b16 %v2040
        %v4822 = vunpack.c.h.b16 %v2040
        %v4823 = vunpack.c.l.b16 %v2041
        %v4824 = vunpack.c.h.b16 %v2041
        %v4825 = vunpack.c.l.b16 %v2042
        %v4826 = vunpack.c.h.b16 %v2042
        %v4827 = vunpack.c.l.b16 %v2043
        %v4828 = vunpack.c.h.b16 %v2043
        %v4829 = vunpack.c.l.b16 %v2044
        %v4830 = vunpack.c.l.b16 %v2045
        %v4831 = vunpack.c.h.b16 %v2045
        %v4832 = vunpack.c.l.b16 %v2046
        %v4833 = vunpack.c.h.b16 %v2046
        %v4834 = vunpack.c.l.b16 %v2047
        %v4835 = vunpack.c.h.b16 %v2047
        %v4836 = vunpack.c.l.b16 %v2048
        %v4837 = vunpack.c.h.b16 %v2048
        %v4838 = vunpack.c.l.b16 %v2049
        %v4839 = vunpack.c.h.b16 %v2049
        %v4840 = vunpack.c.l.b16 %v2050
        %v4841 = vunpack.c.l.b16 %v2051
        %v4842 = vunpack.c.h.b16 %v2051
        %v4843 = vunpack.c.l.b16 %v2052
        %v4844 = vunpack.c.h.b16 %v2052
        %v4845 = vunpack.c.l.b16 %v2053
        %v4846 = vunpack.c.h.b16 %v2053
        %v4847 = vunpack.c.l.b16 %v2054
        %v4848 = vunpack.c.h.b16 %v2054
        %v4849 = vunpack.c.l.b16 %v2055
        %v4850 = vunpack.c.h.b16 %v2055
        %v4851 = vunpack.c.l.b16 %v2056
        %v4852 = vunpack.c.l.b16 %v2057
        %v4853 = vunpack.c.h.b16 %v2057
        %v4854 = vunpack.c.l.b16 %v2058
        %v4855 = vunpack.c.h.b16 %v2058
        %v4856 = vunpack.c.l.b16 %v2059
        %v4857 = vunpack.c.h.b16 %v2059
        %v4858 = vunpack.c.l.b16 %v2060
        %v4859 = vunpack.c.h.b16 %v2060
        %v4860 = vunpack.c.l.b16 %v2061
        %v4861 = vunpack.c.h.b16 %v2061
        %v4862 = vunpack.c.l.b16 %v2062
        %v4863 = vunpack.c.l.b16 %v2063
        %v4864 = vunpack.c.h.b16 %v2063
        %v4865 = vunpack.c.l.b16 %v2064
        %v4866 = vunpack.c.h.b16 %v2064
        %v4867 = vunpack.c.l.b16 %v2065
        %v4868 = vunpack.c.h.b16 %v2065
        %v4869 = vunpack.c.l.b16 %v2066
        %v4870 = vunpack.c.h.b16 %v2066
        %v4871 = vunpack.c.l.b16 %v2067
        %v4872 = vunpack.c.h.b16 %v2067
        %v4873 = vunpack.c.l.b16 %v2068
        %v4874 = vunpack.c.l.b16 %v2069
        %v4875 = vunpack.c.h.b16 %v2069
        %v4876 = vunpack.c.l.b16 %v2070
        %v4877 = vunpack.c.h.b16 %v2070
        %v4878 = vunpack.c.l.b16 %v2071
        %v4879 = vunpack.c.h.b16 %v2071
        %v4880 = vunpack.c.l.b16 %v2072
        %v4881 = vunpack.c.h.b16 %v2072
        %v4882 = vunpack.c.l.b16 %v2073
        %v4883 = vunpack.c.h.b16 %v2073
        %v4884 = vunpack.c.l.b16 %v2074
        %v4885 = vunpack.c.l.b16 %v2075
        %v4886 = vunpack.c.h.b16 %v2075
        %v4887 = vunpack.c.l.b16 %v2076
        %v4888 = vunpack.c.h.b16 %v2076
        %v4889 = vunpack.c.l.b16 %v2077
        %v4890 = vunpack.c.h.b16 %v2077
        %v4891 = vunpack.c.l.b16 %v2078
        %v4892 = vunpack.c.h.b16 %v2078
        %v4893 = vunpack.c.l.b16 %v2079
        %v4894 = vunpack.c.h.b16 %v2079
        %v4895 = vunpack.c.l.b16 %v2080
        %v4896 = vunpack.c.l.b16 %v2081
        %v4897 = vunpack.c.h.b16 %v2081
        %v4898 = vunpack.c.l.b16 %v2082
        %v4899 = vunpack.c.h.b16 %v2082
        %v4900 = vunpack.c.l.b16 %v2083
        %v4901 = vunpack.c.h.b16 %v2083
        %v4902 = vunpack.c.l.b16 %v2084
        %v4903 = vunpack.c.h.b16 %v2084
        %v4904 = vunpack.c.l.b16 %v2085
        %v4905 = vunpack.c.h.b16 %v2085
        %v4906 = vunpack.c.l.b16 %v2086
        %v4907 = vunpack.c.l.b16 %v2087
        %v4908 = vunpack.c.h.b16 %v2087
        %v4909 = vunpack.c.l.b16 %v2088
        %v4910 = vunpack.c.h.b16 %v2088
        %v4911 = vunpack.c.l.b16 %v2089
        %v4912 = vunpack.c.h.b16 %v2089
        %v4913 = vunpack.c.l.b16 %v2090
        %v4914 = vunpack.c.h.b16 %v2090
        %v4915 = vunpack.c.l.b16 %v2091
        %v4916 = vunpack.c.h.b16 %v2091
        %v4917 = vunpack.c.l.b16 %v2092
        %v4918 = vunpack.c.l.b16 %v2093
        %v4919 = vunpack.c.h.b16 %v2093
        %v4920 = vunpack.c.l.b16 %v2094
        %v4921 = vunpack.c.h.b16 %v2094
        %v4922 = vunpack.c.l.b16 %v2095
        %v4923 = vunpack.c.h.b16 %v2095
        %v4924 = vunpack.c.l.b16 %v2096
        %v4925 = vunpack.c.h.b16 %v2096
        %v4926 = vunpack.c.l.b16 %v2097
        %v4927 = vunpack.c.h.b16 %v2097
        %v4928 = vunpack.c.l.b16 %v2098
        %v4929 = vunpack.c.l.b16 %v2099
        %v4930 = vunpack.c.h.b16 %v2099
        %v4931 = vunpack.c.l.b16 %v2100
        %v4932 = vunpack.c.h.b16 %v2100
        %v4933 = vunpack.c.l.b16 %v2101
        %v4934 = vunpack.c.h.b16 %v2101
        %v4935 = vunpack.c.l.b16 %v2102
        %v4936 = vunpack.c.h.b16 %v2102
        %v4937 = vunpack.c.l.b16 %v2103
        %v4938 = vunpack.c.h.b16 %v2103
        %v4939 = vunpack.c.l.b16 %v2104
        %v4940 = vunpack.c.l.b16 %v2105
        %v4941 = vunpack.c.h.b16 %v2105
        %v4942 = vunpack.c.l.b16 %v2106
        %v4943 = vunpack.c.h.b16 %v2106
        %v4944 = vunpack.c.l.b16 %v2107
        %v4945 = vunpack.c.h.b16 %v2107
        %v4946 = vunpack.c.l.b16 %v2108
        %v4947 = vunpack.c.h.b16 %v2108
        %v4948 = vunpack.c.l.b16 %v2109
        %v4949 = vunpack.c.h.b16 %v2109
        %v4950 = vunpack.c.l.b16 %v2110
        %v4951 = vunpack.c.l.b16 %v2111
        %v4952 = vunpack.c.h.b16 %v2111
        %v4953 = vunpack.c.l.b16 %v2112
        %v4954 = vunpack.c.h.b16 %v2112
        %v4955 = vunpack.c.l.b16 %v2113
        %v4956 = vunpack.c.h.b16 %v2113
        %v4957 = vunpack.c.l.b16 %v2114
        %v4958 = vunpack.c.h.b16 %v2114
        %v4959 = vunpack.c.l.b16 %v2115
        %v4960 = vunpack.c.h.b16 %v2115
        %v4961 = vunpack.c.l.b16 %v2116
        %v4962 = vunpack.c.l.b16 %v2117
        %v4963 = vunpack.c.h.b16 %v2117
        %v4964 = vunpack.c.l.b16 %v2118
        %v4965 = vunpack.c.h.b16 %v2118
        %v4966 = vunpack.c.l.b16 %v2119
        %v4967 = vunpack.c.h.b16 %v2119
        %v4968 = vunpack.c.l.b16 %v2120
        %v4969 = vunpack.c.h.b16 %v2120
        %v4970 = vunpack.c.l.b16 %v2121
        %v4971 = vunpack.c.h.b16 %v2121
        %v4972 = vunpack.c.l.b16 %v2122
        %v4973 = vunpack.c.l.b16 %v2123
        %v4974 = vunpack.c.h.b16 %v2123
        %v4975 = vunpack.c.l.b16 %v2124
        %v4976 = vunpack.c.h.b16 %v2124
        %v4977 = vunpack.c.l.b16 %v2125
        %v4978 = vunpack.c.h.b16 %v2125
        %v4979 = vunpack.c.l.b16 %v2126
        %v4980 = vunpack.c.h.b16 %v2126
        %v4981 = vunpack.c.l.b16 %v2127
        %v4982 = vunpack.c.h.b16 %v2127
        %v4983 = vunpack.c.l.b16 %v2128
        %v4984 = vunpack.c.l.b16 %v2129
        %v4985 = vunpack.c.h.b16 %v2129
        %v4986 = vunpack.c.l.b16 %v2130
        %v4987 = vunpack.c.h.b16 %v2130
        %v4988 = vunpack.c.l.b16 %v2131
        %v4989 = vunpack.c.h.b16 %v2131
        %v4990 = vunpack.c.l.b16 %v2132
        %v4991 = vunpack.c.h.b16 %v2132
        %v4992 = vunpack.c.l.b16 %v2133
        %v4993 = vunpack.c.h.b16 %v2133
        %v4994 = vunpack.c.l.b16 %v2134
        %v4995 = vunpack.c.l.b16 %v2135
        %v4996 = vunpack.c.h.b16 %v2135
        %v4997 = vunpack.c.l.b16 %v2136
        %v4998 = vunpack.c.h.b16 %v2136
        %v4999 = vunpack.c.l.b16 %v2137
        %v5000 = vunpack.c.h.b16 %v2137
        %v5001 = vunpack.c.l.b16 %v2138
        %v5002 = vunpack.c.h.b16 %v2138
        %v5003 = vunpack.c.l.b16 %v2139
        %v5004 = vunpack.c.h.b16 %v2139
        %v5005 = vunpack.c.l.b16 %v2140
        %v5006 = vunpack.c.l.b16 %v2141
        %v5007 = vunpack.c.h.b16 %v2141
        %v5008 = vunpack.c.l.b16 %v2142
        %v5009 = vunpack.c.h.b16 %v2142
        %v5010 = vunpack.c.l.b16 %v2143
        %v5011 = vunpack.c.h.b16 %v2143
        %v5012 = vunpack.c.l.b16 %v2144
        %v5013 = vunpack.c.h.b16 %v2144
        %v5014 = vunpack.c.l.b16 %v2145
        %v5015 = vunpack.c.h.b16 %v2145
        %v5016 = vunpack.c.l.b16 %v2146
        %v5017 = vunpack.c.l.b16 %v2147
        %v5018 = vunpack.c.h.b16 %v2147
        %v5019 = vunpack.c.l.b16 %v2148
        %v5020 = vunpack.c.h.b16 %v2148
        %v5021 = vunpack.c.l.b16 %v2149
        %v5022 = vunpack.c.h.b16 %v2149
        %v5023 = vunpack.c.l.b16 %v2150
        %v5024 = vunpack.c.h.b16 %v2150
        %v5025 = vunpack.c.l.b16 %v2151
        %v5026 = vunpack.c.h.b16 %v2151
        %v5027 = vunpack.c.l.b16 %v2152
        %v5028 = vunpack.c.l.b16 %v2153
        %v5029 = vunpack.c.h.b16 %v2153
        %v5030 = vunpack.c.l.b16 %v2154
        %v5031 = vunpack.c.h.b16 %v2154
        %v5032 = vunpack.c.l.b16 %v2155
        %v5033 = vunpack.c.h.b16 %v2155
        %v5034 = vunpack.c.l.b16 %v2156
        %v5035 = vunpack.c.h.b16 %v2156
        %v5036 = vunpack.c.l.b16 %v2157
        %v5037 = vunpack.c.h.b16 %v2157
        %v5038 = vunpack.c.l.b16 %v2158
        %v5039 = vunpack.c.l.b16 %v2159
        %v5040 = vunpack.c.h.b16 %v2159
        %v5041 = vunpack.c.l.b16 %v2160
        %v5042 = vunpack.c.h.b16 %v2160
        %v5043 = vunpack.c.l.b16 %v2161
        %v5044 = vunpack.c.h.b16 %v2161
        %v5045 = vunpack.c.l.b16 %v2162
        %v5046 = vunpack.c.h.b16 %v2162
        %v5047 = vunpack.c.l.b16 %v2163
        %v5048 = vunpack.c.h.b16 %v2163
        %v5049 = vunpack.c.l.b16 %v2164
        %v5050 = vunpack.c.l.b16 %v2165
        %v5051 = vunpack.c.h.b16 %v2165
        %v5052 = vunpack.c.l.b16 %v2166
        %v5053 = vunpack.c.h.b16 %v2166
        %v5054 = vunpack.c.l.b16 %v2167
        %v5055 = vunpack.c.h.b16 %v2167
        %v5056 = vunpack.c.l.b16 %v2168
        %v5057 = vunpack.c.h.b16 %v2168
        %v5058 = vunpack.c.l.b16 %v2169
        %v5059 = vunpack.c.h.b16 %v2169
        %v5060 = vunpack.c.l.b16 %v2170
        %v5061 = vunpack.c.l.b16 %v2171
        %v5062 = vunpack.c.h.b16 %v2171
        %v5063 = vunpack.c.l.b16 %v2172
        %v5064 = vunpack.c.h.b16 %v2172
        %v5065 = vunpack.c.l.b16 %v2173
        %v5066 = vunpack.c.h.b16 %v2173
        %v5067 = vunpack.c.l.b16 %v2174
        %v5068 = vunpack.c.h.b16 %v2174
        %v5069 = vunpack.c.l.b16 %v2175
        %v5070 = vunpack.c.h.b16 %v2175
        %v5071 = vunpack.c.l.b16 %v2176
        %v5072 = vunpack.c.l.b16 %v2177
        %v5073 = vunpack.c.h.b16 %v2177
        %v5074 = vunpack.c.l.b16 %v2178
        %v5075 = vunpack.c.h.b16 %v2178
        %v5076 = vunpack.c.l.b16 %v2179
        %v5077 = vunpack.c.h.b16 %v2179
        %v5078 = vunpack.c.l.b16 %v2180
        %v5079 = vunpack.c.h.b16 %v2180
        %v5080 = vunpack.c.l.b16 %v2181
        %v5081 = vunpack.c.h.b16 %v2181
        %v5082 = vunpack.c.l.b16 %v2182
        %v5083 = vpack.c.b16 %v4566, %v4555
        %v5084 = vpack.c.b16 %v4567, %v4556
        %v5085 = vpack.c.b16 %v4568, %v4557
        %v5086 = vpack.c.b16 %v4569, %v4558
        %v5087 = vpack.c.b16 %v4570, %v4559
        %v5088 = vpack.c.b16 %v4571, %v4560
        %v5089 = vpack.c.b16 %v4572, %v4561
        %v5090 = vpack.c.b16 %v4573, %v4562
        %v5091 = vpack.c.b16 %v4574, %v4563
        %v5092 = vpack.c.b16 %v4575, %v4564
        %v5093 = vpack.c.b16 %v4576, %v4565
        %v5094 = vpack.c.b16 %v4588, %v4577
        %v5095 = vpack.c.b16 %v4589, %v4578
        %v5096 = vpack.c.b16 %v4590, %v4579
        %v5097 = vpack.c.b16 %v4591, %v4580
        %v5098 = vpack.c.b16 %v4592, %v4581
        %v5099 = vpack.c.b16 %v4593, %v4582
        %v5100 = vpack.c.b16 %v4594, %v4583
        %v5101 = vpack.c.b16 %v4595, %v4584
        %v5102 = vpack.c.b16 %v4596, %v4585
        %v5103 = vpack.c.b16 %v4597, %v4586
        %v5104 = vpack.c.b16 %v4598, %v4587
        %v5105 = vpack.c.b16 %v4610, %v4599
        %v5106 = vpack.c.b16 %v4611, %v4600
        %v5107 = vpack.c.b16 %v4612, %v4601
        %v5108 = vpack.c.b16 %v4613, %v4602
        %v5109 = vpack.c.b16 %v4614, %v4603
        %v5110 = vpack.c.b16 %v4615, %v4604
        %v5111 = vpack.c.b16 %v4616, %v4605
        %v5112 = vpack.c.b16 %v4617, %v4606
        %v5113 = vpack.c.b16 %v4618, %v4607
        %v5114 = vpack.c.b16 %v4619, %v4608
        %v5115 = vpack.c.b16 %v4620, %v4609
        %v5116 = vpack.c.b16 %v4632, %v4621
        %v5117 = vpack.c.b16 %v4633, %v4622
        %v5118 = vpack.c.b16 %v4634, %v4623
        %v5119 = vpack.c.b16 %v4635, %v4624
        %v5120 = vpack.c.b16 %v4636, %v4625
        %v5121 = vpack.c.b16 %v4637, %v4626
        %v5122 = vpack.c.b16 %v4638, %v4627
        %v5123 = vpack.c.b16 %v4639, %v4628
        %v5124 = vpack.c.b16 %v4640, %v4629
        %v5125 = vpack.c.b16 %v4641, %v4630
        %v5126 = vpack.c.b16 %v4642, %v4631
        %v5127 = vpack.c.b16 %v4654, %v4643
        %v5128 = vpack.c.b16 %v4655, %v4644
        %v5129 = vpack.c.b16 %v4656, %v4645
        %v5130 = vpack.c.b16 %v4657, %v4646
        %v5131 = vpack.c.b16 %v4658, %v4647
        %v5132 = vpack.c.b16 %v4659, %v4648
        %v5133 = vpack.c.b16 %v4660, %v4649
        %v5134 = vpack.c.b16 %v4661, %v4650
        %v5135 = vpack.c.b16 %v4662, %v4651
        %v5136 = vpack.c.b16 %v4663, %v4652
        %v5137 = vpack.c.b16 %v4664, %v4653
        %v5138 = vpack.c.b16 %v4676, %v4665
        %v5139 = vpack.c.b16 %v4677, %v4666
        %v5140 = vpack.c.b16 %v4678, %v4667
        %v5141 = vpack.c.b16 %v4679, %v4668
        %v5142 = vpack.c.b16 %v4680, %v4669
        %v5143 = vpack.c.b16 %v4681, %v4670
        %v5144 = vpack.c.b16 %v4682, %v4671
        %v5145 = vpack.c.b16 %v4683, %v4672
        %v5146 = vpack.c.b16 %v4684, %v4673
        %v5147 = vpack.c.b16 %v4685, %v4674
        %v5148 = vpack.c.b16 %v4686, %v4675
        %v5149 = vpack.c.b16 %v4698, %v4687
        %v5150 = vpack.c.b16 %v4699, %v4688
        %v5151 = vpack.c.b16 %v4700, %v4689
        %v5152 = vpack.c.b16 %v4701, %v4690
        %v5153 = vpack.c.b16 %v4702, %v4691
        %v5154 = vpack.c.b16 %v4703, %v4692
        %v5155 = vpack.c.b16 %v4704, %v4693
        %v5156 = vpack.c.b16 %v4705, %v4694
        %v5157 = vpack.c.b16 %v4706, %v4695
        %v5158 = vpack.c.b16 %v4707, %v4696
        %v5159 = vpack.c.b16 %v4708, %v4697
        %v5160 = vpack.c.b16 %v4720, %v4709
        %v5161 = vpack.c.b16 %v4721, %v4710
        %v5162 = vpack.c.b16 %v4722, %v4711
        %v5163 = vpack.c.b16 %v4723, %v4712
        %v5164 = vpack.c.b16 %v4724, %v4713
        %v5165 = vpack.c.b16 %v4725, %v4714
        %v5166 = vpack.c.b16 %v4726, %v4715
        %v5167 = vpack.c.b16 %v4727, %v4716
        %v5168 = vpack.c.b16 %v4728, %v4717
        %v5169 = vpack.c.b16 %v4729, %v4718
        %v5170 = vpack.c.b16 %v4730, %v4719
        %v5171 = vpack.c.b16 %v4742, %v4731
        %v5172 = vpack.c.b16 %v4743, %v4732
        %v5173 = vpack.c.b16 %v4744, %v4733
        %v5174 = vpack.c.b16 %v4745, %v4734
        %v5175 = vpack.c.b16 %v4746, %v4735
        %v5176 = vpack.c.b16 %v4747, %v4736
        %v5177 = vpack.c.b16 %v4748, %v4737
        %v5178 = vpack.c.b16 %v4749, %v4738
        %v5179 = vpack.c.b16 %v4750, %v4739
        %v5180 = vpack.c.b16 %v4751, %v4740
        %v5181 = vpack.c.b16 %v4752, %v4741
        %v5182 = vpack.c.b16 %v4764, %v4753
        %v5183 = vpack.c.b16 %v4765, %v4754
        %v5184 = vpack.c.b16 %v4766, %v4755
        %v5185 = vpack.c.b16 %v4767, %v4756
        %v5186 = vpack.c.b16 %v4768, %v4757
        %v5187 = vpack.c.b16 %v4769, %v4758
        %v5188 = vpack.c.b16 %v4770, %v4759
        %v5189 = vpack.c.b16 %v4771, %v4760
        %v5190 = vpack.c.b16 %v4772, %v4761
        %v5191 = vpack.c.b16 %v4773, %v4762
        %v5192 = vpack.c.b16 %v4774, %v4763
        %v5193 = vpack.c.b16 %v4786, %v4775
        %v5194 = vpack.c.b16 %v4787, %v4776
        %v5195 = vpack.c.b16 %v4788, %v4777
        %v5196 = vpack.c.b16 %v4789, %v4778
        %v5197 = vpack.c.b16 %v4790, %v4779
        %v5198 = vpack.c.b16 %v4791, %v4780
        %v5199 = vpack.c.b16 %v4792, %v4781
        %v5200 = vpack.c.b16 %v4793, %v4782
        %v5201 = vpack.c.b16 %v4794, %v4783
        %v5202 = vpack.c.b16 %v4795, %v4784
        %v5203 = vpack.c.b16 %v4796, %v4785
        %v5204 = vpack.c.b16 %v4808, %v4797
        %v5205 = vpack.c.b16 %v4809, %v4798
        %v5206 = vpack.c.b16 %v4810, %v4799
        %v5207 = vpack.c.b16 %v4811, %v4800
        %v5208 = vpack.c.b16 %v4812, %v4801
        %v5209 = vpack.c.b16 %v4813, %v4802
        %v5210 = vpack.c.b16 %v4814, %v4803
        %v5211 = vpack.c.b16 %v4815, %v4804
        %v5212 = vpack.c.b16 %v4816, %v4805
        %v5213 = vpack.c.b16 %v4817, %v4806
        %v5214 = vpack.c.b16 %v4818, %v4807
        %v5215 = vpack.c.b16 %v4830, %v4819
        %v5216 = vpack.c.b16 %v4831, %v4820
        %v5217 = vpack.c.b16 %v4832, %v4821
        %v5218 = vpack.c.b16 %v4833, %v4822
        %v5219 = vpack.c.b16 %v4834, %v4823
        %v5220 = vpack.c.b16 %v4835, %v4824
        %v5221 = vpack.c.b16 %v4836, %v4825
        %v5222 = vpack.c.b16 %v4837, %v4826
        %v5223 = vpack.c.b16 %v4838, %v4827
        %v5224 = vpack.c.b16 %v4839, %v4828
        %v5225 = vpack.c.b16 %v4840, %v4829
        %v5226 = vpack.c.b16 %v4852, %v4841
        %v5227 = vpack.c.b16 %v4853, %v4842
        %v5228 = vpack.c.b16 %v4854, %v4843
        %v5229 = vpack.c.b16 %v4855, %v4844
        %v5230 = vpack.c.b16 %v4856, %v4845
        %v5231 = vpack.c.b16 %v4857, %v4846
        %v5232 = vpack.c.b16 %v4858, %v4847
        %v5233 = vpack.c.b16 %v4859, %v4848
        %v5234 = vpack.c.b16 %v4860, %v4849
        %v5235 = vpack.c.b16 %v4861, %v4850
        %v5236 = vpack.c.b16 %v4862, %v4851
        %v5237 = vpack.c.b16 %v4874, %v4863
        %v5238 = vpack.c.b16 %v4875, %v4864
        %v5239 = vpack.c.b16 %v4876, %v4865
        %v5240 = vpack.c.b16 %v4877, %v4866
        %v5241 = vpack.c.b16 %v4878, %v4867
        %v5242 = vpack.c.b16 %v4879, %v4868
        %v5243 = vpack.c.b16 %v4880, %v4869
        %v5244 = vpack.c.b16 %v4881, %v4870
        %v5245 = vpack.c.b16 %v4882, %v4871
        %v5246 = vpack.c.b16 %v4883, %v4872
        %v5247 = vpack.c.b16 %v4884, %v4873
        %v5248 = vpack.c.b16 %v4896, %v4885
        %v5249 = vpack.c.b16 %v4897, %v4886
        %v5250 = vpack.c.b16 %v4898, %v4887
        %v5251 = vpack.c.b16 %v4899, %v4888
        %v5252 = vpack.c.b16 %v4900, %v4889
        %v5253 = vpack.c.b16 %v4901, %v4890
        %v5254 = vpack.c.b16 %v4902, %v4891
        %v5255 = vpack.c.b16 %v4903, %v4892
        %v5256 = vpack.c.b16 %v4904, %v4893
        %v5257 = vpack.c.b16 %v4905, %v4894
        %v5258 = vpack.c.b16 %v4906, %v4895
        %v5259 = vpack.c.b16 %v4918, %v4907
        %v5260 = vpack.c.b16 %v4919, %v4908
        %v5261 = vpack.c.b16 %v4920, %v4909
        %v5262 = vpack.c.b16 %v4921, %v4910
        %v5263 = vpack.c.b16 %v4922, %v4911
        %v5264 = vpack.c.b16 %v4923, %v4912
        %v5265 = vpack.c.b16 %v4924, %v4913
        %v5266 = vpack.c.b16 %v4925, %v4914
        %v5267 = vpack.c.b16 %v4926, %v4915
        %v5268 = vpack.c.b16 %v4927, %v4916
        %v5269 = vpack.c.b16 %v4928, %v4917
        %v5270 = vpack.c.b16 %v4940, %v4929
        %v5271 = vpack.c.b16 %v4941, %v4930
        %v5272 = vpack.c.b16 %v4942, %v4931
        %v5273 = vpack.c.b16 %v4943, %v4932
        %v5274 = vpack.c.b16 %v4944, %v4933
        %v5275 = vpack.c.b16 %v4945, %v4934
        %v5276 = vpack.c.b16 %v4946, %v4935
        %v5277 = vpack.c.b16 %v4947, %v4936
        %v5278 = vpack.c.b16 %v4948, %v4937
        %v5279 = vpack.c.b16 %v4949, %v4938
        %v5280 = vpack.c.b16 %v4950, %v4939
        %v5281 = vpack.c.b16 %v4962, %v4951
        %v5282 = vpack.c.b16 %v4963, %v4952
        %v5283 = vpack.c.b16 %v4964, %v4953
        %v5284 = vpack.c.b16 %v4965, %v4954
        %v5285 = vpack.c.b16 %v4966, %v4955
        %v5286 = vpack.c.b16 %v4967, %v4956
        %v5287 = vpack.c.b16 %v4968, %v4957
        %v5288 = vpack.c.b16 %v4969, %v4958
        %v5289 = vpack.c.b16 %v4970, %v4959
        %v5290 = vpack.c.b16 %v4971, %v4960
        %v5291 = vpack.c.b16 %v4972, %v4961
        %v5292 = vpack.c.b16 %v4984, %v4973
        %v5293 = vpack.c.b16 %v4985, %v4974
        %v5294 = vpack.c.b16 %v4986, %v4975
        %v5295 = vpack.c.b16 %v4987, %v4976
        %v5296 = vpack.c.b16 %v4988, %v4977
        %v5297 = vpack.c.b16 %v4989, %v4978
        %v5298 = vpack.c.b16 %v4990, %v4979
        %v5299 = vpack.c.b16 %v4991, %v4980
        %v5300 = vpack.c.b16 %v4992, %v4981
        %v5301 = vpack.c.b16 %v4993, %v4982
        %v5302 = vpack.c.b16 %v4994, %v4983
        %v5303 = vpack.c.b16 %v5006, %v4995
        %v5304 = vpack.c.b16 %v5007, %v4996
        %v5305 = vpack.c.b16 %v5008, %v4997
        %v5306 = vpack.c.b16 %v5009, %v4998
        %v5307 = vpack.c.b16 %v5010, %v4999
        %v5308 = vpack.c.b16 %v5011, %v5000
        %v5309 = vpack.c.b16 %v5012, %v5001
        %v5310 = vpack.c.b16 %v5013, %v5002
        %v5311 = vpack.c.b16 %v5014, %v5003
        %v5312 = vpack.c.b16 %v5015, %v5004
        %v5313 = vpack.c.b16 %v5016, %v5005
        %v5314 = vpack.c.b16 %v5028, %v5017
        %v5315 = vpack.c.b16 %v5029, %v5018
        %v5316 = vpack.c.b16 %v5030, %v5019
        %v5317 = vpack.c.b16 %v5031, %v5020
        %v5318 = vpack.c.b16 %v5032, %v5021
        %v5319 = vpack.c.b16 %v5033, %v5022
        %v5320 = vpack.c.b16 %v5034, %v5023
        %v5321 = vpack.c.b16 %v5035, %v5024
        %v5322 = vpack.c.b16 %v5036, %v5025
        %v5323 = vpack.c.b16 %v5037, %v5026
        %v5324 = vpack.c.b16 %v5038, %v5027
        %v5325 = vpack.c.b16 %v5050, %v5039
        %v5326 = vpack.c.b16 %v5051, %v5040
        %v5327 = vpack.c.b16 %v5052, %v5041
        %v5328 = vpack.c.b16 %v5053, %v5042
        %v5329 = vpack.c.b16 %v5054, %v5043
        %v5330 = vpack.c.b16 %v5055, %v5044
        %v5331 = vpack.c.b16 %v5056, %v5045
        %v5332 = vpack.c.b16 %v5057, %v5046
        %v5333 = vpack.c.b16 %v5058, %v5047
        %v5334 = vpack.c.b16 %v5059, %v5048
        %v5335 = vpack.c.b16 %v5060, %v5049
        %v5336 = vpack.c.b16 %v5072, %v5061
        %v5337 = vpack.c.b16 %v5073, %v5062
        %v5338 = vpack.c.b16 %v5074, %v5063
        %v5339 = vpack.c.b16 %v5075, %v5064
        %v5340 = vpack.c.b16 %v5076, %v5065
        %v5341 = vpack.c.b16 %v5077, %v5066
        %v5342 = vpack.c.b16 %v5078, %v5067
        %v5343 = vpack.c.b16 %v5079, %v5068
        %v5344 = vpack.c.b16 %v5080, %v5069
        %v5345 = vpack.c.b16 %v5081, %v5070
        %v5346 = vpack.c.b16 %v5082, %v5071
        %5611 = vmatpush.bf16.msra.mxu0 %v5160
        %5612 = vmatpush.bf16.msra.mxu0 %v5149
        %5613 = vmatpush.bf16.msra.mxu0 %v5138
        %5614 = vmatpush.bf16.msra.mxu0 %v5127
        %5615 = vmatpush.bf16.msra.mxu0 %v5116
        %5616 = vmatpush.bf16.msra.mxu0 %v5105
        %5617 = vmatpush.bf16.msra.mxu0 %v5094
        %5618 = vmatpush.bf16.msra.mxu0 %v5083
        %5619 = vmatmul.bf16.gmra.mxu0 %v4261
        %v5620 = vpop.f32.mrf.mxu0
        %v5621 = vadd.f32 %v3863, %v5620
        %v5622 = vpop.f32.mrf.mxu0
        %5623 = vdwg.mxu0
        %5624 = vmatpush.bf16.msra.mxu0 %v5248
        %5625 = vmatpush.bf16.msra.mxu0 %v5237
        %5626 = vmatpush.bf16.msra.mxu0 %v5226
        %5627 = vmatpush.bf16.msra.mxu0 %v5215
        %5628 = vmatpush.bf16.msra.mxu0 %v5204
        %5629 = vmatpush.bf16.msra.mxu0 %v5193
        %5630 = vmatpush.bf16.msra.mxu0 %v5182
        %5631 = vmatpush.bf16.msra.mxu0 %v5171
        %5632 = vmatmul.bf16.gmra.mxu0 %v4262
        %v5633 = vpop.f32.mrf.mxu0
        %v5634 = vadd.f32 %v5621, %v5633
        %v5635 = vpop.f32.mrf.mxu0
        %5636 = vdwg.mxu0
        %5637 = vmatpush.bf16.msra.mxu0 %v5336
        %5638 = vmatpush.bf16.msra.mxu0 %v5325
        %5639 = vmatpush.bf16.msra.mxu0 %v5314
        %5640 = vmatpush.bf16.msra.mxu0 %v5303
        %5641 = vmatpush.bf16.msra.mxu0 %v5292
        %5642 = vmatpush.bf16.msra.mxu0 %v5281
        %5643 = vmatpush.bf16.msra.mxu0 %v5270
        %5644 = vmatpush.bf16.msra.mxu0 %v5259
        %5645 = vmatmul.bf16.gmra.mxu0 %v4263
        %v5646 = vpop.f32.mrf.mxu0
        %v5647 = vadd.f32 %v5634, %v5646
        %v5648 = vpop.f32.mrf.mxu0
        %5649 = vdwg.mxu0
        %5650 = vmatpush.bf16.msra.mxu0 %v5161
        %5651 = vmatpush.bf16.msra.mxu0 %v5150
        %5652 = vmatpush.bf16.msra.mxu0 %v5139
        %5653 = vmatpush.bf16.msra.mxu0 %v5128
        %5654 = vmatpush.bf16.msra.mxu0 %v5117
        %5655 = vmatpush.bf16.msra.mxu0 %v5106
        %5656 = vmatpush.bf16.msra.mxu0 %v5095
        %5657 = vmatpush.bf16.msra.mxu0 %v5084
        %5658 = vmatmul.bf16.gmra.mxu0 %v4261
        %v5659 = vpop.f32.mrf.mxu0
        %v5660 = vadd.f32 %v3902, %v5659
        %v5661 = vpop.f32.mrf.mxu0
        %5662 = vdwg.mxu0
        %5663 = vmatpush.bf16.msra.mxu0 %v5249
        %5664 = vmatpush.bf16.msra.mxu0 %v5238
        %5665 = vmatpush.bf16.msra.mxu0 %v5227
        %5666 = vmatpush.bf16.msra.mxu0 %v5216
        %5667 = vmatpush.bf16.msra.mxu0 %v5205
        %5668 = vmatpush.bf16.msra.mxu0 %v5194
        %5669 = vmatpush.bf16.msra.mxu0 %v5183
        %5670 = vmatpush.bf16.msra.mxu0 %v5172
        %5671 = vmatmul.bf16.gmra.mxu0 %v4262
        %v5672 = vpop.f32.mrf.mxu0
        %v5673 = vadd.f32 %v5660, %v5672
        %v5674 = vpop.f32.mrf.mxu0
        %5675 = vdwg.mxu0
        %5676 = vmatpush.bf16.msra.mxu0 %v5337
        %5677 = vmatpush.bf16.msra.mxu0 %v5326
        %5678 = vmatpush.bf16.msra.mxu0 %v5315
        %5679 = vmatpush.bf16.msra.mxu0 %v5304
        %5680 = vmatpush.bf16.msra.mxu0 %v5293
        %5681 = vmatpush.bf16.msra.mxu0 %v5282
        %5682 = vmatpush.bf16.msra.mxu0 %v5271
        %5683 = vmatpush.bf16.msra.mxu0 %v5260
        %5684 = vmatmul.bf16.gmra.mxu0 %v4263
        %v5685 = vpop.f32.mrf.mxu0
        %v5686 = vadd.f32 %v5673, %v5685
        %v5687 = vpop.f32.mrf.mxu0
        %5688 = vdwg.mxu0
        %5689 = vmatpush.bf16.msra.mxu0 %v5162
        %5690 = vmatpush.bf16.msra.mxu0 %v5151
        %5691 = vmatpush.bf16.msra.mxu0 %v5140
        %5692 = vmatpush.bf16.msra.mxu0 %v5129
        %5693 = vmatpush.bf16.msra.mxu0 %v5118
        %5694 = vmatpush.bf16.msra.mxu0 %v5107
        %5695 = vmatpush.bf16.msra.mxu0 %v5096
        %5696 = vmatpush.bf16.msra.mxu0 %v5085
        %5697 = vmatmul.bf16.gmra.mxu0 %v4261
        %v5698 = vpop.f32.mrf.mxu0
        %v5699 = vadd.f32 %v3941, %v5698
        %v5700 = vpop.f32.mrf.mxu0
        %5701 = vdwg.mxu0
        %5702 = vmatpush.bf16.msra.mxu0 %v5250
        %5703 = vmatpush.bf16.msra.mxu0 %v5239
        %5704 = vmatpush.bf16.msra.mxu0 %v5228
        %5705 = vmatpush.bf16.msra.mxu0 %v5217
        %5706 = vmatpush.bf16.msra.mxu0 %v5206
        %5707 = vmatpush.bf16.msra.mxu0 %v5195
        %5708 = vmatpush.bf16.msra.mxu0 %v5184
        %5709 = vmatpush.bf16.msra.mxu0 %v5173
        %5710 = vmatmul.bf16.gmra.mxu0 %v4262
        %v5711 = vpop.f32.mrf.mxu0
        %v5712 = vadd.f32 %v5699, %v5711
        %v5713 = vpop.f32.mrf.mxu0
        %5714 = vdwg.mxu0
        %5715 = vmatpush.bf16.msra.mxu0 %v5338
        %5716 = vmatpush.bf16.msra.mxu0 %v5327
        %5717 = vmatpush.bf16.msra.mxu0 %v5316
        %5718 = vmatpush.bf16.msra.mxu0 %v5305
        %5719 = vmatpush.bf16.msra.mxu0 %v5294
        %5720 = vmatpush.bf16.msra.mxu0 %v5283
        %5721 = vmatpush.bf16.msra.mxu0 %v5272
        %5722 = vmatpush.bf16.msra.mxu0 %v5261
        %5723 = vmatmul.bf16.gmra.mxu0 %v4263
        %v5724 = vpop.f32.mrf.mxu0
        %v5725 = vadd.f32 %v5712, %v5724
        %v5726 = vpop.f32.mrf.mxu0
        %5727 = vdwg.mxu0
        %5728 = vmatpush.bf16.msra.mxu0 %v5163
        %5729 = vmatpush.bf16.msra.mxu0 %v5152
        %5730 = vmatpush.bf16.msra.mxu0 %v5141
        %5731 = vmatpush.bf16.msra.mxu0 %v5130
        %5732 = vmatpush.bf16.msra.mxu0 %v5119
        %5733 = vmatpush.bf16.msra.mxu0 %v5108
        %5734 = vmatpush.bf16.msra.mxu0 %v5097
        %5735 = vmatpush.bf16.msra.mxu0 %v5086
        %5736 = vmatmul.bf16.gmra.mxu0 %v4261
        %v5737 = vpop.f32.mrf.mxu0
        %v5738 = vadd.f32 %v3980, %v5737
        %v5739 = vpop.f32.mrf.mxu0
        %5740 = vdwg.mxu0
        %5741 = vmatpush.bf16.msra.mxu0 %v5251
        %5742 = vmatpush.bf16.msra.mxu0 %v5240
        %5743 = vmatpush.bf16.msra.mxu0 %v5229
        %5744 = vmatpush.bf16.msra.mxu0 %v5218
        %5745 = vmatpush.bf16.msra.mxu0 %v5207
        %5746 = vmatpush.bf16.msra.mxu0 %v5196
        %5747 = vmatpush.bf16.msra.mxu0 %v5185
        %5748 = vmatpush.bf16.msra.mxu0 %v5174
        %5749 = vmatmul.bf16.gmra.mxu0 %v4262
        %v5750 = vpop.f32.mrf.mxu0
        %v5751 = vadd.f32 %v5738, %v5750
        %v5752 = vpop.f32.mrf.mxu0
        %5753 = vdwg.mxu0
        %5754 = vmatpush.bf16.msra.mxu0 %v5339
        %5755 = vmatpush.bf16.msra.mxu0 %v5328
        %5756 = vmatpush.bf16.msra.mxu0 %v5317
        %5757 = vmatpush.bf16.msra.mxu0 %v5306
        %5758 = vmatpush.bf16.msra.mxu0 %v5295
        %5759 = vmatpush.bf16.msra.mxu0 %v5284
        %5760 = vmatpush.bf16.msra.mxu0 %v5273
        %5761 = vmatpush.bf16.msra.mxu0 %v5262
        %5762 = vmatmul.bf16.gmra.mxu0 %v4263
        %v5763 = vpop.f32.mrf.mxu0
        %v5764 = vadd.f32 %v5751, %v5763
        %v5765 = vpop.f32.mrf.mxu0
        %5766 = vdwg.mxu0
        %5767 = vmatpush.bf16.msra.mxu0 %v5164
        %5768 = vmatpush.bf16.msra.mxu0 %v5153
        %5769 = vmatpush.bf16.msra.mxu0 %v5142
        %5770 = vmatpush.bf16.msra.mxu0 %v5131
        %5771 = vmatpush.bf16.msra.mxu0 %v5120
        %5772 = vmatpush.bf16.msra.mxu0 %v5109
        %5773 = vmatpush.bf16.msra.mxu0 %v5098
        %5774 = vmatpush.bf16.msra.mxu0 %v5087
        %5775 = vmatmul.bf16.gmra.mxu0 %v4261
        %v5776 = vpop.f32.mrf.mxu0
        %v5777 = vadd.f32 %v4019, %v5776
        %v5778 = vpop.f32.mrf.mxu0
        %5779 = vdwg.mxu0
        %5780 = vmatpush.bf16.msra.mxu0 %v5252
        %5781 = vmatpush.bf16.msra.mxu0 %v5241
        %5782 = vmatpush.bf16.msra.mxu0 %v5230
        %5783 = vmatpush.bf16.msra.mxu0 %v5219
        %5784 = vmatpush.bf16.msra.mxu0 %v5208
        %5785 = vmatpush.bf16.msra.mxu0 %v5197
        %5786 = vmatpush.bf16.msra.mxu0 %v5186
        %5787 = vmatpush.bf16.msra.mxu0 %v5175
        %5788 = vmatmul.bf16.gmra.mxu0 %v4262
        %v5789 = vpop.f32.mrf.mxu0
        %v5790 = vadd.f32 %v5777, %v5789
        %v5791 = vpop.f32.mrf.mxu0
        %5792 = vdwg.mxu0
        %5793 = vmatpush.bf16.msra.mxu0 %v5340
        %5794 = vmatpush.bf16.msra.mxu0 %v5329
        %5795 = vmatpush.bf16.msra.mxu0 %v5318
        %5796 = vmatpush.bf16.msra.mxu0 %v5307
        %5797 = vmatpush.bf16.msra.mxu0 %v5296
        %5798 = vmatpush.bf16.msra.mxu0 %v5285
        %5799 = vmatpush.bf16.msra.mxu0 %v5274
        %5800 = vmatpush.bf16.msra.mxu0 %v5263
        %5801 = vmatmul.bf16.gmra.mxu0 %v4263
        %v5802 = vpop.f32.mrf.mxu0
        %v5803 = vadd.f32 %v5790, %v5802
        %v5804 = vpop.f32.mrf.mxu0
        %5805 = vdwg.mxu0
        %5806 = vmatpush.bf16.msra.mxu0 %v5165
        %5807 = vmatpush.bf16.msra.mxu0 %v5154
        %5808 = vmatpush.bf16.msra.mxu0 %v5143
        %5809 = vmatpush.bf16.msra.mxu0 %v5132
        %5810 = vmatpush.bf16.msra.mxu0 %v5121
        %5811 = vmatpush.bf16.msra.mxu0 %v5110
        %5812 = vmatpush.bf16.msra.mxu0 %v5099
        %5813 = vmatpush.bf16.msra.mxu0 %v5088
        %5814 = vmatmul.bf16.gmra.mxu0 %v4261
        %v5815 = vpop.f32.mrf.mxu0
        %v5816 = vadd.f32 %v4058, %v5815
        %v5817 = vpop.f32.mrf.mxu0
        %5818 = vdwg.mxu0
        %5819 = vmatpush.bf16.msra.mxu0 %v5253
        %5820 = vmatpush.bf16.msra.mxu0 %v5242
        %5821 = vmatpush.bf16.msra.mxu0 %v5231
        %5822 = vmatpush.bf16.msra.mxu0 %v5220
        %5823 = vmatpush.bf16.msra.mxu0 %v5209
        %5824 = vmatpush.bf16.msra.mxu0 %v5198
        %5825 = vmatpush.bf16.msra.mxu0 %v5187
        %5826 = vmatpush.bf16.msra.mxu0 %v5176
        %5827 = vmatmul.bf16.gmra.mxu0 %v4262
        %v5828 = vpop.f32.mrf.mxu0
        %v5829 = vadd.f32 %v5816, %v5828
        %v5830 = vpop.f32.mrf.mxu0
        %5831 = vdwg.mxu0
        %5832 = vmatpush.bf16.msra.mxu0 %v5341
        %5833 = vmatpush.bf16.msra.mxu0 %v5330
        %5834 = vmatpush.bf16.msra.mxu0 %v5319
        %5835 = vmatpush.bf16.msra.mxu0 %v5308
        %5836 = vmatpush.bf16.msra.mxu0 %v5297
        %5837 = vmatpush.bf16.msra.mxu0 %v5286
        %5838 = vmatpush.bf16.msra.mxu0 %v5275
        %5839 = vmatpush.bf16.msra.mxu0 %v5264
        %5840 = vmatmul.bf16.gmra.mxu0 %v4263
        %v5841 = vpop.f32.mrf.mxu0
        %v5842 = vadd.f32 %v5829, %v5841
        %v5843 = vpop.f32.mrf.mxu0
        %5844 = vdwg.mxu0
        %5845 = vmatpush.bf16.msra.mxu0 %v5166
        %5846 = vmatpush.bf16.msra.mxu0 %v5155
        %5847 = vmatpush.bf16.msra.mxu0 %v5144
        %5848 = vmatpush.bf16.msra.mxu0 %v5133
        %5849 = vmatpush.bf16.msra.mxu0 %v5122
        %5850 = vmatpush.bf16.msra.mxu0 %v5111
        %5851 = vmatpush.bf16.msra.mxu0 %v5100
        %5852 = vmatpush.bf16.msra.mxu0 %v5089
        %5853 = vmatmul.bf16.gmra.mxu0 %v4261
        %v5854 = vpop.f32.mrf.mxu0
        %v5855 = vadd.f32 %v4097, %v5854
        %v5856 = vpop.f32.mrf.mxu0
        %5857 = vdwg.mxu0
        %5858 = vmatpush.bf16.msra.mxu0 %v5254
        %5859 = vmatpush.bf16.msra.mxu0 %v5243
        %5860 = vmatpush.bf16.msra.mxu0 %v5232
        %5861 = vmatpush.bf16.msra.mxu0 %v5221
        %5862 = vmatpush.bf16.msra.mxu0 %v5210
        %5863 = vmatpush.bf16.msra.mxu0 %v5199
        %5864 = vmatpush.bf16.msra.mxu0 %v5188
        %5865 = vmatpush.bf16.msra.mxu0 %v5177
        %5866 = vmatmul.bf16.gmra.mxu0 %v4262
        %v5867 = vpop.f32.mrf.mxu0
        %v5868 = vadd.f32 %v5855, %v5867
        %v5869 = vpop.f32.mrf.mxu0
        %5870 = vdwg.mxu0
        %5871 = vmatpush.bf16.msra.mxu0 %v5342
        %5872 = vmatpush.bf16.msra.mxu0 %v5331
        %5873 = vmatpush.bf16.msra.mxu0 %v5320
        %5874 = vmatpush.bf16.msra.mxu0 %v5309
        %5875 = vmatpush.bf16.msra.mxu0 %v5298
        %5876 = vmatpush.bf16.msra.mxu0 %v5287
        %5877 = vmatpush.bf16.msra.mxu0 %v5276
        %5878 = vmatpush.bf16.msra.mxu0 %v5265
        %5879 = vmatmul.bf16.gmra.mxu0 %v4263
        %v5880 = vpop.f32.mrf.mxu0
        %v5881 = vadd.f32 %v5868, %v5880
        %v5882 = vpop.f32.mrf.mxu0
        %5883 = vdwg.mxu0
        %5884 = vmatpush.bf16.msra.mxu0 %v5167
        %5885 = vmatpush.bf16.msra.mxu0 %v5156
        %5886 = vmatpush.bf16.msra.mxu0 %v5145
        %5887 = vmatpush.bf16.msra.mxu0 %v5134
        %5888 = vmatpush.bf16.msra.mxu0 %v5123
        %5889 = vmatpush.bf16.msra.mxu0 %v5112
        %5890 = vmatpush.bf16.msra.mxu0 %v5101
        %5891 = vmatpush.bf16.msra.mxu0 %v5090
        %5892 = vmatmul.bf16.gmra.mxu0 %v4261
        %v5893 = vpop.f32.mrf.mxu0
        %v5894 = vadd.f32 %v4136, %v5893
        %v5895 = vpop.f32.mrf.mxu0
        %5896 = vdwg.mxu0
        %5897 = vmatpush.bf16.msra.mxu0 %v5255
        %5898 = vmatpush.bf16.msra.mxu0 %v5244
        %5899 = vmatpush.bf16.msra.mxu0 %v5233
        %5900 = vmatpush.bf16.msra.mxu0 %v5222
        %5901 = vmatpush.bf16.msra.mxu0 %v5211
        %5902 = vmatpush.bf16.msra.mxu0 %v5200
        %5903 = vmatpush.bf16.msra.mxu0 %v5189
        %5904 = vmatpush.bf16.msra.mxu0 %v5178
        %5905 = vmatmul.bf16.gmra.mxu0 %v4262
        %v5906 = vpop.f32.mrf.mxu0
        %v5907 = vadd.f32 %v5894, %v5906
        %v5908 = vpop.f32.mrf.mxu0
        %5909 = vdwg.mxu0
        %5910 = vmatpush.bf16.msra.mxu0 %v5343
        %5911 = vmatpush.bf16.msra.mxu0 %v5332
        %5912 = vmatpush.bf16.msra.mxu0 %v5321
        %5913 = vmatpush.bf16.msra.mxu0 %v5310
        %5914 = vmatpush.bf16.msra.mxu0 %v5299
        %5915 = vmatpush.bf16.msra.mxu0 %v5288
        %5916 = vmatpush.bf16.msra.mxu0 %v5277
        %5917 = vmatpush.bf16.msra.mxu0 %v5266
        %5918 = vmatmul.bf16.gmra.mxu0 %v4263
        %v5919 = vpop.f32.mrf.mxu0
        %v5920 = vadd.f32 %v5907, %v5919
        %v5921 = vpop.f32.mrf.mxu0
        %5922 = vdwg.mxu0
        %5923 = vmatpush.bf16.msra.mxu0 %v5168
        %5924 = vmatpush.bf16.msra.mxu0 %v5157
        %5925 = vmatpush.bf16.msra.mxu0 %v5146
        %5926 = vmatpush.bf16.msra.mxu0 %v5135
        %5927 = vmatpush.bf16.msra.mxu0 %v5124
        %5928 = vmatpush.bf16.msra.mxu0 %v5113
        %5929 = vmatpush.bf16.msra.mxu0 %v5102
        %5930 = vmatpush.bf16.msra.mxu0 %v5091
        %5931 = vmatmul.bf16.gmra.mxu0 %v4261
        %v5932 = vpop.f32.mrf.mxu0
        %v5933 = vadd.f32 %v4175, %v5932
        %v5934 = vpop.f32.mrf.mxu0
        %5935 = vdwg.mxu0
        %5936 = vmatpush.bf16.msra.mxu0 %v5256
        %5937 = vmatpush.bf16.msra.mxu0 %v5245
        %5938 = vmatpush.bf16.msra.mxu0 %v5234
        %5939 = vmatpush.bf16.msra.mxu0 %v5223
        %5940 = vmatpush.bf16.msra.mxu0 %v5212
        %5941 = vmatpush.bf16.msra.mxu0 %v5201
        %5942 = vmatpush.bf16.msra.mxu0 %v5190
        %5943 = vmatpush.bf16.msra.mxu0 %v5179
        %5944 = vmatmul.bf16.gmra.mxu0 %v4262
        %v5945 = vpop.f32.mrf.mxu0
        %v5946 = vadd.f32 %v5933, %v5945
        %v5947 = vpop.f32.mrf.mxu0
        %5948 = vdwg.mxu0
        %5949 = vmatpush.bf16.msra.mxu0 %v5344
        %5950 = vmatpush.bf16.msra.mxu0 %v5333
        %5951 = vmatpush.bf16.msra.mxu0 %v5322
        %5952 = vmatpush.bf16.msra.mxu0 %v5311
        %5953 = vmatpush.bf16.msra.mxu0 %v5300
        %5954 = vmatpush.bf16.msra.mxu0 %v5289
        %5955 = vmatpush.bf16.msra.mxu0 %v5278
        %5956 = vmatpush.bf16.msra.mxu0 %v5267
        %5957 = vmatmul.bf16.gmra.mxu0 %v4263
        %v5958 = vpop.f32.mrf.mxu0
        %v5959 = vadd.f32 %v5946, %v5958
        %v5960 = vpop.f32.mrf.mxu0
        %5961 = vdwg.mxu0
        %5962 = vmatpush.bf16.msra.mxu0 %v5169
        %5963 = vmatpush.bf16.msra.mxu0 %v5158
        %5964 = vmatpush.bf16.msra.mxu0 %v5147
        %5965 = vmatpush.bf16.msra.mxu0 %v5136
        %5966 = vmatpush.bf16.msra.mxu0 %v5125
        %5967 = vmatpush.bf16.msra.mxu0 %v5114
        %5968 = vmatpush.bf16.msra.mxu0 %v5103
        %5969 = vmatpush.bf16.msra.mxu0 %v5092
        %5970 = vmatmul.bf16.gmra.mxu0 %v4261
        %v5971 = vpop.f32.mrf.mxu0
        %v5972 = vadd.f32 %v4214, %v5971
        %v5973 = vpop.f32.mrf.mxu0
        %5974 = vdwg.mxu0
        %5975 = vmatpush.bf16.msra.mxu0 %v5257
        %5976 = vmatpush.bf16.msra.mxu0 %v5246
        %5977 = vmatpush.bf16.msra.mxu0 %v5235
        %5978 = vmatpush.bf16.msra.mxu0 %v5224
        %5979 = vmatpush.bf16.msra.mxu0 %v5213
        %5980 = vmatpush.bf16.msra.mxu0 %v5202
        %5981 = vmatpush.bf16.msra.mxu0 %v5191
        %5982 = vmatpush.bf16.msra.mxu0 %v5180
        %5983 = vmatmul.bf16.gmra.mxu0 %v4262
        %v5984 = vpop.f32.mrf.mxu0
        %v5985 = vadd.f32 %v5972, %v5984
        %v5986 = vpop.f32.mrf.mxu0
        %5987 = vdwg.mxu0
        %5988 = vmatpush.bf16.msra.mxu0 %v5345
        %5989 = vmatpush.bf16.msra.mxu0 %v5334
        %5990 = vmatpush.bf16.msra.mxu0 %v5323
        %5991 = vmatpush.bf16.msra.mxu0 %v5312
        %5992 = vmatpush.bf16.msra.mxu0 %v5301
        %5993 = vmatpush.bf16.msra.mxu0 %v5290
        %5994 = vmatpush.bf16.msra.mxu0 %v5279
        %5995 = vmatpush.bf16.msra.mxu0 %v5268
        %5996 = vmatmul.bf16.gmra.mxu0 %v4263
        %v5997 = vpop.f32.mrf.mxu0
        %v5998 = vadd.f32 %v5985, %v5997
        %v5999 = vpop.f32.mrf.mxu0
        %6000 = vdwg.mxu0
        %6001 = vmatpush.bf16.msra.mxu0 %v5170
        %6002 = vmatpush.bf16.msra.mxu0 %v5159
        %6003 = vmatpush.bf16.msra.mxu0 %v5148
        %6004 = vmatpush.bf16.msra.mxu0 %v5137
        %6005 = vmatpush.bf16.msra.mxu0 %v5126
        %6006 = vmatpush.bf16.msra.mxu0 %v5115
        %6007 = vmatpush.bf16.msra.mxu0 %v5104
        %6008 = vmatpush.bf16.msra.mxu0 %v5093
        %6009 = vmatmul.bf16.gmra.mxu0 %v4261
        %v6010 = vpop.f32.mrf.mxu0
        %v6011 = vadd.f32 %v4253, %v6010
        %v6012 = vpop.f32.mrf.mxu0
        %6013 = vdwg.mxu0
        %6014 = vmatpush.bf16.msra.mxu0 %v5258
        %6015 = vmatpush.bf16.msra.mxu0 %v5247
        %6016 = vmatpush.bf16.msra.mxu0 %v5236
        %6017 = vmatpush.bf16.msra.mxu0 %v5225
        %6018 = vmatpush.bf16.msra.mxu0 %v5214
        %6019 = vmatpush.bf16.msra.mxu0 %v5203
        %6020 = vmatpush.bf16.msra.mxu0 %v5192
        %6021 = vmatpush.bf16.msra.mxu0 %v5181
        %6022 = vmatmul.bf16.gmra.mxu0 %v4262
        %v6023 = vpop.f32.mrf.mxu0
        %v6024 = vadd.f32 %v6011, %v6023
        %v6025 = vpop.f32.mrf.mxu0
        %6026 = vdwg.mxu0
        %6027 = vmatpush.bf16.msra.mxu0 %v5346
        %6028 = vmatpush.bf16.msra.mxu0 %v5335
        %6029 = vmatpush.bf16.msra.mxu0 %v5324
        %6030 = vmatpush.bf16.msra.mxu0 %v5313
        %6031 = vmatpush.bf16.msra.mxu0 %v5302
        %6032 = vmatpush.bf16.msra.mxu0 %v5291
        %6033 = vmatpush.bf16.msra.mxu0 %v5280
        %6034 = vmatpush.bf16.msra.mxu0 %v5269
        %6035 = vmatmul.bf16.gmra.mxu0 %v4263
        %v6036 = vpop.f32.mrf.mxu0
        %v6037 = vadd.f32 %v6024, %v6036
        %v6038 = vpop.f32.mrf.mxu0
        %6039 = vdwg.mxu0
        %s6040 = scalar_lea.vmem [#allocation6], 4224
        %v6041 = vld [vmem:[%s6040] sm:$0xff]
        %v6042 = vld [vmem:[%s6040 + $0x8] sm:$0xff]
        %v6043 = vld [vmem:[%s6040 + $0x10] sm:$0xff]
        %v6044 = vld [vmem:[%s6040 + $0x18] sm:$0xff]
        %v6045 = vld [vmem:[%s6040 + $0x20] sm:$0xff]
        %v6046 = vld [vmem:[%s6040 + $0x28] sm:$0xf]
        %v6047 = vld [vmem:[%s6040 + $0x2c] sm:$0xff]
        %v6048 = vld [vmem:[%s6040 + $0x34] sm:$0xff]
        %v6049 = vld [vmem:[%s6040 + $0x3c] sm:$0xff]
        %v6050 = vld [vmem:[%s6040 + $0x44] sm:$0xff]
        %v6051 = vld [vmem:[%s6040 + $0x4c] sm:$0xff]
        %v6052 = vld [vmem:[%s6040 + $0x54] sm:$0xf]
        %v6053 = vld [vmem:[%s6040 + $0x58] sm:$0xff]
        %v6054 = vld [vmem:[%s6040 + $0x60] sm:$0xff]
        %v6055 = vld [vmem:[%s6040 + $0x68] sm:$0xff]
        %v6056 = vld [vmem:[%s6040 + $0x70] sm:$0xff]
        %v6057 = vld [vmem:[%s6040 + $0x78] sm:$0xff]
        %v6058 = vld [vmem:[%s6040 + $0x80] sm:$0xf]
        %v6059 = vld [vmem:[%s6040 + $0x84] sm:$0xff]
        %v6060 = vld [vmem:[%s6040 + $0x8c] sm:$0xff]
        %v6061 = vld [vmem:[%s6040 + $0x94] sm:$0xff]
        %v6062 = vld [vmem:[%s6040 + $0x9c] sm:$0xff]
        %v6063 = vld [vmem:[%s6040 + $0xa4] sm:$0xff]
        %v6064 = vld [vmem:[%s6040 + $0xac] sm:$0xf]
        %v6065 = vld [vmem:[%s6040 + $0xb0] sm:$0xff]
        %v6066 = vld [vmem:[%s6040 + $0xb8] sm:$0xff]
        %v6067 = vld [vmem:[%s6040 + $0xc0] sm:$0xff]
        %v6068 = vld [vmem:[%s6040 + $0xc8] sm:$0xff]
        %v6069 = vld [vmem:[%s6040 + $0xd0] sm:$0xff]
        %v6070 = vld [vmem:[%s6040 + $0xd8] sm:$0xf]
        %v6071 = vld [vmem:[%s6040 + $0xdc] sm:$0xff]
        %v6072 = vld [vmem:[%s6040 + $0xe4] sm:$0xff]
        %v6073 = vld [vmem:[%s6040 + $0xec] sm:$0xff]
        %v6074 = vld [vmem:[%s6040 + $0xf4] sm:$0xff]
        %v6075 = vld [vmem:[%s6040 + $0xfc] sm:$0xff]
        %v6076 = vld [vmem:[%s6040 + $0x104] sm:$0xf]
        %v6077 = vld [vmem:[%s6040 + $0x108] sm:$0xff]
        %v6078 = vld [vmem:[%s6040 + $0x110] sm:$0xff]
        %v6079 = vld [vmem:[%s6040 + $0x118] sm:$0xff]
        %v6080 = vld [vmem:[%s6040 + $0x120] sm:$0xff]
        %v6081 = vld [vmem:[%s6040 + $0x128] sm:$0xff]
        %v6082 = vld [vmem:[%s6040 + $0x130] sm:$0xf]
        %v6083 = vld [vmem:[%s6040 + $0x134] sm:$0xff]
        %v6084 = vld [vmem:[%s6040 + $0x13c] sm:$0xff]
        %v6085 = vld [vmem:[%s6040 + $0x144] sm:$0xff]
        %v6086 = vld [vmem:[%s6040 + $0x14c] sm:$0xff]
        %v6087 = vld [vmem:[%s6040 + $0x154] sm:$0xff]
        %v6088 = vld [vmem:[%s6040 + $0x15c] sm:$0xf]
        %v6089 = vld [vmem:[%s6040 + $0x160] sm:$0xff]
        %v6090 = vld [vmem:[%s6040 + $0x168] sm:$0xff]
        %v6091 = vld [vmem:[%s6040 + $0x170] sm:$0xff]
        %v6092 = vld [vmem:[%s6040 + $0x178] sm:$0xff]
        %v6093 = vld [vmem:[%s6040 + $0x180] sm:$0xff]
        %v6094 = vld [vmem:[%s6040 + $0x188] sm:$0xf]
        %v6095 = vld [vmem:[%s6040 + $0x18c] sm:$0xff]
        %v6096 = vld [vmem:[%s6040 + $0x194] sm:$0xff]
        %v6097 = vld [vmem:[%s6040 + $0x19c] sm:$0xff]
        %v6098 = vld [vmem:[%s6040 + $0x1a4] sm:$0xff]
        %v6099 = vld [vmem:[%s6040 + $0x1ac] sm:$0xff]
        %v6100 = vld [vmem:[%s6040 + $0x1b4] sm:$0xf]
        %v6101 = vld [vmem:[%s6040 + $0x1b8] sm:$0xff]
        %v6102 = vld [vmem:[%s6040 + $0x1c0] sm:$0xff]
        %v6103 = vld [vmem:[%s6040 + $0x1c8] sm:$0xff]
        %v6104 = vld [vmem:[%s6040 + $0x1d0] sm:$0xff]
        %v6105 = vld [vmem:[%s6040 + $0x1d8] sm:$0xff]
        %v6106 = vld [vmem:[%s6040 + $0x1e0] sm:$0xf]
        %v6107 = vld [vmem:[%s6040 + $0x1e4] sm:$0xff]
        %v6108 = vld [vmem:[%s6040 + $0x1ec] sm:$0xff]
        %v6109 = vld [vmem:[%s6040 + $0x1f4] sm:$0xff]
        %v6110 = vld [vmem:[%s6040 + $0x1fc] sm:$0xff]
        %v6111 = vld [vmem:[%s6040 + $0x204] sm:$0xff]
        %v6112 = vld [vmem:[%s6040 + $0x20c] sm:$0xf]
        %v6113 = vld [vmem:[%s6040 + $0x210] sm:$0xff]
        %v6114 = vld [vmem:[%s6040 + $0x218] sm:$0xff]
        %v6115 = vld [vmem:[%s6040 + $0x220] sm:$0xff]
        %v6116 = vld [vmem:[%s6040 + $0x228] sm:$0xff]
        %v6117 = vld [vmem:[%s6040 + $0x230] sm:$0xff]
        %v6118 = vld [vmem:[%s6040 + $0x238] sm:$0xf]
        %v6119 = vld [vmem:[%s6040 + $0x23c] sm:$0xff]
        %v6120 = vld [vmem:[%s6040 + $0x244] sm:$0xff]
        %v6121 = vld [vmem:[%s6040 + $0x24c] sm:$0xff]
        %v6122 = vld [vmem:[%s6040 + $0x254] sm:$0xff]
        %v6123 = vld [vmem:[%s6040 + $0x25c] sm:$0xff]
        %v6124 = vld [vmem:[%s6040 + $0x264] sm:$0xf]
        %v6125 = vld [vmem:[%s6040 + $0x268] sm:$0xff]
        %v6126 = vld [vmem:[%s6040 + $0x270] sm:$0xff]
        %v6127 = vld [vmem:[%s6040 + $0x278] sm:$0xff]
        %v6128 = vld [vmem:[%s6040 + $0x280] sm:$0xff]
        %v6129 = vld [vmem:[%s6040 + $0x288] sm:$0xff]
        %v6130 = vld [vmem:[%s6040 + $0x290] sm:$0xf]
        %v6131 = vld [vmem:[%s6040 + $0x294] sm:$0xff]
        %v6132 = vld [vmem:[%s6040 + $0x29c] sm:$0xff]
        %v6133 = vld [vmem:[%s6040 + $0x2a4] sm:$0xff]
        %v6134 = vld [vmem:[%s6040 + $0x2ac] sm:$0xff]
        %v6135 = vld [vmem:[%s6040 + $0x2b4] sm:$0xff]
        %v6136 = vld [vmem:[%s6040 + $0x2bc] sm:$0xf]
        %v6137 = vld [vmem:[%s6040 + $0x2c0] sm:$0xff]
        %v6138 = vld [vmem:[%s6040 + $0x2c8] sm:$0xff]
        %v6139 = vld [vmem:[%s6040 + $0x2d0] sm:$0xff]
        %v6140 = vld [vmem:[%s6040 + $0x2d8] sm:$0xff]
        %v6141 = vld [vmem:[%s6040 + $0x2e0] sm:$0xff]
        %v6142 = vld [vmem:[%s6040 + $0x2e8] sm:$0xf]
        %v6143 = vld [vmem:[%s6040 + $0x2ec] sm:$0xff]
        %v6144 = vld [vmem:[%s6040 + $0x2f4] sm:$0xff]
        %v6145 = vld [vmem:[%s6040 + $0x2fc] sm:$0xff]
        %v6146 = vld [vmem:[%s6040 + $0x304] sm:$0xff]
        %v6147 = vld [vmem:[%s6040 + $0x30c] sm:$0xff]
        %v6148 = vld [vmem:[%s6040 + $0x314] sm:$0xf]
        %v6149 = vld [vmem:[%s6040 + $0x318] sm:$0xff]
        %v6150 = vld [vmem:[%s6040 + $0x320] sm:$0xff]
        %v6151 = vld [vmem:[%s6040 + $0x328] sm:$0xff]
        %v6152 = vld [vmem:[%s6040 + $0x330] sm:$0xff]
        %v6153 = vld [vmem:[%s6040 + $0x338] sm:$0xff]
        %v6154 = vld [vmem:[%s6040 + $0x340] sm:$0xf]
        %v6155 = vld [vmem:[%s6040 + $0x344] sm:$0xff]
        %v6156 = vld [vmem:[%s6040 + $0x34c] sm:$0xff]
        %v6157 = vld [vmem:[%s6040 + $0x354] sm:$0xff]
        %v6158 = vld [vmem:[%s6040 + $0x35c] sm:$0xff]
        %v6159 = vld [vmem:[%s6040 + $0x364] sm:$0xff]
        %v6160 = vld [vmem:[%s6040 + $0x36c] sm:$0xf]
        %v6161 = vld [vmem:[%s6040 + $0x370] sm:$0xff]
        %v6162 = vld [vmem:[%s6040 + $0x378] sm:$0xff]
        %v6163 = vld [vmem:[%s6040 + $0x380] sm:$0xff]
        %v6164 = vld [vmem:[%s6040 + $0x388] sm:$0xff]
        %v6165 = vld [vmem:[%s6040 + $0x390] sm:$0xff]
        %v6166 = vld [vmem:[%s6040 + $0x398] sm:$0xf]
        %v6167 = vld [vmem:[%s6040 + $0x39c] sm:$0xff]
        %v6168 = vld [vmem:[%s6040 + $0x3a4] sm:$0xff]
        %v6169 = vld [vmem:[%s6040 + $0x3ac] sm:$0xff]
        %v6170 = vld [vmem:[%s6040 + $0x3b4] sm:$0xff]
        %v6171 = vld [vmem:[%s6040 + $0x3bc] sm:$0xff]
        %v6172 = vld [vmem:[%s6040 + $0x3c4] sm:$0xf]
        %v6173 = vld [vmem:[%s6040 + $0x3c8] sm:$0xff]
        %v6174 = vld [vmem:[%s6040 + $0x3d0] sm:$0xff]
        %v6175 = vld [vmem:[%s6040 + $0x3d8] sm:$0xff]
        %v6176 = vld [vmem:[%s6040 + $0x3e0] sm:$0xff]
        %v6177 = vld [vmem:[%s6040 + $0x3e8] sm:$0xff]
        %v6178 = vld [vmem:[%s6040 + $0x3f0] sm:$0xf]
        %v6179 = vld [vmem:[%s6040 + $0x3f4] sm:$0xff]
        %v6180 = vld [vmem:[%s6040 + $0x3fc] sm:$0xff]
        %v6181 = vld [vmem:[%s6040 + $0x404] sm:$0xff]
        %v6182 = vld [vmem:[%s6040 + $0x40c] sm:$0xff]
        %v6183 = vld [vmem:[%s6040 + $0x414] sm:$0xff]
        %v6184 = vld [vmem:[%s6040 + $0x41c] sm:$0xf]
        %v6185 = vld [vmem:[%s6040 + $0x420] sm:$0xff]
        %v6186 = vld [vmem:[%s6040 + $0x428] sm:$0xff]
        %v6187 = vld [vmem:[%s6040 + $0x430] sm:$0xff]
        %v6188 = vld [vmem:[%s6040 + $0x438] sm:$0xff]
        %v6189 = vld [vmem:[%s6040 + $0x440] sm:$0xff]
        %v6190 = vld [vmem:[%s6040 + $0x448] sm:$0xf]
        %v6191 = vld [vmem:[%s6040 + $0x44c] sm:$0xff]
        %v6192 = vld [vmem:[%s6040 + $0x454] sm:$0xff]
        %v6193 = vld [vmem:[%s6040 + $0x45c] sm:$0xff]
        %v6194 = vld [vmem:[%s6040 + $0x464] sm:$0xff]
        %v6195 = vld [vmem:[%s6040 + $0x46c] sm:$0xff]
        %v6196 = vld [vmem:[%s6040 + $0x474] sm:$0xf]
        %v6197 = vld [vmem:[%s6040 + $0x478] sm:$0xff]
        %v6198 = vld [vmem:[%s6040 + $0x480] sm:$0xff]
        %v6199 = vld [vmem:[%s6040 + $0x488] sm:$0xff]
        %v6200 = vld [vmem:[%s6040 + $0x490] sm:$0xff]
        %v6201 = vld [vmem:[%s6040 + $0x498] sm:$0xff]
        %v6202 = vld [vmem:[%s6040 + $0x4a0] sm:$0xf]
        %v6203 = vld [vmem:[%s6040 + $0x4a4] sm:$0xff]
        %v6204 = vld [vmem:[%s6040 + $0x4ac] sm:$0xff]
        %v6205 = vld [vmem:[%s6040 + $0x4b4] sm:$0xff]
        %v6206 = vld [vmem:[%s6040 + $0x4bc] sm:$0xff]
        %v6207 = vld [vmem:[%s6040 + $0x4c4] sm:$0xff]
        %v6208 = vld [vmem:[%s6040 + $0x4cc] sm:$0xf]
        %v6209 = vld [vmem:[%s6040 + $0x4d0] sm:$0xff]
        %v6210 = vld [vmem:[%s6040 + $0x4d8] sm:$0xff]
        %v6211 = vld [vmem:[%s6040 + $0x4e0] sm:$0xff]
        %v6212 = vld [vmem:[%s6040 + $0x4e8] sm:$0xff]
        %v6213 = vld [vmem:[%s6040 + $0x4f0] sm:$0xff]
        %v6214 = vld [vmem:[%s6040 + $0x4f8] sm:$0xf]
        %v6215 = vld [vmem:[%s6040 + $0x4fc] sm:$0xff]
        %v6216 = vld [vmem:[%s6040 + $0x504] sm:$0xff]
        %v6217 = vld [vmem:[%s6040 + $0x50c] sm:$0xff]
        %v6218 = vld [vmem:[%s6040 + $0x514] sm:$0xff]
        %v6219 = vld [vmem:[%s6040 + $0x51c] sm:$0xff]
        %v6220 = vld [vmem:[%s6040 + $0x524] sm:$0xf]
        %v6221 = vld [vmem:[%s6040 + $0x528] sm:$0xff]
        %v6222 = vld [vmem:[%s6040 + $0x530] sm:$0xff]
        %v6223 = vld [vmem:[%s6040 + $0x538] sm:$0xff]
        %v6224 = vld [vmem:[%s6040 + $0x540] sm:$0xff]
        %v6225 = vld [vmem:[%s6040 + $0x548] sm:$0xff]
        %v6226 = vld [vmem:[%s6040 + $0x550] sm:$0xf]
        %v6227 = vld [vmem:[%s6040 + $0x554] sm:$0xff]
        %v6228 = vld [vmem:[%s6040 + $0x55c] sm:$0xff]
        %v6229 = vld [vmem:[%s6040 + $0x564] sm:$0xff]
        %v6230 = vld [vmem:[%s6040 + $0x56c] sm:$0xff]
        %v6231 = vld [vmem:[%s6040 + $0x574] sm:$0xff]
        %v6232 = vld [vmem:[%s6040 + $0x57c] sm:$0xf]
        %v6233 = vld [vmem:[%s6040 + $0x580] sm:$0xff]
        %v6234 = vld [vmem:[%s6040 + $0x588] sm:$0xff]
        %v6235 = vld [vmem:[%s6040 + $0x590] sm:$0xff]
        %v6236 = vld [vmem:[%s6040 + $0x598] sm:$0xff]
        %v6237 = vld [vmem:[%s6040 + $0x5a0] sm:$0xff]
        %v6238 = vld [vmem:[%s6040 + $0x5a8] sm:$0xf]
        %v6239 = vld [vmem:[%s6040 + $0x5ac] sm:$0xff]
        %v6240 = vld [vmem:[%s6040 + $0x5b4] sm:$0xff]
        %v6241 = vld [vmem:[%s6040 + $0x5bc] sm:$0xff]
        %v6242 = vld [vmem:[%s6040 + $0x5c4] sm:$0xff]
        %v6243 = vld [vmem:[%s6040 + $0x5cc] sm:$0xff]
        %v6244 = vld [vmem:[%s6040 + $0x5d4] sm:$0xf]
        %v6245 = vld [vmem:[%s6040 + $0x5d8] sm:$0xff]
        %v6246 = vld [vmem:[%s6040 + $0x5e0] sm:$0xff]
        %v6247 = vld [vmem:[%s6040 + $0x5e8] sm:$0xff]
        %v6248 = vld [vmem:[%s6040 + $0x5f0] sm:$0xff]
        %v6249 = vld [vmem:[%s6040 + $0x5f8] sm:$0xff]
        %v6250 = vld [vmem:[%s6040 + $0x600] sm:$0xf]
        %v6251 = vld [vmem:[%s6040 + $0x604] sm:$0xff]
        %v6252 = vld [vmem:[%s6040 + $0x60c] sm:$0xff]
        %v6253 = vld [vmem:[%s6040 + $0x614] sm:$0xff]
        %v6254 = vld [vmem:[%s6040 + $0x61c] sm:$0xff]
        %v6255 = vld [vmem:[%s6040 + $0x624] sm:$0xff]
        %v6256 = vld [vmem:[%s6040 + $0x62c] sm:$0xf]
        %v6257 = vld [vmem:[%s6040 + $0x630] sm:$0xff]
        %v6258 = vld [vmem:[%s6040 + $0x638] sm:$0xff]
        %v6259 = vld [vmem:[%s6040 + $0x640] sm:$0xff]
        %v6260 = vld [vmem:[%s6040 + $0x648] sm:$0xff]
        %v6261 = vld [vmem:[%s6040 + $0x650] sm:$0xff]
        %v6262 = vld [vmem:[%s6040 + $0x658] sm:$0xf]
        %v6263 = vld [vmem:[%s6040 + $0x65c] sm:$0xff]
        %v6264 = vld [vmem:[%s6040 + $0x664] sm:$0xff]
        %v6265 = vld [vmem:[%s6040 + $0x66c] sm:$0xff]
        %v6266 = vld [vmem:[%s6040 + $0x674] sm:$0xff]
        %v6267 = vld [vmem:[%s6040 + $0x67c] sm:$0xff]
        %v6268 = vld [vmem:[%s6040 + $0x684] sm:$0xf]
        %v6269 = vld [vmem:[%s6040 + $0x688] sm:$0xff]
        %v6270 = vld [vmem:[%s6040 + $0x690] sm:$0xff]
        %v6271 = vld [vmem:[%s6040 + $0x698] sm:$0xff]
        %v6272 = vld [vmem:[%s6040 + $0x6a0] sm:$0xff]
        %v6273 = vld [vmem:[%s6040 + $0x6a8] sm:$0xff]
        %v6274 = vld [vmem:[%s6040 + $0x6b0] sm:$0xf]
        %v6275 = vld [vmem:[%s6040 + $0x6b4] sm:$0xff]
        %v6276 = vld [vmem:[%s6040 + $0x6bc] sm:$0xff]
        %v6277 = vld [vmem:[%s6040 + $0x6c4] sm:$0xff]
        %v6278 = vld [vmem:[%s6040 + $0x6cc] sm:$0xff]
        %v6279 = vld [vmem:[%s6040 + $0x6d4] sm:$0xff]
        %v6280 = vld [vmem:[%s6040 + $0x6dc] sm:$0xf]
        %v6281 = vld [vmem:[%s6040 + $0x6e0] sm:$0xff]
        %v6282 = vld [vmem:[%s6040 + $0x6e8] sm:$0xff]
        %v6283 = vld [vmem:[%s6040 + $0x6f0] sm:$0xff]
        %v6284 = vld [vmem:[%s6040 + $0x6f8] sm:$0xff]
        %v6285 = vld [vmem:[%s6040 + $0x700] sm:$0xff]
        %v6286 = vld [vmem:[%s6040 + $0x708] sm:$0xf]
        %v6287 = vld [vmem:[%s6040 + $0x70c] sm:$0xff]
        %v6288 = vld [vmem:[%s6040 + $0x714] sm:$0xff]
        %v6289 = vld [vmem:[%s6040 + $0x71c] sm:$0xff]
        %v6290 = vld [vmem:[%s6040 + $0x724] sm:$0xff]
        %v6291 = vld [vmem:[%s6040 + $0x72c] sm:$0xff]
        %v6292 = vld [vmem:[%s6040 + $0x734] sm:$0xf]
        %v6293 = vld [vmem:[%s6040 + $0x738] sm:$0xff]
        %v6294 = vld [vmem:[%s6040 + $0x740] sm:$0xff]
        %v6295 = vld [vmem:[%s6040 + $0x748] sm:$0xff]
        %v6296 = vld [vmem:[%s6040 + $0x750] sm:$0xff]
        %v6297 = vld [vmem:[%s6040 + $0x758] sm:$0xff]
        %v6298 = vld [vmem:[%s6040 + $0x760] sm:$0xf]
        %v6299 = vld [vmem:[%s6040 + $0x764] sm:$0xff]
        %v6300 = vld [vmem:[%s6040 + $0x76c] sm:$0xff]
        %v6301 = vld [vmem:[%s6040 + $0x774] sm:$0xff]
        %v6302 = vld [vmem:[%s6040 + $0x77c] sm:$0xff]
        %v6303 = vld [vmem:[%s6040 + $0x784] sm:$0xff]
        %v6304 = vld [vmem:[%s6040 + $0x78c] sm:$0xf]
        %v6305 = vld [vmem:[%s6040 + $0x790] sm:$0xff]
        %v6306 = vld [vmem:[%s6040 + $0x798] sm:$0xff]
        %v6307 = vld [vmem:[%s6040 + $0x7a0] sm:$0xff]
        %v6308 = vld [vmem:[%s6040 + $0x7a8] sm:$0xff]
        %v6309 = vld [vmem:[%s6040 + $0x7b0] sm:$0xff]
        %v6310 = vld [vmem:[%s6040 + $0x7b8] sm:$0xf]
        %v6311 = vld [vmem:[%s6040 + $0x7bc] sm:$0xff]
        %v6312 = vld [vmem:[%s6040 + $0x7c4] sm:$0xff]
        %v6313 = vld [vmem:[%s6040 + $0x7cc] sm:$0xff]
        %v6314 = vld [vmem:[%s6040 + $0x7d4] sm:$0xff]
        %v6315 = vld [vmem:[%s6040 + $0x7dc] sm:$0xff]
        %v6316 = vld [vmem:[%s6040 + $0x7e4] sm:$0xf]
        %v6317 = vld [vmem:[%s6040 + $0x7e8] sm:$0xff]
        %v6318 = vld [vmem:[%s6040 + $0x7f0] sm:$0xff]
        %v6319 = vld [vmem:[%s6040 + $0x7f8] sm:$0xff]
        %v6320 = vld [vmem:[%s6040 + $0x800] sm:$0xff]
        %v6321 = vld [vmem:[%s6040 + $0x808] sm:$0xff]
        %v6322 = vld [vmem:[%s6040 + $0x810] sm:$0xf]
        %v6323 = vld [vmem:[%s6040 + $0x814] sm:$0xff]
        %v6324 = vld [vmem:[%s6040 + $0x81c] sm:$0xff]
        %v6325 = vld [vmem:[%s6040 + $0x824] sm:$0xff]
        %v6326 = vld [vmem:[%s6040 + $0x82c] sm:$0xff]
        %v6327 = vld [vmem:[%s6040 + $0x834] sm:$0xff]
        %v6328 = vld [vmem:[%s6040 + $0x83c] sm:$0xf]
        %v6331 = vunpack.c.l.b16 %v1891
        %v6332 = vunpack.c.h.b16 %v1891
        %v6333 = vunpack.c.l.b16 %v1892
        %v6334 = vpack.c.b16 %v6331, %v6331
        %v6335 = vpack.c.b16 %v6332, %v6332
        %v6336 = vpack.c.b16 %v6333, %v6333
        %v6628 = vunpack.c.l.b16 %v6041
        %v6629 = vunpack.c.h.b16 %v6041
        %v6630 = vunpack.c.l.b16 %v6042
        %v6631 = vunpack.c.h.b16 %v6042
        %v6632 = vunpack.c.l.b16 %v6043
        %v6633 = vunpack.c.h.b16 %v6043
        %v6634 = vunpack.c.l.b16 %v6044
        %v6635 = vunpack.c.h.b16 %v6044
        %v6636 = vunpack.c.l.b16 %v6045
        %v6637 = vunpack.c.h.b16 %v6045
        %v6638 = vunpack.c.l.b16 %v6046
        %v6639 = vunpack.c.l.b16 %v6047
        %v6640 = vunpack.c.h.b16 %v6047
        %v6641 = vunpack.c.l.b16 %v6048
        %v6642 = vunpack.c.h.b16 %v6048
        %v6643 = vunpack.c.l.b16 %v6049
        %v6644 = vunpack.c.h.b16 %v6049
        %v6645 = vunpack.c.l.b16 %v6050
        %v6646 = vunpack.c.h.b16 %v6050
        %v6647 = vunpack.c.l.b16 %v6051
        %v6648 = vunpack.c.h.b16 %v6051
        %v6649 = vunpack.c.l.b16 %v6052
        %v6650 = vunpack.c.l.b16 %v6053
        %v6651 = vunpack.c.h.b16 %v6053
        %v6652 = vunpack.c.l.b16 %v6054
        %v6653 = vunpack.c.h.b16 %v6054
        %v6654 = vunpack.c.l.b16 %v6055
        %v6655 = vunpack.c.h.b16 %v6055
        %v6656 = vunpack.c.l.b16 %v6056
        %v6657 = vunpack.c.h.b16 %v6056
        %v6658 = vunpack.c.l.b16 %v6057
        %v6659 = vunpack.c.h.b16 %v6057
        %v6660 = vunpack.c.l.b16 %v6058
        %v6661 = vunpack.c.l.b16 %v6059
        %v6662 = vunpack.c.h.b16 %v6059
        %v6663 = vunpack.c.l.b16 %v6060
        %v6664 = vunpack.c.h.b16 %v6060
        %v6665 = vunpack.c.l.b16 %v6061
        %v6666 = vunpack.c.h.b16 %v6061
        %v6667 = vunpack.c.l.b16 %v6062
        %v6668 = vunpack.c.h.b16 %v6062
        %v6669 = vunpack.c.l.b16 %v6063
        %v6670 = vunpack.c.h.b16 %v6063
        %v6671 = vunpack.c.l.b16 %v6064
        %v6672 = vunpack.c.l.b16 %v6065
        %v6673 = vunpack.c.h.b16 %v6065
        %v6674 = vunpack.c.l.b16 %v6066
        %v6675 = vunpack.c.h.b16 %v6066
        %v6676 = vunpack.c.l.b16 %v6067
        %v6677 = vunpack.c.h.b16 %v6067
        %v6678 = vunpack.c.l.b16 %v6068
        %v6679 = vunpack.c.h.b16 %v6068
        %v6680 = vunpack.c.l.b16 %v6069
        %v6681 = vunpack.c.h.b16 %v6069
        %v6682 = vunpack.c.l.b16 %v6070
        %v6683 = vunpack.c.l.b16 %v6071
        %v6684 = vunpack.c.h.b16 %v6071
        %v6685 = vunpack.c.l.b16 %v6072
        %v6686 = vunpack.c.h.b16 %v6072
        %v6687 = vunpack.c.l.b16 %v6073
        %v6688 = vunpack.c.h.b16 %v6073
        %v6689 = vunpack.c.l.b16 %v6074
        %v6690 = vunpack.c.h.b16 %v6074
        %v6691 = vunpack.c.l.b16 %v6075
        %v6692 = vunpack.c.h.b16 %v6075
        %v6693 = vunpack.c.l.b16 %v6076
        %v6694 = vunpack.c.l.b16 %v6077
        %v6695 = vunpack.c.h.b16 %v6077
        %v6696 = vunpack.c.l.b16 %v6078
        %v6697 = vunpack.c.h.b16 %v6078
        %v6698 = vunpack.c.l.b16 %v6079
        %v6699 = vunpack.c.h.b16 %v6079
        %v6700 = vunpack.c.l.b16 %v6080
        %v6701 = vunpack.c.h.b16 %v6080
        %v6702 = vunpack.c.l.b16 %v6081
        %v6703 = vunpack.c.h.b16 %v6081
        %v6704 = vunpack.c.l.b16 %v6082
        %v6705 = vunpack.c.l.b16 %v6083
        %v6706 = vunpack.c.h.b16 %v6083
        %v6707 = vunpack.c.l.b16 %v6084
        %v6708 = vunpack.c.h.b16 %v6084
        %v6709 = vunpack.c.l.b16 %v6085
        %v6710 = vunpack.c.h.b16 %v6085
        %v6711 = vunpack.c.l.b16 %v6086
        %v6712 = vunpack.c.h.b16 %v6086
        %v6713 = vunpack.c.l.b16 %v6087
        %v6714 = vunpack.c.h.b16 %v6087
        %v6715 = vunpack.c.l.b16 %v6088
        %v6716 = vunpack.c.l.b16 %v6089
        %v6717 = vunpack.c.h.b16 %v6089
        %v6718 = vunpack.c.l.b16 %v6090
        %v6719 = vunpack.c.h.b16 %v6090
        %v6720 = vunpack.c.l.b16 %v6091
        %v6721 = vunpack.c.h.b16 %v6091
        %v6722 = vunpack.c.l.b16 %v6092
        %v6723 = vunpack.c.h.b16 %v6092
        %v6724 = vunpack.c.l.b16 %v6093
        %v6725 = vunpack.c.h.b16 %v6093
        %v6726 = vunpack.c.l.b16 %v6094
        %v6727 = vunpack.c.l.b16 %v6095
        %v6728 = vunpack.c.h.b16 %v6095
        %v6729 = vunpack.c.l.b16 %v6096
        %v6730 = vunpack.c.h.b16 %v6096
        %v6731 = vunpack.c.l.b16 %v6097
        %v6732 = vunpack.c.h.b16 %v6097
        %v6733 = vunpack.c.l.b16 %v6098
        %v6734 = vunpack.c.h.b16 %v6098
        %v6735 = vunpack.c.l.b16 %v6099
        %v6736 = vunpack.c.h.b16 %v6099
        %v6737 = vunpack.c.l.b16 %v6100
        %v6738 = vunpack.c.l.b16 %v6101
        %v6739 = vunpack.c.h.b16 %v6101
        %v6740 = vunpack.c.l.b16 %v6102
        %v6741 = vunpack.c.h.b16 %v6102
        %v6742 = vunpack.c.l.b16 %v6103
        %v6743 = vunpack.c.h.b16 %v6103
        %v6744 = vunpack.c.l.b16 %v6104
        %v6745 = vunpack.c.h.b16 %v6104
        %v6746 = vunpack.c.l.b16 %v6105
        %v6747 = vunpack.c.h.b16 %v6105
        %v6748 = vunpack.c.l.b16 %v6106
        %v6749 = vunpack.c.l.b16 %v6107
        %v6750 = vunpack.c.h.b16 %v6107
        %v6751 = vunpack.c.l.b16 %v6108
        %v6752 = vunpack.c.h.b16 %v6108
        %v6753 = vunpack.c.l.b16 %v6109
        %v6754 = vunpack.c.h.b16 %v6109
        %v6755 = vunpack.c.l.b16 %v6110
        %v6756 = vunpack.c.h.b16 %v6110
        %v6757 = vunpack.c.l.b16 %v6111
        %v6758 = vunpack.c.h.b16 %v6111
        %v6759 = vunpack.c.l.b16 %v6112
        %v6760 = vunpack.c.l.b16 %v6113
        %v6761 = vunpack.c.h.b16 %v6113
        %v6762 = vunpack.c.l.b16 %v6114
        %v6763 = vunpack.c.h.b16 %v6114
        %v6764 = vunpack.c.l.b16 %v6115
        %v6765 = vunpack.c.h.b16 %v6115
        %v6766 = vunpack.c.l.b16 %v6116
        %v6767 = vunpack.c.h.b16 %v6116
        %v6768 = vunpack.c.l.b16 %v6117
        %v6769 = vunpack.c.h.b16 %v6117
        %v6770 = vunpack.c.l.b16 %v6118
        %v6771 = vunpack.c.l.b16 %v6119
        %v6772 = vunpack.c.h.b16 %v6119
        %v6773 = vunpack.c.l.b16 %v6120
        %v6774 = vunpack.c.h.b16 %v6120
        %v6775 = vunpack.c.l.b16 %v6121
        %v6776 = vunpack.c.h.b16 %v6121
        %v6777 = vunpack.c.l.b16 %v6122
        %v6778 = vunpack.c.h.b16 %v6122
        %v6779 = vunpack.c.l.b16 %v6123
        %v6780 = vunpack.c.h.b16 %v6123
        %v6781 = vunpack.c.l.b16 %v6124
        %v6782 = vunpack.c.l.b16 %v6125
        %v6783 = vunpack.c.h.b16 %v6125
        %v6784 = vunpack.c.l.b16 %v6126
        %v6785 = vunpack.c.h.b16 %v6126
        %v6786 = vunpack.c.l.b16 %v6127
        %v6787 = vunpack.c.h.b16 %v6127
        %v6788 = vunpack.c.l.b16 %v6128
        %v6789 = vunpack.c.h.b16 %v6128
        %v6790 = vunpack.c.l.b16 %v6129
        %v6791 = vunpack.c.h.b16 %v6129
        %v6792 = vunpack.c.l.b16 %v6130
        %v6793 = vunpack.c.l.b16 %v6131
        %v6794 = vunpack.c.h.b16 %v6131
        %v6795 = vunpack.c.l.b16 %v6132
        %v6796 = vunpack.c.h.b16 %v6132
        %v6797 = vunpack.c.l.b16 %v6133
        %v6798 = vunpack.c.h.b16 %v6133
        %v6799 = vunpack.c.l.b16 %v6134
        %v6800 = vunpack.c.h.b16 %v6134
        %v6801 = vunpack.c.l.b16 %v6135
        %v6802 = vunpack.c.h.b16 %v6135
        %v6803 = vunpack.c.l.b16 %v6136
        %v6804 = vunpack.c.l.b16 %v6137
        %v6805 = vunpack.c.h.b16 %v6137
        %v6806 = vunpack.c.l.b16 %v6138
        %v6807 = vunpack.c.h.b16 %v6138
        %v6808 = vunpack.c.l.b16 %v6139
        %v6809 = vunpack.c.h.b16 %v6139
        %v6810 = vunpack.c.l.b16 %v6140
        %v6811 = vunpack.c.h.b16 %v6140
        %v6812 = vunpack.c.l.b16 %v6141
        %v6813 = vunpack.c.h.b16 %v6141
        %v6814 = vunpack.c.l.b16 %v6142
        %v6815 = vunpack.c.l.b16 %v6143
        %v6816 = vunpack.c.h.b16 %v6143
        %v6817 = vunpack.c.l.b16 %v6144
        %v6818 = vunpack.c.h.b16 %v6144
        %v6819 = vunpack.c.l.b16 %v6145
        %v6820 = vunpack.c.h.b16 %v6145
        %v6821 = vunpack.c.l.b16 %v6146
        %v6822 = vunpack.c.h.b16 %v6146
        %v6823 = vunpack.c.l.b16 %v6147
        %v6824 = vunpack.c.h.b16 %v6147
        %v6825 = vunpack.c.l.b16 %v6148
        %v6826 = vunpack.c.l.b16 %v6149
        %v6827 = vunpack.c.h.b16 %v6149
        %v6828 = vunpack.c.l.b16 %v6150
        %v6829 = vunpack.c.h.b16 %v6150
        %v6830 = vunpack.c.l.b16 %v6151
        %v6831 = vunpack.c.h.b16 %v6151
        %v6832 = vunpack.c.l.b16 %v6152
        %v6833 = vunpack.c.h.b16 %v6152
        %v6834 = vunpack.c.l.b16 %v6153
        %v6835 = vunpack.c.h.b16 %v6153
        %v6836 = vunpack.c.l.b16 %v6154
        %v6837 = vunpack.c.l.b16 %v6155
        %v6838 = vunpack.c.h.b16 %v6155
        %v6839 = vunpack.c.l.b16 %v6156
        %v6840 = vunpack.c.h.b16 %v6156
        %v6841 = vunpack.c.l.b16 %v6157
        %v6842 = vunpack.c.h.b16 %v6157
        %v6843 = vunpack.c.l.b16 %v6158
        %v6844 = vunpack.c.h.b16 %v6158
        %v6845 = vunpack.c.l.b16 %v6159
        %v6846 = vunpack.c.h.b16 %v6159
        %v6847 = vunpack.c.l.b16 %v6160
        %v6848 = vunpack.c.l.b16 %v6161
        %v6849 = vunpack.c.h.b16 %v6161
        %v6850 = vunpack.c.l.b16 %v6162
        %v6851 = vunpack.c.h.b16 %v6162
        %v6852 = vunpack.c.l.b16 %v6163
        %v6853 = vunpack.c.h.b16 %v6163
        %v6854 = vunpack.c.l.b16 %v6164
        %v6855 = vunpack.c.h.b16 %v6164
        %v6856 = vunpack.c.l.b16 %v6165
        %v6857 = vunpack.c.h.b16 %v6165
        %v6858 = vunpack.c.l.b16 %v6166
        %v6859 = vunpack.c.l.b16 %v6167
        %v6860 = vunpack.c.h.b16 %v6167
        %v6861 = vunpack.c.l.b16 %v6168
        %v6862 = vunpack.c.h.b16 %v6168
        %v6863 = vunpack.c.l.b16 %v6169
        %v6864 = vunpack.c.h.b16 %v6169
        %v6865 = vunpack.c.l.b16 %v6170
        %v6866 = vunpack.c.h.b16 %v6170
        %v6867 = vunpack.c.l.b16 %v6171
        %v6868 = vunpack.c.h.b16 %v6171
        %v6869 = vunpack.c.l.b16 %v6172
        %v6870 = vunpack.c.l.b16 %v6173
        %v6871 = vunpack.c.h.b16 %v6173
        %v6872 = vunpack.c.l.b16 %v6174
        %v6873 = vunpack.c.h.b16 %v6174
        %v6874 = vunpack.c.l.b16 %v6175
        %v6875 = vunpack.c.h.b16 %v6175
        %v6876 = vunpack.c.l.b16 %v6176
        %v6877 = vunpack.c.h.b16 %v6176
        %v6878 = vunpack.c.l.b16 %v6177
        %v6879 = vunpack.c.h.b16 %v6177
        %v6880 = vunpack.c.l.b16 %v6178
        %v6881 = vunpack.c.l.b16 %v6179
        %v6882 = vunpack.c.h.b16 %v6179
        %v6883 = vunpack.c.l.b16 %v6180
        %v6884 = vunpack.c.h.b16 %v6180
        %v6885 = vunpack.c.l.b16 %v6181
        %v6886 = vunpack.c.h.b16 %v6181
        %v6887 = vunpack.c.l.b16 %v6182
        %v6888 = vunpack.c.h.b16 %v6182
        %v6889 = vunpack.c.l.b16 %v6183
        %v6890 = vunpack.c.h.b16 %v6183
        %v6891 = vunpack.c.l.b16 %v6184
        %v6892 = vunpack.c.l.b16 %v6185
        %v6893 = vunpack.c.h.b16 %v6185
        %v6894 = vunpack.c.l.b16 %v6186
        %v6895 = vunpack.c.h.b16 %v6186
        %v6896 = vunpack.c.l.b16 %v6187
        %v6897 = vunpack.c.h.b16 %v6187
        %v6898 = vunpack.c.l.b16 %v6188
        %v6899 = vunpack.c.h.b16 %v6188
        %v6900 = vunpack.c.l.b16 %v6189
        %v6901 = vunpack.c.h.b16 %v6189
        %v6902 = vunpack.c.l.b16 %v6190
        %v6903 = vunpack.c.l.b16 %v6191
        %v6904 = vunpack.c.h.b16 %v6191
        %v6905 = vunpack.c.l.b16 %v6192
        %v6906 = vunpack.c.h.b16 %v6192
        %v6907 = vunpack.c.l.b16 %v6193
        %v6908 = vunpack.c.h.b16 %v6193
        %v6909 = vunpack.c.l.b16 %v6194
        %v6910 = vunpack.c.h.b16 %v6194
        %v6911 = vunpack.c.l.b16 %v6195
        %v6912 = vunpack.c.h.b16 %v6195
        %v6913 = vunpack.c.l.b16 %v6196
        %v6914 = vunpack.c.l.b16 %v6197
        %v6915 = vunpack.c.h.b16 %v6197
        %v6916 = vunpack.c.l.b16 %v6198
        %v6917 = vunpack.c.h.b16 %v6198
        %v6918 = vunpack.c.l.b16 %v6199
        %v6919 = vunpack.c.h.b16 %v6199
        %v6920 = vunpack.c.l.b16 %v6200
        %v6921 = vunpack.c.h.b16 %v6200
        %v6922 = vunpack.c.l.b16 %v6201
        %v6923 = vunpack.c.h.b16 %v6201
        %v6924 = vunpack.c.l.b16 %v6202
        %v6925 = vunpack.c.l.b16 %v6203
        %v6926 = vunpack.c.h.b16 %v6203
        %v6927 = vunpack.c.l.b16 %v6204
        %v6928 = vunpack.c.h.b16 %v6204
        %v6929 = vunpack.c.l.b16 %v6205
        %v6930 = vunpack.c.h.b16 %v6205
        %v6931 = vunpack.c.l.b16 %v6206
        %v6932 = vunpack.c.h.b16 %v6206
        %v6933 = vunpack.c.l.b16 %v6207
        %v6934 = vunpack.c.h.b16 %v6207
        %v6935 = vunpack.c.l.b16 %v6208
        %v6936 = vunpack.c.l.b16 %v6209
        %v6937 = vunpack.c.h.b16 %v6209
        %v6938 = vunpack.c.l.b16 %v6210
        %v6939 = vunpack.c.h.b16 %v6210
        %v6940 = vunpack.c.l.b16 %v6211
        %v6941 = vunpack.c.h.b16 %v6211
        %v6942 = vunpack.c.l.b16 %v6212
        %v6943 = vunpack.c.h.b16 %v6212
        %v6944 = vunpack.c.l.b16 %v6213
        %v6945 = vunpack.c.h.b16 %v6213
        %v6946 = vunpack.c.l.b16 %v6214
        %v6947 = vunpack.c.l.b16 %v6215
        %v6948 = vunpack.c.h.b16 %v6215
        %v6949 = vunpack.c.l.b16 %v6216
        %v6950 = vunpack.c.h.b16 %v6216
        %v6951 = vunpack.c.l.b16 %v6217
        %v6952 = vunpack.c.h.b16 %v6217
        %v6953 = vunpack.c.l.b16 %v6218
        %v6954 = vunpack.c.h.b16 %v6218
        %v6955 = vunpack.c.l.b16 %v6219
        %v6956 = vunpack.c.h.b16 %v6219
        %v6957 = vunpack.c.l.b16 %v6220
        %v6958 = vunpack.c.l.b16 %v6221
        %v6959 = vunpack.c.h.b16 %v6221
        %v6960 = vunpack.c.l.b16 %v6222
        %v6961 = vunpack.c.h.b16 %v6222
        %v6962 = vunpack.c.l.b16 %v6223
        %v6963 = vunpack.c.h.b16 %v6223
        %v6964 = vunpack.c.l.b16 %v6224
        %v6965 = vunpack.c.h.b16 %v6224
        %v6966 = vunpack.c.l.b16 %v6225
        %v6967 = vunpack.c.h.b16 %v6225
        %v6968 = vunpack.c.l.b16 %v6226
        %v6969 = vunpack.c.l.b16 %v6227
        %v6970 = vunpack.c.h.b16 %v6227
        %v6971 = vunpack.c.l.b16 %v6228
        %v6972 = vunpack.c.h.b16 %v6228
        %v6973 = vunpack.c.l.b16 %v6229
        %v6974 = vunpack.c.h.b16 %v6229
        %v6975 = vunpack.c.l.b16 %v6230
        %v6976 = vunpack.c.h.b16 %v6230
        %v6977 = vunpack.c.l.b16 %v6231
        %v6978 = vunpack.c.h.b16 %v6231
        %v6979 = vunpack.c.l.b16 %v6232
        %v6980 = vunpack.c.l.b16 %v6233
        %v6981 = vunpack.c.h.b16 %v6233
        %v6982 = vunpack.c.l.b16 %v6234
        %v6983 = vunpack.c.h.b16 %v6234
        %v6984 = vunpack.c.l.b16 %v6235
        %v6985 = vunpack.c.h.b16 %v6235
        %v6986 = vunpack.c.l.b16 %v6236
        %v6987 = vunpack.c.h.b16 %v6236
        %v6988 = vunpack.c.l.b16 %v6237
        %v6989 = vunpack.c.h.b16 %v6237
        %v6990 = vunpack.c.l.b16 %v6238
        %v6991 = vunpack.c.l.b16 %v6239
        %v6992 = vunpack.c.h.b16 %v6239
        %v6993 = vunpack.c.l.b16 %v6240
        %v6994 = vunpack.c.h.b16 %v6240
        %v6995 = vunpack.c.l.b16 %v6241
        %v6996 = vunpack.c.h.b16 %v6241
        %v6997 = vunpack.c.l.b16 %v6242
        %v6998 = vunpack.c.h.b16 %v6242
        %v6999 = vunpack.c.l.b16 %v6243
        %v7000 = vunpack.c.h.b16 %v6243
        %v7001 = vunpack.c.l.b16 %v6244
        %v7002 = vunpack.c.l.b16 %v6245
        %v7003 = vunpack.c.h.b16 %v6245
        %v7004 = vunpack.c.l.b16 %v6246
        %v7005 = vunpack.c.h.b16 %v6246
        %v7006 = vunpack.c.l.b16 %v6247
        %v7007 = vunpack.c.h.b16 %v6247
        %v7008 = vunpack.c.l.b16 %v6248
        %v7009 = vunpack.c.h.b16 %v6248
        %v7010 = vunpack.c.l.b16 %v6249
        %v7011 = vunpack.c.h.b16 %v6249
        %v7012 = vunpack.c.l.b16 %v6250
        %v7013 = vunpack.c.l.b16 %v6251
        %v7014 = vunpack.c.h.b16 %v6251
        %v7015 = vunpack.c.l.b16 %v6252
        %v7016 = vunpack.c.h.b16 %v6252
        %v7017 = vunpack.c.l.b16 %v6253
        %v7018 = vunpack.c.h.b16 %v6253
        %v7019 = vunpack.c.l.b16 %v6254
        %v7020 = vunpack.c.h.b16 %v6254
        %v7021 = vunpack.c.l.b16 %v6255
        %v7022 = vunpack.c.h.b16 %v6255
        %v7023 = vunpack.c.l.b16 %v6256
        %v7024 = vunpack.c.l.b16 %v6257
        %v7025 = vunpack.c.h.b16 %v6257
        %v7026 = vunpack.c.l.b16 %v6258
        %v7027 = vunpack.c.h.b16 %v6258
        %v7028 = vunpack.c.l.b16 %v6259
        %v7029 = vunpack.c.h.b16 %v6259
        %v7030 = vunpack.c.l.b16 %v6260
        %v7031 = vunpack.c.h.b16 %v6260
        %v7032 = vunpack.c.l.b16 %v6261
        %v7033 = vunpack.c.h.b16 %v6261
        %v7034 = vunpack.c.l.b16 %v6262
        %v7035 = vunpack.c.l.b16 %v6263
        %v7036 = vunpack.c.h.b16 %v6263
        %v7037 = vunpack.c.l.b16 %v6264
        %v7038 = vunpack.c.h.b16 %v6264
        %v7039 = vunpack.c.l.b16 %v6265
        %v7040 = vunpack.c.h.b16 %v6265
        %v7041 = vunpack.c.l.b16 %v6266
        %v7042 = vunpack.c.h.b16 %v6266
        %v7043 = vunpack.c.l.b16 %v6267
        %v7044 = vunpack.c.h.b16 %v6267
        %v7045 = vunpack.c.l.b16 %v6268
        %v7046 = vunpack.c.l.b16 %v6269
        %v7047 = vunpack.c.h.b16 %v6269
        %v7048 = vunpack.c.l.b16 %v6270
        %v7049 = vunpack.c.h.b16 %v6270
        %v7050 = vunpack.c.l.b16 %v6271
        %v7051 = vunpack.c.h.b16 %v6271
        %v7052 = vunpack.c.l.b16 %v6272
        %v7053 = vunpack.c.h.b16 %v6272
        %v7054 = vunpack.c.l.b16 %v6273
        %v7055 = vunpack.c.h.b16 %v6273
        %v7056 = vunpack.c.l.b16 %v6274
        %v7057 = vunpack.c.l.b16 %v6275
        %v7058 = vunpack.c.h.b16 %v6275
        %v7059 = vunpack.c.l.b16 %v6276
        %v7060 = vunpack.c.h.b16 %v6276
        %v7061 = vunpack.c.l.b16 %v6277
        %v7062 = vunpack.c.h.b16 %v6277
        %v7063 = vunpack.c.l.b16 %v6278
        %v7064 = vunpack.c.h.b16 %v6278
        %v7065 = vunpack.c.l.b16 %v6279
        %v7066 = vunpack.c.h.b16 %v6279
        %v7067 = vunpack.c.l.b16 %v6280
        %v7068 = vunpack.c.l.b16 %v6281
        %v7069 = vunpack.c.h.b16 %v6281
        %v7070 = vunpack.c.l.b16 %v6282
        %v7071 = vunpack.c.h.b16 %v6282
        %v7072 = vunpack.c.l.b16 %v6283
        %v7073 = vunpack.c.h.b16 %v6283
        %v7074 = vunpack.c.l.b16 %v6284
        %v7075 = vunpack.c.h.b16 %v6284
        %v7076 = vunpack.c.l.b16 %v6285
        %v7077 = vunpack.c.h.b16 %v6285
        %v7078 = vunpack.c.l.b16 %v6286
        %v7079 = vunpack.c.l.b16 %v6287
        %v7080 = vunpack.c.h.b16 %v6287
        %v7081 = vunpack.c.l.b16 %v6288
        %v7082 = vunpack.c.h.b16 %v6288
        %v7083 = vunpack.c.l.b16 %v6289
        %v7084 = vunpack.c.h.b16 %v6289
        %v7085 = vunpack.c.l.b16 %v6290
        %v7086 = vunpack.c.h.b16 %v6290
        %v7087 = vunpack.c.l.b16 %v6291
        %v7088 = vunpack.c.h.b16 %v6291
        %v7089 = vunpack.c.l.b16 %v6292
        %v7090 = vunpack.c.l.b16 %v6293
        %v7091 = vunpack.c.h.b16 %v6293
        %v7092 = vunpack.c.l.b16 %v6294
        %v7093 = vunpack.c.h.b16 %v6294
        %v7094 = vunpack.c.l.b16 %v6295
        %v7095 = vunpack.c.h.b16 %v6295
        %v7096 = vunpack.c.l.b16 %v6296
        %v7097 = vunpack.c.h.b16 %v6296
        %v7098 = vunpack.c.l.b16 %v6297
        %v7099 = vunpack.c.h.b16 %v6297
        %v7100 = vunpack.c.l.b16 %v6298
        %v7101 = vunpack.c.l.b16 %v6299
        %v7102 = vunpack.c.h.b16 %v6299
        %v7103 = vunpack.c.l.b16 %v6300
        %v7104 = vunpack.c.h.b16 %v6300
        %v7105 = vunpack.c.l.b16 %v6301
        %v7106 = vunpack.c.h.b16 %v6301
        %v7107 = vunpack.c.l.b16 %v6302
        %v7108 = vunpack.c.h.b16 %v6302
        %v7109 = vunpack.c.l.b16 %v6303
        %v7110 = vunpack.c.h.b16 %v6303
        %v7111 = vunpack.c.l.b16 %v6304
        %v7112 = vunpack.c.l.b16 %v6305
        %v7113 = vunpack.c.h.b16 %v6305
        %v7114 = vunpack.c.l.b16 %v6306
        %v7115 = vunpack.c.h.b16 %v6306
        %v7116 = vunpack.c.l.b16 %v6307
        %v7117 = vunpack.c.h.b16 %v6307
        %v7118 = vunpack.c.l.b16 %v6308
        %v7119 = vunpack.c.h.b16 %v6308
        %v7120 = vunpack.c.l.b16 %v6309
        %v7121 = vunpack.c.h.b16 %v6309
        %v7122 = vunpack.c.l.b16 %v6310
        %v7123 = vunpack.c.l.b16 %v6311
        %v7124 = vunpack.c.h.b16 %v6311
        %v7125 = vunpack.c.l.b16 %v6312
        %v7126 = vunpack.c.h.b16 %v6312
        %v7127 = vunpack.c.l.b16 %v6313
        %v7128 = vunpack.c.h.b16 %v6313
        %v7129 = vunpack.c.l.b16 %v6314
        %v7130 = vunpack.c.h.b16 %v6314
        %v7131 = vunpack.c.l.b16 %v6315
        %v7132 = vunpack.c.h.b16 %v6315
        %v7133 = vunpack.c.l.b16 %v6316
        %v7134 = vunpack.c.l.b16 %v6317
        %v7135 = vunpack.c.h.b16 %v6317
        %v7136 = vunpack.c.l.b16 %v6318
        %v7137 = vunpack.c.h.b16 %v6318
        %v7138 = vunpack.c.l.b16 %v6319
        %v7139 = vunpack.c.h.b16 %v6319
        %v7140 = vunpack.c.l.b16 %v6320
        %v7141 = vunpack.c.h.b16 %v6320
        %v7142 = vunpack.c.l.b16 %v6321
        %v7143 = vunpack.c.h.b16 %v6321
        %v7144 = vunpack.c.l.b16 %v6322
        %v7145 = vunpack.c.l.b16 %v6323
        %v7146 = vunpack.c.h.b16 %v6323
        %v7147 = vunpack.c.l.b16 %v6324
        %v7148 = vunpack.c.h.b16 %v6324
        %v7149 = vunpack.c.l.b16 %v6325
        %v7150 = vunpack.c.h.b16 %v6325
        %v7151 = vunpack.c.l.b16 %v6326
        %v7152 = vunpack.c.h.b16 %v6326
        %v7153 = vunpack.c.l.b16 %v6327
        %v7154 = vunpack.c.h.b16 %v6327
        %v7155 = vunpack.c.l.b16 %v6328
        %v7156 = vpack.c.b16 %v6639, %v6628
        %v7157 = vpack.c.b16 %v6640, %v6629
        %v7158 = vpack.c.b16 %v6641, %v6630
        %v7159 = vpack.c.b16 %v6642, %v6631
        %v7160 = vpack.c.b16 %v6643, %v6632
        %v7161 = vpack.c.b16 %v6644, %v6633
        %v7162 = vpack.c.b16 %v6645, %v6634
        %v7163 = vpack.c.b16 %v6646, %v6635
        %v7164 = vpack.c.b16 %v6647, %v6636
        %v7165 = vpack.c.b16 %v6648, %v6637
        %v7166 = vpack.c.b16 %v6649, %v6638
        %v7167 = vpack.c.b16 %v6661, %v6650
        %v7168 = vpack.c.b16 %v6662, %v6651
        %v7169 = vpack.c.b16 %v6663, %v6652
        %v7170 = vpack.c.b16 %v6664, %v6653
        %v7171 = vpack.c.b16 %v6665, %v6654
        %v7172 = vpack.c.b16 %v6666, %v6655
        %v7173 = vpack.c.b16 %v6667, %v6656
        %v7174 = vpack.c.b16 %v6668, %v6657
        %v7175 = vpack.c.b16 %v6669, %v6658
        %v7176 = vpack.c.b16 %v6670, %v6659
        %v7177 = vpack.c.b16 %v6671, %v6660
        %v7178 = vpack.c.b16 %v6683, %v6672
        %v7179 = vpack.c.b16 %v6684, %v6673
        %v7180 = vpack.c.b16 %v6685, %v6674
        %v7181 = vpack.c.b16 %v6686, %v6675
        %v7182 = vpack.c.b16 %v6687, %v6676
        %v7183 = vpack.c.b16 %v6688, %v6677
        %v7184 = vpack.c.b16 %v6689, %v6678
        %v7185 = vpack.c.b16 %v6690, %v6679
        %v7186 = vpack.c.b16 %v6691, %v6680
        %v7187 = vpack.c.b16 %v6692, %v6681
        %v7188 = vpack.c.b16 %v6693, %v6682
        %v7189 = vpack.c.b16 %v6705, %v6694
        %v7190 = vpack.c.b16 %v6706, %v6695
        %v7191 = vpack.c.b16 %v6707, %v6696
        %v7192 = vpack.c.b16 %v6708, %v6697
        %v7193 = vpack.c.b16 %v6709, %v6698
        %v7194 = vpack.c.b16 %v6710, %v6699
        %v7195 = vpack.c.b16 %v6711, %v6700
        %v7196 = vpack.c.b16 %v6712, %v6701
        %v7197 = vpack.c.b16 %v6713, %v6702
        %v7198 = vpack.c.b16 %v6714, %v6703
        %v7199 = vpack.c.b16 %v6715, %v6704
        %v7200 = vpack.c.b16 %v6727, %v6716
        %v7201 = vpack.c.b16 %v6728, %v6717
        %v7202 = vpack.c.b16 %v6729, %v6718
        %v7203 = vpack.c.b16 %v6730, %v6719
        %v7204 = vpack.c.b16 %v6731, %v6720
        %v7205 = vpack.c.b16 %v6732, %v6721
        %v7206 = vpack.c.b16 %v6733, %v6722
        %v7207 = vpack.c.b16 %v6734, %v6723
        %v7208 = vpack.c.b16 %v6735, %v6724
        %v7209 = vpack.c.b16 %v6736, %v6725
        %v7210 = vpack.c.b16 %v6737, %v6726
        %v7211 = vpack.c.b16 %v6749, %v6738
        %v7212 = vpack.c.b16 %v6750, %v6739
        %v7213 = vpack.c.b16 %v6751, %v6740
        %v7214 = vpack.c.b16 %v6752, %v6741
        %v7215 = vpack.c.b16 %v6753, %v6742
        %v7216 = vpack.c.b16 %v6754, %v6743
        %v7217 = vpack.c.b16 %v6755, %v6744
        %v7218 = vpack.c.b16 %v6756, %v6745
        %v7219 = vpack.c.b16 %v6757, %v6746
        %v7220 = vpack.c.b16 %v6758, %v6747
        %v7221 = vpack.c.b16 %v6759, %v6748
        %v7222 = vpack.c.b16 %v6771, %v6760
        %v7223 = vpack.c.b16 %v6772, %v6761
        %v7224 = vpack.c.b16 %v6773, %v6762
        %v7225 = vpack.c.b16 %v6774, %v6763
        %v7226 = vpack.c.b16 %v6775, %v6764
        %v7227 = vpack.c.b16 %v6776, %v6765
        %v7228 = vpack.c.b16 %v6777, %v6766
        %v7229 = vpack.c.b16 %v6778, %v6767
        %v7230 = vpack.c.b16 %v6779, %v6768
        %v7231 = vpack.c.b16 %v6780, %v6769
        %v7232 = vpack.c.b16 %v6781, %v6770
        %v7233 = vpack.c.b16 %v6793, %v6782
        %v7234 = vpack.c.b16 %v6794, %v6783
        %v7235 = vpack.c.b16 %v6795, %v6784
        %v7236 = vpack.c.b16 %v6796, %v6785
        %v7237 = vpack.c.b16 %v6797, %v6786
        %v7238 = vpack.c.b16 %v6798, %v6787
        %v7239 = vpack.c.b16 %v6799, %v6788
        %v7240 = vpack.c.b16 %v6800, %v6789
        %v7241 = vpack.c.b16 %v6801, %v6790
        %v7242 = vpack.c.b16 %v6802, %v6791
        %v7243 = vpack.c.b16 %v6803, %v6792
        %v7244 = vpack.c.b16 %v6815, %v6804
        %v7245 = vpack.c.b16 %v6816, %v6805
        %v7246 = vpack.c.b16 %v6817, %v6806
        %v7247 = vpack.c.b16 %v6818, %v6807
        %v7248 = vpack.c.b16 %v6819, %v6808
        %v7249 = vpack.c.b16 %v6820, %v6809
        %v7250 = vpack.c.b16 %v6821, %v6810
        %v7251 = vpack.c.b16 %v6822, %v6811
        %v7252 = vpack.c.b16 %v6823, %v6812
        %v7253 = vpack.c.b16 %v6824, %v6813
        %v7254 = vpack.c.b16 %v6825, %v6814
        %v7255 = vpack.c.b16 %v6837, %v6826
        %v7256 = vpack.c.b16 %v6838, %v6827
        %v7257 = vpack.c.b16 %v6839, %v6828
        %v7258 = vpack.c.b16 %v6840, %v6829
        %v7259 = vpack.c.b16 %v6841, %v6830
        %v7260 = vpack.c.b16 %v6842, %v6831
        %v7261 = vpack.c.b16 %v6843, %v6832
        %v7262 = vpack.c.b16 %v6844, %v6833
        %v7263 = vpack.c.b16 %v6845, %v6834
        %v7264 = vpack.c.b16 %v6846, %v6835
        %v7265 = vpack.c.b16 %v6847, %v6836
        %v7266 = vpack.c.b16 %v6859, %v6848
        %v7267 = vpack.c.b16 %v6860, %v6849
        %v7268 = vpack.c.b16 %v6861, %v6850
        %v7269 = vpack.c.b16 %v6862, %v6851
        %v7270 = vpack.c.b16 %v6863, %v6852
        %v7271 = vpack.c.b16 %v6864, %v6853
        %v7272 = vpack.c.b16 %v6865, %v6854
        %v7273 = vpack.c.b16 %v6866, %v6855
        %v7274 = vpack.c.b16 %v6867, %v6856
        %v7275 = vpack.c.b16 %v6868, %v6857
        %v7276 = vpack.c.b16 %v6869, %v6858
        %v7277 = vpack.c.b16 %v6881, %v6870
        %v7278 = vpack.c.b16 %v6882, %v6871
        %v7279 = vpack.c.b16 %v6883, %v6872
        %v7280 = vpack.c.b16 %v6884, %v6873
        %v7281 = vpack.c.b16 %v6885, %v6874
        %v7282 = vpack.c.b16 %v6886, %v6875
        %v7283 = vpack.c.b16 %v6887, %v6876
        %v7284 = vpack.c.b16 %v6888, %v6877
        %v7285 = vpack.c.b16 %v6889, %v6878
        %v7286 = vpack.c.b16 %v6890, %v6879
        %v7287 = vpack.c.b16 %v6891, %v6880
        %v7288 = vpack.c.b16 %v6903, %v6892
        %v7289 = vpack.c.b16 %v6904, %v6893
        %v7290 = vpack.c.b16 %v6905, %v6894
        %v7291 = vpack.c.b16 %v6906, %v6895
        %v7292 = vpack.c.b16 %v6907, %v6896
        %v7293 = vpack.c.b16 %v6908, %v6897
        %v7294 = vpack.c.b16 %v6909, %v6898
        %v7295 = vpack.c.b16 %v6910, %v6899
        %v7296 = vpack.c.b16 %v6911, %v6900
        %v7297 = vpack.c.b16 %v6912, %v6901
        %v7298 = vpack.c.b16 %v6913, %v6902
        %v7299 = vpack.c.b16 %v6925, %v6914
        %v7300 = vpack.c.b16 %v6926, %v6915
        %v7301 = vpack.c.b16 %v6927, %v6916
        %v7302 = vpack.c.b16 %v6928, %v6917
        %v7303 = vpack.c.b16 %v6929, %v6918
        %v7304 = vpack.c.b16 %v6930, %v6919
        %v7305 = vpack.c.b16 %v6931, %v6920
        %v7306 = vpack.c.b16 %v6932, %v6921
        %v7307 = vpack.c.b16 %v6933, %v6922
        %v7308 = vpack.c.b16 %v6934, %v6923
        %v7309 = vpack.c.b16 %v6935, %v6924
        %v7310 = vpack.c.b16 %v6947, %v6936
        %v7311 = vpack.c.b16 %v6948, %v6937
        %v7312 = vpack.c.b16 %v6949, %v6938
        %v7313 = vpack.c.b16 %v6950, %v6939
        %v7314 = vpack.c.b16 %v6951, %v6940
        %v7315 = vpack.c.b16 %v6952, %v6941
        %v7316 = vpack.c.b16 %v6953, %v6942
        %v7317 = vpack.c.b16 %v6954, %v6943
        %v7318 = vpack.c.b16 %v6955, %v6944
        %v7319 = vpack.c.b16 %v6956, %v6945
        %v7320 = vpack.c.b16 %v6957, %v6946
        %v7321 = vpack.c.b16 %v6969, %v6958
        %v7322 = vpack.c.b16 %v6970, %v6959
        %v7323 = vpack.c.b16 %v6971, %v6960
        %v7324 = vpack.c.b16 %v6972, %v6961
        %v7325 = vpack.c.b16 %v6973, %v6962
        %v7326 = vpack.c.b16 %v6974, %v6963
        %v7327 = vpack.c.b16 %v6975, %v6964
        %v7328 = vpack.c.b16 %v6976, %v6965
        %v7329 = vpack.c.b16 %v6977, %v6966
        %v7330 = vpack.c.b16 %v6978, %v6967
        %v7331 = vpack.c.b16 %v6979, %v6968
        %v7332 = vpack.c.b16 %v6991, %v6980
        %v7333 = vpack.c.b16 %v6992, %v6981
        %v7334 = vpack.c.b16 %v6993, %v6982
        %v7335 = vpack.c.b16 %v6994, %v6983
        %v7336 = vpack.c.b16 %v6995, %v6984
        %v7337 = vpack.c.b16 %v6996, %v6985
        %v7338 = vpack.c.b16 %v6997, %v6986
        %v7339 = vpack.c.b16 %v6998, %v6987
        %v7340 = vpack.c.b16 %v6999, %v6988
        %v7341 = vpack.c.b16 %v7000, %v6989
        %v7342 = vpack.c.b16 %v7001, %v6990
        %v7343 = vpack.c.b16 %v7013, %v7002
        %v7344 = vpack.c.b16 %v7014, %v7003
        %v7345 = vpack.c.b16 %v7015, %v7004
        %v7346 = vpack.c.b16 %v7016, %v7005
        %v7347 = vpack.c.b16 %v7017, %v7006
        %v7348 = vpack.c.b16 %v7018, %v7007
        %v7349 = vpack.c.b16 %v7019, %v7008
        %v7350 = vpack.c.b16 %v7020, %v7009
        %v7351 = vpack.c.b16 %v7021, %v7010
        %v7352 = vpack.c.b16 %v7022, %v7011
        %v7353 = vpack.c.b16 %v7023, %v7012
        %v7354 = vpack.c.b16 %v7035, %v7024
        %v7355 = vpack.c.b16 %v7036, %v7025
        %v7356 = vpack.c.b16 %v7037, %v7026
        %v7357 = vpack.c.b16 %v7038, %v7027
        %v7358 = vpack.c.b16 %v7039, %v7028
        %v7359 = vpack.c.b16 %v7040, %v7029
        %v7360 = vpack.c.b16 %v7041, %v7030
        %v7361 = vpack.c.b16 %v7042, %v7031
        %v7362 = vpack.c.b16 %v7043, %v7032
        %v7363 = vpack.c.b16 %v7044, %v7033
        %v7364 = vpack.c.b16 %v7045, %v7034
        %v7365 = vpack.c.b16 %v7057, %v7046
        %v7366 = vpack.c.b16 %v7058, %v7047
        %v7367 = vpack.c.b16 %v7059, %v7048
        %v7368 = vpack.c.b16 %v7060, %v7049
        %v7369 = vpack.c.b16 %v7061, %v7050
        %v7370 = vpack.c.b16 %v7062, %v7051
        %v7371 = vpack.c.b16 %v7063, %v7052
        %v7372 = vpack.c.b16 %v7064, %v7053
        %v7373 = vpack.c.b16 %v7065, %v7054
        %v7374 = vpack.c.b16 %v7066, %v7055
        %v7375 = vpack.c.b16 %v7067, %v7056
        %v7376 = vpack.c.b16 %v7079, %v7068
        %v7377 = vpack.c.b16 %v7080, %v7069
        %v7378 = vpack.c.b16 %v7081, %v7070
        %v7379 = vpack.c.b16 %v7082, %v7071
        %v7380 = vpack.c.b16 %v7083, %v7072
        %v7381 = vpack.c.b16 %v7084, %v7073
        %v7382 = vpack.c.b16 %v7085, %v7074
        %v7383 = vpack.c.b16 %v7086, %v7075
        %v7384 = vpack.c.b16 %v7087, %v7076
        %v7385 = vpack.c.b16 %v7088, %v7077
        %v7386 = vpack.c.b16 %v7089, %v7078
        %v7387 = vpack.c.b16 %v7101, %v7090
        %v7388 = vpack.c.b16 %v7102, %v7091
        %v7389 = vpack.c.b16 %v7103, %v7092
        %v7390 = vpack.c.b16 %v7104, %v7093
        %v7391 = vpack.c.b16 %v7105, %v7094
        %v7392 = vpack.c.b16 %v7106, %v7095
        %v7393 = vpack.c.b16 %v7107, %v7096
        %v7394 = vpack.c.b16 %v7108, %v7097
        %v7395 = vpack.c.b16 %v7109, %v7098
        %v7396 = vpack.c.b16 %v7110, %v7099
        %v7397 = vpack.c.b16 %v7111, %v7100
        %v7398 = vpack.c.b16 %v7123, %v7112
        %v7399 = vpack.c.b16 %v7124, %v7113
        %v7400 = vpack.c.b16 %v7125, %v7114
        %v7401 = vpack.c.b16 %v7126, %v7115
        %v7402 = vpack.c.b16 %v7127, %v7116
        %v7403 = vpack.c.b16 %v7128, %v7117
        %v7404 = vpack.c.b16 %v7129, %v7118
        %v7405 = vpack.c.b16 %v7130, %v7119
        %v7406 = vpack.c.b16 %v7131, %v7120
        %v7407 = vpack.c.b16 %v7132, %v7121
        %v7408 = vpack.c.b16 %v7133, %v7122
        %v7409 = vpack.c.b16 %v7145, %v7134
        %v7410 = vpack.c.b16 %v7146, %v7135
        %v7411 = vpack.c.b16 %v7147, %v7136
        %v7412 = vpack.c.b16 %v7148, %v7137
        %v7413 = vpack.c.b16 %v7149, %v7138
        %v7414 = vpack.c.b16 %v7150, %v7139
        %v7415 = vpack.c.b16 %v7151, %v7140
        %v7416 = vpack.c.b16 %v7152, %v7141
        %v7417 = vpack.c.b16 %v7153, %v7142
        %v7418 = vpack.c.b16 %v7154, %v7143
        %v7419 = vpack.c.b16 %v7155, %v7144
        %7684 = vmatpush.bf16.msra.mxu0 %v7233
        %7685 = vmatpush.bf16.msra.mxu0 %v7222
        %7686 = vmatpush.bf16.msra.mxu0 %v7211
        %7687 = vmatpush.bf16.msra.mxu0 %v7200
        %7688 = vmatpush.bf16.msra.mxu0 %v7189
        %7689 = vmatpush.bf16.msra.mxu0 %v7178
        %7690 = vmatpush.bf16.msra.mxu0 %v7167
        %7691 = vmatpush.bf16.msra.mxu0 %v7156
        %7692 = vmatmul.bf16.gmra.mxu0 %v6334
        %v7693 = vpop.f32.mrf.mxu0
        %v7694 = vadd.f32 0.0, %v7693
        %v7695 = vpop.f32.mrf.mxu0
        %7696 = vdwg.mxu0
        %7697 = vmatpush.bf16.msra.mxu0 %v7321
        %7698 = vmatpush.bf16.msra.mxu0 %v7310
        %7699 = vmatpush.bf16.msra.mxu0 %v7299
        %7700 = vmatpush.bf16.msra.mxu0 %v7288
        %7701 = vmatpush.bf16.msra.mxu0 %v7277
        %7702 = vmatpush.bf16.msra.mxu0 %v7266
        %7703 = vmatpush.bf16.msra.mxu0 %v7255
        %7704 = vmatpush.bf16.msra.mxu0 %v7244
        %7705 = vmatmul.bf16.gmra.mxu0 %v6335
        %v7706 = vpop.f32.mrf.mxu0
        %v7707 = vadd.f32 %v7694, %v7706
        %v7708 = vpop.f32.mrf.mxu0
        %7709 = vdwg.mxu0
        %7710 = vmatpush.bf16.msra.mxu0 %v7409
        %7711 = vmatpush.bf16.msra.mxu0 %v7398
        %7712 = vmatpush.bf16.msra.mxu0 %v7387
        %7713 = vmatpush.bf16.msra.mxu0 %v7376
        %7714 = vmatpush.bf16.msra.mxu0 %v7365
        %7715 = vmatpush.bf16.msra.mxu0 %v7354
        %7716 = vmatpush.bf16.msra.mxu0 %v7343
        %7717 = vmatpush.bf16.msra.mxu0 %v7332
        %7718 = vmatmul.bf16.gmra.mxu0 %v6336
        %v7719 = vpop.f32.mrf.mxu0
        %v7720 = vadd.f32 %v7707, %v7719
        %v7721 = vpop.f32.mrf.mxu0
        %7722 = vdwg.mxu0
        %7723 = vmatpush.bf16.msra.mxu0 %v7234
        %7724 = vmatpush.bf16.msra.mxu0 %v7223
        %7725 = vmatpush.bf16.msra.mxu0 %v7212
        %7726 = vmatpush.bf16.msra.mxu0 %v7201
        %7727 = vmatpush.bf16.msra.mxu0 %v7190
        %7728 = vmatpush.bf16.msra.mxu0 %v7179
        %7729 = vmatpush.bf16.msra.mxu0 %v7168
        %7730 = vmatpush.bf16.msra.mxu0 %v7157
        %7731 = vmatmul.bf16.gmra.mxu0 %v6334
        %v7732 = vpop.f32.mrf.mxu0
        %v7733 = vadd.f32 0.0, %v7732
        %v7734 = vpop.f32.mrf.mxu0
        %7735 = vdwg.mxu0
        %7736 = vmatpush.bf16.msra.mxu0 %v7322
        %7737 = vmatpush.bf16.msra.mxu0 %v7311
        %7738 = vmatpush.bf16.msra.mxu0 %v7300
        %7739 = vmatpush.bf16.msra.mxu0 %v7289
        %7740 = vmatpush.bf16.msra.mxu0 %v7278
        %7741 = vmatpush.bf16.msra.mxu0 %v7267
        %7742 = vmatpush.bf16.msra.mxu0 %v7256
        %7743 = vmatpush.bf16.msra.mxu0 %v7245
        %7744 = vmatmul.bf16.gmra.mxu0 %v6335
        %v7745 = vpop.f32.mrf.mxu0
        %v7746 = vadd.f32 %v7733, %v7745
        %v7747 = vpop.f32.mrf.mxu0
        %7748 = vdwg.mxu0
        %7749 = vmatpush.bf16.msra.mxu0 %v7410
        %7750 = vmatpush.bf16.msra.mxu0 %v7399
        %7751 = vmatpush.bf16.msra.mxu0 %v7388
        %7752 = vmatpush.bf16.msra.mxu0 %v7377
        %7753 = vmatpush.bf16.msra.mxu0 %v7366
        %7754 = vmatpush.bf16.msra.mxu0 %v7355
        %7755 = vmatpush.bf16.msra.mxu0 %v7344
        %7756 = vmatpush.bf16.msra.mxu0 %v7333
        %7757 = vmatmul.bf16.gmra.mxu0 %v6336
        %v7758 = vpop.f32.mrf.mxu0
        %v7759 = vadd.f32 %v7746, %v7758
        %v7760 = vpop.f32.mrf.mxu0
        %7761 = vdwg.mxu0
        %7762 = vmatpush.bf16.msra.mxu0 %v7235
        %7763 = vmatpush.bf16.msra.mxu0 %v7224
        %7764 = vmatpush.bf16.msra.mxu0 %v7213
        %7765 = vmatpush.bf16.msra.mxu0 %v7202
        %7766 = vmatpush.bf16.msra.mxu0 %v7191
        %7767 = vmatpush.bf16.msra.mxu0 %v7180
        %7768 = vmatpush.bf16.msra.mxu0 %v7169
        %7769 = vmatpush.bf16.msra.mxu0 %v7158
        %7770 = vmatmul.bf16.gmra.mxu0 %v6334
        %v7771 = vpop.f32.mrf.mxu0
        %v7772 = vadd.f32 0.0, %v7771
        %v7773 = vpop.f32.mrf.mxu0
        %7774 = vdwg.mxu0
        %7775 = vmatpush.bf16.msra.mxu0 %v7323
        %7776 = vmatpush.bf16.msra.mxu0 %v7312
        %7777 = vmatpush.bf16.msra.mxu0 %v7301
        %7778 = vmatpush.bf16.msra.mxu0 %v7290
        %7779 = vmatpush.bf16.msra.mxu0 %v7279
        %7780 = vmatpush.bf16.msra.mxu0 %v7268
        %7781 = vmatpush.bf16.msra.mxu0 %v7257
        %7782 = vmatpush.bf16.msra.mxu0 %v7246
        %7783 = vmatmul.bf16.gmra.mxu0 %v6335
        %v7784 = vpop.f32.mrf.mxu0
        %v7785 = vadd.f32 %v7772, %v7784
        %v7786 = vpop.f32.mrf.mxu0
        %7787 = vdwg.mxu0
        %7788 = vmatpush.bf16.msra.mxu0 %v7411
        %7789 = vmatpush.bf16.msra.mxu0 %v7400
        %7790 = vmatpush.bf16.msra.mxu0 %v7389
        %7791 = vmatpush.bf16.msra.mxu0 %v7378
        %7792 = vmatpush.bf16.msra.mxu0 %v7367
        %7793 = vmatpush.bf16.msra.mxu0 %v7356
        %7794 = vmatpush.bf16.msra.mxu0 %v7345
        %7795 = vmatpush.bf16.msra.mxu0 %v7334
        %7796 = vmatmul.bf16.gmra.mxu0 %v6336
        %v7797 = vpop.f32.mrf.mxu0
        %v7798 = vadd.f32 %v7785, %v7797
        %v7799 = vpop.f32.mrf.mxu0
        %7800 = vdwg.mxu0
        %7801 = vmatpush.bf16.msra.mxu0 %v7236
        %7802 = vmatpush.bf16.msra.mxu0 %v7225
        %7803 = vmatpush.bf16.msra.mxu0 %v7214
        %7804 = vmatpush.bf16.msra.mxu0 %v7203
        %7805 = vmatpush.bf16.msra.mxu0 %v7192
        %7806 = vmatpush.bf16.msra.mxu0 %v7181
        %7807 = vmatpush.bf16.msra.mxu0 %v7170
        %7808 = vmatpush.bf16.msra.mxu0 %v7159
        %7809 = vmatmul.bf16.gmra.mxu0 %v6334
        %v7810 = vpop.f32.mrf.mxu0
        %v7811 = vadd.f32 0.0, %v7810
        %v7812 = vpop.f32.mrf.mxu0
        %7813 = vdwg.mxu0
        %7814 = vmatpush.bf16.msra.mxu0 %v7324
        %7815 = vmatpush.bf16.msra.mxu0 %v7313
        %7816 = vmatpush.bf16.msra.mxu0 %v7302
        %7817 = vmatpush.bf16.msra.mxu0 %v7291
        %7818 = vmatpush.bf16.msra.mxu0 %v7280
        %7819 = vmatpush.bf16.msra.mxu0 %v7269
        %7820 = vmatpush.bf16.msra.mxu0 %v7258
        %7821 = vmatpush.bf16.msra.mxu0 %v7247
        %7822 = vmatmul.bf16.gmra.mxu0 %v6335
        %v7823 = vpop.f32.mrf.mxu0
        %v7824 = vadd.f32 %v7811, %v7823
        %v7825 = vpop.f32.mrf.mxu0
        %7826 = vdwg.mxu0
        %7827 = vmatpush.bf16.msra.mxu0 %v7412
        %7828 = vmatpush.bf16.msra.mxu0 %v7401
        %7829 = vmatpush.bf16.msra.mxu0 %v7390
        %7830 = vmatpush.bf16.msra.mxu0 %v7379
        %7831 = vmatpush.bf16.msra.mxu0 %v7368
        %7832 = vmatpush.bf16.msra.mxu0 %v7357
        %7833 = vmatpush.bf16.msra.mxu0 %v7346
        %7834 = vmatpush.bf16.msra.mxu0 %v7335
        %7835 = vmatmul.bf16.gmra.mxu0 %v6336
        %v7836 = vpop.f32.mrf.mxu0
        %v7837 = vadd.f32 %v7824, %v7836
        %v7838 = vpop.f32.mrf.mxu0
        %7839 = vdwg.mxu0
        %7840 = vmatpush.bf16.msra.mxu0 %v7237
        %7841 = vmatpush.bf16.msra.mxu0 %v7226
        %7842 = vmatpush.bf16.msra.mxu0 %v7215
        %7843 = vmatpush.bf16.msra.mxu0 %v7204
        %7844 = vmatpush.bf16.msra.mxu0 %v7193
        %7845 = vmatpush.bf16.msra.mxu0 %v7182
        %7846 = vmatpush.bf16.msra.mxu0 %v7171
        %7847 = vmatpush.bf16.msra.mxu0 %v7160
        %7848 = vmatmul.bf16.gmra.mxu0 %v6334
        %v7849 = vpop.f32.mrf.mxu0
        %v7850 = vadd.f32 0.0, %v7849
        %v7851 = vpop.f32.mrf.mxu0
        %7852 = vdwg.mxu0
        %7853 = vmatpush.bf16.msra.mxu0 %v7325
        %7854 = vmatpush.bf16.msra.mxu0 %v7314
        %7855 = vmatpush.bf16.msra.mxu0 %v7303
        %7856 = vmatpush.bf16.msra.mxu0 %v7292
        %7857 = vmatpush.bf16.msra.mxu0 %v7281
        %7858 = vmatpush.bf16.msra.mxu0 %v7270
        %7859 = vmatpush.bf16.msra.mxu0 %v7259
        %7860 = vmatpush.bf16.msra.mxu0 %v7248
        %7861 = vmatmul.bf16.gmra.mxu0 %v6335
        %v7862 = vpop.f32.mrf.mxu0
        %v7863 = vadd.f32 %v7850, %v7862
        %v7864 = vpop.f32.mrf.mxu0
        %7865 = vdwg.mxu0
        %7866 = vmatpush.bf16.msra.mxu0 %v7413
        %7867 = vmatpush.bf16.msra.mxu0 %v7402
        %7868 = vmatpush.bf16.msra.mxu0 %v7391
        %7869 = vmatpush.bf16.msra.mxu0 %v7380
        %7870 = vmatpush.bf16.msra.mxu0 %v7369
        %7871 = vmatpush.bf16.msra.mxu0 %v7358
        %7872 = vmatpush.bf16.msra.mxu0 %v7347
        %7873 = vmatpush.bf16.msra.mxu0 %v7336
        %7874 = vmatmul.bf16.gmra.mxu0 %v6336
        %v7875 = vpop.f32.mrf.mxu0
        %v7876 = vadd.f32 %v7863, %v7875
        %v7877 = vpop.f32.mrf.mxu0
        %7878 = vdwg.mxu0
        %7879 = vmatpush.bf16.msra.mxu0 %v7238
        %7880 = vmatpush.bf16.msra.mxu0 %v7227
        %7881 = vmatpush.bf16.msra.mxu0 %v7216
        %7882 = vmatpush.bf16.msra.mxu0 %v7205
        %7883 = vmatpush.bf16.msra.mxu0 %v7194
        %7884 = vmatpush.bf16.msra.mxu0 %v7183
        %7885 = vmatpush.bf16.msra.mxu0 %v7172
        %7886 = vmatpush.bf16.msra.mxu0 %v7161
        %7887 = vmatmul.bf16.gmra.mxu0 %v6334
        %v7888 = vpop.f32.mrf.mxu0
        %v7889 = vadd.f32 0.0, %v7888
        %v7890 = vpop.f32.mrf.mxu0
        %7891 = vdwg.mxu0
        %7892 = vmatpush.bf16.msra.mxu0 %v7326
        %7893 = vmatpush.bf16.msra.mxu0 %v7315
        %7894 = vmatpush.bf16.msra.mxu0 %v7304
        %7895 = vmatpush.bf16.msra.mxu0 %v7293
        %7896 = vmatpush.bf16.msra.mxu0 %v7282
        %7897 = vmatpush.bf16.msra.mxu0 %v7271
        %7898 = vmatpush.bf16.msra.mxu0 %v7260
        %7899 = vmatpush.bf16.msra.mxu0 %v7249
        %7900 = vmatmul.bf16.gmra.mxu0 %v6335
        %v7901 = vpop.f32.mrf.mxu0
        %v7902 = vadd.f32 %v7889, %v7901
        %v7903 = vpop.f32.mrf.mxu0
        %7904 = vdwg.mxu0
        %7905 = vmatpush.bf16.msra.mxu0 %v7414
        %7906 = vmatpush.bf16.msra.mxu0 %v7403
        %7907 = vmatpush.bf16.msra.mxu0 %v7392
        %7908 = vmatpush.bf16.msra.mxu0 %v7381
        %7909 = vmatpush.bf16.msra.mxu0 %v7370
        %7910 = vmatpush.bf16.msra.mxu0 %v7359
        %7911 = vmatpush.bf16.msra.mxu0 %v7348
        %7912 = vmatpush.bf16.msra.mxu0 %v7337
        %7913 = vmatmul.bf16.gmra.mxu0 %v6336
        %v7914 = vpop.f32.mrf.mxu0
        %v7915 = vadd.f32 %v7902, %v7914
        %v7916 = vpop.f32.mrf.mxu0
        %7917 = vdwg.mxu0
        %7918 = vmatpush.bf16.msra.mxu0 %v7239
        %7919 = vmatpush.bf16.msra.mxu0 %v7228
        %7920 = vmatpush.bf16.msra.mxu0 %v7217
        %7921 = vmatpush.bf16.msra.mxu0 %v7206
        %7922 = vmatpush.bf16.msra.mxu0 %v7195
        %7923 = vmatpush.bf16.msra.mxu0 %v7184
        %7924 = vmatpush.bf16.msra.mxu0 %v7173
        %7925 = vmatpush.bf16.msra.mxu0 %v7162
        %7926 = vmatmul.bf16.gmra.mxu0 %v6334
        %v7927 = vpop.f32.mrf.mxu0
        %v7928 = vadd.f32 0.0, %v7927
        %v7929 = vpop.f32.mrf.mxu0
        %7930 = vdwg.mxu0
        %7931 = vmatpush.bf16.msra.mxu0 %v7327
        %7932 = vmatpush.bf16.msra.mxu0 %v7316
        %7933 = vmatpush.bf16.msra.mxu0 %v7305
        %7934 = vmatpush.bf16.msra.mxu0 %v7294
        %7935 = vmatpush.bf16.msra.mxu0 %v7283
        %7936 = vmatpush.bf16.msra.mxu0 %v7272
        %7937 = vmatpush.bf16.msra.mxu0 %v7261
        %7938 = vmatpush.bf16.msra.mxu0 %v7250
        %7939 = vmatmul.bf16.gmra.mxu0 %v6335
        %v7940 = vpop.f32.mrf.mxu0
        %v7941 = vadd.f32 %v7928, %v7940
        %v7942 = vpop.f32.mrf.mxu0
        %7943 = vdwg.mxu0
        %7944 = vmatpush.bf16.msra.mxu0 %v7415
        %7945 = vmatpush.bf16.msra.mxu0 %v7404
        %7946 = vmatpush.bf16.msra.mxu0 %v7393
        %7947 = vmatpush.bf16.msra.mxu0 %v7382
        %7948 = vmatpush.bf16.msra.mxu0 %v7371
        %7949 = vmatpush.bf16.msra.mxu0 %v7360
        %7950 = vmatpush.bf16.msra.mxu0 %v7349
        %7951 = vmatpush.bf16.msra.mxu0 %v7338
        %7952 = vmatmul.bf16.gmra.mxu0 %v6336
        %v7953 = vpop.f32.mrf.mxu0
        %v7954 = vadd.f32 %v7941, %v7953
        %v7955 = vpop.f32.mrf.mxu0
        %7956 = vdwg.mxu0
        %7957 = vmatpush.bf16.msra.mxu0 %v7240
        %7958 = vmatpush.bf16.msra.mxu0 %v7229
        %7959 = vmatpush.bf16.msra.mxu0 %v7218
        %7960 = vmatpush.bf16.msra.mxu0 %v7207
        %7961 = vmatpush.bf16.msra.mxu0 %v7196
        %7962 = vmatpush.bf16.msra.mxu0 %v7185
        %7963 = vmatpush.bf16.msra.mxu0 %v7174
        %7964 = vmatpush.bf16.msra.mxu0 %v7163
        %7965 = vmatmul.bf16.gmra.mxu0 %v6334
        %v7966 = vpop.f32.mrf.mxu0
        %v7967 = vadd.f32 0.0, %v7966
        %v7968 = vpop.f32.mrf.mxu0
        %7969 = vdwg.mxu0
        %7970 = vmatpush.bf16.msra.mxu0 %v7328
        %7971 = vmatpush.bf16.msra.mxu0 %v7317
        %7972 = vmatpush.bf16.msra.mxu0 %v7306
        %7973 = vmatpush.bf16.msra.mxu0 %v7295
        %7974 = vmatpush.bf16.msra.mxu0 %v7284
        %7975 = vmatpush.bf16.msra.mxu0 %v7273
        %7976 = vmatpush.bf16.msra.mxu0 %v7262
        %7977 = vmatpush.bf16.msra.mxu0 %v7251
        %7978 = vmatmul.bf16.gmra.mxu0 %v6335
        %v7979 = vpop.f32.mrf.mxu0
        %v7980 = vadd.f32 %v7967, %v7979
        %v7981 = vpop.f32.mrf.mxu0
        %7982 = vdwg.mxu0
        %7983 = vmatpush.bf16.msra.mxu0 %v7416
        %7984 = vmatpush.bf16.msra.mxu0 %v7405
        %7985 = vmatpush.bf16.msra.mxu0 %v7394
        %7986 = vmatpush.bf16.msra.mxu0 %v7383
        %7987 = vmatpush.bf16.msra.mxu0 %v7372
        %7988 = vmatpush.bf16.msra.mxu0 %v7361
        %7989 = vmatpush.bf16.msra.mxu0 %v7350
        %7990 = vmatpush.bf16.msra.mxu0 %v7339
        %7991 = vmatmul.bf16.gmra.mxu0 %v6336
        %v7992 = vpop.f32.mrf.mxu0
        %v7993 = vadd.f32 %v7980, %v7992
        %v7994 = vpop.f32.mrf.mxu0
        %7995 = vdwg.mxu0
        %7996 = vmatpush.bf16.msra.mxu0 %v7241
        %7997 = vmatpush.bf16.msra.mxu0 %v7230
        %7998 = vmatpush.bf16.msra.mxu0 %v7219
        %7999 = vmatpush.bf16.msra.mxu0 %v7208
        %8000 = vmatpush.bf16.msra.mxu0 %v7197
        %8001 = vmatpush.bf16.msra.mxu0 %v7186
        %8002 = vmatpush.bf16.msra.mxu0 %v7175
        %8003 = vmatpush.bf16.msra.mxu0 %v7164
        %8004 = vmatmul.bf16.gmra.mxu0 %v6334
        %v8005 = vpop.f32.mrf.mxu0
        %v8006 = vadd.f32 0.0, %v8005
        %v8007 = vpop.f32.mrf.mxu0
        %8008 = vdwg.mxu0
        %8009 = vmatpush.bf16.msra.mxu0 %v7329
        %8010 = vmatpush.bf16.msra.mxu0 %v7318
        %8011 = vmatpush.bf16.msra.mxu0 %v7307
        %8012 = vmatpush.bf16.msra.mxu0 %v7296
        %8013 = vmatpush.bf16.msra.mxu0 %v7285
        %8014 = vmatpush.bf16.msra.mxu0 %v7274
        %8015 = vmatpush.bf16.msra.mxu0 %v7263
        %8016 = vmatpush.bf16.msra.mxu0 %v7252
        %8017 = vmatmul.bf16.gmra.mxu0 %v6335
        %v8018 = vpop.f32.mrf.mxu0
        %v8019 = vadd.f32 %v8006, %v8018
        %v8020 = vpop.f32.mrf.mxu0
        %8021 = vdwg.mxu0
        %8022 = vmatpush.bf16.msra.mxu0 %v7417
        %8023 = vmatpush.bf16.msra.mxu0 %v7406
        %8024 = vmatpush.bf16.msra.mxu0 %v7395
        %8025 = vmatpush.bf16.msra.mxu0 %v7384
        %8026 = vmatpush.bf16.msra.mxu0 %v7373
        %8027 = vmatpush.bf16.msra.mxu0 %v7362
        %8028 = vmatpush.bf16.msra.mxu0 %v7351
        %8029 = vmatpush.bf16.msra.mxu0 %v7340
        %8030 = vmatmul.bf16.gmra.mxu0 %v6336
        %v8031 = vpop.f32.mrf.mxu0
        %v8032 = vadd.f32 %v8019, %v8031
        %v8033 = vpop.f32.mrf.mxu0
        %8034 = vdwg.mxu0
        %8035 = vmatpush.bf16.msra.mxu0 %v7242
        %8036 = vmatpush.bf16.msra.mxu0 %v7231
        %8037 = vmatpush.bf16.msra.mxu0 %v7220
        %8038 = vmatpush.bf16.msra.mxu0 %v7209
        %8039 = vmatpush.bf16.msra.mxu0 %v7198
        %8040 = vmatpush.bf16.msra.mxu0 %v7187
        %8041 = vmatpush.bf16.msra.mxu0 %v7176
        %8042 = vmatpush.bf16.msra.mxu0 %v7165
        %8043 = vmatmul.bf16.gmra.mxu0 %v6334
        %v8044 = vpop.f32.mrf.mxu0
        %v8045 = vadd.f32 0.0, %v8044
        %v8046 = vpop.f32.mrf.mxu0
        %8047 = vdwg.mxu0
        %8048 = vmatpush.bf16.msra.mxu0 %v7330
        %8049 = vmatpush.bf16.msra.mxu0 %v7319
        %8050 = vmatpush.bf16.msra.mxu0 %v7308
        %8051 = vmatpush.bf16.msra.mxu0 %v7297
        %8052 = vmatpush.bf16.msra.mxu0 %v7286
        %8053 = vmatpush.bf16.msra.mxu0 %v7275
        %8054 = vmatpush.bf16.msra.mxu0 %v7264
        %8055 = vmatpush.bf16.msra.mxu0 %v7253
        %8056 = vmatmul.bf16.gmra.mxu0 %v6335
        %v8057 = vpop.f32.mrf.mxu0
        %v8058 = vadd.f32 %v8045, %v8057
        %v8059 = vpop.f32.mrf.mxu0
        %8060 = vdwg.mxu0
        %8061 = vmatpush.bf16.msra.mxu0 %v7418
        %8062 = vmatpush.bf16.msra.mxu0 %v7407
        %8063 = vmatpush.bf16.msra.mxu0 %v7396
        %8064 = vmatpush.bf16.msra.mxu0 %v7385
        %8065 = vmatpush.bf16.msra.mxu0 %v7374
        %8066 = vmatpush.bf16.msra.mxu0 %v7363
        %8067 = vmatpush.bf16.msra.mxu0 %v7352
        %8068 = vmatpush.bf16.msra.mxu0 %v7341
        %8069 = vmatmul.bf16.gmra.mxu0 %v6336
        %v8070 = vpop.f32.mrf.mxu0
        %v8071 = vadd.f32 %v8058, %v8070
        %v8072 = vpop.f32.mrf.mxu0
        %8073 = vdwg.mxu0
        %8074 = vmatpush.bf16.msra.mxu0 %v7243
        %8075 = vmatpush.bf16.msra.mxu0 %v7232
        %8076 = vmatpush.bf16.msra.mxu0 %v7221
        %8077 = vmatpush.bf16.msra.mxu0 %v7210
        %8078 = vmatpush.bf16.msra.mxu0 %v7199
        %8079 = vmatpush.bf16.msra.mxu0 %v7188
        %8080 = vmatpush.bf16.msra.mxu0 %v7177
        %8081 = vmatpush.bf16.msra.mxu0 %v7166
        %8082 = vmatmul.bf16.gmra.mxu0 %v6334
        %v8083 = vpop.f32.mrf.mxu0
        %v8084 = vadd.f32 0.0, %v8083
        %v8085 = vpop.f32.mrf.mxu0
        %8086 = vdwg.mxu0
        %8087 = vmatpush.bf16.msra.mxu0 %v7331
        %8088 = vmatpush.bf16.msra.mxu0 %v7320
        %8089 = vmatpush.bf16.msra.mxu0 %v7309
        %8090 = vmatpush.bf16.msra.mxu0 %v7298
        %8091 = vmatpush.bf16.msra.mxu0 %v7287
        %8092 = vmatpush.bf16.msra.mxu0 %v7276
        %8093 = vmatpush.bf16.msra.mxu0 %v7265
        %8094 = vmatpush.bf16.msra.mxu0 %v7254
        %8095 = vmatmul.bf16.gmra.mxu0 %v6335
        %v8096 = vpop.f32.mrf.mxu0
        %v8097 = vadd.f32 %v8084, %v8096
        %v8098 = vpop.f32.mrf.mxu0
        %8099 = vdwg.mxu0
        %8100 = vmatpush.bf16.msra.mxu0 %v7419
        %8101 = vmatpush.bf16.msra.mxu0 %v7408
        %8102 = vmatpush.bf16.msra.mxu0 %v7397
        %8103 = vmatpush.bf16.msra.mxu0 %v7386
        %8104 = vmatpush.bf16.msra.mxu0 %v7375
        %8105 = vmatpush.bf16.msra.mxu0 %v7364
        %8106 = vmatpush.bf16.msra.mxu0 %v7353
        %8107 = vmatpush.bf16.msra.mxu0 %v7342
        %8108 = vmatmul.bf16.gmra.mxu0 %v6336
        %v8109 = vpop.f32.mrf.mxu0
        %v8110 = vadd.f32 %v8097, %v8109
        %v8111 = vpop.f32.mrf.mxu0
        %8112 = vdwg.mxu0
        %v8113 = vadd.f32 %v5647, %v7720
        %v8114 = vadd.f32 %v5686, %v7759
        %v8115 = vadd.f32 %v5725, %v7798
        %v8116 = vadd.f32 %v5764, %v7837
        %v8117 = vadd.f32 %v5803, %v7876
        %v8118 = vadd.f32 %v5842, %v7915
        %v8119 = vadd.f32 %v5881, %v7954
        %v8120 = vadd.f32 %v5920, %v7993
        %v8121 = vadd.f32 %v5959, %v8032
        %v8122 = vadd.f32 %v5998, %v8071
        %v8123 = vadd.f32 %v6037, %v8110
        %s8124 = scalar_lea.vmem [#allocation6], 6336
        %v8125 = vld [vmem:[%s8124] sm:$0xff]
        %v8126 = vld [vmem:[%s8124 + $0x8] sm:$0xff]
        %v8127 = vld [vmem:[%s8124 + $0x10] sm:$0xff]
        %v8128 = vld [vmem:[%s8124 + $0x18] sm:$0xff]
        %v8129 = vld [vmem:[%s8124 + $0x20] sm:$0xff]
        %v8130 = vld [vmem:[%s8124 + $0x28] sm:$0xf]
        %v8131 = vld [vmem:[%s8124 + $0x2c] sm:$0xff]
        %v8132 = vld [vmem:[%s8124 + $0x34] sm:$0xff]
        %v8133 = vld [vmem:[%s8124 + $0x3c] sm:$0xff]
        %v8134 = vld [vmem:[%s8124 + $0x44] sm:$0xff]
        %v8135 = vld [vmem:[%s8124 + $0x4c] sm:$0xff]
        %v8136 = vld [vmem:[%s8124 + $0x54] sm:$0xf]
        %v8137 = vld [vmem:[%s8124 + $0x58] sm:$0xff]
        %v8138 = vld [vmem:[%s8124 + $0x60] sm:$0xff]
        %v8139 = vld [vmem:[%s8124 + $0x68] sm:$0xff]
        %v8140 = vld [vmem:[%s8124 + $0x70] sm:$0xff]
        %v8141 = vld [vmem:[%s8124 + $0x78] sm:$0xff]
        %v8142 = vld [vmem:[%s8124 + $0x80] sm:$0xf]
        %v8143 = vld [vmem:[%s8124 + $0x84] sm:$0xff]
        %v8144 = vld [vmem:[%s8124 + $0x8c] sm:$0xff]
        %v8145 = vld [vmem:[%s8124 + $0x94] sm:$0xff]
        %v8146 = vld [vmem:[%s8124 + $0x9c] sm:$0xff]
        %v8147 = vld [vmem:[%s8124 + $0xa4] sm:$0xff]
        %v8148 = vld [vmem:[%s8124 + $0xac] sm:$0xf]
        %v8149 = vld [vmem:[%s8124 + $0xb0] sm:$0xff]
        %v8150 = vld [vmem:[%s8124 + $0xb8] sm:$0xff]
        %v8151 = vld [vmem:[%s8124 + $0xc0] sm:$0xff]
        %v8152 = vld [vmem:[%s8124 + $0xc8] sm:$0xff]
        %v8153 = vld [vmem:[%s8124 + $0xd0] sm:$0xff]
        %v8154 = vld [vmem:[%s8124 + $0xd8] sm:$0xf]
        %v8155 = vld [vmem:[%s8124 + $0xdc] sm:$0xff]
        %v8156 = vld [vmem:[%s8124 + $0xe4] sm:$0xff]
        %v8157 = vld [vmem:[%s8124 + $0xec] sm:$0xff]
        %v8158 = vld [vmem:[%s8124 + $0xf4] sm:$0xff]
        %v8159 = vld [vmem:[%s8124 + $0xfc] sm:$0xff]
        %v8160 = vld [vmem:[%s8124 + $0x104] sm:$0xf]
        %v8161 = vld [vmem:[%s8124 + $0x108] sm:$0xff]
        %v8162 = vld [vmem:[%s8124 + $0x110] sm:$0xff]
        %v8163 = vld [vmem:[%s8124 + $0x118] sm:$0xff]
        %v8164 = vld [vmem:[%s8124 + $0x120] sm:$0xff]
        %v8165 = vld [vmem:[%s8124 + $0x128] sm:$0xff]
        %v8166 = vld [vmem:[%s8124 + $0x130] sm:$0xf]
        %v8167 = vld [vmem:[%s8124 + $0x134] sm:$0xff]
        %v8168 = vld [vmem:[%s8124 + $0x13c] sm:$0xff]
        %v8169 = vld [vmem:[%s8124 + $0x144] sm:$0xff]
        %v8170 = vld [vmem:[%s8124 + $0x14c] sm:$0xff]
        %v8171 = vld [vmem:[%s8124 + $0x154] sm:$0xff]
        %v8172 = vld [vmem:[%s8124 + $0x15c] sm:$0xf]
        %v8173 = vld [vmem:[%s8124 + $0x160] sm:$0xff]
        %v8174 = vld [vmem:[%s8124 + $0x168] sm:$0xff]
        %v8175 = vld [vmem:[%s8124 + $0x170] sm:$0xff]
        %v8176 = vld [vmem:[%s8124 + $0x178] sm:$0xff]
        %v8177 = vld [vmem:[%s8124 + $0x180] sm:$0xff]
        %v8178 = vld [vmem:[%s8124 + $0x188] sm:$0xf]
        %v8179 = vld [vmem:[%s8124 + $0x18c] sm:$0xff]
        %v8180 = vld [vmem:[%s8124 + $0x194] sm:$0xff]
        %v8181 = vld [vmem:[%s8124 + $0x19c] sm:$0xff]
        %v8182 = vld [vmem:[%s8124 + $0x1a4] sm:$0xff]
        %v8183 = vld [vmem:[%s8124 + $0x1ac] sm:$0xff]
        %v8184 = vld [vmem:[%s8124 + $0x1b4] sm:$0xf]
        %v8185 = vld [vmem:[%s8124 + $0x1b8] sm:$0xff]
        %v8186 = vld [vmem:[%s8124 + $0x1c0] sm:$0xff]
        %v8187 = vld [vmem:[%s8124 + $0x1c8] sm:$0xff]
        %v8188 = vld [vmem:[%s8124 + $0x1d0] sm:$0xff]
        %v8189 = vld [vmem:[%s8124 + $0x1d8] sm:$0xff]
        %v8190 = vld [vmem:[%s8124 + $0x1e0] sm:$0xf]
        %v8191 = vld [vmem:[%s8124 + $0x1e4] sm:$0xff]
        %v8192 = vld [vmem:[%s8124 + $0x1ec] sm:$0xff]
        %v8193 = vld [vmem:[%s8124 + $0x1f4] sm:$0xff]
        %v8194 = vld [vmem:[%s8124 + $0x1fc] sm:$0xff]
        %v8195 = vld [vmem:[%s8124 + $0x204] sm:$0xff]
        %v8196 = vld [vmem:[%s8124 + $0x20c] sm:$0xf]
        %v8197 = vld [vmem:[%s8124 + $0x210] sm:$0xff]
        %v8198 = vld [vmem:[%s8124 + $0x218] sm:$0xff]
        %v8199 = vld [vmem:[%s8124 + $0x220] sm:$0xff]
        %v8200 = vld [vmem:[%s8124 + $0x228] sm:$0xff]
        %v8201 = vld [vmem:[%s8124 + $0x230] sm:$0xff]
        %v8202 = vld [vmem:[%s8124 + $0x238] sm:$0xf]
        %v8203 = vld [vmem:[%s8124 + $0x23c] sm:$0xff]
        %v8204 = vld [vmem:[%s8124 + $0x244] sm:$0xff]
        %v8205 = vld [vmem:[%s8124 + $0x24c] sm:$0xff]
        %v8206 = vld [vmem:[%s8124 + $0x254] sm:$0xff]
        %v8207 = vld [vmem:[%s8124 + $0x25c] sm:$0xff]
        %v8208 = vld [vmem:[%s8124 + $0x264] sm:$0xf]
        %v8209 = vld [vmem:[%s8124 + $0x268] sm:$0xff]
        %v8210 = vld [vmem:[%s8124 + $0x270] sm:$0xff]
        %v8211 = vld [vmem:[%s8124 + $0x278] sm:$0xff]
        %v8212 = vld [vmem:[%s8124 + $0x280] sm:$0xff]
        %v8213 = vld [vmem:[%s8124 + $0x288] sm:$0xff]
        %v8214 = vld [vmem:[%s8124 + $0x290] sm:$0xf]
        %v8215 = vld [vmem:[%s8124 + $0x294] sm:$0xff]
        %v8216 = vld [vmem:[%s8124 + $0x29c] sm:$0xff]
        %v8217 = vld [vmem:[%s8124 + $0x2a4] sm:$0xff]
        %v8218 = vld [vmem:[%s8124 + $0x2ac] sm:$0xff]
        %v8219 = vld [vmem:[%s8124 + $0x2b4] sm:$0xff]
        %v8220 = vld [vmem:[%s8124 + $0x2bc] sm:$0xf]
        %v8221 = vld [vmem:[%s8124 + $0x2c0] sm:$0xff]
        %v8222 = vld [vmem:[%s8124 + $0x2c8] sm:$0xff]
        %v8223 = vld [vmem:[%s8124 + $0x2d0] sm:$0xff]
        %v8224 = vld [vmem:[%s8124 + $0x2d8] sm:$0xff]
        %v8225 = vld [vmem:[%s8124 + $0x2e0] sm:$0xff]
        %v8226 = vld [vmem:[%s8124 + $0x2e8] sm:$0xf]
        %v8227 = vld [vmem:[%s8124 + $0x2ec] sm:$0xff]
        %v8228 = vld [vmem:[%s8124 + $0x2f4] sm:$0xff]
        %v8229 = vld [vmem:[%s8124 + $0x2fc] sm:$0xff]
        %v8230 = vld [vmem:[%s8124 + $0x304] sm:$0xff]
        %v8231 = vld [vmem:[%s8124 + $0x30c] sm:$0xff]
        %v8232 = vld [vmem:[%s8124 + $0x314] sm:$0xf]
        %v8233 = vld [vmem:[%s8124 + $0x318] sm:$0xff]
        %v8234 = vld [vmem:[%s8124 + $0x320] sm:$0xff]
        %v8235 = vld [vmem:[%s8124 + $0x328] sm:$0xff]
        %v8236 = vld [vmem:[%s8124 + $0x330] sm:$0xff]
        %v8237 = vld [vmem:[%s8124 + $0x338] sm:$0xff]
        %v8238 = vld [vmem:[%s8124 + $0x340] sm:$0xf]
        %v8239 = vld [vmem:[%s8124 + $0x344] sm:$0xff]
        %v8240 = vld [vmem:[%s8124 + $0x34c] sm:$0xff]
        %v8241 = vld [vmem:[%s8124 + $0x354] sm:$0xff]
        %v8242 = vld [vmem:[%s8124 + $0x35c] sm:$0xff]
        %v8243 = vld [vmem:[%s8124 + $0x364] sm:$0xff]
        %v8244 = vld [vmem:[%s8124 + $0x36c] sm:$0xf]
        %v8245 = vld [vmem:[%s8124 + $0x370] sm:$0xff]
        %v8246 = vld [vmem:[%s8124 + $0x378] sm:$0xff]
        %v8247 = vld [vmem:[%s8124 + $0x380] sm:$0xff]
        %v8248 = vld [vmem:[%s8124 + $0x388] sm:$0xff]
        %v8249 = vld [vmem:[%s8124 + $0x390] sm:$0xff]
        %v8250 = vld [vmem:[%s8124 + $0x398] sm:$0xf]
        %v8251 = vld [vmem:[%s8124 + $0x39c] sm:$0xff]
        %v8252 = vld [vmem:[%s8124 + $0x3a4] sm:$0xff]
        %v8253 = vld [vmem:[%s8124 + $0x3ac] sm:$0xff]
        %v8254 = vld [vmem:[%s8124 + $0x3b4] sm:$0xff]
        %v8255 = vld [vmem:[%s8124 + $0x3bc] sm:$0xff]
        %v8256 = vld [vmem:[%s8124 + $0x3c4] sm:$0xf]
        %v8257 = vld [vmem:[%s8124 + $0x3c8] sm:$0xff]
        %v8258 = vld [vmem:[%s8124 + $0x3d0] sm:$0xff]
        %v8259 = vld [vmem:[%s8124 + $0x3d8] sm:$0xff]
        %v8260 = vld [vmem:[%s8124 + $0x3e0] sm:$0xff]
        %v8261 = vld [vmem:[%s8124 + $0x3e8] sm:$0xff]
        %v8262 = vld [vmem:[%s8124 + $0x3f0] sm:$0xf]
        %v8263 = vld [vmem:[%s8124 + $0x3f4] sm:$0xff]
        %v8264 = vld [vmem:[%s8124 + $0x3fc] sm:$0xff]
        %v8265 = vld [vmem:[%s8124 + $0x404] sm:$0xff]
        %v8266 = vld [vmem:[%s8124 + $0x40c] sm:$0xff]
        %v8267 = vld [vmem:[%s8124 + $0x414] sm:$0xff]
        %v8268 = vld [vmem:[%s8124 + $0x41c] sm:$0xf]
        %v8269 = vld [vmem:[%s8124 + $0x420] sm:$0xff]
        %v8270 = vld [vmem:[%s8124 + $0x428] sm:$0xff]
        %v8271 = vld [vmem:[%s8124 + $0x430] sm:$0xff]
        %v8272 = vld [vmem:[%s8124 + $0x438] sm:$0xff]
        %v8273 = vld [vmem:[%s8124 + $0x440] sm:$0xff]
        %v8274 = vld [vmem:[%s8124 + $0x448] sm:$0xf]
        %v8275 = vld [vmem:[%s8124 + $0x44c] sm:$0xff]
        %v8276 = vld [vmem:[%s8124 + $0x454] sm:$0xff]
        %v8277 = vld [vmem:[%s8124 + $0x45c] sm:$0xff]
        %v8278 = vld [vmem:[%s8124 + $0x464] sm:$0xff]
        %v8279 = vld [vmem:[%s8124 + $0x46c] sm:$0xff]
        %v8280 = vld [vmem:[%s8124 + $0x474] sm:$0xf]
        %v8281 = vld [vmem:[%s8124 + $0x478] sm:$0xff]
        %v8282 = vld [vmem:[%s8124 + $0x480] sm:$0xff]
        %v8283 = vld [vmem:[%s8124 + $0x488] sm:$0xff]
        %v8284 = vld [vmem:[%s8124 + $0x490] sm:$0xff]
        %v8285 = vld [vmem:[%s8124 + $0x498] sm:$0xff]
        %v8286 = vld [vmem:[%s8124 + $0x4a0] sm:$0xf]
        %v8287 = vld [vmem:[%s8124 + $0x4a4] sm:$0xff]
        %v8288 = vld [vmem:[%s8124 + $0x4ac] sm:$0xff]
        %v8289 = vld [vmem:[%s8124 + $0x4b4] sm:$0xff]
        %v8290 = vld [vmem:[%s8124 + $0x4bc] sm:$0xff]
        %v8291 = vld [vmem:[%s8124 + $0x4c4] sm:$0xff]
        %v8292 = vld [vmem:[%s8124 + $0x4cc] sm:$0xf]
        %v8293 = vld [vmem:[%s8124 + $0x4d0] sm:$0xff]
        %v8294 = vld [vmem:[%s8124 + $0x4d8] sm:$0xff]
        %v8295 = vld [vmem:[%s8124 + $0x4e0] sm:$0xff]
        %v8296 = vld [vmem:[%s8124 + $0x4e8] sm:$0xff]
        %v8297 = vld [vmem:[%s8124 + $0x4f0] sm:$0xff]
        %v8298 = vld [vmem:[%s8124 + $0x4f8] sm:$0xf]
        %v8299 = vld [vmem:[%s8124 + $0x4fc] sm:$0xff]
        %v8300 = vld [vmem:[%s8124 + $0x504] sm:$0xff]
        %v8301 = vld [vmem:[%s8124 + $0x50c] sm:$0xff]
        %v8302 = vld [vmem:[%s8124 + $0x514] sm:$0xff]
        %v8303 = vld [vmem:[%s8124 + $0x51c] sm:$0xff]
        %v8304 = vld [vmem:[%s8124 + $0x524] sm:$0xf]
        %v8305 = vld [vmem:[%s8124 + $0x528] sm:$0xff]
        %v8306 = vld [vmem:[%s8124 + $0x530] sm:$0xff]
        %v8307 = vld [vmem:[%s8124 + $0x538] sm:$0xff]
        %v8308 = vld [vmem:[%s8124 + $0x540] sm:$0xff]
        %v8309 = vld [vmem:[%s8124 + $0x548] sm:$0xff]
        %v8310 = vld [vmem:[%s8124 + $0x550] sm:$0xf]
        %v8311 = vld [vmem:[%s8124 + $0x554] sm:$0xff]
        %v8312 = vld [vmem:[%s8124 + $0x55c] sm:$0xff]
        %v8313 = vld [vmem:[%s8124 + $0x564] sm:$0xff]
        %v8314 = vld [vmem:[%s8124 + $0x56c] sm:$0xff]
        %v8315 = vld [vmem:[%s8124 + $0x574] sm:$0xff]
        %v8316 = vld [vmem:[%s8124 + $0x57c] sm:$0xf]
        %v8317 = vld [vmem:[%s8124 + $0x580] sm:$0xff]
        %v8318 = vld [vmem:[%s8124 + $0x588] sm:$0xff]
        %v8319 = vld [vmem:[%s8124 + $0x590] sm:$0xff]
        %v8320 = vld [vmem:[%s8124 + $0x598] sm:$0xff]
        %v8321 = vld [vmem:[%s8124 + $0x5a0] sm:$0xff]
        %v8322 = vld [vmem:[%s8124 + $0x5a8] sm:$0xf]
        %v8323 = vld [vmem:[%s8124 + $0x5ac] sm:$0xff]
        %v8324 = vld [vmem:[%s8124 + $0x5b4] sm:$0xff]
        %v8325 = vld [vmem:[%s8124 + $0x5bc] sm:$0xff]
        %v8326 = vld [vmem:[%s8124 + $0x5c4] sm:$0xff]
        %v8327 = vld [vmem:[%s8124 + $0x5cc] sm:$0xff]
        %v8328 = vld [vmem:[%s8124 + $0x5d4] sm:$0xf]
        %v8329 = vld [vmem:[%s8124 + $0x5d8] sm:$0xff]
        %v8330 = vld [vmem:[%s8124 + $0x5e0] sm:$0xff]
        %v8331 = vld [vmem:[%s8124 + $0x5e8] sm:$0xff]
        %v8332 = vld [vmem:[%s8124 + $0x5f0] sm:$0xff]
        %v8333 = vld [vmem:[%s8124 + $0x5f8] sm:$0xff]
        %v8334 = vld [vmem:[%s8124 + $0x600] sm:$0xf]
        %v8335 = vld [vmem:[%s8124 + $0x604] sm:$0xff]
        %v8336 = vld [vmem:[%s8124 + $0x60c] sm:$0xff]
        %v8337 = vld [vmem:[%s8124 + $0x614] sm:$0xff]
        %v8338 = vld [vmem:[%s8124 + $0x61c] sm:$0xff]
        %v8339 = vld [vmem:[%s8124 + $0x624] sm:$0xff]
        %v8340 = vld [vmem:[%s8124 + $0x62c] sm:$0xf]
        %v8341 = vld [vmem:[%s8124 + $0x630] sm:$0xff]
        %v8342 = vld [vmem:[%s8124 + $0x638] sm:$0xff]
        %v8343 = vld [vmem:[%s8124 + $0x640] sm:$0xff]
        %v8344 = vld [vmem:[%s8124 + $0x648] sm:$0xff]
        %v8345 = vld [vmem:[%s8124 + $0x650] sm:$0xff]
        %v8346 = vld [vmem:[%s8124 + $0x658] sm:$0xf]
        %v8347 = vld [vmem:[%s8124 + $0x65c] sm:$0xff]
        %v8348 = vld [vmem:[%s8124 + $0x664] sm:$0xff]
        %v8349 = vld [vmem:[%s8124 + $0x66c] sm:$0xff]
        %v8350 = vld [vmem:[%s8124 + $0x674] sm:$0xff]
        %v8351 = vld [vmem:[%s8124 + $0x67c] sm:$0xff]
        %v8352 = vld [vmem:[%s8124 + $0x684] sm:$0xf]
        %v8353 = vld [vmem:[%s8124 + $0x688] sm:$0xff]
        %v8354 = vld [vmem:[%s8124 + $0x690] sm:$0xff]
        %v8355 = vld [vmem:[%s8124 + $0x698] sm:$0xff]
        %v8356 = vld [vmem:[%s8124 + $0x6a0] sm:$0xff]
        %v8357 = vld [vmem:[%s8124 + $0x6a8] sm:$0xff]
        %v8358 = vld [vmem:[%s8124 + $0x6b0] sm:$0xf]
        %v8359 = vld [vmem:[%s8124 + $0x6b4] sm:$0xff]
        %v8360 = vld [vmem:[%s8124 + $0x6bc] sm:$0xff]
        %v8361 = vld [vmem:[%s8124 + $0x6c4] sm:$0xff]
        %v8362 = vld [vmem:[%s8124 + $0x6cc] sm:$0xff]
        %v8363 = vld [vmem:[%s8124 + $0x6d4] sm:$0xff]
        %v8364 = vld [vmem:[%s8124 + $0x6dc] sm:$0xf]
        %v8365 = vld [vmem:[%s8124 + $0x6e0] sm:$0xff]
        %v8366 = vld [vmem:[%s8124 + $0x6e8] sm:$0xff]
        %v8367 = vld [vmem:[%s8124 + $0x6f0] sm:$0xff]
        %v8368 = vld [vmem:[%s8124 + $0x6f8] sm:$0xff]
        %v8369 = vld [vmem:[%s8124 + $0x700] sm:$0xff]
        %v8370 = vld [vmem:[%s8124 + $0x708] sm:$0xf]
        %v8371 = vld [vmem:[%s8124 + $0x70c] sm:$0xff]
        %v8372 = vld [vmem:[%s8124 + $0x714] sm:$0xff]
        %v8373 = vld [vmem:[%s8124 + $0x71c] sm:$0xff]
        %v8374 = vld [vmem:[%s8124 + $0x724] sm:$0xff]
        %v8375 = vld [vmem:[%s8124 + $0x72c] sm:$0xff]
        %v8376 = vld [vmem:[%s8124 + $0x734] sm:$0xf]
        %v8377 = vld [vmem:[%s8124 + $0x738] sm:$0xff]
        %v8378 = vld [vmem:[%s8124 + $0x740] sm:$0xff]
        %v8379 = vld [vmem:[%s8124 + $0x748] sm:$0xff]
        %v8380 = vld [vmem:[%s8124 + $0x750] sm:$0xff]
        %v8381 = vld [vmem:[%s8124 + $0x758] sm:$0xff]
        %v8382 = vld [vmem:[%s8124 + $0x760] sm:$0xf]
        %v8383 = vld [vmem:[%s8124 + $0x764] sm:$0xff]
        %v8384 = vld [vmem:[%s8124 + $0x76c] sm:$0xff]
        %v8385 = vld [vmem:[%s8124 + $0x774] sm:$0xff]
        %v8386 = vld [vmem:[%s8124 + $0x77c] sm:$0xff]
        %v8387 = vld [vmem:[%s8124 + $0x784] sm:$0xff]
        %v8388 = vld [vmem:[%s8124 + $0x78c] sm:$0xf]
        %v8389 = vld [vmem:[%s8124 + $0x790] sm:$0xff]
        %v8390 = vld [vmem:[%s8124 + $0x798] sm:$0xff]
        %v8391 = vld [vmem:[%s8124 + $0x7a0] sm:$0xff]
        %v8392 = vld [vmem:[%s8124 + $0x7a8] sm:$0xff]
        %v8393 = vld [vmem:[%s8124 + $0x7b0] sm:$0xff]
        %v8394 = vld [vmem:[%s8124 + $0x7b8] sm:$0xf]
        %v8395 = vld [vmem:[%s8124 + $0x7bc] sm:$0xff]
        %v8396 = vld [vmem:[%s8124 + $0x7c4] sm:$0xff]
        %v8397 = vld [vmem:[%s8124 + $0x7cc] sm:$0xff]
        %v8398 = vld [vmem:[%s8124 + $0x7d4] sm:$0xff]
        %v8399 = vld [vmem:[%s8124 + $0x7dc] sm:$0xff]
        %v8400 = vld [vmem:[%s8124 + $0x7e4] sm:$0xf]
        %v8401 = vld [vmem:[%s8124 + $0x7e8] sm:$0xff]
        %v8402 = vld [vmem:[%s8124 + $0x7f0] sm:$0xff]
        %v8403 = vld [vmem:[%s8124 + $0x7f8] sm:$0xff]
        %v8404 = vld [vmem:[%s8124 + $0x800] sm:$0xff]
        %v8405 = vld [vmem:[%s8124 + $0x808] sm:$0xff]
        %v8406 = vld [vmem:[%s8124 + $0x810] sm:$0xf]
        %v8407 = vld [vmem:[%s8124 + $0x814] sm:$0xff]
        %v8408 = vld [vmem:[%s8124 + $0x81c] sm:$0xff]
        %v8409 = vld [vmem:[%s8124 + $0x824] sm:$0xff]
        %v8410 = vld [vmem:[%s8124 + $0x82c] sm:$0xff]
        %v8411 = vld [vmem:[%s8124 + $0x834] sm:$0xff]
        %v8412 = vld [vmem:[%s8124 + $0x83c] sm:$0xf]
        %v8415 = vunpack.c.l.b16 %v1893
        %v8416 = vunpack.c.h.b16 %v1893
        %v8417 = vunpack.c.l.b16 %v1894
        %v8418 = vpack.c.b16 %v8415, %v8415
        %v8419 = vpack.c.b16 %v8416, %v8416
        %v8420 = vpack.c.b16 %v8417, %v8417
        %v8712 = vunpack.c.l.b16 %v8125
        %v8713 = vunpack.c.h.b16 %v8125
        %v8714 = vunpack.c.l.b16 %v8126
        %v8715 = vunpack.c.h.b16 %v8126
        %v8716 = vunpack.c.l.b16 %v8127
        %v8717 = vunpack.c.h.b16 %v8127
        %v8718 = vunpack.c.l.b16 %v8128
        %v8719 = vunpack.c.h.b16 %v8128
        %v8720 = vunpack.c.l.b16 %v8129
        %v8721 = vunpack.c.h.b16 %v8129
        %v8722 = vunpack.c.l.b16 %v8130
        %v8723 = vunpack.c.l.b16 %v8131
        %v8724 = vunpack.c.h.b16 %v8131
        %v8725 = vunpack.c.l.b16 %v8132
        %v8726 = vunpack.c.h.b16 %v8132
        %v8727 = vunpack.c.l.b16 %v8133
        %v8728 = vunpack.c.h.b16 %v8133
        %v8729 = vunpack.c.l.b16 %v8134
        %v8730 = vunpack.c.h.b16 %v8134
        %v8731 = vunpack.c.l.b16 %v8135
        %v8732 = vunpack.c.h.b16 %v8135
        %v8733 = vunpack.c.l.b16 %v8136
        %v8734 = vunpack.c.l.b16 %v8137
        %v8735 = vunpack.c.h.b16 %v8137
        %v8736 = vunpack.c.l.b16 %v8138
        %v8737 = vunpack.c.h.b16 %v8138
        %v8738 = vunpack.c.l.b16 %v8139
        %v8739 = vunpack.c.h.b16 %v8139
        %v8740 = vunpack.c.l.b16 %v8140
        %v8741 = vunpack.c.h.b16 %v8140
        %v8742 = vunpack.c.l.b16 %v8141
        %v8743 = vunpack.c.h.b16 %v8141
        %v8744 = vunpack.c.l.b16 %v8142
        %v8745 = vunpack.c.l.b16 %v8143
        %v8746 = vunpack.c.h.b16 %v8143
        %v8747 = vunpack.c.l.b16 %v8144
        %v8748 = vunpack.c.h.b16 %v8144
        %v8749 = vunpack.c.l.b16 %v8145
        %v8750 = vunpack.c.h.b16 %v8145
        %v8751 = vunpack.c.l.b16 %v8146
        %v8752 = vunpack.c.h.b16 %v8146
        %v8753 = vunpack.c.l.b16 %v8147
        %v8754 = vunpack.c.h.b16 %v8147
        %v8755 = vunpack.c.l.b16 %v8148
        %v8756 = vunpack.c.l.b16 %v8149
        %v8757 = vunpack.c.h.b16 %v8149
        %v8758 = vunpack.c.l.b16 %v8150
        %v8759 = vunpack.c.h.b16 %v8150
        %v8760 = vunpack.c.l.b16 %v8151
        %v8761 = vunpack.c.h.b16 %v8151
        %v8762 = vunpack.c.l.b16 %v8152
        %v8763 = vunpack.c.h.b16 %v8152
        %v8764 = vunpack.c.l.b16 %v8153
        %v8765 = vunpack.c.h.b16 %v8153
        %v8766 = vunpack.c.l.b16 %v8154
        %v8767 = vunpack.c.l.b16 %v8155
        %v8768 = vunpack.c.h.b16 %v8155
        %v8769 = vunpack.c.l.b16 %v8156
        %v8770 = vunpack.c.h.b16 %v8156
        %v8771 = vunpack.c.l.b16 %v8157
        %v8772 = vunpack.c.h.b16 %v8157
        %v8773 = vunpack.c.l.b16 %v8158
        %v8774 = vunpack.c.h.b16 %v8158
        %v8775 = vunpack.c.l.b16 %v8159
        %v8776 = vunpack.c.h.b16 %v8159
        %v8777 = vunpack.c.l.b16 %v8160
        %v8778 = vunpack.c.l.b16 %v8161
        %v8779 = vunpack.c.h.b16 %v8161
        %v8780 = vunpack.c.l.b16 %v8162
        %v8781 = vunpack.c.h.b16 %v8162
        %v8782 = vunpack.c.l.b16 %v8163
        %v8783 = vunpack.c.h.b16 %v8163
        %v8784 = vunpack.c.l.b16 %v8164
        %v8785 = vunpack.c.h.b16 %v8164
        %v8786 = vunpack.c.l.b16 %v8165
        %v8787 = vunpack.c.h.b16 %v8165
        %v8788 = vunpack.c.l.b16 %v8166
        %v8789 = vunpack.c.l.b16 %v8167
        %v8790 = vunpack.c.h.b16 %v8167
        %v8791 = vunpack.c.l.b16 %v8168
        %v8792 = vunpack.c.h.b16 %v8168
        %v8793 = vunpack.c.l.b16 %v8169
        %v8794 = vunpack.c.h.b16 %v8169
        %v8795 = vunpack.c.l.b16 %v8170
        %v8796 = vunpack.c.h.b16 %v8170
        %v8797 = vunpack.c.l.b16 %v8171
        %v8798 = vunpack.c.h.b16 %v8171
        %v8799 = vunpack.c.l.b16 %v8172
        %v8800 = vunpack.c.l.b16 %v8173
        %v8801 = vunpack.c.h.b16 %v8173
        %v8802 = vunpack.c.l.b16 %v8174
        %v8803 = vunpack.c.h.b16 %v8174
        %v8804 = vunpack.c.l.b16 %v8175
        %v8805 = vunpack.c.h.b16 %v8175
        %v8806 = vunpack.c.l.b16 %v8176
        %v8807 = vunpack.c.h.b16 %v8176
        %v8808 = vunpack.c.l.b16 %v8177
        %v8809 = vunpack.c.h.b16 %v8177
        %v8810 = vunpack.c.l.b16 %v8178
        %v8811 = vunpack.c.l.b16 %v8179
        %v8812 = vunpack.c.h.b16 %v8179
        %v8813 = vunpack.c.l.b16 %v8180
        %v8814 = vunpack.c.h.b16 %v8180
        %v8815 = vunpack.c.l.b16 %v8181
        %v8816 = vunpack.c.h.b16 %v8181
        %v8817 = vunpack.c.l.b16 %v8182
        %v8818 = vunpack.c.h.b16 %v8182
        %v8819 = vunpack.c.l.b16 %v8183
        %v8820 = vunpack.c.h.b16 %v8183
        %v8821 = vunpack.c.l.b16 %v8184
        %v8822 = vunpack.c.l.b16 %v8185
        %v8823 = vunpack.c.h.b16 %v8185
        %v8824 = vunpack.c.l.b16 %v8186
        %v8825 = vunpack.c.h.b16 %v8186
        %v8826 = vunpack.c.l.b16 %v8187
        %v8827 = vunpack.c.h.b16 %v8187
        %v8828 = vunpack.c.l.b16 %v8188
        %v8829 = vunpack.c.h.b16 %v8188
        %v8830 = vunpack.c.l.b16 %v8189
        %v8831 = vunpack.c.h.b16 %v8189
        %v8832 = vunpack.c.l.b16 %v8190
        %v8833 = vunpack.c.l.b16 %v8191
        %v8834 = vunpack.c.h.b16 %v8191
        %v8835 = vunpack.c.l.b16 %v8192
        %v8836 = vunpack.c.h.b16 %v8192
        %v8837 = vunpack.c.l.b16 %v8193
        %v8838 = vunpack.c.h.b16 %v8193
        %v8839 = vunpack.c.l.b16 %v8194
        %v8840 = vunpack.c.h.b16 %v8194
        %v8841 = vunpack.c.l.b16 %v8195
        %v8842 = vunpack.c.h.b16 %v8195
        %v8843 = vunpack.c.l.b16 %v8196
        %v8844 = vunpack.c.l.b16 %v8197
        %v8845 = vunpack.c.h.b16 %v8197
        %v8846 = vunpack.c.l.b16 %v8198
        %v8847 = vunpack.c.h.b16 %v8198
        %v8848 = vunpack.c.l.b16 %v8199
        %v8849 = vunpack.c.h.b16 %v8199
        %v8850 = vunpack.c.l.b16 %v8200
        %v8851 = vunpack.c.h.b16 %v8200
        %v8852 = vunpack.c.l.b16 %v8201
        %v8853 = vunpack.c.h.b16 %v8201
        %v8854 = vunpack.c.l.b16 %v8202
        %v8855 = vunpack.c.l.b16 %v8203
        %v8856 = vunpack.c.h.b16 %v8203
        %v8857 = vunpack.c.l.b16 %v8204
        %v8858 = vunpack.c.h.b16 %v8204
        %v8859 = vunpack.c.l.b16 %v8205
        %v8860 = vunpack.c.h.b16 %v8205
        %v8861 = vunpack.c.l.b16 %v8206
        %v8862 = vunpack.c.h.b16 %v8206
        %v8863 = vunpack.c.l.b16 %v8207
        %v8864 = vunpack.c.h.b16 %v8207
        %v8865 = vunpack.c.l.b16 %v8208
        %v8866 = vunpack.c.l.b16 %v8209
        %v8867 = vunpack.c.h.b16 %v8209
        %v8868 = vunpack.c.l.b16 %v8210
        %v8869 = vunpack.c.h.b16 %v8210
        %v8870 = vunpack.c.l.b16 %v8211
        %v8871 = vunpack.c.h.b16 %v8211
        %v8872 = vunpack.c.l.b16 %v8212
        %v8873 = vunpack.c.h.b16 %v8212
        %v8874 = vunpack.c.l.b16 %v8213
        %v8875 = vunpack.c.h.b16 %v8213
        %v8876 = vunpack.c.l.b16 %v8214
        %v8877 = vunpack.c.l.b16 %v8215
        %v8878 = vunpack.c.h.b16 %v8215
        %v8879 = vunpack.c.l.b16 %v8216
        %v8880 = vunpack.c.h.b16 %v8216
        %v8881 = vunpack.c.l.b16 %v8217
        %v8882 = vunpack.c.h.b16 %v8217
        %v8883 = vunpack.c.l.b16 %v8218
        %v8884 = vunpack.c.h.b16 %v8218
        %v8885 = vunpack.c.l.b16 %v8219
        %v8886 = vunpack.c.h.b16 %v8219
        %v8887 = vunpack.c.l.b16 %v8220
        %v8888 = vunpack.c.l.b16 %v8221
        %v8889 = vunpack.c.h.b16 %v8221
        %v8890 = vunpack.c.l.b16 %v8222
        %v8891 = vunpack.c.h.b16 %v8222
        %v8892 = vunpack.c.l.b16 %v8223
        %v8893 = vunpack.c.h.b16 %v8223
        %v8894 = vunpack.c.l.b16 %v8224
        %v8895 = vunpack.c.h.b16 %v8224
        %v8896 = vunpack.c.l.b16 %v8225
        %v8897 = vunpack.c.h.b16 %v8225
        %v8898 = vunpack.c.l.b16 %v8226
        %v8899 = vunpack.c.l.b16 %v8227
        %v8900 = vunpack.c.h.b16 %v8227
        %v8901 = vunpack.c.l.b16 %v8228
        %v8902 = vunpack.c.h.b16 %v8228
        %v8903 = vunpack.c.l.b16 %v8229
        %v8904 = vunpack.c.h.b16 %v8229
        %v8905 = vunpack.c.l.b16 %v8230
        %v8906 = vunpack.c.h.b16 %v8230
        %v8907 = vunpack.c.l.b16 %v8231
        %v8908 = vunpack.c.h.b16 %v8231
        %v8909 = vunpack.c.l.b16 %v8232
        %v8910 = vunpack.c.l.b16 %v8233
        %v8911 = vunpack.c.h.b16 %v8233
        %v8912 = vunpack.c.l.b16 %v8234
        %v8913 = vunpack.c.h.b16 %v8234
        %v8914 = vunpack.c.l.b16 %v8235
        %v8915 = vunpack.c.h.b16 %v8235
        %v8916 = vunpack.c.l.b16 %v8236
        %v8917 = vunpack.c.h.b16 %v8236
        %v8918 = vunpack.c.l.b16 %v8237
        %v8919 = vunpack.c.h.b16 %v8237
        %v8920 = vunpack.c.l.b16 %v8238
        %v8921 = vunpack.c.l.b16 %v8239
        %v8922 = vunpack.c.h.b16 %v8239
        %v8923 = vunpack.c.l.b16 %v8240
        %v8924 = vunpack.c.h.b16 %v8240
        %v8925 = vunpack.c.l.b16 %v8241
        %v8926 = vunpack.c.h.b16 %v8241
        %v8927 = vunpack.c.l.b16 %v8242
        %v8928 = vunpack.c.h.b16 %v8242
        %v8929 = vunpack.c.l.b16 %v8243
        %v8930 = vunpack.c.h.b16 %v8243
        %v8931 = vunpack.c.l.b16 %v8244
        %v8932 = vunpack.c.l.b16 %v8245
        %v8933 = vunpack.c.h.b16 %v8245
        %v8934 = vunpack.c.l.b16 %v8246
        %v8935 = vunpack.c.h.b16 %v8246
        %v8936 = vunpack.c.l.b16 %v8247
        %v8937 = vunpack.c.h.b16 %v8247
        %v8938 = vunpack.c.l.b16 %v8248
        %v8939 = vunpack.c.h.b16 %v8248
        %v8940 = vunpack.c.l.b16 %v8249
        %v8941 = vunpack.c.h.b16 %v8249
        %v8942 = vunpack.c.l.b16 %v8250
        %v8943 = vunpack.c.l.b16 %v8251
        %v8944 = vunpack.c.h.b16 %v8251
        %v8945 = vunpack.c.l.b16 %v8252
        %v8946 = vunpack.c.h.b16 %v8252
        %v8947 = vunpack.c.l.b16 %v8253
        %v8948 = vunpack.c.h.b16 %v8253
        %v8949 = vunpack.c.l.b16 %v8254
        %v8950 = vunpack.c.h.b16 %v8254
        %v8951 = vunpack.c.l.b16 %v8255
        %v8952 = vunpack.c.h.b16 %v8255
        %v8953 = vunpack.c.l.b16 %v8256
        %v8954 = vunpack.c.l.b16 %v8257
        %v8955 = vunpack.c.h.b16 %v8257
        %v8956 = vunpack.c.l.b16 %v8258
        %v8957 = vunpack.c.h.b16 %v8258
        %v8958 = vunpack.c.l.b16 %v8259
        %v8959 = vunpack.c.h.b16 %v8259
        %v8960 = vunpack.c.l.b16 %v8260
        %v8961 = vunpack.c.h.b16 %v8260
        %v8962 = vunpack.c.l.b16 %v8261
        %v8963 = vunpack.c.h.b16 %v8261
        %v8964 = vunpack.c.l.b16 %v8262
        %v8965 = vunpack.c.l.b16 %v8263
        %v8966 = vunpack.c.h.b16 %v8263
        %v8967 = vunpack.c.l.b16 %v8264
        %v8968 = vunpack.c.h.b16 %v8264
        %v8969 = vunpack.c.l.b16 %v8265
        %v8970 = vunpack.c.h.b16 %v8265
        %v8971 = vunpack.c.l.b16 %v8266
        %v8972 = vunpack.c.h.b16 %v8266
        %v8973 = vunpack.c.l.b16 %v8267
        %v8974 = vunpack.c.h.b16 %v8267
        %v8975 = vunpack.c.l.b16 %v8268
        %v8976 = vunpack.c.l.b16 %v8269
        %v8977 = vunpack.c.h.b16 %v8269
        %v8978 = vunpack.c.l.b16 %v8270
        %v8979 = vunpack.c.h.b16 %v8270
        %v8980 = vunpack.c.l.b16 %v8271
        %v8981 = vunpack.c.h.b16 %v8271
        %v8982 = vunpack.c.l.b16 %v8272
        %v8983 = vunpack.c.h.b16 %v8272
        %v8984 = vunpack.c.l.b16 %v8273
        %v8985 = vunpack.c.h.b16 %v8273
        %v8986 = vunpack.c.l.b16 %v8274
        %v8987 = vunpack.c.l.b16 %v8275
        %v8988 = vunpack.c.h.b16 %v8275
        %v8989 = vunpack.c.l.b16 %v8276
        %v8990 = vunpack.c.h.b16 %v8276
        %v8991 = vunpack.c.l.b16 %v8277
        %v8992 = vunpack.c.h.b16 %v8277
        %v8993 = vunpack.c.l.b16 %v8278
        %v8994 = vunpack.c.h.b16 %v8278
        %v8995 = vunpack.c.l.b16 %v8279
        %v8996 = vunpack.c.h.b16 %v8279
        %v8997 = vunpack.c.l.b16 %v8280
        %v8998 = vunpack.c.l.b16 %v8281
        %v8999 = vunpack.c.h.b16 %v8281
        %v9000 = vunpack.c.l.b16 %v8282
        %v9001 = vunpack.c.h.b16 %v8282
        %v9002 = vunpack.c.l.b16 %v8283
        %v9003 = vunpack.c.h.b16 %v8283
        %v9004 = vunpack.c.l.b16 %v8284
        %v9005 = vunpack.c.h.b16 %v8284
        %v9006 = vunpack.c.l.b16 %v8285
        %v9007 = vunpack.c.h.b16 %v8285
        %v9008 = vunpack.c.l.b16 %v8286
        %v9009 = vunpack.c.l.b16 %v8287
        %v9010 = vunpack.c.h.b16 %v8287
        %v9011 = vunpack.c.l.b16 %v8288
        %v9012 = vunpack.c.h.b16 %v8288
        %v9013 = vunpack.c.l.b16 %v8289
        %v9014 = vunpack.c.h.b16 %v8289
        %v9015 = vunpack.c.l.b16 %v8290
        %v9016 = vunpack.c.h.b16 %v8290
        %v9017 = vunpack.c.l.b16 %v8291
        %v9018 = vunpack.c.h.b16 %v8291
        %v9019 = vunpack.c.l.b16 %v8292
        %v9020 = vunpack.c.l.b16 %v8293
        %v9021 = vunpack.c.h.b16 %v8293
        %v9022 = vunpack.c.l.b16 %v8294
        %v9023 = vunpack.c.h.b16 %v8294
        %v9024 = vunpack.c.l.b16 %v8295
        %v9025 = vunpack.c.h.b16 %v8295
        %v9026 = vunpack.c.l.b16 %v8296
        %v9027 = vunpack.c.h.b16 %v8296
        %v9028 = vunpack.c.l.b16 %v8297
        %v9029 = vunpack.c.h.b16 %v8297
        %v9030 = vunpack.c.l.b16 %v8298
        %v9031 = vunpack.c.l.b16 %v8299
        %v9032 = vunpack.c.h.b16 %v8299
        %v9033 = vunpack.c.l.b16 %v8300
        %v9034 = vunpack.c.h.b16 %v8300
        %v9035 = vunpack.c.l.b16 %v8301
        %v9036 = vunpack.c.h.b16 %v8301
        %v9037 = vunpack.c.l.b16 %v8302
        %v9038 = vunpack.c.h.b16 %v8302
        %v9039 = vunpack.c.l.b16 %v8303
        %v9040 = vunpack.c.h.b16 %v8303
        %v9041 = vunpack.c.l.b16 %v8304
        %v9042 = vunpack.c.l.b16 %v8305
        %v9043 = vunpack.c.h.b16 %v8305
        %v9044 = vunpack.c.l.b16 %v8306
        %v9045 = vunpack.c.h.b16 %v8306
        %v9046 = vunpack.c.l.b16 %v8307
        %v9047 = vunpack.c.h.b16 %v8307
        %v9048 = vunpack.c.l.b16 %v8308
        %v9049 = vunpack.c.h.b16 %v8308
        %v9050 = vunpack.c.l.b16 %v8309
        %v9051 = vunpack.c.h.b16 %v8309
        %v9052 = vunpack.c.l.b16 %v8310
        %v9053 = vunpack.c.l.b16 %v8311
        %v9054 = vunpack.c.h.b16 %v8311
        %v9055 = vunpack.c.l.b16 %v8312
        %v9056 = vunpack.c.h.b16 %v8312
        %v9057 = vunpack.c.l.b16 %v8313
        %v9058 = vunpack.c.h.b16 %v8313
        %v9059 = vunpack.c.l.b16 %v8314
        %v9060 = vunpack.c.h.b16 %v8314
        %v9061 = vunpack.c.l.b16 %v8315
        %v9062 = vunpack.c.h.b16 %v8315
        %v9063 = vunpack.c.l.b16 %v8316
        %v9064 = vunpack.c.l.b16 %v8317
        %v9065 = vunpack.c.h.b16 %v8317
        %v9066 = vunpack.c.l.b16 %v8318
        %v9067 = vunpack.c.h.b16 %v8318
        %v9068 = vunpack.c.l.b16 %v8319
        %v9069 = vunpack.c.h.b16 %v8319
        %v9070 = vunpack.c.l.b16 %v8320
        %v9071 = vunpack.c.h.b16 %v8320
        %v9072 = vunpack.c.l.b16 %v8321
        %v9073 = vunpack.c.h.b16 %v8321
        %v9074 = vunpack.c.l.b16 %v8322
        %v9075 = vunpack.c.l.b16 %v8323
        %v9076 = vunpack.c.h.b16 %v8323
        %v9077 = vunpack.c.l.b16 %v8324
        %v9078 = vunpack.c.h.b16 %v8324
        %v9079 = vunpack.c.l.b16 %v8325
        %v9080 = vunpack.c.h.b16 %v8325
        %v9081 = vunpack.c.l.b16 %v8326
        %v9082 = vunpack.c.h.b16 %v8326
        %v9083 = vunpack.c.l.b16 %v8327
        %v9084 = vunpack.c.h.b16 %v8327
        %v9085 = vunpack.c.l.b16 %v8328
        %v9086 = vunpack.c.l.b16 %v8329
        %v9087 = vunpack.c.h.b16 %v8329
        %v9088 = vunpack.c.l.b16 %v8330
        %v9089 = vunpack.c.h.b16 %v8330
        %v9090 = vunpack.c.l.b16 %v8331
        %v9091 = vunpack.c.h.b16 %v8331
        %v9092 = vunpack.c.l.b16 %v8332
        %v9093 = vunpack.c.h.b16 %v8332
        %v9094 = vunpack.c.l.b16 %v8333
        %v9095 = vunpack.c.h.b16 %v8333
        %v9096 = vunpack.c.l.b16 %v8334
        %v9097 = vunpack.c.l.b16 %v8335
        %v9098 = vunpack.c.h.b16 %v8335
        %v9099 = vunpack.c.l.b16 %v8336
        %v9100 = vunpack.c.h.b16 %v8336
        %v9101 = vunpack.c.l.b16 %v8337
        %v9102 = vunpack.c.h.b16 %v8337
        %v9103 = vunpack.c.l.b16 %v8338
        %v9104 = vunpack.c.h.b16 %v8338
        %v9105 = vunpack.c.l.b16 %v8339
        %v9106 = vunpack.c.h.b16 %v8339
        %v9107 = vunpack.c.l.b16 %v8340
        %v9108 = vunpack.c.l.b16 %v8341
        %v9109 = vunpack.c.h.b16 %v8341
        %v9110 = vunpack.c.l.b16 %v8342
        %v9111 = vunpack.c.h.b16 %v8342
        %v9112 = vunpack.c.l.b16 %v8343
        %v9113 = vunpack.c.h.b16 %v8343
        %v9114 = vunpack.c.l.b16 %v8344
        %v9115 = vunpack.c.h.b16 %v8344
        %v9116 = vunpack.c.l.b16 %v8345
        %v9117 = vunpack.c.h.b16 %v8345
        %v9118 = vunpack.c.l.b16 %v8346
        %v9119 = vunpack.c.l.b16 %v8347
        %v9120 = vunpack.c.h.b16 %v8347
        %v9121 = vunpack.c.l.b16 %v8348
        %v9122 = vunpack.c.h.b16 %v8348
        %v9123 = vunpack.c.l.b16 %v8349
        %v9124 = vunpack.c.h.b16 %v8349
        %v9125 = vunpack.c.l.b16 %v8350
        %v9126 = vunpack.c.h.b16 %v8350
        %v9127 = vunpack.c.l.b16 %v8351
        %v9128 = vunpack.c.h.b16 %v8351
        %v9129 = vunpack.c.l.b16 %v8352
        %v9130 = vunpack.c.l.b16 %v8353
        %v9131 = vunpack.c.h.b16 %v8353
        %v9132 = vunpack.c.l.b16 %v8354
        %v9133 = vunpack.c.h.b16 %v8354
        %v9134 = vunpack.c.l.b16 %v8355
        %v9135 = vunpack.c.h.b16 %v8355
        %v9136 = vunpack.c.l.b16 %v8356
        %v9137 = vunpack.c.h.b16 %v8356
        %v9138 = vunpack.c.l.b16 %v8357
        %v9139 = vunpack.c.h.b16 %v8357
        %v9140 = vunpack.c.l.b16 %v8358
        %v9141 = vunpack.c.l.b16 %v8359
        %v9142 = vunpack.c.h.b16 %v8359
        %v9143 = vunpack.c.l.b16 %v8360
        %v9144 = vunpack.c.h.b16 %v8360
        %v9145 = vunpack.c.l.b16 %v8361
        %v9146 = vunpack.c.h.b16 %v8361
        %v9147 = vunpack.c.l.b16 %v8362
        %v9148 = vunpack.c.h.b16 %v8362
        %v9149 = vunpack.c.l.b16 %v8363
        %v9150 = vunpack.c.h.b16 %v8363
        %v9151 = vunpack.c.l.b16 %v8364
        %v9152 = vunpack.c.l.b16 %v8365
        %v9153 = vunpack.c.h.b16 %v8365
        %v9154 = vunpack.c.l.b16 %v8366
        %v9155 = vunpack.c.h.b16 %v8366
        %v9156 = vunpack.c.l.b16 %v8367
        %v9157 = vunpack.c.h.b16 %v8367
        %v9158 = vunpack.c.l.b16 %v8368
        %v9159 = vunpack.c.h.b16 %v8368
        %v9160 = vunpack.c.l.b16 %v8369
        %v9161 = vunpack.c.h.b16 %v8369
        %v9162 = vunpack.c.l.b16 %v8370
        %v9163 = vunpack.c.l.b16 %v8371
        %v9164 = vunpack.c.h.b16 %v8371
        %v9165 = vunpack.c.l.b16 %v8372
        %v9166 = vunpack.c.h.b16 %v8372
        %v9167 = vunpack.c.l.b16 %v8373
        %v9168 = vunpack.c.h.b16 %v8373
        %v9169 = vunpack.c.l.b16 %v8374
        %v9170 = vunpack.c.h.b16 %v8374
        %v9171 = vunpack.c.l.b16 %v8375
        %v9172 = vunpack.c.h.b16 %v8375
        %v9173 = vunpack.c.l.b16 %v8376
        %v9174 = vunpack.c.l.b16 %v8377
        %v9175 = vunpack.c.h.b16 %v8377
        %v9176 = vunpack.c.l.b16 %v8378
        %v9177 = vunpack.c.h.b16 %v8378
        %v9178 = vunpack.c.l.b16 %v8379
        %v9179 = vunpack.c.h.b16 %v8379
        %v9180 = vunpack.c.l.b16 %v8380
        %v9181 = vunpack.c.h.b16 %v8380
        %v9182 = vunpack.c.l.b16 %v8381
        %v9183 = vunpack.c.h.b16 %v8381
        %v9184 = vunpack.c.l.b16 %v8382
        %v9185 = vunpack.c.l.b16 %v8383
        %v9186 = vunpack.c.h.b16 %v8383
        %v9187 = vunpack.c.l.b16 %v8384
        %v9188 = vunpack.c.h.b16 %v8384
        %v9189 = vunpack.c.l.b16 %v8385
        %v9190 = vunpack.c.h.b16 %v8385
        %v9191 = vunpack.c.l.b16 %v8386
        %v9192 = vunpack.c.h.b16 %v8386
        %v9193 = vunpack.c.l.b16 %v8387
        %v9194 = vunpack.c.h.b16 %v8387
        %v9195 = vunpack.c.l.b16 %v8388
        %v9196 = vunpack.c.l.b16 %v8389
        %v9197 = vunpack.c.h.b16 %v8389
        %v9198 = vunpack.c.l.b16 %v8390
        %v9199 = vunpack.c.h.b16 %v8390
        %v9200 = vunpack.c.l.b16 %v8391
        %v9201 = vunpack.c.h.b16 %v8391
        %v9202 = vunpack.c.l.b16 %v8392
        %v9203 = vunpack.c.h.b16 %v8392
        %v9204 = vunpack.c.l.b16 %v8393
        %v9205 = vunpack.c.h.b16 %v8393
        %v9206 = vunpack.c.l.b16 %v8394
        %v9207 = vunpack.c.l.b16 %v8395
        %v9208 = vunpack.c.h.b16 %v8395
        %v9209 = vunpack.c.l.b16 %v8396
        %v9210 = vunpack.c.h.b16 %v8396
        %v9211 = vunpack.c.l.b16 %v8397
        %v9212 = vunpack.c.h.b16 %v8397
        %v9213 = vunpack.c.l.b16 %v8398
        %v9214 = vunpack.c.h.b16 %v8398
        %v9215 = vunpack.c.l.b16 %v8399
        %v9216 = vunpack.c.h.b16 %v8399
        %v9217 = vunpack.c.l.b16 %v8400
        %v9218 = vunpack.c.l.b16 %v8401
        %v9219 = vunpack.c.h.b16 %v8401
        %v9220 = vunpack.c.l.b16 %v8402
        %v9221 = vunpack.c.h.b16 %v8402
        %v9222 = vunpack.c.l.b16 %v8403
        %v9223 = vunpack.c.h.b16 %v8403
        %v9224 = vunpack.c.l.b16 %v8404
        %v9225 = vunpack.c.h.b16 %v8404
        %v9226 = vunpack.c.l.b16 %v8405
        %v9227 = vunpack.c.h.b16 %v8405
        %v9228 = vunpack.c.l.b16 %v8406
        %v9229 = vunpack.c.l.b16 %v8407
        %v9230 = vunpack.c.h.b16 %v8407
        %v9231 = vunpack.c.l.b16 %v8408
        %v9232 = vunpack.c.h.b16 %v8408
        %v9233 = vunpack.c.l.b16 %v8409
        %v9234 = vunpack.c.h.b16 %v8409
        %v9235 = vunpack.c.l.b16 %v8410
        %v9236 = vunpack.c.h.b16 %v8410
        %v9237 = vunpack.c.l.b16 %v8411
        %v9238 = vunpack.c.h.b16 %v8411
        %v9239 = vunpack.c.l.b16 %v8412
        %v9240 = vpack.c.b16 %v8723, %v8712
        %v9241 = vpack.c.b16 %v8724, %v8713
        %v9242 = vpack.c.b16 %v8725, %v8714
        %v9243 = vpack.c.b16 %v8726, %v8715
        %v9244 = vpack.c.b16 %v8727, %v8716
        %v9245 = vpack.c.b16 %v8728, %v8717
        %v9246 = vpack.c.b16 %v8729, %v8718
        %v9247 = vpack.c.b16 %v8730, %v8719
        %v9248 = vpack.c.b16 %v8731, %v8720
        %v9249 = vpack.c.b16 %v8732, %v8721
        %v9250 = vpack.c.b16 %v8733, %v8722
        %v9251 = vpack.c.b16 %v8745, %v8734
        %v9252 = vpack.c.b16 %v8746, %v8735
        %v9253 = vpack.c.b16 %v8747, %v8736
        %v9254 = vpack.c.b16 %v8748, %v8737
        %v9255 = vpack.c.b16 %v8749, %v8738
        %v9256 = vpack.c.b16 %v8750, %v8739
        %v9257 = vpack.c.b16 %v8751, %v8740
        %v9258 = vpack.c.b16 %v8752, %v8741
        %v9259 = vpack.c.b16 %v8753, %v8742
        %v9260 = vpack.c.b16 %v8754, %v8743
        %v9261 = vpack.c.b16 %v8755, %v8744
        %v9262 = vpack.c.b16 %v8767, %v8756
        %v9263 = vpack.c.b16 %v8768, %v8757
        %v9264 = vpack.c.b16 %v8769, %v8758
        %v9265 = vpack.c.b16 %v8770, %v8759
        %v9266 = vpack.c.b16 %v8771, %v8760
        %v9267 = vpack.c.b16 %v8772, %v8761
        %v9268 = vpack.c.b16 %v8773, %v8762
        %v9269 = vpack.c.b16 %v8774, %v8763
        %v9270 = vpack.c.b16 %v8775, %v8764
        %v9271 = vpack.c.b16 %v8776, %v8765
        %v9272 = vpack.c.b16 %v8777, %v8766
        %v9273 = vpack.c.b16 %v8789, %v8778
        %v9274 = vpack.c.b16 %v8790, %v8779
        %v9275 = vpack.c.b16 %v8791, %v8780
        %v9276 = vpack.c.b16 %v8792, %v8781
        %v9277 = vpack.c.b16 %v8793, %v8782
        %v9278 = vpack.c.b16 %v8794, %v8783
        %v9279 = vpack.c.b16 %v8795, %v8784
        %v9280 = vpack.c.b16 %v8796, %v8785
        %v9281 = vpack.c.b16 %v8797, %v8786
        %v9282 = vpack.c.b16 %v8798, %v8787
        %v9283 = vpack.c.b16 %v8799, %v8788
        %v9284 = vpack.c.b16 %v8811, %v8800
        %v9285 = vpack.c.b16 %v8812, %v8801
        %v9286 = vpack.c.b16 %v8813, %v8802
        %v9287 = vpack.c.b16 %v8814, %v8803
        %v9288 = vpack.c.b16 %v8815, %v8804
        %v9289 = vpack.c.b16 %v8816, %v8805
        %v9290 = vpack.c.b16 %v8817, %v8806
        %v9291 = vpack.c.b16 %v8818, %v8807
        %v9292 = vpack.c.b16 %v8819, %v8808
        %v9293 = vpack.c.b16 %v8820, %v8809
        %v9294 = vpack.c.b16 %v8821, %v8810
        %v9295 = vpack.c.b16 %v8833, %v8822
        %v9296 = vpack.c.b16 %v8834, %v8823
        %v9297 = vpack.c.b16 %v8835, %v8824
        %v9298 = vpack.c.b16 %v8836, %v8825
        %v9299 = vpack.c.b16 %v8837, %v8826
        %v9300 = vpack.c.b16 %v8838, %v8827
        %v9301 = vpack.c.b16 %v8839, %v8828
        %v9302 = vpack.c.b16 %v8840, %v8829
        %v9303 = vpack.c.b16 %v8841, %v8830
        %v9304 = vpack.c.b16 %v8842, %v8831
        %v9305 = vpack.c.b16 %v8843, %v8832
        %v9306 = vpack.c.b16 %v8855, %v8844
        %v9307 = vpack.c.b16 %v8856, %v8845
        %v9308 = vpack.c.b16 %v8857, %v8846
        %v9309 = vpack.c.b16 %v8858, %v8847
        %v9310 = vpack.c.b16 %v8859, %v8848
        %v9311 = vpack.c.b16 %v8860, %v8849
        %v9312 = vpack.c.b16 %v8861, %v8850
        %v9313 = vpack.c.b16 %v8862, %v8851
        %v9314 = vpack.c.b16 %v8863, %v8852
        %v9315 = vpack.c.b16 %v8864, %v8853
        %v9316 = vpack.c.b16 %v8865, %v8854
        %v9317 = vpack.c.b16 %v8877, %v8866
        %v9318 = vpack.c.b16 %v8878, %v8867
        %v9319 = vpack.c.b16 %v8879, %v8868
        %v9320 = vpack.c.b16 %v8880, %v8869
        %v9321 = vpack.c.b16 %v8881, %v8870
        %v9322 = vpack.c.b16 %v8882, %v8871
        %v9323 = vpack.c.b16 %v8883, %v8872
        %v9324 = vpack.c.b16 %v8884, %v8873
        %v9325 = vpack.c.b16 %v8885, %v8874
        %v9326 = vpack.c.b16 %v8886, %v8875
        %v9327 = vpack.c.b16 %v8887, %v8876
        %v9328 = vpack.c.b16 %v8899, %v8888
        %v9329 = vpack.c.b16 %v8900, %v8889
        %v9330 = vpack.c.b16 %v8901, %v8890
        %v9331 = vpack.c.b16 %v8902, %v8891
        %v9332 = vpack.c.b16 %v8903, %v8892
        %v9333 = vpack.c.b16 %v8904, %v8893
        %v9334 = vpack.c.b16 %v8905, %v8894
        %v9335 = vpack.c.b16 %v8906, %v8895
        %v9336 = vpack.c.b16 %v8907, %v8896
        %v9337 = vpack.c.b16 %v8908, %v8897
        %v9338 = vpack.c.b16 %v8909, %v8898
        %v9339 = vpack.c.b16 %v8921, %v8910
        %v9340 = vpack.c.b16 %v8922, %v8911
        %v9341 = vpack.c.b16 %v8923, %v8912
        %v9342 = vpack.c.b16 %v8924, %v8913
        %v9343 = vpack.c.b16 %v8925, %v8914
        %v9344 = vpack.c.b16 %v8926, %v8915
        %v9345 = vpack.c.b16 %v8927, %v8916
        %v9346 = vpack.c.b16 %v8928, %v8917
        %v9347 = vpack.c.b16 %v8929, %v8918
        %v9348 = vpack.c.b16 %v8930, %v8919
        %v9349 = vpack.c.b16 %v8931, %v8920
        %v9350 = vpack.c.b16 %v8943, %v8932
        %v9351 = vpack.c.b16 %v8944, %v8933
        %v9352 = vpack.c.b16 %v8945, %v8934
        %v9353 = vpack.c.b16 %v8946, %v8935
        %v9354 = vpack.c.b16 %v8947, %v8936
        %v9355 = vpack.c.b16 %v8948, %v8937
        %v9356 = vpack.c.b16 %v8949, %v8938
        %v9357 = vpack.c.b16 %v8950, %v8939
        %v9358 = vpack.c.b16 %v8951, %v8940
        %v9359 = vpack.c.b16 %v8952, %v8941
        %v9360 = vpack.c.b16 %v8953, %v8942
        %v9361 = vpack.c.b16 %v8965, %v8954
        %v9362 = vpack.c.b16 %v8966, %v8955
        %v9363 = vpack.c.b16 %v8967, %v8956
        %v9364 = vpack.c.b16 %v8968, %v8957
        %v9365 = vpack.c.b16 %v8969, %v8958
        %v9366 = vpack.c.b16 %v8970, %v8959
        %v9367 = vpack.c.b16 %v8971, %v8960
        %v9368 = vpack.c.b16 %v8972, %v8961
        %v9369 = vpack.c.b16 %v8973, %v8962
        %v9370 = vpack.c.b16 %v8974, %v8963
        %v9371 = vpack.c.b16 %v8975, %v8964
        %v9372 = vpack.c.b16 %v8987, %v8976
        %v9373 = vpack.c.b16 %v8988, %v8977
        %v9374 = vpack.c.b16 %v8989, %v8978
        %v9375 = vpack.c.b16 %v8990, %v8979
        %v9376 = vpack.c.b16 %v8991, %v8980
        %v9377 = vpack.c.b16 %v8992, %v8981
        %v9378 = vpack.c.b16 %v8993, %v8982
        %v9379 = vpack.c.b16 %v8994, %v8983
        %v9380 = vpack.c.b16 %v8995, %v8984
        %v9381 = vpack.c.b16 %v8996, %v8985
        %v9382 = vpack.c.b16 %v8997, %v8986
        %v9383 = vpack.c.b16 %v9009, %v8998
        %v9384 = vpack.c.b16 %v9010, %v8999
        %v9385 = vpack.c.b16 %v9011, %v9000
        %v9386 = vpack.c.b16 %v9012, %v9001
        %v9387 = vpack.c.b16 %v9013, %v9002
        %v9388 = vpack.c.b16 %v9014, %v9003
        %v9389 = vpack.c.b16 %v9015, %v9004
        %v9390 = vpack.c.b16 %v9016, %v9005
        %v9391 = vpack.c.b16 %v9017, %v9006
        %v9392 = vpack.c.b16 %v9018, %v9007
        %v9393 = vpack.c.b16 %v9019, %v9008
        %v9394 = vpack.c.b16 %v9031, %v9020
        %v9395 = vpack.c.b16 %v9032, %v9021
        %v9396 = vpack.c.b16 %v9033, %v9022
        %v9397 = vpack.c.b16 %v9034, %v9023
        %v9398 = vpack.c.b16 %v9035, %v9024
        %v9399 = vpack.c.b16 %v9036, %v9025
        %v9400 = vpack.c.b16 %v9037, %v9026
        %v9401 = vpack.c.b16 %v9038, %v9027
        %v9402 = vpack.c.b16 %v9039, %v9028
        %v9403 = vpack.c.b16 %v9040, %v9029
        %v9404 = vpack.c.b16 %v9041, %v9030
        %v9405 = vpack.c.b16 %v9053, %v9042
        %v9406 = vpack.c.b16 %v9054, %v9043
        %v9407 = vpack.c.b16 %v9055, %v9044
        %v9408 = vpack.c.b16 %v9056, %v9045
        %v9409 = vpack.c.b16 %v9057, %v9046
        %v9410 = vpack.c.b16 %v9058, %v9047
        %v9411 = vpack.c.b16 %v9059, %v9048
        %v9412 = vpack.c.b16 %v9060, %v9049
        %v9413 = vpack.c.b16 %v9061, %v9050
        %v9414 = vpack.c.b16 %v9062, %v9051
        %v9415 = vpack.c.b16 %v9063, %v9052
        %v9416 = vpack.c.b16 %v9075, %v9064
        %v9417 = vpack.c.b16 %v9076, %v9065
        %v9418 = vpack.c.b16 %v9077, %v9066
        %v9419 = vpack.c.b16 %v9078, %v9067
        %v9420 = vpack.c.b16 %v9079, %v9068
        %v9421 = vpack.c.b16 %v9080, %v9069
        %v9422 = vpack.c.b16 %v9081, %v9070
        %v9423 = vpack.c.b16 %v9082, %v9071
        %v9424 = vpack.c.b16 %v9083, %v9072
        %v9425 = vpack.c.b16 %v9084, %v9073
        %v9426 = vpack.c.b16 %v9085, %v9074
        %v9427 = vpack.c.b16 %v9097, %v9086
        %v9428 = vpack.c.b16 %v9098, %v9087
        %v9429 = vpack.c.b16 %v9099, %v9088
        %v9430 = vpack.c.b16 %v9100, %v9089
        %v9431 = vpack.c.b16 %v9101, %v9090
        %v9432 = vpack.c.b16 %v9102, %v9091
        %v9433 = vpack.c.b16 %v9103, %v9092
        %v9434 = vpack.c.b16 %v9104, %v9093
        %v9435 = vpack.c.b16 %v9105, %v9094
        %v9436 = vpack.c.b16 %v9106, %v9095
        %v9437 = vpack.c.b16 %v9107, %v9096
        %v9438 = vpack.c.b16 %v9119, %v9108
        %v9439 = vpack.c.b16 %v9120, %v9109
        %v9440 = vpack.c.b16 %v9121, %v9110
        %v9441 = vpack.c.b16 %v9122, %v9111
        %v9442 = vpack.c.b16 %v9123, %v9112
        %v9443 = vpack.c.b16 %v9124, %v9113
        %v9444 = vpack.c.b16 %v9125, %v9114
        %v9445 = vpack.c.b16 %v9126, %v9115
        %v9446 = vpack.c.b16 %v9127, %v9116
        %v9447 = vpack.c.b16 %v9128, %v9117
        %v9448 = vpack.c.b16 %v9129, %v9118
        %v9449 = vpack.c.b16 %v9141, %v9130
        %v9450 = vpack.c.b16 %v9142, %v9131
        %v9451 = vpack.c.b16 %v9143, %v9132
        %v9452 = vpack.c.b16 %v9144, %v9133
        %v9453 = vpack.c.b16 %v9145, %v9134
        %v9454 = vpack.c.b16 %v9146, %v9135
        %v9455 = vpack.c.b16 %v9147, %v9136
        %v9456 = vpack.c.b16 %v9148, %v9137
        %v9457 = vpack.c.b16 %v9149, %v9138
        %v9458 = vpack.c.b16 %v9150, %v9139
        %v9459 = vpack.c.b16 %v9151, %v9140
        %v9460 = vpack.c.b16 %v9163, %v9152
        %v9461 = vpack.c.b16 %v9164, %v9153
        %v9462 = vpack.c.b16 %v9165, %v9154
        %v9463 = vpack.c.b16 %v9166, %v9155
        %v9464 = vpack.c.b16 %v9167, %v9156
        %v9465 = vpack.c.b16 %v9168, %v9157
        %v9466 = vpack.c.b16 %v9169, %v9158
        %v9467 = vpack.c.b16 %v9170, %v9159
        %v9468 = vpack.c.b16 %v9171, %v9160
        %v9469 = vpack.c.b16 %v9172, %v9161
        %v9470 = vpack.c.b16 %v9173, %v9162
        %v9471 = vpack.c.b16 %v9185, %v9174
        %v9472 = vpack.c.b16 %v9186, %v9175
        %v9473 = vpack.c.b16 %v9187, %v9176
        %v9474 = vpack.c.b16 %v9188, %v9177
        %v9475 = vpack.c.b16 %v9189, %v9178
        %v9476 = vpack.c.b16 %v9190, %v9179
        %v9477 = vpack.c.b16 %v9191, %v9180
        %v9478 = vpack.c.b16 %v9192, %v9181
        %v9479 = vpack.c.b16 %v9193, %v9182
        %v9480 = vpack.c.b16 %v9194, %v9183
        %v9481 = vpack.c.b16 %v9195, %v9184
        %v9482 = vpack.c.b16 %v9207, %v9196
        %v9483 = vpack.c.b16 %v9208, %v9197
        %v9484 = vpack.c.b16 %v9209, %v9198
        %v9485 = vpack.c.b16 %v9210, %v9199
        %v9486 = vpack.c.b16 %v9211, %v9200
        %v9487 = vpack.c.b16 %v9212, %v9201
        %v9488 = vpack.c.b16 %v9213, %v9202
        %v9489 = vpack.c.b16 %v9214, %v9203
        %v9490 = vpack.c.b16 %v9215, %v9204
        %v9491 = vpack.c.b16 %v9216, %v9205
        %v9492 = vpack.c.b16 %v9217, %v9206
        %v9493 = vpack.c.b16 %v9229, %v9218
        %v9494 = vpack.c.b16 %v9230, %v9219
        %v9495 = vpack.c.b16 %v9231, %v9220
        %v9496 = vpack.c.b16 %v9232, %v9221
        %v9497 = vpack.c.b16 %v9233, %v9222
        %v9498 = vpack.c.b16 %v9234, %v9223
        %v9499 = vpack.c.b16 %v9235, %v9224
        %v9500 = vpack.c.b16 %v9236, %v9225
        %v9501 = vpack.c.b16 %v9237, %v9226
        %v9502 = vpack.c.b16 %v9238, %v9227
        %v9503 = vpack.c.b16 %v9239, %v9228
        %9768 = vmatpush.bf16.msra.mxu0 %v9317
        %9769 = vmatpush.bf16.msra.mxu0 %v9306
        %9770 = vmatpush.bf16.msra.mxu0 %v9295
        %9771 = vmatpush.bf16.msra.mxu0 %v9284
        %9772 = vmatpush.bf16.msra.mxu0 %v9273
        %9773 = vmatpush.bf16.msra.mxu0 %v9262
        %9774 = vmatpush.bf16.msra.mxu0 %v9251
        %9775 = vmatpush.bf16.msra.mxu0 %v9240
        %9776 = vmatmul.bf16.gmra.mxu0 %v8418
        %v9777 = vpop.f32.mrf.mxu0
        %v9778 = vadd.f32 0.0, %v9777
        %v9779 = vpop.f32.mrf.mxu0
        %9780 = vdwg.mxu0
        %9781 = vmatpush.bf16.msra.mxu0 %v9405
        %9782 = vmatpush.bf16.msra.mxu0 %v9394
        %9783 = vmatpush.bf16.msra.mxu0 %v9383
        %9784 = vmatpush.bf16.msra.mxu0 %v9372
        %9785 = vmatpush.bf16.msra.mxu0 %v9361
        %9786 = vmatpush.bf16.msra.mxu0 %v9350
        %9787 = vmatpush.bf16.msra.mxu0 %v9339
        %9788 = vmatpush.bf16.msra.mxu0 %v9328
        %9789 = vmatmul.bf16.gmra.mxu0 %v8419
        %v9790 = vpop.f32.mrf.mxu0
        %v9791 = vadd.f32 %v9778, %v9790
        %v9792 = vpop.f32.mrf.mxu0
        %9793 = vdwg.mxu0
        %9794 = vmatpush.bf16.msra.mxu0 %v9493
        %9795 = vmatpush.bf16.msra.mxu0 %v9482
        %9796 = vmatpush.bf16.msra.mxu0 %v9471
        %9797 = vmatpush.bf16.msra.mxu0 %v9460
        %9798 = vmatpush.bf16.msra.mxu0 %v9449
        %9799 = vmatpush.bf16.msra.mxu0 %v9438
        %9800 = vmatpush.bf16.msra.mxu0 %v9427
        %9801 = vmatpush.bf16.msra.mxu0 %v9416
        %9802 = vmatmul.bf16.gmra.mxu0 %v8420
        %v9803 = vpop.f32.mrf.mxu0
        %v9804 = vadd.f32 %v9791, %v9803
        %v9805 = vpop.f32.mrf.mxu0
        %9806 = vdwg.mxu0
        %9807 = vmatpush.bf16.msra.mxu0 %v9318
        %9808 = vmatpush.bf16.msra.mxu0 %v9307
        %9809 = vmatpush.bf16.msra.mxu0 %v9296
        %9810 = vmatpush.bf16.msra.mxu0 %v9285
        %9811 = vmatpush.bf16.msra.mxu0 %v9274
        %9812 = vmatpush.bf16.msra.mxu0 %v9263
        %9813 = vmatpush.bf16.msra.mxu0 %v9252
        %9814 = vmatpush.bf16.msra.mxu0 %v9241
        %9815 = vmatmul.bf16.gmra.mxu0 %v8418
        %v9816 = vpop.f32.mrf.mxu0
        %v9817 = vadd.f32 0.0, %v9816
        %v9818 = vpop.f32.mrf.mxu0
        %9819 = vdwg.mxu0
        %9820 = vmatpush.bf16.msra.mxu0 %v9406
        %9821 = vmatpush.bf16.msra.mxu0 %v9395
        %9822 = vmatpush.bf16.msra.mxu0 %v9384
        %9823 = vmatpush.bf16.msra.mxu0 %v9373
        %9824 = vmatpush.bf16.msra.mxu0 %v9362
        %9825 = vmatpush.bf16.msra.mxu0 %v9351
        %9826 = vmatpush.bf16.msra.mxu0 %v9340
        %9827 = vmatpush.bf16.msra.mxu0 %v9329
        %9828 = vmatmul.bf16.gmra.mxu0 %v8419
        %v9829 = vpop.f32.mrf.mxu0
        %v9830 = vadd.f32 %v9817, %v9829
        %v9831 = vpop.f32.mrf.mxu0
        %9832 = vdwg.mxu0
        %9833 = vmatpush.bf16.msra.mxu0 %v9494
        %9834 = vmatpush.bf16.msra.mxu0 %v9483
        %9835 = vmatpush.bf16.msra.mxu0 %v9472
        %9836 = vmatpush.bf16.msra.mxu0 %v9461
        %9837 = vmatpush.bf16.msra.mxu0 %v9450
        %9838 = vmatpush.bf16.msra.mxu0 %v9439
        %9839 = vmatpush.bf16.msra.mxu0 %v9428
        %9840 = vmatpush.bf16.msra.mxu0 %v9417
        %9841 = vmatmul.bf16.gmra.mxu0 %v8420
        %v9842 = vpop.f32.mrf.mxu0
        %v9843 = vadd.f32 %v9830, %v9842
        %v9844 = vpop.f32.mrf.mxu0
        %9845 = vdwg.mxu0
        %9846 = vmatpush.bf16.msra.mxu0 %v9319
        %9847 = vmatpush.bf16.msra.mxu0 %v9308
        %9848 = vmatpush.bf16.msra.mxu0 %v9297
        %9849 = vmatpush.bf16.msra.mxu0 %v9286
        %9850 = vmatpush.bf16.msra.mxu0 %v9275
        %9851 = vmatpush.bf16.msra.mxu0 %v9264
        %9852 = vmatpush.bf16.msra.mxu0 %v9253
        %9853 = vmatpush.bf16.msra.mxu0 %v9242
        %9854 = vmatmul.bf16.gmra.mxu0 %v8418
        %v9855 = vpop.f32.mrf.mxu0
        %v9856 = vadd.f32 0.0, %v9855
        %v9857 = vpop.f32.mrf.mxu0
        %9858 = vdwg.mxu0
        %9859 = vmatpush.bf16.msra.mxu0 %v9407
        %9860 = vmatpush.bf16.msra.mxu0 %v9396
        %9861 = vmatpush.bf16.msra.mxu0 %v9385
        %9862 = vmatpush.bf16.msra.mxu0 %v9374
        %9863 = vmatpush.bf16.msra.mxu0 %v9363
        %9864 = vmatpush.bf16.msra.mxu0 %v9352
        %9865 = vmatpush.bf16.msra.mxu0 %v9341
        %9866 = vmatpush.bf16.msra.mxu0 %v9330
        %9867 = vmatmul.bf16.gmra.mxu0 %v8419
        %v9868 = vpop.f32.mrf.mxu0
        %v9869 = vadd.f32 %v9856, %v9868
        %v9870 = vpop.f32.mrf.mxu0
        %9871 = vdwg.mxu0
        %9872 = vmatpush.bf16.msra.mxu0 %v9495
        %9873 = vmatpush.bf16.msra.mxu0 %v9484
        %9874 = vmatpush.bf16.msra.mxu0 %v9473
        %9875 = vmatpush.bf16.msra.mxu0 %v9462
        %9876 = vmatpush.bf16.msra.mxu0 %v9451
        %9877 = vmatpush.bf16.msra.mxu0 %v9440
        %9878 = vmatpush.bf16.msra.mxu0 %v9429
        %9879 = vmatpush.bf16.msra.mxu0 %v9418
        %9880 = vmatmul.bf16.gmra.mxu0 %v8420
        %v9881 = vpop.f32.mrf.mxu0
        %v9882 = vadd.f32 %v9869, %v9881
        %v9883 = vpop.f32.mrf.mxu0
        %9884 = vdwg.mxu0
        %9885 = vmatpush.bf16.msra.mxu0 %v9320
        %9886 = vmatpush.bf16.msra.mxu0 %v9309
        %9887 = vmatpush.bf16.msra.mxu0 %v9298
        %9888 = vmatpush.bf16.msra.mxu0 %v9287
        %9889 = vmatpush.bf16.msra.mxu0 %v9276
        %9890 = vmatpush.bf16.msra.mxu0 %v9265
        %9891 = vmatpush.bf16.msra.mxu0 %v9254
        %9892 = vmatpush.bf16.msra.mxu0 %v9243
        %9893 = vmatmul.bf16.gmra.mxu0 %v8418
        %v9894 = vpop.f32.mrf.mxu0
        %v9895 = vadd.f32 0.0, %v9894
        %v9896 = vpop.f32.mrf.mxu0
        %9897 = vdwg.mxu0
        %9898 = vmatpush.bf16.msra.mxu0 %v9408
        %9899 = vmatpush.bf16.msra.mxu0 %v9397
        %9900 = vmatpush.bf16.msra.mxu0 %v9386
        %9901 = vmatpush.bf16.msra.mxu0 %v9375
        %9902 = vmatpush.bf16.msra.mxu0 %v9364
        %9903 = vmatpush.bf16.msra.mxu0 %v9353
        %9904 = vmatpush.bf16.msra.mxu0 %v9342
        %9905 = vmatpush.bf16.msra.mxu0 %v9331
        %9906 = vmatmul.bf16.gmra.mxu0 %v8419
        %v9907 = vpop.f32.mrf.mxu0
        %v9908 = vadd.f32 %v9895, %v9907
        %v9909 = vpop.f32.mrf.mxu0
        %9910 = vdwg.mxu0
        %9911 = vmatpush.bf16.msra.mxu0 %v9496
        %9912 = vmatpush.bf16.msra.mxu0 %v9485
        %9913 = vmatpush.bf16.msra.mxu0 %v9474
        %9914 = vmatpush.bf16.msra.mxu0 %v9463
        %9915 = vmatpush.bf16.msra.mxu0 %v9452
        %9916 = vmatpush.bf16.msra.mxu0 %v9441
        %9917 = vmatpush.bf16.msra.mxu0 %v9430
        %9918 = vmatpush.bf16.msra.mxu0 %v9419
        %9919 = vmatmul.bf16.gmra.mxu0 %v8420
        %v9920 = vpop.f32.mrf.mxu0
        %v9921 = vadd.f32 %v9908, %v9920
        %v9922 = vpop.f32.mrf.mxu0
        %9923 = vdwg.mxu0
        %9924 = vmatpush.bf16.msra.mxu0 %v9321
        %9925 = vmatpush.bf16.msra.mxu0 %v9310
        %9926 = vmatpush.bf16.msra.mxu0 %v9299
        %9927 = vmatpush.bf16.msra.mxu0 %v9288
        %9928 = vmatpush.bf16.msra.mxu0 %v9277
        %9929 = vmatpush.bf16.msra.mxu0 %v9266
        %9930 = vmatpush.bf16.msra.mxu0 %v9255
        %9931 = vmatpush.bf16.msra.mxu0 %v9244
        %9932 = vmatmul.bf16.gmra.mxu0 %v8418
        %v9933 = vpop.f32.mrf.mxu0
        %v9934 = vadd.f32 0.0, %v9933
        %v9935 = vpop.f32.mrf.mxu0
        %9936 = vdwg.mxu0
        %9937 = vmatpush.bf16.msra.mxu0 %v9409
        %9938 = vmatpush.bf16.msra.mxu0 %v9398
        %9939 = vmatpush.bf16.msra.mxu0 %v9387
        %9940 = vmatpush.bf16.msra.mxu0 %v9376
        %9941 = vmatpush.bf16.msra.mxu0 %v9365
        %9942 = vmatpush.bf16.msra.mxu0 %v9354
        %9943 = vmatpush.bf16.msra.mxu0 %v9343
        %9944 = vmatpush.bf16.msra.mxu0 %v9332
        %9945 = vmatmul.bf16.gmra.mxu0 %v8419
        %v9946 = vpop.f32.mrf.mxu0
        %v9947 = vadd.f32 %v9934, %v9946
        %v9948 = vpop.f32.mrf.mxu0
        %9949 = vdwg.mxu0
        %9950 = vmatpush.bf16.msra.mxu0 %v9497
        %9951 = vmatpush.bf16.msra.mxu0 %v9486
        %9952 = vmatpush.bf16.msra.mxu0 %v9475
        %9953 = vmatpush.bf16.msra.mxu0 %v9464
        %9954 = vmatpush.bf16.msra.mxu0 %v9453
        %9955 = vmatpush.bf16.msra.mxu0 %v9442
        %9956 = vmatpush.bf16.msra.mxu0 %v9431
        %9957 = vmatpush.bf16.msra.mxu0 %v9420
        %9958 = vmatmul.bf16.gmra.mxu0 %v8420
        %v9959 = vpop.f32.mrf.mxu0
        %v9960 = vadd.f32 %v9947, %v9959
        %v9961 = vpop.f32.mrf.mxu0
        %9962 = vdwg.mxu0
        %9963 = vmatpush.bf16.msra.mxu0 %v9322
        %9964 = vmatpush.bf16.msra.mxu0 %v9311
        %9965 = vmatpush.bf16.msra.mxu0 %v9300
        %9966 = vmatpush.bf16.msra.mxu0 %v9289
        %9967 = vmatpush.bf16.msra.mxu0 %v9278
        %9968 = vmatpush.bf16.msra.mxu0 %v9267
        %9969 = vmatpush.bf16.msra.mxu0 %v9256
        %9970 = vmatpush.bf16.msra.mxu0 %v9245
        %9971 = vmatmul.bf16.gmra.mxu0 %v8418
        %v9972 = vpop.f32.mrf.mxu0
        %v9973 = vadd.f32 0.0, %v9972
        %v9974 = vpop.f32.mrf.mxu0
        %9975 = vdwg.mxu0
        %9976 = vmatpush.bf16.msra.mxu0 %v9410
        %9977 = vmatpush.bf16.msra.mxu0 %v9399
        %9978 = vmatpush.bf16.msra.mxu0 %v9388
        %9979 = vmatpush.bf16.msra.mxu0 %v9377
        %9980 = vmatpush.bf16.msra.mxu0 %v9366
        %9981 = vmatpush.bf16.msra.mxu0 %v9355
        %9982 = vmatpush.bf16.msra.mxu0 %v9344
        %9983 = vmatpush.bf16.msra.mxu0 %v9333
        %9984 = vmatmul.bf16.gmra.mxu0 %v8419
        %v9985 = vpop.f32.mrf.mxu0
        %v9986 = vadd.f32 %v9973, %v9985
        %v9987 = vpop.f32.mrf.mxu0
        %9988 = vdwg.mxu0
        %9989 = vmatpush.bf16.msra.mxu0 %v9498
        %9990 = vmatpush.bf16.msra.mxu0 %v9487
        %9991 = vmatpush.bf16.msra.mxu0 %v9476
        %9992 = vmatpush.bf16.msra.mxu0 %v9465
        %9993 = vmatpush.bf16.msra.mxu0 %v9454
        %9994 = vmatpush.bf16.msra.mxu0 %v9443
        %9995 = vmatpush.bf16.msra.mxu0 %v9432
        %9996 = vmatpush.bf16.msra.mxu0 %v9421
        %9997 = vmatmul.bf16.gmra.mxu0 %v8420
        %v9998 = vpop.f32.mrf.mxu0
        %v9999 = vadd.f32 %v9986, %v9998
        %v10000 = vpop.f32.mrf.mxu0
        %10001 = vdwg.mxu0
        %10002 = vmatpush.bf16.msra.mxu0 %v9323
        %10003 = vmatpush.bf16.msra.mxu0 %v9312
        %10004 = vmatpush.bf16.msra.mxu0 %v9301
        %10005 = vmatpush.bf16.msra.mxu0 %v9290
        %10006 = vmatpush.bf16.msra.mxu0 %v9279
        %10007 = vmatpush.bf16.msra.mxu0 %v9268
        %10008 = vmatpush.bf16.msra.mxu0 %v9257
        %10009 = vmatpush.bf16.msra.mxu0 %v9246
        %10010 = vmatmul.bf16.gmra.mxu0 %v8418
        %v10011 = vpop.f32.mrf.mxu0
        %v10012 = vadd.f32 0.0, %v10011
        %v10013 = vpop.f32.mrf.mxu0
        %10014 = vdwg.mxu0
        %10015 = vmatpush.bf16.msra.mxu0 %v9411
        %10016 = vmatpush.bf16.msra.mxu0 %v9400
        %10017 = vmatpush.bf16.msra.mxu0 %v9389
        %10018 = vmatpush.bf16.msra.mxu0 %v9378
        %10019 = vmatpush.bf16.msra.mxu0 %v9367
        %10020 = vmatpush.bf16.msra.mxu0 %v9356
        %10021 = vmatpush.bf16.msra.mxu0 %v9345
        %10022 = vmatpush.bf16.msra.mxu0 %v9334
        %10023 = vmatmul.bf16.gmra.mxu0 %v8419
        %v10024 = vpop.f32.mrf.mxu0
        %v10025 = vadd.f32 %v10012, %v10024
        %v10026 = vpop.f32.mrf.mxu0
        %10027 = vdwg.mxu0
        %10028 = vmatpush.bf16.msra.mxu0 %v9499
        %10029 = vmatpush.bf16.msra.mxu0 %v9488
        %10030 = vmatpush.bf16.msra.mxu0 %v9477
        %10031 = vmatpush.bf16.msra.mxu0 %v9466
        %10032 = vmatpush.bf16.msra.mxu0 %v9455
        %10033 = vmatpush.bf16.msra.mxu0 %v9444
        %10034 = vmatpush.bf16.msra.mxu0 %v9433
        %10035 = vmatpush.bf16.msra.mxu0 %v9422
        %10036 = vmatmul.bf16.gmra.mxu0 %v8420
        %v10037 = vpop.f32.mrf.mxu0
        %v10038 = vadd.f32 %v10025, %v10037
        %v10039 = vpop.f32.mrf.mxu0
        %10040 = vdwg.mxu0
        %10041 = vmatpush.bf16.msra.mxu0 %v9324
        %10042 = vmatpush.bf16.msra.mxu0 %v9313
        %10043 = vmatpush.bf16.msra.mxu0 %v9302
        %10044 = vmatpush.bf16.msra.mxu0 %v9291
        %10045 = vmatpush.bf16.msra.mxu0 %v9280
        %10046 = vmatpush.bf16.msra.mxu0 %v9269
        %10047 = vmatpush.bf16.msra.mxu0 %v9258
        %10048 = vmatpush.bf16.msra.mxu0 %v9247
        %10049 = vmatmul.bf16.gmra.mxu0 %v8418
        %v10050 = vpop.f32.mrf.mxu0
        %v10051 = vadd.f32 0.0, %v10050
        %v10052 = vpop.f32.mrf.mxu0
        %10053 = vdwg.mxu0
        %10054 = vmatpush.bf16.msra.mxu0 %v9412
        %10055 = vmatpush.bf16.msra.mxu0 %v9401
        %10056 = vmatpush.bf16.msra.mxu0 %v9390
        %10057 = vmatpush.bf16.msra.mxu0 %v9379
        %10058 = vmatpush.bf16.msra.mxu0 %v9368
        %10059 = vmatpush.bf16.msra.mxu0 %v9357
        %10060 = vmatpush.bf16.msra.mxu0 %v9346
        %10061 = vmatpush.bf16.msra.mxu0 %v9335
        %10062 = vmatmul.bf16.gmra.mxu0 %v8419
        %v10063 = vpop.f32.mrf.mxu0
        %v10064 = vadd.f32 %v10051, %v10063
        %v10065 = vpop.f32.mrf.mxu0
        %10066 = vdwg.mxu0
        %10067 = vmatpush.bf16.msra.mxu0 %v9500
        %10068 = vmatpush.bf16.msra.mxu0 %v9489
        %10069 = vmatpush.bf16.msra.mxu0 %v9478
        %10070 = vmatpush.bf16.msra.mxu0 %v9467
        %10071 = vmatpush.bf16.msra.mxu0 %v9456
        %10072 = vmatpush.bf16.msra.mxu0 %v9445
        %10073 = vmatpush.bf16.msra.mxu0 %v9434
        %10074 = vmatpush.bf16.msra.mxu0 %v9423
        %10075 = vmatmul.bf16.gmra.mxu0 %v8420
        %v10076 = vpop.f32.mrf.mxu0
        %v10077 = vadd.f32 %v10064, %v10076
        %v10078 = vpop.f32.mrf.mxu0
        %10079 = vdwg.mxu0
        %10080 = vmatpush.bf16.msra.mxu0 %v9325
        %10081 = vmatpush.bf16.msra.mxu0 %v9314
        %10082 = vmatpush.bf16.msra.mxu0 %v9303
        %10083 = vmatpush.bf16.msra.mxu0 %v9292
        %10084 = vmatpush.bf16.msra.mxu0 %v9281
        %10085 = vmatpush.bf16.msra.mxu0 %v9270
        %10086 = vmatpush.bf16.msra.mxu0 %v9259
        %10087 = vmatpush.bf16.msra.mxu0 %v9248
        %10088 = vmatmul.bf16.gmra.mxu0 %v8418
        %v10089 = vpop.f32.mrf.mxu0
        %v10090 = vadd.f32 0.0, %v10089
        %v10091 = vpop.f32.mrf.mxu0
        %10092 = vdwg.mxu0
        %10093 = vmatpush.bf16.msra.mxu0 %v9413
        %10094 = vmatpush.bf16.msra.mxu0 %v9402
        %10095 = vmatpush.bf16.msra.mxu0 %v9391
        %10096 = vmatpush.bf16.msra.mxu0 %v9380
        %10097 = vmatpush.bf16.msra.mxu0 %v9369
        %10098 = vmatpush.bf16.msra.mxu0 %v9358
        %10099 = vmatpush.bf16.msra.mxu0 %v9347
        %10100 = vmatpush.bf16.msra.mxu0 %v9336
        %10101 = vmatmul.bf16.gmra.mxu0 %v8419
        %v10102 = vpop.f32.mrf.mxu0
        %v10103 = vadd.f32 %v10090, %v10102
        %v10104 = vpop.f32.mrf.mxu0
        %10105 = vdwg.mxu0
        %10106 = vmatpush.bf16.msra.mxu0 %v9501
        %10107 = vmatpush.bf16.msra.mxu0 %v9490
        %10108 = vmatpush.bf16.msra.mxu0 %v9479
        %10109 = vmatpush.bf16.msra.mxu0 %v9468
        %10110 = vmatpush.bf16.msra.mxu0 %v9457
        %10111 = vmatpush.bf16.msra.mxu0 %v9446
        %10112 = vmatpush.bf16.msra.mxu0 %v9435
        %10113 = vmatpush.bf16.msra.mxu0 %v9424
        %10114 = vmatmul.bf16.gmra.mxu0 %v8420
        %v10115 = vpop.f32.mrf.mxu0
        %v10116 = vadd.f32 %v10103, %v10115
        %v10117 = vpop.f32.mrf.mxu0
        %10118 = vdwg.mxu0
        %10119 = vmatpush.bf16.msra.mxu0 %v9326
        %10120 = vmatpush.bf16.msra.mxu0 %v9315
        %10121 = vmatpush.bf16.msra.mxu0 %v9304
        %10122 = vmatpush.bf16.msra.mxu0 %v9293
        %10123 = vmatpush.bf16.msra.mxu0 %v9282
        %10124 = vmatpush.bf16.msra.mxu0 %v9271
        %10125 = vmatpush.bf16.msra.mxu0 %v9260
        %10126 = vmatpush.bf16.msra.mxu0 %v9249
        %10127 = vmatmul.bf16.gmra.mxu0 %v8418
        %v10128 = vpop.f32.mrf.mxu0
        %v10129 = vadd.f32 0.0, %v10128
        %v10130 = vpop.f32.mrf.mxu0
        %10131 = vdwg.mxu0
        %10132 = vmatpush.bf16.msra.mxu0 %v9414
        %10133 = vmatpush.bf16.msra.mxu0 %v9403
        %10134 = vmatpush.bf16.msra.mxu0 %v9392
        %10135 = vmatpush.bf16.msra.mxu0 %v9381
        %10136 = vmatpush.bf16.msra.mxu0 %v9370
        %10137 = vmatpush.bf16.msra.mxu0 %v9359
        %10138 = vmatpush.bf16.msra.mxu0 %v9348
        %10139 = vmatpush.bf16.msra.mxu0 %v9337
        %10140 = vmatmul.bf16.gmra.mxu0 %v8419
        %v10141 = vpop.f32.mrf.mxu0
        %v10142 = vadd.f32 %v10129, %v10141
        %v10143 = vpop.f32.mrf.mxu0
        %10144 = vdwg.mxu0
        %10145 = vmatpush.bf16.msra.mxu0 %v9502
        %10146 = vmatpush.bf16.msra.mxu0 %v9491
        %10147 = vmatpush.bf16.msra.mxu0 %v9480
        %10148 = vmatpush.bf16.msra.mxu0 %v9469
        %10149 = vmatpush.bf16.msra.mxu0 %v9458
        %10150 = vmatpush.bf16.msra.mxu0 %v9447
        %10151 = vmatpush.bf16.msra.mxu0 %v9436
        %10152 = vmatpush.bf16.msra.mxu0 %v9425
        %10153 = vmatmul.bf16.gmra.mxu0 %v8420
        %v10154 = vpop.f32.mrf.mxu0
        %v10155 = vadd.f32 %v10142, %v10154
        %v10156 = vpop.f32.mrf.mxu0
        %10157 = vdwg.mxu0
        %10158 = vmatpush.bf16.msra.mxu0 %v9327
        %10159 = vmatpush.bf16.msra.mxu0 %v9316
        %10160 = vmatpush.bf16.msra.mxu0 %v9305
        %10161 = vmatpush.bf16.msra.mxu0 %v9294
        %10162 = vmatpush.bf16.msra.mxu0 %v9283
        %10163 = vmatpush.bf16.msra.mxu0 %v9272
        %10164 = vmatpush.bf16.msra.mxu0 %v9261
        %10165 = vmatpush.bf16.msra.mxu0 %v9250
        %10166 = vmatmul.bf16.gmra.mxu0 %v8418
        %v10167 = vpop.f32.mrf.mxu0
        %v10168 = vadd.f32 0.0, %v10167
        %v10169 = vpop.f32.mrf.mxu0
        %10170 = vdwg.mxu0
        %10171 = vmatpush.bf16.msra.mxu0 %v9415
        %10172 = vmatpush.bf16.msra.mxu0 %v9404
        %10173 = vmatpush.bf16.msra.mxu0 %v9393
        %10174 = vmatpush.bf16.msra.mxu0 %v9382
        %10175 = vmatpush.bf16.msra.mxu0 %v9371
        %10176 = vmatpush.bf16.msra.mxu0 %v9360
        %10177 = vmatpush.bf16.msra.mxu0 %v9349
        %10178 = vmatpush.bf16.msra.mxu0 %v9338
        %10179 = vmatmul.bf16.gmra.mxu0 %v8419
        %v10180 = vpop.f32.mrf.mxu0
        %v10181 = vadd.f32 %v10168, %v10180
        %v10182 = vpop.f32.mrf.mxu0
        %10183 = vdwg.mxu0
        %10184 = vmatpush.bf16.msra.mxu0 %v9503
        %10185 = vmatpush.bf16.msra.mxu0 %v9492
        %10186 = vmatpush.bf16.msra.mxu0 %v9481
        %10187 = vmatpush.bf16.msra.mxu0 %v9470
        %10188 = vmatpush.bf16.msra.mxu0 %v9459
        %10189 = vmatpush.bf16.msra.mxu0 %v9448
        %10190 = vmatpush.bf16.msra.mxu0 %v9437
        %10191 = vmatpush.bf16.msra.mxu0 %v9426
        %10192 = vmatmul.bf16.gmra.mxu0 %v8420
        %v10193 = vpop.f32.mrf.mxu0
        %v10194 = vadd.f32 %v10181, %v10193
        %v10195 = vpop.f32.mrf.mxu0
        %10196 = vdwg.mxu0
        %v10197 = vadd.f32 %v8113, %v9804
        %v10198 = vadd.f32 %v8114, %v9843
        %v10199 = vadd.f32 %v8115, %v9882
        %v10200 = vadd.f32 %v8116, %v9921
        %v10201 = vadd.f32 %v8117, %v9960
        %v10202 = vadd.f32 %v8118, %v9999
        %v10203 = vadd.f32 %v8119, %v10038
        %v10204 = vadd.f32 %v8120, %v10077
        %v10205 = vadd.f32 %v8121, %v10116
        %v10206 = vadd.f32 %v8122, %v10155
        %v10207 = vadd.f32 %v8123, %v10194
        %v10208 = vpack.c.bf16 %v10198, %v10197
        %v10209 = vpack.c.bf16 %v10200, %v10199
        %v10210 = vpack.c.bf16 %v10202, %v10201
        %v10211 = vpack.c.bf16 %v10204, %v10203
        %v10212 = vpack.c.bf16 %v10206, %v10205
        %v10213 = vpack.c.bf16 %v10207, %v10207
        %v10219 = vunpack.c.l.b16 %v10208
        %v10220 = vunpack.c.h.b16 %v10208
        %v10221 = vunpack.c.l.b16 %v10209
        %v10222 = vunpack.c.h.b16 %v10209
        %v10223 = vunpack.c.l.b16 %v10210
        %v10224 = vunpack.c.h.b16 %v10210
        %v10225 = vunpack.c.l.b16 %v10211
        %v10226 = vunpack.c.h.b16 %v10211
        %v10227 = vunpack.c.l.b16 %v10212
        %v10228 = vunpack.c.h.b16 %v10212
        %v10229 = vpack.c.b16 %v10219, %v10219
        %v10230 = vpack.c.b16 %v10220, %v10220
        %v10231 = vpack.c.b16 %v10221, %v10221
        %v10232 = vpack.c.b16 %v10222, %v10222
        %v10233 = vpack.c.b16 %v10223, %v10223
        %v10234 = vpack.c.b16 %v10224, %v10224
        %v10235 = vpack.c.b16 %v10225, %v10225
        %v10236 = vpack.c.b16 %v10226, %v10226
        %v10237 = vpack.c.b16 %v10227, %v10227
        %v10238 = vpack.c.b16 %v10228, %v10228
        %v10240 = vunpack.c.l.b16 %v10213
        %v10241 = vpack.c.b16 %v10240, %v10240
        %10242 = vrot.lane.b32.xlu0 %v10229, 127
        %v10243 = vpop.permute.xlu0 %10242
        %10244 = vrot.lane.b32.xlu0 %v10230, 127
        %v10245 = vpop.permute.xlu0 %10244
        %10246 = vrot.lane.b32.xlu0 %v10231, 127
        %v10247 = vpop.permute.xlu0 %10246
        %10248 = vrot.lane.b32.xlu0 %v10232, 127
        %v10249 = vpop.permute.xlu0 %10248
        %10250 = vrot.lane.b32.xlu0 %v10233, 127
        %v10251 = vpop.permute.xlu0 %10250
        %10252 = vrot.lane.b32.xlu0 %v10234, 127
        %v10253 = vpop.permute.xlu0 %10252
        %10254 = vrot.lane.b32.xlu0 %v10235, 127
        %v10255 = vpop.permute.xlu0 %10254
        %10256 = vrot.lane.b32.xlu0 %v10236, 127
        %v10257 = vpop.permute.xlu0 %10256
        %10258 = vrot.lane.b32.xlu0 %v10237, 127
        %v10259 = vpop.permute.xlu0 %10258
        %10260 = vrot.lane.b32.xlu0 %v10238, 127
        %v10261 = vpop.permute.xlu0 %10260
        %10262 = vrot.lane.b32.xlu0 %v10241, 127
        %v10263 = vpop.permute.xlu0 %10262
        %v10264 = vsel %vm497, %v10243, %v10245
        %v10265 = vsel %vm497, %v10245, %v10247
        %v10266 = vsel %vm497, %v10247, %v10249
        %v10267 = vsel %vm497, %v10249, %v10251
        %v10268 = vsel %vm497, %v10251, %v10253
        %v10269 = vsel %vm497, %v10253, %v10255
        %v10270 = vsel %vm497, %v10255, %v10257
        %v10271 = vsel %vm497, %v10257, %v10259
        %v10272 = vsel %vm497, %v10259, %v10261
        %v10273 = vsel %vm497, %v10261, %v10263
        %10274 = vrot.lane.b32.xlu0 %v10229, 126
        %v10275 = vpop.permute.xlu0 %10274
        %10276 = vrot.lane.b32.xlu0 %v10230, 126
        %v10277 = vpop.permute.xlu0 %10276
        %10278 = vrot.lane.b32.xlu0 %v10231, 126
        %v10279 = vpop.permute.xlu0 %10278
        %10280 = vrot.lane.b32.xlu0 %v10232, 126
        %v10281 = vpop.permute.xlu0 %10280
        %10282 = vrot.lane.b32.xlu0 %v10233, 126
        %v10283 = vpop.permute.xlu0 %10282
        %10284 = vrot.lane.b32.xlu0 %v10234, 126
        %v10285 = vpop.permute.xlu0 %10284
        %10286 = vrot.lane.b32.xlu0 %v10235, 126
        %v10287 = vpop.permute.xlu0 %10286
        %10288 = vrot.lane.b32.xlu0 %v10236, 126
        %v10289 = vpop.permute.xlu0 %10288
        %10290 = vrot.lane.b32.xlu0 %v10237, 126
        %v10291 = vpop.permute.xlu0 %10290
        %10292 = vrot.lane.b32.xlu0 %v10238, 126
        %v10293 = vpop.permute.xlu0 %10292
        %10294 = vrot.lane.b32.xlu0 %v10241, 126
        %v10295 = vpop.permute.xlu0 %10294
        %v10296 = vsel %vm503, %v10275, %v10277
        %v10297 = vsel %vm503, %v10277, %v10279
        %v10298 = vsel %vm503, %v10279, %v10281
        %v10299 = vsel %vm503, %v10281, %v10283
        %v10300 = vsel %vm503, %v10283, %v10285
        %v10301 = vsel %vm503, %v10285, %v10287
        %v10302 = vsel %vm503, %v10287, %v10289
        %v10303 = vsel %vm503, %v10289, %v10291
        %v10304 = vsel %vm503, %v10291, %v10293
        %v10305 = vsel %vm503, %v10293, %v10295
        %10306 = vrot.lane.b32.xlu0 %v10229, 94
        %v10307 = vpop.permute.xlu0 %10306
        %10308 = vrot.lane.b32.xlu0 %v10230, 94
        %v10309 = vpop.permute.xlu0 %10308
        %10310 = vrot.lane.b32.xlu0 %v10231, 94
        %v10311 = vpop.permute.xlu0 %10310
        %10312 = vrot.lane.b32.xlu0 %v10232, 94
        %v10313 = vpop.permute.xlu0 %10312
        %10314 = vrot.lane.b32.xlu0 %v10233, 94
        %v10315 = vpop.permute.xlu0 %10314
        %10316 = vrot.lane.b32.xlu0 %v10234, 94
        %v10317 = vpop.permute.xlu0 %10316
        %10318 = vrot.lane.b32.xlu0 %v10235, 94
        %v10319 = vpop.permute.xlu0 %10318
        %10320 = vrot.lane.b32.xlu0 %v10236, 94
        %v10321 = vpop.permute.xlu0 %10320
        %10322 = vrot.lane.b32.xlu0 %v10237, 94
        %v10323 = vpop.permute.xlu0 %10322
        %10324 = vrot.lane.b32.xlu0 %v10238, 94
        %v10325 = vpop.permute.xlu0 %10324
        %10326 = vrot.lane.b32.xlu0 %v10241, 94
        %v10327 = vpop.permute.xlu0 %10326
        %vm10328 = vcmask 769024
        %v10329 = vsel %vm10328, %v10307, %v10309
        %v10330 = vsel %vm10328, %v10309, %v10311
        %v10331 = vsel %vm10328, %v10311, %v10313
        %v10332 = vsel %vm10328, %v10313, %v10315
        %v10333 = vsel %vm10328, %v10315, %v10317
        %v10334 = vsel %vm10328, %v10317, %v10319
        %v10335 = vsel %vm10328, %v10319, %v10321
        %v10336 = vsel %vm10328, %v10321, %v10323
        %v10337 = vsel %vm10328, %v10323, %v10325
        %v10338 = vsel %vm10328, %v10325, %v10327
        %10339 = vrot.lane.b32.xlu0 %v10229, 93
        %v10340 = vpop.permute.xlu0 %10339
        %10341 = vrot.lane.b32.xlu0 %v10230, 93
        %v10342 = vpop.permute.xlu0 %10341
        %10343 = vrot.lane.b32.xlu0 %v10231, 93
        %v10344 = vpop.permute.xlu0 %10343
        %10345 = vrot.lane.b32.xlu0 %v10232, 93
        %v10346 = vpop.permute.xlu0 %10345
        %10347 = vrot.lane.b32.xlu0 %v10233, 93
        %v10348 = vpop.permute.xlu0 %10347
        %10349 = vrot.lane.b32.xlu0 %v10234, 93
        %v10350 = vpop.permute.xlu0 %10349
        %10351 = vrot.lane.b32.xlu0 %v10235, 93
        %v10352 = vpop.permute.xlu0 %10351
        %10353 = vrot.lane.b32.xlu0 %v10236, 93
        %v10354 = vpop.permute.xlu0 %10353
        %10355 = vrot.lane.b32.xlu0 %v10237, 93
        %v10356 = vpop.permute.xlu0 %10355
        %10357 = vrot.lane.b32.xlu0 %v10238, 93
        %v10358 = vpop.permute.xlu0 %10357
        %10359 = vrot.lane.b32.xlu0 %v10241, 93
        %v10360 = vpop.permute.xlu0 %10359
        %vm10361 = vcmask 760832
        %v10362 = vsel %vm10361, %v10340, %v10342
        %v10363 = vsel %vm10361, %v10342, %v10344
        %v10364 = vsel %vm10361, %v10344, %v10346
        %v10365 = vsel %vm10361, %v10346, %v10348
        %v10366 = vsel %vm10361, %v10348, %v10350
        %v10367 = vsel %vm10361, %v10350, %v10352
        %v10368 = vsel %vm10361, %v10352, %v10354
        %v10369 = vsel %vm10361, %v10354, %v10356
        %v10370 = vsel %vm10361, %v10356, %v10358
        %v10371 = vsel %vm10361, %v10358, %v10360
        %10372 = vrot.lane.b32.xlu0 %v10229, 92
        %v10373 = vpop.permute.xlu0 %10372
        %10374 = vrot.lane.b32.xlu0 %v10230, 92
        %v10375 = vpop.permute.xlu0 %10374
        %10376 = vrot.lane.b32.xlu0 %v10231, 92
        %v10377 = vpop.permute.xlu0 %10376
        %10378 = vrot.lane.b32.xlu0 %v10232, 92
        %v10379 = vpop.permute.xlu0 %10378
        %10380 = vrot.lane.b32.xlu0 %v10233, 92
        %v10381 = vpop.permute.xlu0 %10380
        %10382 = vrot.lane.b32.xlu0 %v10234, 92
        %v10383 = vpop.permute.xlu0 %10382
        %10384 = vrot.lane.b32.xlu0 %v10235, 92
        %v10385 = vpop.permute.xlu0 %10384
        %10386 = vrot.lane.b32.xlu0 %v10236, 92
        %v10387 = vpop.permute.xlu0 %10386
        %10388 = vrot.lane.b32.xlu0 %v10237, 92
        %v10389 = vpop.permute.xlu0 %10388
        %10390 = vrot.lane.b32.xlu0 %v10238, 92
        %v10391 = vpop.permute.xlu0 %10390
        %10392 = vrot.lane.b32.xlu0 %v10241, 92
        %v10393 = vpop.permute.xlu0 %10392
        %v10394 = vsel %vm1693, %v10373, %v10375
        %v10395 = vsel %vm1693, %v10375, %v10377
        %v10396 = vsel %vm1693, %v10377, %v10379
        %v10397 = vsel %vm1693, %v10379, %v10381
        %v10398 = vsel %vm1693, %v10381, %v10383
        %v10399 = vsel %vm1693, %v10383, %v10385
        %v10400 = vsel %vm1693, %v10385, %v10387
        %v10401 = vsel %vm1693, %v10387, %v10389
        %v10402 = vsel %vm1693, %v10389, %v10391
        %v10403 = vsel %vm1693, %v10391, %v10393
        %10404 = vrot.lane.b32.xlu0 %v10229, 60
        %v10405 = vpop.permute.xlu0 %10404
        %10406 = vrot.lane.b32.xlu0 %v10230, 60
        %v10407 = vpop.permute.xlu0 %10406
        %10408 = vrot.lane.b32.xlu0 %v10231, 60
        %v10409 = vpop.permute.xlu0 %10408
        %10410 = vrot.lane.b32.xlu0 %v10232, 60
        %v10411 = vpop.permute.xlu0 %10410
        %10412 = vrot.lane.b32.xlu0 %v10233, 60
        %v10413 = vpop.permute.xlu0 %10412
        %10414 = vrot.lane.b32.xlu0 %v10234, 60
        %v10415 = vpop.permute.xlu0 %10414
        %10416 = vrot.lane.b32.xlu0 %v10235, 60
        %v10417 = vpop.permute.xlu0 %10416
        %10418 = vrot.lane.b32.xlu0 %v10236, 60
        %v10419 = vpop.permute.xlu0 %10418
        %10420 = vrot.lane.b32.xlu0 %v10237, 60
        %v10421 = vpop.permute.xlu0 %10420
        %10422 = vrot.lane.b32.xlu0 %v10238, 60
        %v10423 = vpop.permute.xlu0 %10422
        %10424 = vrot.lane.b32.xlu0 %v10241, 60
        %v10425 = vpop.permute.xlu0 %10424
        %vm10426 = vcmask 490496
        %v10427 = vsel %vm10426, %v10405, %v10407
        %v10428 = vsel %vm10426, %v10407, %v10409
        %v10429 = vsel %vm10426, %v10409, %v10411
        %v10430 = vsel %vm10426, %v10411, %v10413
        %v10431 = vsel %vm10426, %v10413, %v10415
        %v10432 = vsel %vm10426, %v10415, %v10417
        %v10433 = vsel %vm10426, %v10417, %v10419
        %v10434 = vsel %vm10426, %v10419, %v10421
        %v10435 = vsel %vm10426, %v10421, %v10423
        %v10436 = vsel %vm10426, %v10423, %v10425
        %10437 = vrot.lane.b32.xlu0 %v10229, 59
        %v10438 = vpop.permute.xlu0 %10437
        %10439 = vrot.lane.b32.xlu0 %v10230, 59
        %v10440 = vpop.permute.xlu0 %10439
        %10441 = vrot.lane.b32.xlu0 %v10231, 59
        %v10442 = vpop.permute.xlu0 %10441
        %10443 = vrot.lane.b32.xlu0 %v10232, 59
        %v10444 = vpop.permute.xlu0 %10443
        %10445 = vrot.lane.b32.xlu0 %v10233, 59
        %v10446 = vpop.permute.xlu0 %10445
        %10447 = vrot.lane.b32.xlu0 %v10234, 59
        %v10448 = vpop.permute.xlu0 %10447
        %10449 = vrot.lane.b32.xlu0 %v10235, 59
        %v10450 = vpop.permute.xlu0 %10449
        %10451 = vrot.lane.b32.xlu0 %v10236, 59
        %v10452 = vpop.permute.xlu0 %10451
        %10453 = vrot.lane.b32.xlu0 %v10237, 59
        %v10454 = vpop.permute.xlu0 %10453
        %10455 = vrot.lane.b32.xlu0 %v10238, 59
        %v10456 = vpop.permute.xlu0 %10455
        %10457 = vrot.lane.b32.xlu0 %v10241, 59
        %v10458 = vpop.permute.xlu0 %10457
        %vm10459 = vcmask 482304
        %v10460 = vsel %vm10459, %v10438, %v10440
        %v10461 = vsel %vm10459, %v10440, %v10442
        %v10462 = vsel %vm10459, %v10442, %v10444
        %v10463 = vsel %vm10459, %v10444, %v10446
        %v10464 = vsel %vm10459, %v10446, %v10448
        %v10465 = vsel %vm10459, %v10448, %v10450
        %v10466 = vsel %vm10459, %v10450, %v10452
        %v10467 = vsel %vm10459, %v10452, %v10454
        %v10468 = vsel %vm10459, %v10454, %v10456
        %v10469 = vsel %vm10459, %v10456, %v10458
        %10470 = vrot.lane.b32.xlu0 %v10229, 58
        %v10471 = vpop.permute.xlu0 %10470
        %10472 = vrot.lane.b32.xlu0 %v10230, 58
        %v10473 = vpop.permute.xlu0 %10472
        %10474 = vrot.lane.b32.xlu0 %v10231, 58
        %v10475 = vpop.permute.xlu0 %10474
        %10476 = vrot.lane.b32.xlu0 %v10232, 58
        %v10477 = vpop.permute.xlu0 %10476
        %10478 = vrot.lane.b32.xlu0 %v10233, 58
        %v10479 = vpop.permute.xlu0 %10478
        %10480 = vrot.lane.b32.xlu0 %v10234, 58
        %v10481 = vpop.permute.xlu0 %10480
        %10482 = vrot.lane.b32.xlu0 %v10235, 58
        %v10483 = vpop.permute.xlu0 %10482
        %10484 = vrot.lane.b32.xlu0 %v10236, 58
        %v10485 = vpop.permute.xlu0 %10484
        %10486 = vrot.lane.b32.xlu0 %v10237, 58
        %v10487 = vpop.permute.xlu0 %10486
        %10488 = vrot.lane.b32.xlu0 %v10238, 58
        %v10489 = vpop.permute.xlu0 %10488
        %10490 = vrot.lane.b32.xlu0 %v10241, 58
        %v10491 = vpop.permute.xlu0 %10490
        %vm10492 = vcmask 474112
        %v10493 = vsel %vm10492, %v10471, %v10473
        %v10494 = vsel %vm10492, %v10473, %v10475
        %v10495 = vsel %vm10492, %v10475, %v10477
        %v10496 = vsel %vm10492, %v10477, %v10479
        %v10497 = vsel %vm10492, %v10479, %v10481
        %v10498 = vsel %vm10492, %v10481, %v10483
        %v10499 = vsel %vm10492, %v10483, %v10485
        %v10500 = vsel %vm10492, %v10485, %v10487
        %v10501 = vsel %vm10492, %v10487, %v10489
        %v10502 = vsel %vm10492, %v10489, %v10491
        %v10505 = vsel %vm541, %v10229, %v10264
        %v10509 = vsel %vm541, %v10230, %v10265
        %v10513 = vsel %vm541, %v10231, %v10266
        %v10517 = vsel %vm541, %v10232, %v10267
        %v10521 = vsel %vm541, %v10233, %v10268
        %v10525 = vsel %vm541, %v10234, %v10269
        %v10529 = vsel %vm541, %v10235, %v10270
        %v10533 = vsel %vm541, %v10236, %v10271
        %v10537 = vsel %vm541, %v10237, %v10272
        %v10541 = vsel %vm541, %v10238, %v10273
        %v10545 = vsel %vm541, %v10296, %v10329
        %v10549 = vsel %vm541, %v10297, %v10330
        %v10553 = vsel %vm541, %v10298, %v10331
        %v10557 = vsel %vm541, %v10299, %v10332
        %v10561 = vsel %vm541, %v10300, %v10333
        %v10565 = vsel %vm541, %v10301, %v10334
        %v10569 = vsel %vm541, %v10302, %v10335
        %v10573 = vsel %vm541, %v10303, %v10336
        %v10577 = vsel %vm541, %v10304, %v10337
        %v10581 = vsel %vm541, %v10305, %v10338
        %v10585 = vsel %vm541, %v10362, %v10394
        %v10589 = vsel %vm541, %v10363, %v10395
        %v10593 = vsel %vm541, %v10364, %v10396
        %v10597 = vsel %vm541, %v10365, %v10397
        %v10601 = vsel %vm541, %v10366, %v10398
        %v10605 = vsel %vm541, %v10367, %v10399
        %v10609 = vsel %vm541, %v10368, %v10400
        %v10613 = vsel %vm541, %v10369, %v10401
        %v10617 = vsel %vm541, %v10370, %v10402
        %v10621 = vsel %vm541, %v10371, %v10403
        %v10625 = vsel %vm541, %v10427, %v10460
        %v10629 = vsel %vm541, %v10428, %v10461
        %v10633 = vsel %vm541, %v10429, %v10462
        %v10637 = vsel %vm541, %v10430, %v10463
        %v10641 = vsel %vm541, %v10431, %v10464
        %v10645 = vsel %vm541, %v10432, %v10465
        %v10649 = vsel %vm541, %v10433, %v10466
        %v10653 = vsel %vm541, %v10434, %v10467
        %v10657 = vsel %vm541, %v10435, %v10468
        %v10661 = vsel %vm541, %v10436, %v10469
        %v10664 = vsel %vm541, %v10493, 0
        %v10667 = vsel %vm541, %v10494, 0
        %v10670 = vsel %vm541, %v10495, 0
        %v10673 = vsel %vm541, %v10496, 0
        %v10676 = vsel %vm541, %v10497, 0
        %v10679 = vsel %vm541, %v10498, 0
        %v10682 = vsel %vm541, %v10499, 0
        %v10685 = vsel %vm541, %v10500, 0
        %v10688 = vsel %vm541, %v10501, 0
        %v10691 = vsel %vm541, %v10502, 0
        %v10693 = vld [vmem:[%s8] sm:$0xf]
        %v10694 = vld [vmem:[%s8 + $0x4] sm:$0xf]
        %v10695 = vld [vmem:[%s9] sm:$0xff]
        %v10696 = vld [vmem:[%s9 + $0x8] sm:$0xff]
        %10698 = vset.pattern.permute.xlu0 0
        %10699 = vperm.xlu0 %10698, %v10695
        %v10700 = vpop.permute.xlu0 %10699
        %10703 = vset.pattern.permute.xlu0 0
        %10704 = vperm.xlu0 %10703, %v10696
        %v10705 = vpop.permute.xlu0 %10704
        %v10709 = vunpack.c.l.b16 %v10693
        %v10710 = vunpack.c.l.b16 %v10694
        %v10711 = vpack.c.b16 %v10710, %v10709
        %10713 = vmatpush.bf16.msra.mxu0 0
        %10714 = vmatpush.bf16.msra.mxu0 0
        %10715 = vmatpush.bf16.msra.mxu0 0
        %10716 = vmatpush.bf16.msra.mxu0 %v10664
        %10717 = vmatpush.bf16.msra.mxu0 %v10625
        %10718 = vmatpush.bf16.msra.mxu0 %v10585
        %10719 = vmatpush.bf16.msra.mxu0 %v10545
        %10720 = vmatpush.bf16.msra.mxu0 %v10505
        %10721 = vmatmul.bf16.gmra.mxu0 %v10711
        %v10722 = vpop.f32.mrf.mxu0
        %v10723 = vadd.f32 %v10700, %v10722
        %v10724 = vpop.f32.mrf.mxu0
        %v10725 = vadd.f32 %v10705, %v10724
        %10726 = vdwg.mxu0
        %10727 = vmatpush.bf16.msra.mxu0 0
        %10728 = vmatpush.bf16.msra.mxu0 0
        %10729 = vmatpush.bf16.msra.mxu0 0
        %10730 = vmatpush.bf16.msra.mxu0 %v10667
        %10731 = vmatpush.bf16.msra.mxu0 %v10629
        %10732 = vmatpush.bf16.msra.mxu0 %v10589
        %10733 = vmatpush.bf16.msra.mxu0 %v10549
        %10734 = vmatpush.bf16.msra.mxu0 %v10509
        %10735 = vmatmul.bf16.gmra.mxu0 %v10711
        %v10736 = vpop.f32.mrf.mxu0
        %v10737 = vadd.f32 %v10700, %v10736
        %v10738 = vpop.f32.mrf.mxu0
        %v10739 = vadd.f32 %v10705, %v10738
        %10740 = vdwg.mxu0
        %10741 = vmatpush.bf16.msra.mxu0 0
        %10742 = vmatpush.bf16.msra.mxu0 0
        %10743 = vmatpush.bf16.msra.mxu0 0
        %10744 = vmatpush.bf16.msra.mxu0 %v10670
        %10745 = vmatpush.bf16.msra.mxu0 %v10633
        %10746 = vmatpush.bf16.msra.mxu0 %v10593
        %10747 = vmatpush.bf16.msra.mxu0 %v10553
        %10748 = vmatpush.bf16.msra.mxu0 %v10513
        %10749 = vmatmul.bf16.gmra.mxu0 %v10711
        %v10750 = vpop.f32.mrf.mxu0
        %v10751 = vadd.f32 %v10700, %v10750
        %v10752 = vpop.f32.mrf.mxu0
        %v10753 = vadd.f32 %v10705, %v10752
        %10754 = vdwg.mxu0
        %10755 = vmatpush.bf16.msra.mxu0 0
        %10756 = vmatpush.bf16.msra.mxu0 0
        %10757 = vmatpush.bf16.msra.mxu0 0
        %10758 = vmatpush.bf16.msra.mxu0 %v10673
        %10759 = vmatpush.bf16.msra.mxu0 %v10637
        %10760 = vmatpush.bf16.msra.mxu0 %v10597
        %10761 = vmatpush.bf16.msra.mxu0 %v10557
        %10762 = vmatpush.bf16.msra.mxu0 %v10517
        %10763 = vmatmul.bf16.gmra.mxu0 %v10711
        %v10764 = vpop.f32.mrf.mxu0
        %v10765 = vadd.f32 %v10700, %v10764
        %v10766 = vpop.f32.mrf.mxu0
        %v10767 = vadd.f32 %v10705, %v10766
        %10768 = vdwg.mxu0
        %10769 = vmatpush.bf16.msra.mxu0 0
        %10770 = vmatpush.bf16.msra.mxu0 0
        %10771 = vmatpush.bf16.msra.mxu0 0
        %10772 = vmatpush.bf16.msra.mxu0 %v10676
        %10773 = vmatpush.bf16.msra.mxu0 %v10641
        %10774 = vmatpush.bf16.msra.mxu0 %v10601
        %10775 = vmatpush.bf16.msra.mxu0 %v10561
        %10776 = vmatpush.bf16.msra.mxu0 %v10521
        %10777 = vmatmul.bf16.gmra.mxu0 %v10711
        %v10778 = vpop.f32.mrf.mxu0
        %v10779 = vadd.f32 %v10700, %v10778
        %v10780 = vpop.f32.mrf.mxu0
        %v10781 = vadd.f32 %v10705, %v10780
        %10782 = vdwg.mxu0
        %10783 = vmatpush.bf16.msra.mxu0 0
        %10784 = vmatpush.bf16.msra.mxu0 0
        %10785 = vmatpush.bf16.msra.mxu0 0
        %10786 = vmatpush.bf16.msra.mxu0 %v10679
        %10787 = vmatpush.bf16.msra.mxu0 %v10645
        %10788 = vmatpush.bf16.msra.mxu0 %v10605
        %10789 = vmatpush.bf16.msra.mxu0 %v10565
        %10790 = vmatpush.bf16.msra.mxu0 %v10525
        %10791 = vmatmul.bf16.gmra.mxu0 %v10711
        %v10792 = vpop.f32.mrf.mxu0
        %v10793 = vadd.f32 %v10700, %v10792
        %v10794 = vpop.f32.mrf.mxu0
        %v10795 = vadd.f32 %v10705, %v10794
        %10796 = vdwg.mxu0
        %10797 = vmatpush.bf16.msra.mxu0 0
        %10798 = vmatpush.bf16.msra.mxu0 0
        %10799 = vmatpush.bf16.msra.mxu0 0
        %10800 = vmatpush.bf16.msra.mxu0 %v10682
        %10801 = vmatpush.bf16.msra.mxu0 %v10649
        %10802 = vmatpush.bf16.msra.mxu0 %v10609
        %10803 = vmatpush.bf16.msra.mxu0 %v10569
        %10804 = vmatpush.bf16.msra.mxu0 %v10529
        %10805 = vmatmul.bf16.gmra.mxu0 %v10711
        %v10806 = vpop.f32.mrf.mxu0
        %v10807 = vadd.f32 %v10700, %v10806
        %v10808 = vpop.f32.mrf.mxu0
        %v10809 = vadd.f32 %v10705, %v10808
        %10810 = vdwg.mxu0
        %10811 = vmatpush.bf16.msra.mxu0 0
        %10812 = vmatpush.bf16.msra.mxu0 0
        %10813 = vmatpush.bf16.msra.mxu0 0
        %10814 = vmatpush.bf16.msra.mxu0 %v10685
        %10815 = vmatpush.bf16.msra.mxu0 %v10653
        %10816 = vmatpush.bf16.msra.mxu0 %v10613
        %10817 = vmatpush.bf16.msra.mxu0 %v10573
        %10818 = vmatpush.bf16.msra.mxu0 %v10533
        %10819 = vmatmul.bf16.gmra.mxu0 %v10711
        %v10820 = vpop.f32.mrf.mxu0
        %v10821 = vadd.f32 %v10700, %v10820
        %v10822 = vpop.f32.mrf.mxu0
        %v10823 = vadd.f32 %v10705, %v10822
        %10824 = vdwg.mxu0
        %10825 = vmatpush.bf16.msra.mxu0 0
        %10826 = vmatpush.bf16.msra.mxu0 0
        %10827 = vmatpush.bf16.msra.mxu0 0
        %10828 = vmatpush.bf16.msra.mxu0 %v10688
        %10829 = vmatpush.bf16.msra.mxu0 %v10657
        %10830 = vmatpush.bf16.msra.mxu0 %v10617
        %10831 = vmatpush.bf16.msra.mxu0 %v10577
        %10832 = vmatpush.bf16.msra.mxu0 %v10537
        %10833 = vmatmul.bf16.gmra.mxu0 %v10711
        %v10834 = vpop.f32.mrf.mxu0
        %v10835 = vadd.f32 %v10700, %v10834
        %v10836 = vpop.f32.mrf.mxu0
        %v10837 = vadd.f32 %v10705, %v10836
        %10838 = vdwg.mxu0
        %10839 = vmatpush.bf16.msra.mxu0 0
        %10840 = vmatpush.bf16.msra.mxu0 0
        %10841 = vmatpush.bf16.msra.mxu0 0
        %10842 = vmatpush.bf16.msra.mxu0 %v10691
        %10843 = vmatpush.bf16.msra.mxu0 %v10661
        %10844 = vmatpush.bf16.msra.mxu0 %v10621
        %10845 = vmatpush.bf16.msra.mxu0 %v10581
        %10846 = vmatpush.bf16.msra.mxu0 %v10541
        %10847 = vmatmul.bf16.gmra.mxu0 %v10711
        %v10848 = vpop.f32.mrf.mxu0
        %v10849 = vadd.f32 %v10700, %v10848
        %v10850 = vpop.f32.mrf.mxu0
        %v10851 = vadd.f32 %v10705, %v10850
        %10852 = vdwg.mxu0
        %v10853 = vmax.f32 %v10723, 0.0
        %v10854 = vmax.f32 %v10737, 0.0
        %v10855 = vmax.f32 %v10751, 0.0
        %v10856 = vmax.f32 %v10765, 0.0
        %v10857 = vmax.f32 %v10779, 0.0
        %v10858 = vmax.f32 %v10793, 0.0
        %v10859 = vmax.f32 %v10807, 0.0
        %v10860 = vmax.f32 %v10821, 0.0
        %v10861 = vmax.f32 %v10835, 0.0
        %v10862 = vmax.f32 %v10849, 0.0
        %v10863 = vmax.f32 %v10725, 0.0
        %v10864 = vmax.f32 %v10739, 0.0
        %v10865 = vmax.f32 %v10753, 0.0
        %v10866 = vmax.f32 %v10767, 0.0
        %v10867 = vmax.f32 %v10781, 0.0
        %v10868 = vmax.f32 %v10795, 0.0
        %v10869 = vmax.f32 %v10809, 0.0
        %v10870 = vmax.f32 %v10823, 0.0
        %v10871 = vmax.f32 %v10837, 0.0
        %v10872 = vmax.f32 %v10851, 0.0
        %10873 = vst [vmem:[%s406] sm:$0xff] %v10853
        %10874 = vst [vmem:[%s406 + $0x8] sm:$0xff] %v10854
        %10875 = vst [vmem:[%s406 + $0x10] sm:$0xff] %v10855
        %10876 = vst [vmem:[%s406 + $0x18] sm:$0xff] %v10856
        %10877 = vst [vmem:[%s406 + $0x20] sm:$0xff] %v10857
        %10878 = vst [vmem:[%s406 + $0x28] sm:$0xff] %v10858
        %10879 = vst [vmem:[%s406 + $0x30] sm:$0xff] %v10859
        %10880 = vst [vmem:[%s406 + $0x38] sm:$0xff] %v10860
        %10881 = vst [vmem:[%s406 + $0x40] sm:$0xff] %v10861
        %10882 = vst [vmem:[%s406 + $0x48] sm:$0xff] %v10862
        %10883 = vst [vmem:[%s406 + $0x50] sm:$0xff] %v10863
        %10884 = vst [vmem:[%s406 + $0x58] sm:$0xff] %v10864
        %10885 = vst [vmem:[%s406 + $0x60] sm:$0xff] %v10865
        %10886 = vst [vmem:[%s406 + $0x68] sm:$0xff] %v10866
        %10887 = vst [vmem:[%s406 + $0x70] sm:$0xff] %v10867
        %10888 = vst [vmem:[%s406 + $0x78] sm:$0xff] %v10868
        %10889 = vst [vmem:[%s406 + $0x80] sm:$0xff] %v10869
        %10890 = vst [vmem:[%s406 + $0x88] sm:$0xff] %v10870
        %10891 = vst [vmem:[%s406 + $0x90] sm:$0xff] %v10871
        %10892 = vst [vmem:[%s406 + $0x98] sm:$0xff] %v10872
        %p10893 = scmp.lt.s32.totalorder %s23, 1
        %s10894 = scalar_select %p10893, %s23, 1
        %s10895 = smul.addr %s10894, 20
        %s10896 = smul.addr %s10895, 8
        %s10897 = scalar_lea.vmem %s10, %s10896
        // Predicated region
        $region73: #{hyperprior_hyper_synthesis.1} parent=59 // pred_check
          %p10898 = pneg %p256
        $region74: #{hyperprior_hyper_synthesis.1} parent=59 // pred_check_branch
          %10900 = sbr.rel (%p10898) target = $region76
        $region75: #{hyperprior_hyper_synthesis.1} parent=59 // pred_region
          _
        $region76: #{hyperprior_hyper_synthesis.1} parent=59 // pred_fallthru
          _
      $region60: #{hyperprior_hyper_synthesis.1} parent=5 // pred_fallthru
        _
      %p10901 = scmp.le.s32.totalorder 2, %s18
      // Predicated region
      $region77: #{hyperprior_hyper_synthesis.1} parent=5 // pred_check
        %p10902 = pneg %p10901
      $region78: #{hyperprior_hyper_synthesis.1} parent=5 // pred_check_branch
        %10904 = sbr.rel (%p10902) target = $region80
      $region79: #{hyperprior_hyper_synthesis.1} parent=5 // pred_region
        %s10905 = ssub.s32 %s18, 2
        // Predicated region
        $region81: #{hyperprior_hyper_synthesis.1} parent=79 // pred_check
          %p10906 = pneg %p262
        $region82: #{hyperprior_hyper_synthesis.1} parent=79 // pred_check_branch
          %10908 = sbr.rel (%p10906) target = $region84
        $region83: #{hyperprior_hyper_synthesis.1} parent=79 // pred_region
          %p10909 = scmp.lt.s32.totalorder %s24, 1
          %s10910 = scalar_select %p10909, %s24, 1
          %s10911 = smul.addr %s10910, 20
          %s10912 = smul.addr %s10911, 8
          %s10913 = scalar_lea.vmem %s10, %s10912
        $region84: #{hyperprior_hyper_synthesis.1} parent=79 // pred_fallthru
          _
      $region80: #{hyperprior_hyper_synthesis.1} parent=5 // pred_fallthru
        _
    $region6: #{hyperprior_hyper_synthesis.1} parent=1 // loop_footer
      %s22 = sadd.s32 1, %s18
    $region7: #{hyperprior_hyper_synthesis.1} parent=1 // loop_footer_branch
      %17 = sbr.rel target = $region3
    $region8: #{hyperprior_hyper_synthesis.1} parent=1 // loop_exit
      _
    %10914 = vsyncpa [#allocation3], 1
    %s10915 = scalar_lea.sflag [#allocation3], 1
    %10916 = vsyncpa %s10915, 1
    %10917 = vsyncpa [#allocation5], 1

</llo_original>
